<compile_context>
chip_gen: v5e
topology: v5e:2x2
jax: 0.10.0
libtpu: 0.0.40
codegen_flags: <defaults>
</compile_context>

<pallas_src>
import functools

import jax
import jax.numpy as jnp
from jax.experimental import pallas as pl
from jax.experimental.pallas import tpu as pltpu


def _round_up(x, m):
    return (x + m - 1) // m * m


@functools.lru_cache(maxsize=None)
def _vmem_limit_bytes():
    """Generation-aware scoped-VMEM limit."""
    cap = 64 * 1024 * 1024
    try:
        cap = int(pltpu.get_tpu_info().vmem_capacity_bytes)
    except Exception:
        pass
    return min(int(cap * 0.6), 96 * 1024 * 1024)


def _proj_kernel(h_ref, w_ref, fe_ref):
    """Fused projection for all heads + folded ones / attention-score columns.

    h_ref  : (TM, In+1)      bf16 row tile of node features (last col == 1)
    w_ref  : (In+1, FA_pad)  bf16 [per-head [W_h | e_one] | w_el | w_er | 0-pad]
    fe_ref : (TM, FA_pad)    bf16 per-head [f_h | 1], then el, er (lane-dense)
    """
    fe_ref[...] = jnp.dot(h_ref[...], w_ref[...],
                          preferred_element_type=jnp.float32).astype(fe_ref.dtype)


def _attn_kernel(fe_ref, elt_ref, er_ref, b_ref, mask_ref, o_ref, m_sc, acc_sc, *,
                 num_heads, head_dim, neg_slope, apply_act):
    """Online-softmax edge attention for one (dst-row tile, src-col tile) step.

    fe_ref   : (TN, FA_pad) bf16  per-head [f_h | 1] source features
    elt_ref  : (H, TN)  f32  source attention scores, pre-transposed
    er_ref   : (TM, H)  f32  destination attention scores
    b_ref    : (1, HD_pad) f32 bias (zero padded)
    mask_ref : (TM, TN) int8 adjacency tile (1 = edge dst<-src)
    o_ref    : (TM, HD_pad)  output tile (written on the last src step)
    m_sc     : (TM, H)       f32 running max
    acc_sc   : (TM, H*(D+1)) f32 fused [aggregate | denominator] accumulator
    """
    H, D = num_heads, head_dim
    D1 = D + 1
    j = pl.program_id(1)

    @pl.when(j == 0)
    def _():
        m_sc[...] = jnp.full(m_sc.shape, -1e30, m_sc.dtype)
        acc_sc[...] = jnp.zeros(acc_sc.shape, acc_sc.dtype)

    fe = fe_ref[...]                                   # (TN, FA_pad) bf16
    el = elt_ref[...]                                  # (H, TN)
    er = er_ref[...]                                   # (TM, H)
    maskf = mask_ref[...].astype(jnp.float32)          # (TM, TN) in {0, 1}
    negb = (maskf - 1.0) * 1e30                        # 0 edge / -1e30 non-edge
    m_prev = m_sc[...]                                 # (TM, H)
    acc_prev = acc_sc[...]                             # (TM, H*(D+1))

    new_m, new_acc = [], []
    for hh in range(H):
        # e[dst, src] = leaky_relu(er[dst] + el[src]), non-edges pushed to -1e30
        s = er[:, hh:hh + 1] + el[hh:hh + 1, :]        # (TM, TN)
        s = jnp.where(s > 0.0, s, neg_slope * s)
        s = s + negb
        mp = m_prev[:, hh:hh + 1]
        mn = jnp.maximum(mp, jnp.max(s, axis=1, keepdims=True))
        # masked unnormalised probabilities (multiplicative zero is exact here)
        p = jnp.exp(s - mn) * maskf                    # (TM, TN)
        alpha = jnp.exp(mp - mn)                       # (TM, 1)
        # one matmul yields both the aggregate and the denominator: [agg | den]
        part = jnp.dot(p.astype(jnp.bfloat16), fe[:, hh * D1:(hh + 1) * D1],
                       preferred_element_type=jnp.float32)   # (TM, D+1)
        new_acc.append(alpha * acc_prev[:, hh * D1:(hh + 1) * D1] + part)
        new_m.append(mn)
    m_sc[...] = jnp.concatenate(new_m, axis=1)
    acc_sc[...] = jnp.concatenate(new_acc, axis=1)

    @pl.when(j == pl.num_programs(1) - 1)
    def _():
        acc = acc_sc[...]
        rows = acc.shape[0]
        outs = []
        for hh in range(H):
            num = acc[:, hh * D1:hh * D1 + D]
            den = acc[:, hh * D1 + D:(hh + 1) * D1]
            outs.append(num * pl.reciprocal(den, approx=True))
        pad = o_ref.shape[1] - H * D
        if pad:
            outs.append(jnp.zeros((rows, pad), jnp.float32))
        out = jnp.concatenate(outs, axis=1) + b_ref[...]      # (TM, HD_pad)
        if apply_act:
            # ELU(alpha=1); clamp before exp so no transient inf
            out = jnp.where(out > 0.0, out, jnp.exp(jnp.minimum(out, 0.0)) - 1.0)
        o_ref[...] = out.astype(o_ref.dtype)


def gat_conv(h, params, mask_i8, apply_act, out_dtype, *, tile_m=128, tile_n=128):
    """One GATConv layer on padded inputs.

    h       : (N_pad, In_h) bf16, In_h >= W.shape[0] (extra columns are zero)
    mask_i8 : (N_pad, N_pad) int8 adjacency, mask[dst, src] == 1 for an edge
    returns : (N_pad, HD_pad) out_dtype, head-major (== torch .flatten(1)),
              zero-padded beyond the first H*D columns.
    """
    W, attn_l, attn_r, bias = params   # W: (In, H*D), attn_*: (H, D), bias: (H*D,)
    In = W.shape[0]
    H, D = attn_l.shape
    HD = H * D
    D1 = D + 1
    HD1 = H * D1
    FA = HD1 + 2 * H
    FA_pad = _round_up(FA, 128)
    HD_pad = _round_up(HD, 128)

    N_pad, In_h = h.shape
    assert In_h >= In
    tm = min(tile_m, N_pad)
    tn = min(tile_n, N_pad)
    assert N_pad % tm == 0 and N_pad % tn == 0, (N_pad, tm, tn)
    n_i, n_j = N_pad // tm, N_pad // tn
    vmem_limit = _vmem_limit_bytes()

    # --- augmented projection weight: per head [W_h | e_one], then el/er ----
    W3 = W.reshape(In, H, D)
    w_el = jnp.einsum('ihd,hd->ih', W3, attn_l)        # (In, H)
    w_er = jnp.einsum('ihd,hd->ih', W3, attn_r)        # (In, H)
    Wf = jnp.concatenate([W3, jnp.zeros((In, H, 1), W.dtype)], axis=-1)
    Wf = Wf.reshape(In, HD1)
    W_top = jnp.concatenate([Wf, w_el, w_er], axis=1)  # (In, FA)
    one_row = jnp.concatenate(
        [jnp.zeros((1, H, D), W.dtype), jnp.ones((1, H, 1), W.dtype)], axis=-1
    ).reshape(1, HD1)
    one_row = jnp.concatenate([one_row, jnp.zeros((1, 2 * H), W.dtype)], axis=1)
    blocks = [W_top]
    if In_h > In:   # zero rows matching the (zero) lane padding of the prev layer
        blocks.append(jnp.zeros((In_h - In, FA), W.dtype))
    blocks.append(one_row)                             # row for the ones column of h
    W_aug = jnp.concatenate(blocks, axis=0)            # (In_h + 1, FA)
    W_aug = jnp.pad(W_aug, ((0, 0), (0, FA_pad - FA))).astype(jnp.bfloat16)

    h_aug = jnp.concatenate([h, jnp.ones((N_pad, 1), jnp.bfloat16)], axis=1)

    # --- 1) projection: one lane-dense bf16 matmul for all heads ------------
    fe = pl.pallas_call(
        _proj_kernel,
        out_shape=jax.ShapeDtypeStruct((N_pad, FA_pad), jnp.bfloat16),
        grid=(n_i,),
        in_specs=[
            pl.BlockSpec((tm, In_h + 1), lambda i: (i, 0)),
            pl.BlockSpec((In_h + 1, FA_pad), lambda i: (0, 0)),   # resident
        ],
        out_specs=pl.BlockSpec((tm, FA_pad), lambda i: (i, 0)),
        compiler_params=pltpu.CompilerParams(
            dimension_semantics=("parallel",),
            vmem_limit_bytes=vmem_limit),
        cost_estimate=pl.CostEstimate(
            flops=2 * N_pad * (In_h + 1) * FA_pad,
            transcendentals=0,
            bytes_accessed=2 * (N_pad * (In_h + 1) + (In_h + 1) * FA_pad
                                + N_pad * FA_pad)),
    )(h_aug, W_aug)

    # hoisted source/dest scores (no per-tile XLU transpose in the kernel)
    el_t = fe[:, HD1:HD1 + H].astype(jnp.float32).T         # (H, N_pad)
    er = fe[:, HD1 + H:HD1 + 2 * H].astype(jnp.float32)     # (N_pad, H)
    bias_pad = jnp.pad(bias.reshape(1, HD).astype(jnp.float32),
                       ((0, 0), (0, HD_pad - HD)))

    # --- 2) online-softmax edge attention + aggregation ---------------------
    kernel = functools.partial(_attn_kernel, num_heads=H, head_dim=D,
                               neg_slope=0.2, apply_act=apply_act)
    out_bytes = jnp.dtype(out_dtype).itemsize
    out = pl.pallas_call(
        kernel,
        out_shape=jax.ShapeDtypeStruct((N_pad, HD_pad), out_dtype),
        grid=(n_i, n_j),
        in_specs=[
            pl.BlockSpec((tn, FA_pad), lambda i, j: (j, 0)),   # source features
            pl.BlockSpec((H, tn), lambda i, j: (0, j)),        # el^T
            pl.BlockSpec((tm, H), lambda i, j: (i, 0)),        # er
            pl.BlockSpec((1, HD_pad), lambda i, j: (0, 0)),    # bias
            pl.BlockSpec((tm, tn), lambda i, j: (i, j)),       # int8 mask tile
        ],
        out_specs=pl.BlockSpec((tm, HD_pad), lambda i, j: (i, 0)),
        scratch_shapes=[pltpu.VMEM((tm, H), jnp.float32),
                        pltpu.VMEM((tm, HD1), jnp.float32)],
        compiler_params=pltpu.CompilerParams(
            dimension_semantics=("parallel", "arbitrary"),
            vmem_limit_bytes=vmem_limit),
        cost_estimate=pl.CostEstimate(
            flops=2 * N_pad * N_pad * HD1 + 8 * N_pad * N_pad * H,
            transcendentals=2 * N_pad * N_pad * H,
            bytes_accessed=(n_i * N_pad * FA_pad * 2 + N_pad * N_pad
                            + N_pad * HD_pad * out_bytes)),
    )(fe, el_t, er, bias_pad, mask_i8)
    return out


def gat_forward(params_list, adj, features, *, tile_m=128, tile_n=128):
    """Mirrors GAT.forward: hidden layers flatten heads; final layer means over heads."""
    N = features.shape[0]
    N_pad = _round_up(N, max(128, tile_m, tile_n))

    # int8 adjacency mask (adj[dst, src] > 0 means edge).  Padded rows get a
    # self loop so their (discarded) outputs stay finite through the layers.
    maskf = (adj > 0.0).astype(jnp.float32)
    maskf = jnp.pad(maskf, ((0, N_pad - N), (0, N_pad - N)))
    pad_self = (jnp.arange(N_pad) >= N).astype(jnp.float32)
    maskf = jnp.maximum(maskf, jnp.eye(N_pad, dtype=jnp.float32) * pad_self[:, None])
    mask_i8 = maskf.astype(jnp.int8)

    h = jnp.pad(features, ((0, N_pad - N), (0, 0))).astype(jnp.bfloat16)
    for p in params_list[:-1]:
        # (N_pad, HD_pad) bf16, head-major == torch (N, H, D).flatten(1)
        h = gat_conv(h, p, mask_i8, apply_act=True, out_dtype=jnp.bfloat16,
                     tile_m=tile_m, tile_n=tile_n)
    out = gat_conv(h, params_list[-1], mask_i8, apply_act=False,
                   out_dtype=jnp.float32, tile_m=tile_m, tile_n=tile_n)
    H_last, D_last = params_list[-1][1].shape
    out = out[:N, :H_last * D_last].reshape(N, H_last, D_last)
    return out.mean(axis=1)   # final layer .mean(1) over heads (H_last == 1 here)


def init_gatconv_params(key, in_feats, out_feats, num_heads):
    k1, k2, k3, k4 = jax.random.split(key, 4)
    scale = 1.0 / jnp.sqrt(jnp.float32(in_feats))
    W = jax.random.normal(k1, (in_feats, num_heads * out_feats), jnp.float32) * scale
    attn_l = jax.random.normal(k2, (num_heads, out_feats), jnp.float32) * 0.1
    attn_r = jax.random.normal(k3, (num_heads, out_feats), jnp.float32) * 0.1
    bias = jax.random.normal(k4, (num_heads * out_feats,), jnp.float32) * 0.01
    return W, attn_l, attn_r, bias


if __name__ == "__main__":
    key = jax.random.PRNGKey(0)

    # small shapes consistent with the module
    N = 200           # graph nodes (not a multiple of 128 -> exercises padding)
    in_feats = 48
    n_hidden = 32
    n_classes = 8
    n_layers = 2      # -> 1 + (n_layers - 1) + 1 = 3 GATConv layers total
    num_heads = 4

    # layer dimensions exactly as in GAT.__init__
    dims = [(in_feats, n_hidden, num_heads)]
    for _ in range(n_layers - 1):
        dims.append((n_hidden * num_heads, n_hidden, num_heads))
    dims.append((n_hidden * num_heads, n_classes, 1))

    keys = jax.random.split(key, 2 + len(dims))
    kf, ka, pks = keys[0], keys[1], keys[2:]

    features = jax.random.normal(kf, (N, in_feats), jnp.float32)

    # random sparse graph with self loops (so every node has in-degree >= 1)
    adj_rand = (jax.random.uniform(ka, (N, N)) < 0.05).astype(jnp.float32)
    adj = jnp.maximum(adj_rand, jnp.eye(N, dtype=jnp.float32))  # adj[dst, src]

    params = [init_gatconv_params(pk, fi, fo, nh)
              for (fi, fo, nh), pk in zip(dims, pks)]

    fwd = jax.jit(functools.partial(gat_forward, tile_m=128, tile_n=128))
    out = jax.block_until_ready(fwd(params, adj, features))
    assert out.shape == (N, n_classes), out.shape
    assert out.dtype == jnp.float32
    assert bool(jnp.isfinite(out).all())
    print("KERNEL_OK")
</pallas_src>

<mosaic_0001>
module attributes {stable_mosaic.version = 11 : i64} {
  func.func @_proj_kernel(%arg0: i32, %arg1: memref<128x49xbf16, #tpu.memory_space<vmem>>, %arg2: memref<49x256xbf16, #tpu.memory_space<vmem>>, %arg3: memref<128x256xbf16, #tpu.memory_space<vmem>>) attributes {dimension_semantics = [#tpu.dimension_semantics<parallel>], iteration_bounds = array<i64: 2>, scalar_prefetch = 0 : i64, scratch_operands = 0 : i64, tpu.core_type = #tpu.core_type<tc>, window_params = [{transform_indices = @transform_0, window_bounds = array<i64: 128, 49>}, {pipeline_mode = #tpu.pipeline_mode<synchronous>, transform_indices = @transform_1, window_bounds = array<i64: 49, 256>}, {transform_indices = @transform_2, window_bounds = array<i64: 128, 256>}]} {
    %c0 = arith.constant 0 : index
    %c0_0 = arith.constant 0 : index
    %0 = vector.load %arg1[%c0, %c0_0] : memref<128x49xbf16, #tpu.memory_space<vmem>>, vector<128x49xbf16>
    %c0_1 = arith.constant 0 : index
    %c0_2 = arith.constant 0 : index
    %1 = vector.load %arg2[%c0_1, %c0_2] : memref<49x256xbf16, #tpu.memory_space<vmem>>, vector<49x256xbf16>
    %cst = arith.constant dense<0.000000e+00> : vector<128x256xf32>
    %2 = tpu.matmul %0, %1, %cst {dimension_numbers = #tpu.dot_dimension_numbers<[1], [0], [0], [1], [0, 0, 1, 1], [], []>} : vector<128x49xbf16>, vector<49x256xbf16>, vector<128x256xf32> -> vector<128x256xf32>
    %3 = arith.truncf %2 : vector<128x256xf32> to vector<128x256xbf16>
    %c0_3 = arith.constant 0 : index
    %c0_4 = arith.constant 0 : index
    %4 = vector.load %arg3[%c0_3, %c0_4] : memref<128x256xbf16, #tpu.memory_space<vmem>>, vector<128x256xbf16>
    tpu.vector_store %arg3[%c0_3, %c0_4], %3 {strides = array<i32>} : memref<128x256xbf16, #tpu.memory_space<vmem>>, vector<128x256xbf16>,
    return
  }
  func.func @transform_0(%arg0: i32) -> (i32, i32) {
    %c0_i32 = arith.constant 0 : i32
    %c0_i32_0 = arith.constant 0 : i32
    return %arg0, %c0_i32 : i32, i32
  }
  func.func @transform_1(%arg0: i32) -> (i32, i32) {
    %c0_i32 = arith.constant 0 : i32
    %c0_i32_0 = arith.constant 0 : i32
    %c0_i32_1 = arith.constant 0 : i32
    return %c0_i32, %c0_i32_0 : i32, i32
  }
  func.func @transform_2(%arg0: i32) -> (i32, i32) {
    %c0_i32 = arith.constant 0 : i32
    %c0_i32_0 = arith.constant 0 : i32
    return %arg0, %c0_i32 : i32, i32
  }
}

module attributes {stable_mosaic.version = 11 : i64} {
  func.func @_attn_kernel(%arg0: i32, %arg1: i32, %arg2: memref<128x256xbf16, #tpu.memory_space<vmem>>, %arg3: memref<4x128xf32, #tpu.memory_space<vmem>>, %arg4: memref<128x4xf32, #tpu.memory_space<vmem>>, %arg5: memref<1x128xf32, #tpu.memory_space<vmem>>, %arg6: memref<128x128xi8, #tpu.memory_space<vmem>>, %arg7: memref<128x128xbf16, #tpu.memory_space<vmem>>, %arg8: memref<128x4xf32, #tpu.memory_space<vmem>>, %arg9: memref<128x132xf32, #tpu.memory_space<vmem>>) attributes {dimension_semantics = [#tpu.dimension_semantics<parallel>, #tpu.dimension_semantics<arbitrary>], iteration_bounds = array<i64: 2, 2>, scalar_prefetch = 0 : i64, scratch_operands = 2 : i64, tpu.core_type = #tpu.core_type<tc>, window_params = [{transform_indices = @transform_0, window_bounds = array<i64: 128, 256>}, {transform_indices = @transform_1, window_bounds = array<i64: 4, 128>}, {transform_indices = @transform_2, window_bounds = array<i64: 128, 4>}, {pipeline_mode = #tpu.pipeline_mode<synchronous>, transform_indices = @transform_3, window_bounds = array<i64: 1, 128>}, {transform_indices = @transform_4, window_bounds = array<i64: 128, 128>}, {transform_indices = @transform_5, window_bounds = array<i64: 128, 128>}]} {
    %c0_i32 = arith.constant 0 : i32
    %0 = arith.cmpi eq, %arg1, %c0_i32 : i32
    %1 = arith.extui %0 : i1 to i32
    %c0_i32_0 = arith.constant 0 : i32
    %2 = arith.cmpi ne, %1, %c0_i32_0 : i32
    scf.if %2 {
      %cst_34 = arith.constant -1.000000e+30 : f32
      %133 = vector.broadcast %cst_34 : f32 to vector<128x4xf32>
      %c0_35 = arith.constant 0 : index
      %c0_36 = arith.constant 0 : index
      %134 = vector.load %arg8[%c0_35, %c0_36] : memref<128x4xf32, #tpu.memory_space<vmem>>, vector<128x4xf32>
      tpu.vector_store %arg8[%c0_35, %c0_36], %133 {strides = array<i32>} : memref<128x4xf32, #tpu.memory_space<vmem>>, vector<128x4xf32>,
      %cst_37 = arith.constant 0.000000e+00 : f32
      %135 = vector.broadcast %cst_37 : f32 to vector<128x132xf32>
      %c0_38 = arith.constant 0 : index
      %c0_39 = arith.constant 0 : index
      %136 = vector.load %arg9[%c0_38, %c0_39] : memref<128x132xf32, #tpu.memory_space<vmem>>, vector<128x132xf32>
      tpu.vector_store %arg9[%c0_38, %c0_39], %135 {strides = array<i32>} : memref<128x132xf32, #tpu.memory_space<vmem>>, vector<128x132xf32>,
    } else {
    }
    %c0 = arith.constant 0 : index
    %c0_1 = arith.constant 0 : index
    %3 = vector.load %arg2[%c0, %c0_1] : memref<128x256xbf16, #tpu.memory_space<vmem>>, vector<128x256xbf16>
    %c0_2 = arith.constant 0 : index
    %c0_3 = arith.constant 0 : index
    %4 = vector.load %arg3[%c0_2, %c0_3] : memref<4x128xf32, #tpu.memory_space<vmem>>, vector<4x128xf32>
    %c0_4 = arith.constant 0 : index
    %c0_5 = arith.constant 0 : index
    %5 = vector.load %arg4[%c0_4, %c0_5] : memref<128x4xf32, #tpu.memory_space<vmem>>, vector<128x4xf32>
    %c0_6 = arith.constant 0 : index
    %c0_7 = arith.constant 0 : index
    %6 = vector.load %arg6[%c0_6, %c0_7] : memref<128x128xi8, #tpu.memory_space<vmem>>, vector<128x128xi8>
    %7 = arith.sitofp %6 : vector<128x128xi8> to vector<128x128xf32>
    %cst = arith.constant 1.000000e+00 : f32
    %8 = vector.broadcast %cst : f32 to vector<128x128xf32>
    %9 = arith.subf %7, %8 : vector<128x128xf32>
    %cst_8 = arith.constant 1.000000e+30 : f32
    %10 = vector.broadcast %cst_8 : f32 to vector<128x128xf32>
    %11 = arith.mulf %9, %10 : vector<128x128xf32>
    %c0_9 = arith.constant 0 : index
    %c0_10 = arith.constant 0 : index
    %12 = vector.load %arg8[%c0_9, %c0_10] : memref<128x4xf32, #tpu.memory_space<vmem>>, vector<128x4xf32>
    %c0_11 = arith.constant 0 : index
    %c0_12 = arith.constant 0 : index
    %13 = vector.load %arg9[%c0_11, %c0_12] : memref<128x132xf32, #tpu.memory_space<vmem>>, vector<128x132xf32>
    %14 = vector.extract_strided_slice %5 {offsets = [0, 0], sizes = [128, 1], strides = [1, 1]} : vector<128x4xf32> to vector<128x1xf32>
    %15 = vector.extract_strided_slice %4 {offsets = [0, 0], sizes = [1, 128], strides = [1, 1]} : vector<4x128xf32> to vector<1x128xf32>
    %16 = vector.broadcast %14 : vector<128x1xf32> to vector<128x128xf32>
    %17 = vector.broadcast %15 : vector<1x128xf32> to vector<128x128xf32>
    %18 = arith.addf %16, %17 : vector<128x128xf32>
    %cst_13 = arith.constant 0.000000e+00 : f32
    %19 = vector.broadcast %cst_13 : f32 to vector<128x128xf32>
    %20 = arith.cmpf ogt, %18, %19 : vector<128x128xf32>
    %cst_14 = arith.constant 2.000000e-01 : f32
    %21 = vector.broadcast %cst_14 : f32 to vector<128x128xf32>
    %22 = arith.mulf %21, %18 : vector<128x128xf32>
    %23 = arith.select %20, %18, %22 : vector<128x128xi1>, vector<128x128xf32>
    %24 = arith.addf %23, %11 : vector<128x128xf32>
    %25 = vector.extract_strided_slice %12 {offsets = [0, 0], sizes = [128, 1], strides = [1, 1]} : vector<128x4xf32> to vector<128x1xf32>
    %cst_15 = arith.constant dense<0xFF800000> : vector<128xf32>
    %26 = vector.multi_reduction <maximumf>, %24, %cst_15 [1] : vector<128x128xf32> to vector<128xf32>
    %27 = vector.shape_cast %26 : vector<128xf32> to vector<128x1xf32>
    %28 = arith.maximumf %25, %27 : vector<128x1xf32>
    %29 = vector.broadcast %28 : vector<128x1xf32> to vector<128x128xf32>
    %30 = arith.subf %24, %29 : vector<128x128xf32>
    %31 = math.exp %30 : vector<128x128xf32>
    %32 = arith.mulf %31, %7 : vector<128x128xf32>
    %33 = arith.subf %25, %28 : vector<128x1xf32>
    %34 = math.exp %33 : vector<128x1xf32>
    %35 = arith.truncf %32 : vector<128x128xf32> to vector<128x128xbf16>
    %36 = vector.extract_strided_slice %3 {offsets = [0, 0], sizes = [128, 33], strides = [1, 1]} : vector<128x256xbf16> to vector<128x33xbf16>
    %cst_16 = arith.constant dense<0.000000e+00> : vector<128x33xf32>
    %37 = tpu.matmul %35, %36, %cst_16 {dimension_numbers = #tpu.dot_dimension_numbers<[1], [0], [0], [1], [0, 0, 1, 1], [], []>} : vector<128x128xbf16>, vector<128x33xbf16>, vector<128x33xf32> -> vector<128x33xf32>
    %38 = vector.extract_strided_slice %13 {offsets = [0, 0], sizes = [128, 33], strides = [1, 1]} : vector<128x132xf32> to vector<128x33xf32>
    %39 = vector.broadcast %34 : vector<128x1xf32> to vector<128x33xf32>
    %40 = arith.mulf %39, %38 : vector<128x33xf32>
    %41 = arith.addf %40, %37 : vector<128x33xf32>
    %42 = vector.extract_strided_slice %5 {offsets = [0, 1], sizes = [128, 1], strides = [1, 1]} : vector<128x4xf32> to vector<128x1xf32>
    %43 = vector.extract_strided_slice %4 {offsets = [1, 0], sizes = [1, 128], strides = [1, 1]} : vector<4x128xf32> to vector<1x128xf32>
    %44 = vector.broadcast %42 : vector<128x1xf32> to vector<128x128xf32>
    %45 = vector.broadcast %43 : vector<1x128xf32> to vector<128x128xf32>
    %46 = arith.addf %44, %45 : vector<128x128xf32>
    %cst_17 = arith.constant 0.000000e+00 : f32
    %47 = vector.broadcast %cst_17 : f32 to vector<128x128xf32>
    %48 = arith.cmpf ogt, %46, %47 : vector<128x128xf32>
    %cst_18 = arith.constant 2.000000e-01 : f32
    %49 = vector.broadcast %cst_18 : f32 to vector<128x128xf32>
    %50 = arith.mulf %49, %46 : vector<128x128xf32>
    %51 = arith.select %48, %46, %50 : vector<128x128xi1>, vector<128x128xf32>
    %52 = arith.addf %51, %11 : vector<128x128xf32>
    %53 = vector.extract_strided_slice %12 {offsets = [0, 1], sizes = [128, 1], strides = [1, 1]} : vector<128x4xf32> to vector<128x1xf32>
    %cst_19 = arith.constant dense<0xFF800000> : vector<128xf32>
    %54 = vector.multi_reduction <maximumf>, %52, %cst_19 [1] : vector<128x128xf32> to vector<128xf32>
    %55 = vector.shape_cast %54 : vector<128xf32> to vector<128x1xf32>
    %56 = arith.maximumf %53, %55 : vector<128x1xf32>
    %57 = vector.broadcast %56 : vector<128x1xf32> to vector<128x128xf32>
    %58 = arith.subf %52, %57 : vector<128x128xf32>
    %59 = math.exp %58 : vector<128x128xf32>
    %60 = arith.mulf %59, %7 : vector<128x128xf32>
    %61 = arith.subf %53, %56 : vector<128x1xf32>
    %62 = math.exp %61 : vector<128x1xf32>
    %63 = arith.truncf %60 : vector<128x128xf32> to vector<128x128xbf16>
    %64 = vector.extract_strided_slice %3 {offsets = [0, 33], sizes = [128, 33], strides = [1, 1]} : vector<128x256xbf16> to vector<128x33xbf16>
    %cst_20 = arith.constant dense<0.000000e+00> : vector<128x33xf32>
    %65 = tpu.matmul %63, %64, %cst_20 {dimension_numbers = #tpu.dot_dimension_numbers<[1], [0], [0], [1], [0, 0, 1, 1], [], []>} : vector<128x128xbf16>, vector<128x33xbf16>, vector<128x33xf32> -> vector<128x33xf32>
    %66 = vector.extract_strided_slice %13 {offsets = [0, 33], sizes = [128, 33], strides = [1, 1]} : vector<128x132xf32> to vector<128x33xf32>
    %67 = vector.broadcast %62 : vector<128x1xf32> to vector<128x33xf32>
    %68 = arith.mulf %67, %66 : vector<128x33xf32>
    %69 = arith.addf %68, %65 : vector<128x33xf32>
    %70 = vector.extract_strided_slice %5 {offsets = [0, 2], sizes = [128, 1], strides = [1, 1]} : vector<128x4xf32> to vector<128x1xf32>
    %71 = vector.extract_strided_slice %4 {offsets = [2, 0], sizes = [1, 128], strides = [1, 1]} : vector<4x128xf32> to vector<1x128xf32>
    %72 = vector.broadcast %70 : vector<128x1xf32> to vector<128x128xf32>
    %73 = vector.broadcast %71 : vector<1x128xf32> to vector<128x128xf32>
    %74 = arith.addf %72, %73 : vector<128x128xf32>
    %cst_21 = arith.constant 0.000000e+00 : f32
    %75 = vector.broadcast %cst_21 : f32 to vector<128x128xf32>
    %76 = arith.cmpf ogt, %74, %75 : vector<128x128xf32>
    %cst_22 = arith.constant 2.000000e-01 : f32
    %77 = vector.broadcast %cst_22 : f32 to vector<128x128xf32>
    %78 = arith.mulf %77, %74 : vector<128x128xf32>
    %79 = arith.select %76, %74, %78 : vector<128x128xi1>, vector<128x128xf32>
    %80 = arith.addf %79, %11 : vector<128x128xf32>
    %81 = vector.extract_strided_slice %12 {offsets = [0, 2], sizes = [128, 1], strides = [1, 1]} : vector<128x4xf32> to vector<128x1xf32>
    %cst_23 = arith.constant dense<0xFF800000> : vector<128xf32>
    %82 = vector.multi_reduction <maximumf>, %80, %cst_23 [1] : vector<128x128xf32> to vector<128xf32>
    %83 = vector.shape_cast %82 : vector<128xf32> to vector<128x1xf32>
    %84 = arith.maximumf %81, %83 : vector<128x1xf32>
    %85 = vector.broadcast %84 : vector<128x1xf32> to vector<128x128xf32>
    %86 = arith.subf %80, %85 : vector<128x128xf32>
    %87 = math.exp %86 : vector<128x128xf32>
    %88 = arith.mulf %87, %7 : vector<128x128xf32>
    %89 = arith.subf %81, %84 : vector<128x1xf32>
    %90 = math.exp %89 : vector<128x1xf32>
    %91 = arith.truncf %88 : vector<128x128xf32> to vector<128x128xbf16>
    %92 = vector.extract_strided_slice %3 {offsets = [0, 66], sizes = [128, 33], strides = [1, 1]} : vector<128x256xbf16> to vector<128x33xbf16>
    %cst_24 = arith.constant dense<0.000000e+00> : vector<128x33xf32>
    %93 = tpu.matmul %91, %92, %cst_24 {dimension_numbers = #tpu.dot_dimension_numbers<[1], [0], [0], [1], [0, 0, 1, 1], [], []>} : vector<128x128xbf16>, vector<128x33xbf16>, vector<128x33xf32> -> vector<128x33xf32>
    %94 = vector.extract_strided_slice %13 {offsets = [0, 66], sizes = [128, 33], strides = [1, 1]} : vector<128x132xf32> to vector<128x33xf32>
    %95 = vector.broadcast %90 : vector<128x1xf32> to vector<128x33xf32>
    %96 = arith.mulf %95, %94 : vector<128x33xf32>
    %97 = arith.addf %96, %93 : vector<128x33xf32>
    %98 = vector.extract_strided_slice %5 {offsets = [0, 3], sizes = [128, 1], strides = [1, 1]} : vector<128x4xf32> to vector<128x1xf32>
    %99 = vector.extract_strided_slice %4 {offsets = [3, 0], sizes = [1, 128], strides = [1, 1]} : vector<4x128xf32> to vector<1x128xf32>
    %100 = vector.broadcast %98 : vector<128x1xf32> to vector<128x128xf32>
    %101 = vector.broadcast %99 : vector<1x128xf32> to vector<128x128xf32>
    %102 = arith.addf %100, %101 : vector<128x128xf32>
    %cst_25 = arith.constant 0.000000e+00 : f32
    %103 = vector.broadcast %cst_25 : f32 to vector<128x128xf32>
    %104 = arith.cmpf ogt, %102, %103 : vector<128x128xf32>
    %cst_26 = arith.constant 2.000000e-01 : f32
    %105 = vector.broadcast %cst_26 : f32 to vector<128x128xf32>
    %106 = arith.mulf %105, %102 : vector<128x128xf32>
    %107 = arith.select %104, %102, %106 : vector<128x128xi1>, vector<128x128xf32>
    %108 = arith.addf %107, %11 : vector<128x128xf32>
    %109 = vector.extract_strided_slice %12 {offsets = [0, 3], sizes = [128, 1], strides = [1, 1]} : vector<128x4xf32> to vector<128x1xf32>
    %cst_27 = arith.constant dense<0xFF800000> : vector<128xf32>
    %110 = vector.multi_reduction <maximumf>, %108, %cst_27 [1] : vector<128x128xf32> to vector<128xf32>
    %111 = vector.shape_cast %110 : vector<128xf32> to vector<128x1xf32>
    %112 = arith.maximumf %109, %111 : vector<128x1xf32>
    %113 = vector.broadcast %112 : vector<128x1xf32> to vector<128x128xf32>
    %114 = arith.subf %108, %113 : vector<128x128xf32>
    %115 = math.exp %114 : vector<128x128xf32>
    %116 = arith.mulf %115, %7 : vector<128x128xf32>
    %117 = arith.subf %109, %112 : vector<128x1xf32>
    %118 = math.exp %117 : vector<128x1xf32>
    %119 = arith.truncf %116 : vector<128x128xf32> to vector<128x128xbf16>
    %120 = vector.extract_strided_slice %3 {offsets = [0, 99], sizes = [128, 33], strides = [1, 1]} : vector<128x256xbf16> to vector<128x33xbf16>
    %cst_28 = arith.constant dense<0.000000e+00> : vector<128x33xf32>
    %121 = tpu.matmul %119, %120, %cst_28 {dimension_numbers = #tpu.dot_dimension_numbers<[1], [0], [0], [1], [0, 0, 1, 1], [], []>} : vector<128x128xbf16>, vector<128x33xbf16>, vector<128x33xf32> -> vector<128x33xf32>
    %122 = vector.extract_strided_slice %13 {offsets = [0, 99], sizes = [128, 33], strides = [1, 1]} : vector<128x132xf32> to vector<128x33xf32>
    %123 = vector.broadcast %118 : vector<128x1xf32> to vector<128x33xf32>
    %124 = arith.mulf %123, %122 : vector<128x33xf32>
    %125 = arith.addf %124, %121 : vector<128x33xf32>
    %126 = tpu.concatenate %28, %56, %84, %112 in 1 : vector<128x1xf32>, vector<128x1xf32>, vector<128x1xf32>, vector<128x1xf32> -> vector<128x4xf32>
    %c0_29 = arith.constant 0 : index
    %c0_30 = arith.constant 0 : index
    %127 = vector.load %arg8[%c0_29, %c0_30] : memref<128x4xf32, #tpu.memory_space<vmem>>, vector<128x4xf32>
    tpu.vector_store %arg8[%c0_29, %c0_30], %126 {strides = array<i32>} : memref<128x4xf32, #tpu.memory_space<vmem>>, vector<128x4xf32>,
    %128 = tpu.concatenate %41, %69, %97, %125 in 1 : vector<128x33xf32>, vector<128x33xf32>, vector<128x33xf32>, vector<128x33xf32> -> vector<128x132xf32>
    %c0_31 = arith.constant 0 : index
    %c0_32 = arith.constant 0 : index
    %129 = vector.load %arg9[%c0_31, %c0_32] : memref<128x132xf32, #tpu.memory_space<vmem>>, vector<128x132xf32>
    tpu.vector_store %arg9[%c0_31, %c0_32], %128 {strides = array<i32>} : memref<128x132xf32, #tpu.memory_space<vmem>>, vector<128x132xf32>,
    %c1_i32 = arith.constant 1 : i32
    %130 = arith.cmpi eq, %arg1, %c1_i32 : i32
    %131 = arith.extui %130 : i1 to i32
    %c0_i32_33 = arith.constant 0 : i32
    %132 = arith.cmpi ne, %131, %c0_i32_33 : i32
    scf.if %132 {
      %c0_34 = arith.constant 0 : index
      %c0_35 = arith.constant 0 : index
      %133 = vector.load %arg9[%c0_34, %c0_35] : memref<128x132xf32, #tpu.memory_space<vmem>>, vector<128x132xf32>
      %134 = vector.extract_strided_slice %133 {offsets = [0, 0], sizes = [128, 32], strides = [1, 1]} : vector<128x132xf32> to vector<128x32xf32>
      %135 = vector.extract_strided_slice %133 {offsets = [0, 32], sizes = [128, 1], strides = [1, 1]} : vector<128x132xf32> to vector<128x1xf32>
      %136 = tpu.reciprocal %135 {approx = true} : vector<128x1xf32> -> vector<128x1xf32>
      %137 = vector.broadcast %136 : vector<128x1xf32> to vector<128x32xf32>
      %138 = arith.mulf %134, %137 : vector<128x32xf32>
      %139 = vector.extract_strided_slice %133 {offsets = [0, 33], sizes = [128, 32], strides = [1, 1]} : vector<128x132xf32> to vector<128x32xf32>
      %140 = vector.extract_strided_slice %133 {offsets = [0, 65], sizes = [128, 1], strides = [1, 1]} : vector<128x132xf32> to vector<128x1xf32>
      %141 = tpu.reciprocal %140 {approx = true} : vector<128x1xf32> -> vector<128x1xf32>
      %142 = vector.broadcast %141 : vector<128x1xf32> to vector<128x32xf32>
      %143 = arith.mulf %139, %142 : vector<128x32xf32>
      %144 = vector.extract_strided_slice %133 {offsets = [0, 66], sizes = [128, 32], strides = [1, 1]} : vector<128x132xf32> to vector<128x32xf32>
      %145 = vector.extract_strided_slice %133 {offsets = [0, 98], sizes = [128, 1], strides = [1, 1]} : vector<128x132xf32> to vector<128x1xf32>
      %146 = tpu.reciprocal %145 {approx = true} : vector<128x1xf32> -> vector<128x1xf32>
      %147 = vector.broadcast %146 : vector<128x1xf32> to vector<128x32xf32>
      %148 = arith.mulf %144, %147 : vector<128x32xf32>
      %149 = vector.extract_strided_slice %133 {offsets = [0, 99], sizes = [128, 32], strides = [1, 1]} : vector<128x132xf32> to vector<128x32xf32>
      %150 = vector.extract_strided_slice %133 {offsets = [0, 131], sizes = [128, 1], strides = [1, 1]} : vector<128x132xf32> to vector<128x1xf32>
      %151 = tpu.reciprocal %150 {approx = true} : vector<128x1xf32> -> vector<128x1xf32>
      %152 = vector.broadcast %151 : vector<128x1xf32> to vector<128x32xf32>
      %153 = arith.mulf %149, %152 : vector<128x32xf32>
      %154 = tpu.concatenate %138, %143, %148, %153 in 1 : vector<128x32xf32>, vector<128x32xf32>, vector<128x32xf32>, vector<128x32xf32> -> vector<128x128xf32>
      %c0_36 = arith.constant 0 : index
      %c0_37 = arith.constant 0 : index
      %155 = vector.load %arg5[%c0_36, %c0_37] : memref<1x128xf32, #tpu.memory_space<vmem>>, vector<1x128xf32>
      %156 = vector.broadcast %155 : vector<1x128xf32> to vector<128x128xf32>
      %157 = arith.addf %154, %156 : vector<128x128xf32>
      %cst_38 = arith.constant 0.000000e+00 : f32
      %158 = vector.broadcast %cst_38 : f32 to vector<128x128xf32>
      %159 = arith.cmpf ogt, %157, %158 : vector<128x128xf32>
      %cst_39 = arith.constant 0.000000e+00 : f32
      %160 = vector.broadcast %cst_39 : f32 to vector<128x128xf32>
      %161 = arith.minimumf %157, %160 : vector<128x128xf32>
      %162 = math.exp %161 : vector<128x128xf32>
      %cst_40 = arith.constant 1.000000e+00 : f32
      %163 = vector.broadcast %cst_40 : f32 to vector<128x128xf32>
      %164 = arith.subf %162, %163 : vector<128x128xf32>
      %165 = arith.select %159, %157, %164 : vector<128x128xi1>, vector<128x128xf32>
      %166 = arith.truncf %165 : vector<128x128xf32> to vector<128x128xbf16>
      %c0_41 = arith.constant 0 : index
      %c0_42 = arith.constant 0 : index
      %167 = vector.load %arg7[%c0_41, %c0_42] : memref<128x128xbf16, #tpu.memory_space<vmem>>, vector<128x128xbf16>
      tpu.vector_store %arg7[%c0_41, %c0_42], %166 {strides = array<i32>} : memref<128x128xbf16, #tpu.memory_space<vmem>>, vector<128x128xbf16>,
    } else {
    }
    return
  }
  func.func @transform_0(%arg0: i32, %arg1: i32) -> (i32, i32) {
    %c0_i32 = arith.constant 0 : i32
    %c0_i32_0 = arith.constant 0 : i32
    return %arg1, %c0_i32 : i32, i32
  }
  func.func @transform_1(%arg0: i32, %arg1: i32) -> (i32, i32) {
    %c0_i32 = arith.constant 0 : i32
    %c0_i32_0 = arith.constant 0 : i32
    return %c0_i32, %arg1 : i32, i32
  }
  func.func @transform_2(%arg0: i32, %arg1: i32) -> (i32, i32) {
    %c0_i32 = arith.constant 0 : i32
    %c0_i32_0 = arith.constant 0 : i32
    return %arg0, %c0_i32 : i32, i32
  }
  func.func @transform_3(%arg0: i32, %arg1: i32) -> (i32, i32) {
    %c0_i32 = arith.constant 0 : i32
    %c0_i32_0 = arith.constant 0 : i32
    %c0_i32_1 = arith.constant 0 : i32
    return %c0_i32, %c0_i32_0 : i32, i32
  }
  func.func @transform_4(%arg0: i32, %arg1: i32) -> (i32, i32) {
    %c0_i32 = arith.constant 0 : i32
    return %arg0, %arg1 : i32, i32
  }
  func.func @transform_5(%arg0: i32, %arg1: i32) -> (i32, i32) {
    %c0_i32 = arith.constant 0 : i32
    %c0_i32_0 = arith.constant 0 : i32
    return %arg0, %c0_i32 : i32, i32
  }
}

module attributes {stable_mosaic.version = 11 : i64} {
  func.func @_proj_kernel(%arg0: i32, %arg1: memref<128x129xbf16, #tpu.memory_space<vmem>>, %arg2: memref<129x256xbf16, #tpu.memory_space<vmem>>, %arg3: memref<128x256xbf16, #tpu.memory_space<vmem>>) attributes {dimension_semantics = [#tpu.dimension_semantics<parallel>], iteration_bounds = array<i64: 2>, scalar_prefetch = 0 : i64, scratch_operands = 0 : i64, tpu.core_type = #tpu.core_type<tc>, window_params = [{transform_indices = @transform_0, window_bounds = array<i64: 128, 129>}, {pipeline_mode = #tpu.pipeline_mode<synchronous>, transform_indices = @transform_1, window_bounds = array<i64: 129, 256>}, {transform_indices = @transform_2, window_bounds = array<i64: 128, 256>}]} {
    %c0 = arith.constant 0 : index
    %c0_0 = arith.constant 0 : index
    %0 = vector.load %arg1[%c0, %c0_0] : memref<128x129xbf16, #tpu.memory_space<vmem>>, vector<128x129xbf16>
    %c0_1 = arith.constant 0 : index
    %c0_2 = arith.constant 0 : index
    %1 = vector.load %arg2[%c0_1, %c0_2] : memref<129x256xbf16, #tpu.memory_space<vmem>>, vector<129x256xbf16>
    %cst = arith.constant dense<0.000000e+00> : vector<128x256xf32>
    %2 = tpu.matmul %0, %1, %cst {dimension_numbers = #tpu.dot_dimension_numbers<[1], [0], [0], [1], [0, 0, 1, 1], [], []>} : vector<128x129xbf16>, vector<129x256xbf16>, vector<128x256xf32> -> vector<128x256xf32>
    %3 = arith.truncf %2 : vector<128x256xf32> to vector<128x256xbf16>
    %c0_3 = arith.constant 0 : index
    %c0_4 = arith.constant 0 : index
    %4 = vector.load %arg3[%c0_3, %c0_4] : memref<128x256xbf16, #tpu.memory_space<vmem>>, vector<128x256xbf16>
    tpu.vector_store %arg3[%c0_3, %c0_4], %3 {strides = array<i32>} : memref<128x256xbf16, #tpu.memory_space<vmem>>, vector<128x256xbf16>,
    return
  }
  func.func @transform_0(%arg0: i32) -> (i32, i32) {
    %c0_i32 = arith.constant 0 : i32
    %c0_i32_0 = arith.constant 0 : i32
    return %arg0, %c0_i32 : i32, i32
  }
  func.func @transform_1(%arg0: i32) -> (i32, i32) {
    %c0_i32 = arith.constant 0 : i32
    %c0_i32_0 = arith.constant 0 : i32
    %c0_i32_1 = arith.constant 0 : i32
    return %c0_i32, %c0_i32_0 : i32, i32
  }
  func.func @transform_2(%arg0: i32) -> (i32, i32) {
    %c0_i32 = arith.constant 0 : i32
    %c0_i32_0 = arith.constant 0 : i32
    return %arg0, %c0_i32 : i32, i32
  }
}

module attributes {stable_mosaic.version = 11 : i64} {
  func.func @_proj_kernel(%arg0: i32, %arg1: memref<128x129xbf16, #tpu.memory_space<vmem>>, %arg2: memref<129x128xbf16, #tpu.memory_space<vmem>>, %arg3: memref<128x128xbf16, #tpu.memory_space<vmem>>) attributes {dimension_semantics = [#tpu.dimension_semantics<parallel>], iteration_bounds = array<i64: 2>, scalar_prefetch = 0 : i64, scratch_operands = 0 : i64, tpu.core_type = #tpu.core_type<tc>, window_params = [{transform_indices = @transform_0, window_bounds = array<i64: 128, 129>}, {pipeline_mode = #tpu.pipeline_mode<synchronous>, transform_indices = @transform_1, window_bounds = array<i64: 129, 128>}, {transform_indices = @transform_2, window_bounds = array<i64: 128, 128>}]} {
    %c0 = arith.constant 0 : index
    %c0_0 = arith.constant 0 : index
    %0 = vector.load %arg1[%c0, %c0_0] : memref<128x129xbf16, #tpu.memory_space<vmem>>, vector<128x129xbf16>
    %c0_1 = arith.constant 0 : index
    %c0_2 = arith.constant 0 : index
    %1 = vector.load %arg2[%c0_1, %c0_2] : memref<129x128xbf16, #tpu.memory_space<vmem>>, vector<129x128xbf16>
    %cst = arith.constant dense<0.000000e+00> : vector<128x128xf32>
    %2 = tpu.matmul %0, %1, %cst {dimension_numbers = #tpu.dot_dimension_numbers<[1], [0], [0], [1], [0, 0, 1, 1], [], []>} : vector<128x129xbf16>, vector<129x128xbf16>, vector<128x128xf32> -> vector<128x128xf32>
    %3 = arith.truncf %2 : vector<128x128xf32> to vector<128x128xbf16>
    %c0_3 = arith.constant 0 : index
    %c0_4 = arith.constant 0 : index
    %4 = vector.load %arg3[%c0_3, %c0_4] : memref<128x128xbf16, #tpu.memory_space<vmem>>, vector<128x128xbf16>
    tpu.vector_store %arg3[%c0_3, %c0_4], %3 {strides = array<i32>} : memref<128x128xbf16, #tpu.memory_space<vmem>>, vector<128x128xbf16>,
    return
  }
  func.func @transform_0(%arg0: i32) -> (i32, i32) {
    %c0_i32 = arith.constant 0 : i32
    %c0_i32_0 = arith.constant 0 : i32
    return %arg0, %c0_i32 : i32, i32
  }
  func.func @transform_1(%arg0: i32) -> (i32, i32) {
    %c0_i32 = arith.constant 0 : i32
    %c0_i32_0 = arith.constant 0 : i32
    %c0_i32_1 = arith.constant 0 : i32
    return %c0_i32, %c0_i32_0 : i32, i32
  }
  func.func @transform_2(%arg0: i32) -> (i32, i32) {
    %c0_i32 = arith.constant 0 : i32
    %c0_i32_0 = arith.constant 0 : i32
    return %arg0, %c0_i32 : i32, i32
  }
}

module attributes {stable_mosaic.version = 11 : i64} {
  func.func @_attn_kernel(%arg0: i32, %arg1: i32, %arg2: memref<128x128xbf16, #tpu.memory_space<vmem>>, %arg3: memref<1x128xf32, #tpu.memory_space<vmem>>, %arg4: memref<128x1xf32, #tpu.memory_space<vmem>>, %arg5: memref<1x128xf32, #tpu.memory_space<vmem>>, %arg6: memref<128x128xi8, #tpu.memory_space<vmem>>, %arg7: memref<128x128xf32, #tpu.memory_space<vmem>>, %arg8: memref<128x1xf32, #tpu.memory_space<vmem>>, %arg9: memref<128x9xf32, #tpu.memory_space<vmem>>) attributes {dimension_semantics = [#tpu.dimension_semantics<parallel>, #tpu.dimension_semantics<arbitrary>], iteration_bounds = array<i64: 2, 2>, scalar_prefetch = 0 : i64, scratch_operands = 2 : i64, tpu.core_type = #tpu.core_type<tc>, window_params = [{transform_indices = @transform_0, window_bounds = array<i64: 128, 128>}, {transform_indices = @transform_1, window_bounds = array<i64: 1, 128>}, {transform_indices = @transform_2, window_bounds = array<i64: 128, 1>}, {pipeline_mode = #tpu.pipeline_mode<synchronous>, transform_indices = @transform_3, window_bounds = array<i64: 1, 128>}, {transform_indices = @transform_4, window_bounds = array<i64: 128, 128>}, {transform_indices = @transform_5, window_bounds = array<i64: 128, 128>}]} {
    %c0_i32 = arith.constant 0 : i32
    %0 = arith.cmpi eq, %arg1, %c0_i32 : i32
    %1 = arith.extui %0 : i1 to i32
    %c0_i32_0 = arith.constant 0 : i32
    %2 = arith.cmpi ne, %1, %c0_i32_0 : i32
    scf.if %2 {
      %cst_22 = arith.constant -1.000000e+30 : f32
      %43 = vector.broadcast %cst_22 : f32 to vector<128x1xf32>
      %c0_23 = arith.constant 0 : index
      %c0_24 = arith.constant 0 : index
      %44 = vector.load %arg8[%c0_23, %c0_24] : memref<128x1xf32, #tpu.memory_space<vmem>>, vector<128x1xf32>
      tpu.vector_store %arg8[%c0_23, %c0_24], %43 {strides = array<i32>} : memref<128x1xf32, #tpu.memory_space<vmem>>, vector<128x1xf32>,
      %cst_25 = arith.constant 0.000000e+00 : f32
      %45 = vector.broadcast %cst_25 : f32 to vector<128x9xf32>
      %c0_26 = arith.constant 0 : index
      %c0_27 = arith.constant 0 : index
      %46 = vector.load %arg9[%c0_26, %c0_27] : memref<128x9xf32, #tpu.memory_space<vmem>>, vector<128x9xf32>
      tpu.vector_store %arg9[%c0_26, %c0_27], %45 {strides = array<i32>} : memref<128x9xf32, #tpu.memory_space<vmem>>, vector<128x9xf32>,
    } else {
    }
    %c0 = arith.constant 0 : index
    %c0_1 = arith.constant 0 : index
    %3 = vector.load %arg2[%c0, %c0_1] : memref<128x128xbf16, #tpu.memory_space<vmem>>, vector<128x128xbf16>
    %c0_2 = arith.constant 0 : index
    %c0_3 = arith.constant 0 : index
    %4 = vector.load %arg3[%c0_2, %c0_3] : memref<1x128xf32, #tpu.memory_space<vmem>>, vector<1x128xf32>
    %c0_4 = arith.constant 0 : index
    %c0_5 = arith.constant 0 : index
    %5 = vector.load %arg4[%c0_4, %c0_5] : memref<128x1xf32, #tpu.memory_space<vmem>>, vector<128x1xf32>
    %c0_6 = arith.constant 0 : index
    %c0_7 = arith.constant 0 : index
    %6 = vector.load %arg6[%c0_6, %c0_7] : memref<128x128xi8, #tpu.memory_space<vmem>>, vector<128x128xi8>
    %7 = arith.sitofp %6 : vector<128x128xi8> to vector<128x128xf32>
    %cst = arith.constant 1.000000e+00 : f32
    %8 = vector.broadcast %cst : f32 to vector<128x128xf32>
    %9 = arith.subf %7, %8 : vector<128x128xf32>
    %cst_8 = arith.constant 1.000000e+30 : f32
    %10 = vector.broadcast %cst_8 : f32 to vector<128x128xf32>
    %11 = arith.mulf %9, %10 : vector<128x128xf32>
    %c0_9 = arith.constant 0 : index
    %c0_10 = arith.constant 0 : index
    %12 = vector.load %arg8[%c0_9, %c0_10] : memref<128x1xf32, #tpu.memory_space<vmem>>, vector<128x1xf32>
    %c0_11 = arith.constant 0 : index
    %c0_12 = arith.constant 0 : index
    %13 = vector.load %arg9[%c0_11, %c0_12] : memref<128x9xf32, #tpu.memory_space<vmem>>, vector<128x9xf32>
    %14 = vector.broadcast %5 : vector<128x1xf32> to vector<128x128xf32>
    %15 = vector.broadcast %4 : vector<1x128xf32> to vector<128x128xf32>
    %16 = arith.addf %14, %15 : vector<128x128xf32>
    %cst_13 = arith.constant 0.000000e+00 : f32
    %17 = vector.broadcast %cst_13 : f32 to vector<128x128xf32>
    %18 = arith.cmpf ogt, %16, %17 : vector<128x128xf32>
    %cst_14 = arith.constant 2.000000e-01 : f32
    %19 = vector.broadcast %cst_14 : f32 to vector<128x128xf32>
    %20 = arith.mulf %19, %16 : vector<128x128xf32>
    %21 = arith.select %18, %16, %20 : vector<128x128xi1>, vector<128x128xf32>
    %22 = arith.addf %21, %11 : vector<128x128xf32>
    %cst_15 = arith.constant dense<0xFF800000> : vector<128xf32>
    %23 = vector.multi_reduction <maximumf>, %22, %cst_15 [1] : vector<128x128xf32> to vector<128xf32>
    %24 = vector.shape_cast %23 : vector<128xf32> to vector<128x1xf32>
    %25 = arith.maximumf %12, %24 : vector<128x1xf32>
    %26 = vector.broadcast %25 : vector<128x1xf32> to vector<128x128xf32>
    %27 = arith.subf %22, %26 : vector<128x128xf32>
    %28 = math.exp %27 : vector<128x128xf32>
    %29 = arith.mulf %28, %7 : vector<128x128xf32>
    %30 = arith.subf %12, %25 : vector<128x1xf32>
    %31 = math.exp %30 : vector<128x1xf32>
    %32 = arith.truncf %29 : vector<128x128xf32> to vector<128x128xbf16>
    %33 = vector.extract_strided_slice %3 {offsets = [0, 0], sizes = [128, 9], strides = [1, 1]} : vector<128x128xbf16> to vector<128x9xbf16>
    %cst_16 = arith.constant dense<0.000000e+00> : vector<128x9xf32>
    %34 = tpu.matmul %32, %33, %cst_16 {dimension_numbers = #tpu.dot_dimension_numbers<[1], [0], [0], [1], [0, 0, 1, 1], [], []>} : vector<128x128xbf16>, vector<128x9xbf16>, vector<128x9xf32> -> vector<128x9xf32>
    %35 = vector.broadcast %31 : vector<128x1xf32> to vector<128x9xf32>
    %36 = arith.mulf %35, %13 : vector<128x9xf32>
    %37 = arith.addf %36, %34 : vector<128x9xf32>
    %c0_17 = arith.constant 0 : index
    %c0_18 = arith.constant 0 : index
    %38 = vector.load %arg8[%c0_17, %c0_18] : memref<128x1xf32, #tpu.memory_space<vmem>>, vector<128x1xf32>
    tpu.vector_store %arg8[%c0_17, %c0_18], %25 {strides = array<i32>} : memref<128x1xf32, #tpu.memory_space<vmem>>, vector<128x1xf32>,
    %c0_19 = arith.constant 0 : index
    %c0_20 = arith.constant 0 : index
    %39 = vector.load %arg9[%c0_19, %c0_20] : memref<128x9xf32, #tpu.memory_space<vmem>>, vector<128x9xf32>
    tpu.vector_store %arg9[%c0_19, %c0_20], %37 {strides = array<i32>} : memref<128x9xf32, #tpu.memory_space<vmem>>, vector<128x9xf32>,
    %c1_i32 = arith.constant 1 : i32
    %40 = arith.cmpi eq, %arg1, %c1_i32 : i32
    %41 = arith.extui %40 : i1 to i32
    %c0_i32_21 = arith.constant 0 : i32
    %42 = arith.cmpi ne, %41, %c0_i32_21 : i32
    scf.if %42 {
      %c0_22 = arith.constant 0 : index
      %c0_23 = arith.constant 0 : index
      %43 = vector.load %arg9[%c0_22, %c0_23] : memref<128x9xf32, #tpu.memory_space<vmem>>, vector<128x9xf32>
      %44 = vector.extract_strided_slice %43 {offsets = [0, 0], sizes = [128, 8], strides = [1, 1]} : vector<128x9xf32> to vector<128x8xf32>
      %45 = vector.extract_strided_slice %43 {offsets = [0, 8], sizes = [128, 1], strides = [1, 1]} : vector<128x9xf32> to vector<128x1xf32>
      %46 = tpu.reciprocal %45 {approx = true} : vector<128x1xf32> -> vector<128x1xf32>
      %47 = vector.broadcast %46 : vector<128x1xf32> to vector<128x8xf32>
      %48 = arith.mulf %44, %47 : vector<128x8xf32>
      %cst_24 = arith.constant 0.000000e+00 : f32
      %49 = vector.broadcast %cst_24 : f32 to vector<128x120xf32>
      %50 = tpu.concatenate %48, %49 in 1 : vector<128x8xf32>, vector<128x120xf32> -> vector<128x128xf32>
      %c0_25 = arith.constant 0 : index
      %c0_26 = arith.constant 0 : index
      %51 = vector.load %arg5[%c0_25, %c0_26] : memref<1x128xf32, #tpu.memory_space<vmem>>, vector<1x128xf32>
      %52 = vector.broadcast %51 : vector<1x128xf32> to vector<128x128xf32>
      %53 = arith.addf %50, %52 : vector<128x128xf32>
      %c0_27 = arith.constant 0 : index
      %c0_28 = arith.constant 0 : index
      %54 = vector.load %arg7[%c0_27, %c0_28] : memref<128x128xf32, #tpu.memory_space<vmem>>, vector<128x128xf32>
      tpu.vector_store %arg7[%c0_27, %c0_28], %53 {strides = array<i32>} : memref<128x128xf32, #tpu.memory_space<vmem>>, vector<128x128xf32>,
    } else {
    }
    return
  }
  func.func @transform_0(%arg0: i32, %arg1: i32) -> (i32, i32) {
    %c0_i32 = arith.constant 0 : i32
    %c0_i32_0 = arith.constant 0 : i32
    return %arg1, %c0_i32 : i32, i32
  }
  func.func @transform_1(%arg0: i32, %arg1: i32) -> (i32, i32) {
    %c0_i32 = arith.constant 0 : i32
    %c0_i32_0 = arith.constant 0 : i32
    return %c0_i32, %arg1 : i32, i32
  }
  func.func @transform_2(%arg0: i32, %arg1: i32) -> (i32, i32) {
    %c0_i32 = arith.constant 0 : i32
    %c0_i32_0 = arith.constant 0 : i32
    return %arg0, %c0_i32 : i32, i32
  }
  func.func @transform_3(%arg0: i32, %arg1: i32) -> (i32, i32) {
    %c0_i32 = arith.constant 0 : i32
    %c0_i32_0 = arith.constant 0 : i32
    %c0_i32_1 = arith.constant 0 : i32
    return %c0_i32, %c0_i32_0 : i32, i32
  }
  func.func @transform_4(%arg0: i32, %arg1: i32) -> (i32, i32) {
    %c0_i32 = arith.constant 0 : i32
    return %arg0, %arg1 : i32, i32
  }
  func.func @transform_5(%arg0: i32, %arg1: i32) -> (i32, i32) {
    %c0_i32 = arith.constant 0 : i32
    %c0_i32_0 = arith.constant 0 : i32
    return %arg0, %c0_i32 : i32, i32
  }
}

</mosaic_0001>

<llo_original>
// kernel: gat_forward.6
$region0: #{gat_forward.6}
  #allocation0 [shape = 'u32[]', space=smem, size = 0x4, offset = 0x4, fixed_abs, tag = 'smem constant byte address 0x4 - core index']
  #allocation1 [shape = 'u32[72,128]{1,0:T(1,128)}', space=vmem, size = 0x9000, scoped, tag = 'internal scratch']
  %s0 = inlined_call_operand.vmem [shape: bf16[256,49], index: 0, kind: input, shape index: {}]
  %s1 = inlined_call_operand.vmem [shape: bf16[49,256], index: 1, kind: input, shape index: {}]
  %s2 = inlined_call_operand.vmem [shape: bf16[256,256], index: 2, kind: output, shape index: {}]
  %s3 = sld [smem:[#allocation0]]
  $region41: #{gat_forward.6} parent=0
    _
  %s5 = ssub.s32 1, %s3
  %s6 = scalar_select 0, %s5, %s3
  loop: start=0, step=1, limit=4
  $region2: #{gat_forward.6} parent=0 // loop_pre_header
    _
  $region3: #{gat_forward.6} parent=0 // loop_header
    %s8 = sphi 0, %s12
    %p9 = scmp.ge.s32.totalorder %s8, 4
    %s18 = sphi 0, %s20
    %s21 = sphi 0, %s18
    %s22 = sphi 0, %s21
    %s38 = sphi 0, %s22
    %s42 = sphi 0, %s42
    %s44 = sphi 0, %s42
    %s45 = sphi 0, %s44
    %s59 = sphi 0, %s45
    %s65 = sphi 0, %s67
    %s68 = sphi 0, %s65
    %s69 = sphi 0, %s68
    %s85 = sphi 0, %s69
  $region4: #{gat_forward.6} parent=0 // loop_header_branch
    %11 = sbr.rel (%p9) target = $region8
  $region5: #{gat_forward.6} parent=0 // loop_body
    %s13 = ssub.s32 %s8, 1
    %s14 = ssub.s32 %s8, 2
    %s15 = sadd.s32 %s8, 1
    %s16 = ssub.s32 %s8, %s15
    %p17 = scmp.eq.s32.totalorder %s16, 0
    %s19 = sadd.s32 %s18, 1
    %s20 = scalar_select %p17, %s18, %s19
    %p23 = pneg %p17
    %p24 = scmp.eq.s32.totalorder %s8, 1
    %p25 = por %p23, %p24
    %p26 = scmp.ne.s32.totalorder %s18, %s21
    %p27 = scmp.eq.s32.totalorder %s8, 0
    %p28 = por %p26, %p27
    %p29 = scmp.ne.s32.totalorder %s18, %s21
    %p30 = scmp.eq.s32.totalorder %s13, 1
    %p31 = por %p29, %p30
    %p32 = scmp.ne.s32.totalorder %s21, %s22
    %p33 = scmp.eq.s32.totalorder %s13, 0
    %p34 = por %p32, %p33
    %p35 = scmp.ne.s32.totalorder %s21, %s22
    %p36 = scmp.eq.s32.totalorder %s14, 1
    %p37 = por %p35, %p36
    %p39 = scmp.ne.s32.totalorder %s22, %s38
    %p40 = scmp.eq.s32.totalorder %s14, 0
    %p41 = por %p39, %p40
    %s43 = sadd.s32 %s42, 1
    %p46 = scmp.eq.s32.totalorder %s8, 1
    %p47 = scmp.ne.s32.totalorder %s42, %s44
    %p48 = scmp.eq.s32.totalorder %s8, 0
    %p49 = por %p47, %p48
    %p50 = scmp.ne.s32.totalorder %s42, %s44
    %p51 = scmp.eq.s32.totalorder %s13, 1
    %p52 = por %p50, %p51
    %p53 = scmp.ne.s32.totalorder %s44, %s45
    %p54 = scmp.eq.s32.totalorder %s13, 0
    %p55 = por %p53, %p54
    %p56 = scmp.ne.s32.totalorder %s44, %s45
    %p57 = scmp.eq.s32.totalorder %s14, 1
    %p58 = por %p56, %p57
    %p60 = scmp.ne.s32.totalorder %s45, %s59
    %p61 = scmp.eq.s32.totalorder %s14, 0
    %p62 = por %p60, %p61
    %s63 = ssub.s32 %s8, %s15
    %p64 = scmp.eq.s32.totalorder %s63, 0
    %s66 = sadd.s32 %s65, 1
    %s67 = scalar_select %p64, %s65, %s66
    %p70 = pneg %p64
    %p71 = scmp.eq.s32.totalorder %s8, 1
    %p72 = por %p70, %p71
    %p73 = scmp.ne.s32.totalorder %s65, %s68
    %p74 = scmp.eq.s32.totalorder %s8, 0
    %p75 = por %p73, %p74
    %p76 = scmp.ne.s32.totalorder %s65, %s68
    %p77 = scmp.eq.s32.totalorder %s13, 1
    %p78 = por %p76, %p77
    %p79 = scmp.ne.s32.totalorder %s68, %s69
    %p80 = scmp.eq.s32.totalorder %s13, 0
    %p81 = por %p79, %p80
    %p82 = scmp.ne.s32.totalorder %s68, %s69
    %p83 = scmp.eq.s32.totalorder %s14, 1
    %p84 = por %p82, %p83
    %p86 = scmp.ne.s32.totalorder %s69, %s85
    %p87 = scmp.eq.s32.totalorder %s14, 0
    %p88 = por %p86, %p87
    %p89 = scmp.le.s32.totalorder 1, %s8
    %p90 = scmp.lt.s32.totalorder %s8, 3
    %p91 = pnand %p89, %p90
    %p92 = pneg %p91
    // Predicated region
    $region9: #{gat_forward.6} parent=5 // pred_check
      _
    $region10: #{gat_forward.6} parent=5 // pred_check_branch
      %94 = sbr.rel (%p91) target = $region12
    $region11: #{gat_forward.6} parent=5 // pred_region
      %s95 = ssub.s32 %s8, 1
      // Predicated region
      $region13: #{gat_forward.6} parent=11 // pred_check
        %p96 = pneg %p55
      $region14: #{gat_forward.6} parent=11 // pred_check_branch
        %98 = sbr.rel (%p96) target = $region16
      $region15: #{gat_forward.6} parent=11 // pred_region
        _
      $region16: #{gat_forward.6} parent=11 // pred_fallthru
        _
    $region12: #{gat_forward.6} parent=5 // pred_fallthru
      _
    %p99 = scmp.lt.s32.totalorder %s8, 2
    // Predicated region
    $region17: #{gat_forward.6} parent=5 // pred_check
      %p100 = pneg %p99
    $region18: #{gat_forward.6} parent=5 // pred_check_branch
      %102 = sbr.rel (%p100) target = $region20
    $region19: #{gat_forward.6} parent=5 // pred_region
      // Predicated region
      $region21: #{gat_forward.6} parent=19 // pred_check
        %p103 = pneg %p28
      $region22: #{gat_forward.6} parent=19 // pred_check_branch
        %105 = sbr.rel (%p103) target = $region24
      $region23: #{gat_forward.6} parent=19 // pred_region
        %s106 = smul.u32 16, %s8
        %p107 = scmp.lt.s32.totalorder %s106, 31
        %s108 = scalar_select %p107, %s106, 31
        %s109 = smul.addr %s108, 4
        %s110 = scalar_lea.vmem %s0, %s109
        %s111 = smul.u32 16, %s8
      $region24: #{gat_forward.6} parent=19 // pred_fallthru
        _
    $region20: #{gat_forward.6} parent=5 // pred_fallthru
      _
    %p112 = scmp.le.s32.totalorder 1, %s8
    %p113 = scmp.lt.s32.totalorder %s8, 3
    %p114 = pnand %p112, %p113
    %p115 = pneg %p114
    // Predicated region
    $region25: #{gat_forward.6} parent=5 // pred_check
      _
    $region26: #{gat_forward.6} parent=5 // pred_check_branch
      %117 = sbr.rel (%p114) target = $region28
    $region27: #{gat_forward.6} parent=5 // pred_region
      %s118 = ssub.s32 %s8, 1
      %s119 = smul.u32 16, %s13
      %p120 = scmp.lt.s32.totalorder %s119, 31
      %s121 = scalar_select %p120, %s119, 31
      %s122 = smul.addr %s121, 4
      %s123 = scalar_lea.vmem %s0, %s122
      %p124 = pneg %p34
      %p125 = pneg %p31
      %p126 = pneg %p55
      %p127 = pneg %p52
      %p128 = pneg %p81
      %p129 = pneg %p78
      %s130 = smul.u32 16, %s13
      %p131 = scmp.lt.s32.totalorder %s130, 31
      %s132 = scalar_select %p131, %s130, 31
      %s133 = smul.addr %s132, 2
      %s134 = smul.addr %s133, 4
      %s135 = scalar_lea.vmem %s2, %s134
      %s136 = smul.u32 16, %s13
      %p137 = scmp.lt.s32.totalorder %s136, 31
      %s138 = scalar_select %p137, %s136, 31
      %s139 = smul.addr %s138, 4
      %s140 = scalar_lea.vmem %s0, %s139
      %s141 = smul.u32 16, %s13
      %s142 = smul.u32 16, %s13
      %p143 = scmp.lt.s32.totalorder %s142, 31
      %s144 = scalar_select %p143, %s142, 31
      %s145 = smul.addr %s144, 2
      %s146 = smul.addr %s145, 4
      %s147 = scalar_lea.vmem %s2, %s146
      %s148 = smul.u32 16, %s13
      %v150 = vld [vmem:[%s140] sm:$0xf]
      %v151 = vld [vmem:[%s140 + $0x4] sm:$0xf]
      %v152 = vld [vmem:[%s140 + $0x8] sm:$0xf]
      %v153 = vld [vmem:[%s140 + $0xc] sm:$0xf]
      %v154 = vld [vmem:[%s140 + $0x10] sm:$0xf]
      %v155 = vld [vmem:[%s140 + $0x14] sm:$0xf]
      %v156 = vld [vmem:[%s140 + $0x18] sm:$0xf]
      %v157 = vld [vmem:[%s140 + $0x1c] sm:$0xf]
      %v158 = vld [vmem:[%s140 + $0x20] sm:$0xf]
      %v159 = vld [vmem:[%s140 + $0x24] sm:$0xf]
      %v160 = vld [vmem:[%s140 + $0x28] sm:$0xf]
      %v161 = vld [vmem:[%s140 + $0x2c] sm:$0xf]
      %v162 = vld [vmem:[%s140 + $0x30] sm:$0xf]
      %v163 = vld [vmem:[%s140 + $0x34] sm:$0xf]
      %v164 = vld [vmem:[%s140 + $0x38] sm:$0xf]
      %v165 = vld [vmem:[%s140 + $0x3c] sm:$0xf]
      %v166 = vld [vmem:[%s1] sm:$0xff]
      %v167 = vld [vmem:[%s1 + $0x8] sm:$0xff]
      %v168 = vld [vmem:[%s1 + $0x10] sm:$0xff]
      %v169 = vld [vmem:[%s1 + $0x18] sm:$0xff]
      %v170 = vld [vmem:[%s1 + $0x20] sm:$0xff]
      %v171 = vld [vmem:[%s1 + $0x28] sm:$0xff]
      %v172 = vld [vmem:[%s1 + $0x30] sm:$0x11]
      %v189 = vunpack.c.l.b16 %v150
      %v190 = vunpack.c.l.b16 %v151
      %v191 = vunpack.c.l.b16 %v152
      %v192 = vunpack.c.l.b16 %v153
      %v193 = vunpack.c.l.b16 %v154
      %v194 = vunpack.c.l.b16 %v155
      %v195 = vunpack.c.l.b16 %v156
      %v196 = vunpack.c.l.b16 %v157
      %v197 = vunpack.c.l.b16 %v158
      %v198 = vunpack.c.l.b16 %v159
      %v199 = vunpack.c.l.b16 %v160
      %v200 = vunpack.c.l.b16 %v161
      %v201 = vunpack.c.l.b16 %v162
      %v202 = vunpack.c.l.b16 %v163
      %v203 = vunpack.c.l.b16 %v164
      %v204 = vunpack.c.l.b16 %v165
      %v205 = vpack.c.b16 %v190, %v189
      %v206 = vpack.c.b16 %v192, %v191
      %v207 = vpack.c.b16 %v194, %v193
      %v208 = vpack.c.b16 %v196, %v195
      %v209 = vpack.c.b16 %v198, %v197
      %v210 = vpack.c.b16 %v200, %v199
      %v211 = vpack.c.b16 %v202, %v201
      %v212 = vpack.c.b16 %v204, %v203
      %v220 = vunpack.c.l.b16 %v166
      %v221 = vunpack.c.h.b16 %v166
      %v222 = vunpack.c.l.b16 %v167
      %v223 = vunpack.c.h.b16 %v167
      %v224 = vunpack.c.l.b16 %v168
      %v225 = vunpack.c.h.b16 %v168
      %v226 = vunpack.c.l.b16 %v169
      %v227 = vunpack.c.h.b16 %v169
      %v228 = vunpack.c.l.b16 %v170
      %v229 = vunpack.c.h.b16 %v170
      %v230 = vunpack.c.l.b16 %v171
      %v231 = vunpack.c.h.b16 %v171
      %v232 = vunpack.c.l.b16 %v172
      %v233 = vunpack.c.h.b16 %v172
      %v234 = vpack.c.b16 %v222, %v220
      %v235 = vpack.c.b16 %v223, %v221
      %v236 = vpack.c.b16 %v226, %v224
      %v237 = vpack.c.b16 %v227, %v225
      %v238 = vpack.c.b16 %v230, %v228
      %v239 = vpack.c.b16 %v231, %v229
      %v240 = vpack.c.b16 %v232, %v232
      %v241 = vpack.c.b16 %v233, %v233
      %vm248 = vcmask 400384
      %v250 = vsel %vm248, %v205, 0
      %v253 = vsel %vm248, %v206, 0
      %v256 = vsel %vm248, %v207, 0
      %v259 = vsel %vm248, %v208, 0
      %v262 = vsel %vm248, %v209, 0
      %v265 = vsel %vm248, %v210, 0
      %v268 = vsel %vm248, %v211, 0
      %v271 = vsel %vm248, %v212, 0
      %vm273 = vcmask 1040384
      %v274 = vsel 0, 4294967295, 65535
      %v275 = vsel %vm273, %v274, 0
      %v277 = vand.u32 %v240, %v275
      %v280 = vand.u32 %v241, %v275
      %282 = vmatpush.bf16.msra.mxu0 0
      %283 = vmatpush.bf16.msra.mxu0 0
      %284 = vmatpush.bf16.msra.mxu0 0
      %285 = vmatpush.bf16.msra.mxu0 0
      %286 = vmatpush.bf16.msra.mxu0 %v277
      %287 = vmatpush.bf16.msra.mxu0 %v238
      %288 = vmatpush.bf16.msra.mxu0 %v236
      %289 = vmatpush.bf16.msra.mxu0 %v234
      %290 = vmatmul.bf16.gmra.mxu0 %v250
      %v291 = vpop.f32.mrf.mxu0
      %v292 = vadd.f32 0.0, %v291
      %v293 = vpop.f32.mrf.mxu0
      %v294 = vadd.f32 0.0, %v293
      %295 = vmatmul.bf16.gmra.mxu0 %v253
      %v296 = vpop.f32.mrf.mxu0
      %v297 = vadd.f32 0.0, %v296
      %v298 = vpop.f32.mrf.mxu0
      %v299 = vadd.f32 0.0, %v298
      %300 = vmatmul.bf16.gmra.mxu0 %v256
      %v301 = vpop.f32.mrf.mxu0
      %v302 = vadd.f32 0.0, %v301
      %v303 = vpop.f32.mrf.mxu0
      %v304 = vadd.f32 0.0, %v303
      %305 = vmatmul.bf16.gmra.mxu0 %v259
      %v306 = vpop.f32.mrf.mxu0
      %v307 = vadd.f32 0.0, %v306
      %v308 = vpop.f32.mrf.mxu0
      %v309 = vadd.f32 0.0, %v308
      %310 = vmatmul.bf16.gmra.mxu0 %v262
      %v311 = vpop.f32.mrf.mxu0
      %v312 = vadd.f32 0.0, %v311
      %v313 = vpop.f32.mrf.mxu0
      %v314 = vadd.f32 0.0, %v313
      %315 = vmatmul.bf16.gmra.mxu0 %v265
      %v316 = vpop.f32.mrf.mxu0
      %v317 = vadd.f32 0.0, %v316
      %v318 = vpop.f32.mrf.mxu0
      %v319 = vadd.f32 0.0, %v318
      %320 = vmatmul.bf16.gmra.mxu0 %v268
      %v321 = vpop.f32.mrf.mxu0
      %v322 = vadd.f32 0.0, %v321
      %v323 = vpop.f32.mrf.mxu0
      %v324 = vadd.f32 0.0, %v323
      %325 = vmatmul.bf16.gmra.mxu0 %v271
      %v326 = vpop.f32.mrf.mxu0
      %v327 = vadd.f32 0.0, %v326
      %v328 = vpop.f32.mrf.mxu0
      %v329 = vadd.f32 0.0, %v328
      %330 = vdwg.mxu0
      %331 = vmatpush.bf16.msra.mxu0 0
      %332 = vmatpush.bf16.msra.mxu0 0
      %333 = vmatpush.bf16.msra.mxu0 0
      %334 = vmatpush.bf16.msra.mxu0 0
      %335 = vmatpush.bf16.msra.mxu0 %v280
      %336 = vmatpush.bf16.msra.mxu0 %v239
      %337 = vmatpush.bf16.msra.mxu0 %v237
      %338 = vmatpush.bf16.msra.mxu0 %v235
      %339 = vmatmul.bf16.gmra.mxu0 %v250
      %v340 = vpop.f32.mrf.mxu0
      %v341 = vadd.f32 0.0, %v340
      %v342 = vpop.f32.mrf.mxu0
      %v343 = vadd.f32 0.0, %v342
      %344 = vmatmul.bf16.gmra.mxu0 %v253
      %v345 = vpop.f32.mrf.mxu0
      %v346 = vadd.f32 0.0, %v345
      %v347 = vpop.f32.mrf.mxu0
      %v348 = vadd.f32 0.0, %v347
      %349 = vmatmul.bf16.gmra.mxu0 %v256
      %v350 = vpop.f32.mrf.mxu0
      %v351 = vadd.f32 0.0, %v350
      %v352 = vpop.f32.mrf.mxu0
      %v353 = vadd.f32 0.0, %v352
      %354 = vmatmul.bf16.gmra.mxu0 %v259
      %v355 = vpop.f32.mrf.mxu0
      %v356 = vadd.f32 0.0, %v355
      %v357 = vpop.f32.mrf.mxu0
      %v358 = vadd.f32 0.0, %v357
      %359 = vmatmul.bf16.gmra.mxu0 %v262
      %v360 = vpop.f32.mrf.mxu0
      %v361 = vadd.f32 0.0, %v360
      %v362 = vpop.f32.mrf.mxu0
      %v363 = vadd.f32 0.0, %v362
      %364 = vmatmul.bf16.gmra.mxu0 %v265
      %v365 = vpop.f32.mrf.mxu0
      %v366 = vadd.f32 0.0, %v365
      %v367 = vpop.f32.mrf.mxu0
      %v368 = vadd.f32 0.0, %v367
      %369 = vmatmul.bf16.gmra.mxu0 %v268
      %v370 = vpop.f32.mrf.mxu0
      %v371 = vadd.f32 0.0, %v370
      %v372 = vpop.f32.mrf.mxu0
      %v373 = vadd.f32 0.0, %v372
      %374 = vmatmul.bf16.gmra.mxu0 %v271
      %v375 = vpop.f32.mrf.mxu0
      %v376 = vadd.f32 0.0, %v375
      %v377 = vpop.f32.mrf.mxu0
      %v378 = vadd.f32 0.0, %v377
      %379 = vdwg.mxu0
      %v380 = vpack.c.bf16 %v341, %v292
      %v381 = vpack.c.bf16 %v343, %v294
      %v382 = vpack.c.bf16 %v346, %v297
      %v383 = vpack.c.bf16 %v348, %v299
      %v384 = vpack.c.bf16 %v351, %v302
      %v385 = vpack.c.bf16 %v353, %v304
      %v386 = vpack.c.bf16 %v356, %v307
      %v387 = vpack.c.bf16 %v358, %v309
      %v388 = vpack.c.bf16 %v361, %v312
      %v389 = vpack.c.bf16 %v363, %v314
      %v390 = vpack.c.bf16 %v366, %v317
      %v391 = vpack.c.bf16 %v368, %v319
      %v392 = vpack.c.bf16 %v371, %v322
      %v393 = vpack.c.bf16 %v373, %v324
      %v394 = vpack.c.bf16 %v376, %v327
      %v395 = vpack.c.bf16 %v378, %v329
      %396 = vst [vmem:[%s147] sm:$0xff] %v380
      %397 = vst [vmem:[%s147 + $0x8] sm:$0xff] %v381
      %398 = vst [vmem:[%s147 + $0x10] sm:$0xff] %v382
      %399 = vst [vmem:[%s147 + $0x18] sm:$0xff] %v383
      %400 = vst [vmem:[%s147 + $0x20] sm:$0xff] %v384
      %401 = vst [vmem:[%s147 + $0x28] sm:$0xff] %v385
      %402 = vst [vmem:[%s147 + $0x30] sm:$0xff] %v386
      %403 = vst [vmem:[%s147 + $0x38] sm:$0xff] %v387
      %404 = vst [vmem:[%s147 + $0x40] sm:$0xff] %v388
      %405 = vst [vmem:[%s147 + $0x48] sm:$0xff] %v389
      %406 = vst [vmem:[%s147 + $0x50] sm:$0xff] %v390
      %407 = vst [vmem:[%s147 + $0x58] sm:$0xff] %v391
      %408 = vst [vmem:[%s147 + $0x60] sm:$0xff] %v392
      %409 = vst [vmem:[%s147 + $0x68] sm:$0xff] %v393
      %410 = vst [vmem:[%s147 + $0x70] sm:$0xff] %v394
      %411 = vst [vmem:[%s147 + $0x78] sm:$0xff] %v395
      %s412 = smul.u32 16, %s13
      %p413 = scmp.lt.s32.totalorder %s412, 31
      %s414 = scalar_select %p413, %s412, 31
      %s415 = smul.addr %s414, 2
      %s416 = smul.addr %s415, 4
      %s417 = scalar_lea.vmem %s2, %s416
      // Predicated region
      $region29: #{gat_forward.6} parent=27 // pred_check
        %p418 = pneg %p78
      $region30: #{gat_forward.6} parent=27 // pred_check_branch
        %420 = sbr.rel (%p418) target = $region32
      $region31: #{gat_forward.6} parent=27 // pred_region
        %s421 = smul.u32 16, %s13
      $region32: #{gat_forward.6} parent=27 // pred_fallthru
        _
    $region28: #{gat_forward.6} parent=5 // pred_fallthru
      _
    %p422 = scmp.le.s32.totalorder 2, %s8
    // Predicated region
    $region33: #{gat_forward.6} parent=5 // pred_check
      %p423 = pneg %p422
    $region34: #{gat_forward.6} parent=5 // pred_check_branch
      %425 = sbr.rel (%p423) target = $region36
    $region35: #{gat_forward.6} parent=5 // pred_region
      %s426 = ssub.s32 %s8, 2
      // Predicated region
      $region37: #{gat_forward.6} parent=35 // pred_check
        %p427 = pneg %p84
      $region38: #{gat_forward.6} parent=35 // pred_check_branch
        %429 = sbr.rel (%p427) target = $region40
      $region39: #{gat_forward.6} parent=35 // pred_region
        %s430 = smul.u32 16, %s14
        %p431 = scmp.lt.s32.totalorder %s430, 31
        %s432 = scalar_select %p431, %s430, 31
        %s433 = smul.addr %s432, 2
        %s434 = smul.addr %s433, 4
        %s435 = scalar_lea.vmem %s2, %s434
      $region40: #{gat_forward.6} parent=35 // pred_fallthru
        _
    $region36: #{gat_forward.6} parent=5 // pred_fallthru
      _
  $region6: #{gat_forward.6} parent=0 // loop_footer
    %s12 = sadd.s32 1, %s8
  $region7: #{gat_forward.6} parent=0 // loop_footer_branch
    %7 = sbr.rel target = $region3
  $region8: #{gat_forward.6} parent=0 // loop_exit
    _

// kernel: gat_forward.8
$region0: #{gat_forward.8}
  #allocation0 [shape = 'u32[]', space=smem, size = 0x4, offset = 0x4, fixed_abs, tag = 'smem constant byte address 0x4 - core index']
  #allocation1 [shape = 'u32[72,128]{1,0:T(1,128)}', space=vmem, size = 0x9000, scoped, tag = 'internal scratch']
  %s0 = inlined_call_operand.vmem [shape: bf16[256,129], index: 0, kind: input, shape index: {}]
  %s1 = inlined_call_operand.vmem [shape: bf16[129,256], index: 1, kind: input, shape index: {}]
  %s2 = inlined_call_operand.vmem [shape: bf16[256,256], index: 2, kind: output, shape index: {}]
  %s3 = sld [smem:[#allocation0]]
  $region41: #{gat_forward.8} parent=0
    _
  %s5 = ssub.s32 1, %s3
  %s6 = scalar_select 0, %s5, %s3
  loop: start=0, step=1, limit=4
  $region2: #{gat_forward.8} parent=0 // loop_pre_header
    _
  $region3: #{gat_forward.8} parent=0 // loop_header
    %s8 = sphi 0, %s12
    %p9 = scmp.ge.s32.totalorder %s8, 4
    %s18 = sphi 0, %s20
    %s21 = sphi 0, %s18
    %s22 = sphi 0, %s21
    %s38 = sphi 0, %s22
    %s42 = sphi 0, %s42
    %s44 = sphi 0, %s42
    %s45 = sphi 0, %s44
    %s59 = sphi 0, %s45
    %s65 = sphi 0, %s67
    %s68 = sphi 0, %s65
    %s69 = sphi 0, %s68
    %s85 = sphi 0, %s69
  $region4: #{gat_forward.8} parent=0 // loop_header_branch
    %11 = sbr.rel (%p9) target = $region8
  $region5: #{gat_forward.8} parent=0 // loop_body
    %s13 = ssub.s32 %s8, 1
    %s14 = ssub.s32 %s8, 2
    %s15 = sadd.s32 %s8, 1
    %s16 = ssub.s32 %s8, %s15
    %p17 = scmp.eq.s32.totalorder %s16, 0
    %s19 = sadd.s32 %s18, 1
    %s20 = scalar_select %p17, %s18, %s19
    %p23 = pneg %p17
    %p24 = scmp.eq.s32.totalorder %s8, 1
    %p25 = por %p23, %p24
    %p26 = scmp.ne.s32.totalorder %s18, %s21
    %p27 = scmp.eq.s32.totalorder %s8, 0
    %p28 = por %p26, %p27
    %p29 = scmp.ne.s32.totalorder %s18, %s21
    %p30 = scmp.eq.s32.totalorder %s13, 1
    %p31 = por %p29, %p30
    %p32 = scmp.ne.s32.totalorder %s21, %s22
    %p33 = scmp.eq.s32.totalorder %s13, 0
    %p34 = por %p32, %p33
    %p35 = scmp.ne.s32.totalorder %s21, %s22
    %p36 = scmp.eq.s32.totalorder %s14, 1
    %p37 = por %p35, %p36
    %p39 = scmp.ne.s32.totalorder %s22, %s38
    %p40 = scmp.eq.s32.totalorder %s14, 0
    %p41 = por %p39, %p40
    %s43 = sadd.s32 %s42, 1
    %p46 = scmp.eq.s32.totalorder %s8, 1
    %p47 = scmp.ne.s32.totalorder %s42, %s44
    %p48 = scmp.eq.s32.totalorder %s8, 0
    %p49 = por %p47, %p48
    %p50 = scmp.ne.s32.totalorder %s42, %s44
    %p51 = scmp.eq.s32.totalorder %s13, 1
    %p52 = por %p50, %p51
    %p53 = scmp.ne.s32.totalorder %s44, %s45
    %p54 = scmp.eq.s32.totalorder %s13, 0
    %p55 = por %p53, %p54
    %p56 = scmp.ne.s32.totalorder %s44, %s45
    %p57 = scmp.eq.s32.totalorder %s14, 1
    %p58 = por %p56, %p57
    %p60 = scmp.ne.s32.totalorder %s45, %s59
    %p61 = scmp.eq.s32.totalorder %s14, 0
    %p62 = por %p60, %p61
    %s63 = ssub.s32 %s8, %s15
    %p64 = scmp.eq.s32.totalorder %s63, 0
    %s66 = sadd.s32 %s65, 1
    %s67 = scalar_select %p64, %s65, %s66
    %p70 = pneg %p64
    %p71 = scmp.eq.s32.totalorder %s8, 1
    %p72 = por %p70, %p71
    %p73 = scmp.ne.s32.totalorder %s65, %s68
    %p74 = scmp.eq.s32.totalorder %s8, 0
    %p75 = por %p73, %p74
    %p76 = scmp.ne.s32.totalorder %s65, %s68
    %p77 = scmp.eq.s32.totalorder %s13, 1
    %p78 = por %p76, %p77
    %p79 = scmp.ne.s32.totalorder %s68, %s69
    %p80 = scmp.eq.s32.totalorder %s13, 0
    %p81 = por %p79, %p80
    %p82 = scmp.ne.s32.totalorder %s68, %s69
    %p83 = scmp.eq.s32.totalorder %s14, 1
    %p84 = por %p82, %p83
    %p86 = scmp.ne.s32.totalorder %s69, %s85
    %p87 = scmp.eq.s32.totalorder %s14, 0
    %p88 = por %p86, %p87
    %p89 = scmp.le.s32.totalorder 1, %s8
    %p90 = scmp.lt.s32.totalorder %s8, 3
    %p91 = pnand %p89, %p90
    %p92 = pneg %p91
    // Predicated region
    $region9: #{gat_forward.8} parent=5 // pred_check
      _
    $region10: #{gat_forward.8} parent=5 // pred_check_branch
      %94 = sbr.rel (%p91) target = $region12
    $region11: #{gat_forward.8} parent=5 // pred_region
      %s95 = ssub.s32 %s8, 1
      // Predicated region
      $region13: #{gat_forward.8} parent=11 // pred_check
        %p96 = pneg %p55
      $region14: #{gat_forward.8} parent=11 // pred_check_branch
        %98 = sbr.rel (%p96) target = $region16
      $region15: #{gat_forward.8} parent=11 // pred_region
        _
      $region16: #{gat_forward.8} parent=11 // pred_fallthru
        _
    $region12: #{gat_forward.8} parent=5 // pred_fallthru
      _
    %p99 = scmp.lt.s32.totalorder %s8, 2
    // Predicated region
    $region17: #{gat_forward.8} parent=5 // pred_check
      %p100 = pneg %p99
    $region18: #{gat_forward.8} parent=5 // pred_check_branch
      %102 = sbr.rel (%p100) target = $region20
    $region19: #{gat_forward.8} parent=5 // pred_region
      // Predicated region
      $region21: #{gat_forward.8} parent=19 // pred_check
        %p103 = pneg %p28
      $region22: #{gat_forward.8} parent=19 // pred_check_branch
        %105 = sbr.rel (%p103) target = $region24
      $region23: #{gat_forward.8} parent=19 // pred_region
        %s106 = smul.u32 16, %s8
        %p107 = scmp.lt.s32.totalorder %s106, 31
        %s108 = scalar_select %p107, %s106, 31
        %s109 = smul.addr %s108, 2
        %s110 = smul.addr %s109, 4
        %s111 = scalar_lea.vmem %s0, %s110
        %s112 = smul.u32 16, %s8
      $region24: #{gat_forward.8} parent=19 // pred_fallthru
        _
    $region20: #{gat_forward.8} parent=5 // pred_fallthru
      _
    %p113 = scmp.le.s32.totalorder 1, %s8
    %p114 = scmp.lt.s32.totalorder %s8, 3
    %p115 = pnand %p113, %p114
    %p116 = pneg %p115
    // Predicated region
    $region25: #{gat_forward.8} parent=5 // pred_check
      _
    $region26: #{gat_forward.8} parent=5 // pred_check_branch
      %118 = sbr.rel (%p115) target = $region28
    $region27: #{gat_forward.8} parent=5 // pred_region
      %s119 = ssub.s32 %s8, 1
      %s120 = smul.u32 16, %s13
      %p121 = scmp.lt.s32.totalorder %s120, 31
      %s122 = scalar_select %p121, %s120, 31
      %s123 = smul.addr %s122, 2
      %s124 = smul.addr %s123, 4
      %s125 = scalar_lea.vmem %s0, %s124
      %p126 = pneg %p34
      %p127 = pneg %p31
      %p128 = pneg %p55
      %p129 = pneg %p52
      %p130 = pneg %p81
      %p131 = pneg %p78
      %s132 = smul.u32 16, %s13
      %p133 = scmp.lt.s32.totalorder %s132, 31
      %s134 = scalar_select %p133, %s132, 31
      %s135 = smul.addr %s134, 2
      %s136 = smul.addr %s135, 4
      %s137 = scalar_lea.vmem %s2, %s136
      %s138 = smul.u32 16, %s13
      %p139 = scmp.lt.s32.totalorder %s138, 31
      %s140 = scalar_select %p139, %s138, 31
      %s141 = smul.addr %s140, 2
      %s142 = smul.addr %s141, 4
      %s143 = scalar_lea.vmem %s0, %s142
      %s144 = smul.u32 16, %s13
      %s145 = smul.u32 16, %s13
      %p146 = scmp.lt.s32.totalorder %s145, 31
      %s147 = scalar_select %p146, %s145, 31
      %s148 = smul.addr %s147, 2
      %s149 = smul.addr %s148, 4
      %s150 = scalar_lea.vmem %s2, %s149
      %s151 = smul.u32 16, %s13
      %v153 = vld [vmem:[%s143] sm:$0xff]
      %v154 = vld [vmem:[%s143 + $0x8] sm:$0xff]
      %v155 = vld [vmem:[%s143 + $0x10] sm:$0xff]
      %v156 = vld [vmem:[%s143 + $0x18] sm:$0xff]
      %v157 = vld [vmem:[%s143 + $0x20] sm:$0xff]
      %v158 = vld [vmem:[%s143 + $0x28] sm:$0xff]
      %v159 = vld [vmem:[%s143 + $0x30] sm:$0xff]
      %v160 = vld [vmem:[%s143 + $0x38] sm:$0xff]
      %v161 = vld [vmem:[%s143 + $0x40] sm:$0xff]
      %v162 = vld [vmem:[%s143 + $0x48] sm:$0xff]
      %v163 = vld [vmem:[%s143 + $0x50] sm:$0xff]
      %v164 = vld [vmem:[%s143 + $0x58] sm:$0xff]
      %v165 = vld [vmem:[%s143 + $0x60] sm:$0xff]
      %v166 = vld [vmem:[%s143 + $0x68] sm:$0xff]
      %v167 = vld [vmem:[%s143 + $0x70] sm:$0xff]
      %v168 = vld [vmem:[%s143 + $0x78] sm:$0xff]
      %v169 = vld [vmem:[%s1] sm:$0xff]
      %v170 = vld [vmem:[%s1 + $0x8] sm:$0xff]
      %v171 = vld [vmem:[%s1 + $0x10] sm:$0xff]
      %v172 = vld [vmem:[%s1 + $0x18] sm:$0xff]
      %v173 = vld [vmem:[%s1 + $0x20] sm:$0xff]
      %v174 = vld [vmem:[%s1 + $0x28] sm:$0xff]
      %v175 = vld [vmem:[%s1 + $0x30] sm:$0xff]
      %v176 = vld [vmem:[%s1 + $0x38] sm:$0xff]
      %v177 = vld [vmem:[%s1 + $0x40] sm:$0xff]
      %v178 = vld [vmem:[%s1 + $0x48] sm:$0xff]
      %v179 = vld [vmem:[%s1 + $0x50] sm:$0xff]
      %v180 = vld [vmem:[%s1 + $0x58] sm:$0xff]
      %v181 = vld [vmem:[%s1 + $0x60] sm:$0xff]
      %v182 = vld [vmem:[%s1 + $0x68] sm:$0xff]
      %v183 = vld [vmem:[%s1 + $0x70] sm:$0xff]
      %v184 = vld [vmem:[%s1 + $0x78] sm:$0xff]
      %v185 = vld [vmem:[%s1 + $0x80] sm:$0x11]
      %v202 = vunpack.c.l.b16 %v153
      %v203 = vunpack.c.h.b16 %v153
      %v204 = vunpack.c.l.b16 %v154
      %v205 = vunpack.c.h.b16 %v154
      %v206 = vunpack.c.l.b16 %v155
      %v207 = vunpack.c.h.b16 %v155
      %v208 = vunpack.c.l.b16 %v156
      %v209 = vunpack.c.h.b16 %v156
      %v210 = vunpack.c.l.b16 %v157
      %v211 = vunpack.c.h.b16 %v157
      %v212 = vunpack.c.l.b16 %v158
      %v213 = vunpack.c.h.b16 %v158
      %v214 = vunpack.c.l.b16 %v159
      %v215 = vunpack.c.h.b16 %v159
      %v216 = vunpack.c.l.b16 %v160
      %v217 = vunpack.c.h.b16 %v160
      %v218 = vunpack.c.l.b16 %v161
      %v219 = vunpack.c.h.b16 %v161
      %v220 = vunpack.c.l.b16 %v162
      %v221 = vunpack.c.h.b16 %v162
      %v222 = vunpack.c.l.b16 %v163
      %v223 = vunpack.c.h.b16 %v163
      %v224 = vunpack.c.l.b16 %v164
      %v225 = vunpack.c.h.b16 %v164
      %v226 = vunpack.c.l.b16 %v165
      %v227 = vunpack.c.h.b16 %v165
      %v228 = vunpack.c.l.b16 %v166
      %v229 = vunpack.c.h.b16 %v166
      %v230 = vunpack.c.l.b16 %v167
      %v231 = vunpack.c.h.b16 %v167
      %v232 = vunpack.c.l.b16 %v168
      %v233 = vunpack.c.h.b16 %v168
      %v234 = vpack.c.b16 %v204, %v202
      %v235 = vpack.c.b16 %v205, %v203
      %v236 = vpack.c.b16 %v208, %v206
      %v237 = vpack.c.b16 %v209, %v207
      %v238 = vpack.c.b16 %v212, %v210
      %v239 = vpack.c.b16 %v213, %v211
      %v240 = vpack.c.b16 %v216, %v214
      %v241 = vpack.c.b16 %v217, %v215
      %v242 = vpack.c.b16 %v220, %v218
      %v243 = vpack.c.b16 %v221, %v219
      %v244 = vpack.c.b16 %v224, %v222
      %v245 = vpack.c.b16 %v225, %v223
      %v246 = vpack.c.b16 %v228, %v226
      %v247 = vpack.c.b16 %v229, %v227
      %v248 = vpack.c.b16 %v232, %v230
      %v249 = vpack.c.b16 %v233, %v231
      %v275 = vunpack.c.l.b16 %v169
      %v276 = vunpack.c.h.b16 %v169
      %v277 = vunpack.c.l.b16 %v170
      %v278 = vunpack.c.h.b16 %v170
      %v279 = vunpack.c.l.b16 %v171
      %v280 = vunpack.c.h.b16 %v171
      %v281 = vunpack.c.l.b16 %v172
      %v282 = vunpack.c.h.b16 %v172
      %v283 = vunpack.c.l.b16 %v173
      %v284 = vunpack.c.h.b16 %v173
      %v285 = vunpack.c.l.b16 %v174
      %v286 = vunpack.c.h.b16 %v174
      %v287 = vunpack.c.l.b16 %v175
      %v288 = vunpack.c.h.b16 %v175
      %v289 = vunpack.c.l.b16 %v176
      %v290 = vunpack.c.h.b16 %v176
      %v291 = vunpack.c.l.b16 %v177
      %v292 = vunpack.c.h.b16 %v177
      %v293 = vunpack.c.l.b16 %v178
      %v294 = vunpack.c.h.b16 %v178
      %v295 = vunpack.c.l.b16 %v179
      %v296 = vunpack.c.h.b16 %v179
      %v297 = vunpack.c.l.b16 %v180
      %v298 = vunpack.c.h.b16 %v180
      %v299 = vunpack.c.l.b16 %v181
      %v300 = vunpack.c.h.b16 %v181
      %v301 = vunpack.c.l.b16 %v182
      %v302 = vunpack.c.h.b16 %v182
      %v303 = vunpack.c.l.b16 %v183
      %v304 = vunpack.c.h.b16 %v183
      %v305 = vunpack.c.l.b16 %v184
      %v306 = vunpack.c.h.b16 %v184
      %v307 = vunpack.c.l.b16 %v185
      %v308 = vunpack.c.h.b16 %v185
      %v309 = vpack.c.b16 %v277, %v275
      %v310 = vpack.c.b16 %v278, %v276
      %v311 = vpack.c.b16 %v281, %v279
      %v312 = vpack.c.b16 %v282, %v280
      %v313 = vpack.c.b16 %v285, %v283
      %v314 = vpack.c.b16 %v286, %v284
      %v315 = vpack.c.b16 %v289, %v287
      %v316 = vpack.c.b16 %v290, %v288
      %v317 = vpack.c.b16 %v293, %v291
      %v318 = vpack.c.b16 %v294, %v292
      %v319 = vpack.c.b16 %v297, %v295
      %v320 = vpack.c.b16 %v298, %v296
      %v321 = vpack.c.b16 %v301, %v299
      %v322 = vpack.c.b16 %v302, %v300
      %v323 = vpack.c.b16 %v305, %v303
      %v324 = vpack.c.b16 %v306, %v304
      %v325 = vpack.c.b16 %v307, %v307
      %v326 = vpack.c.b16 %v308, %v308
      %vm343 = vcmask 7168
      %v345 = vsel %vm343, %v235, 0
      %v348 = vsel %vm343, %v237, 0
      %v351 = vsel %vm343, %v239, 0
      %v354 = vsel %vm343, %v241, 0
      %v357 = vsel %vm343, %v243, 0
      %v360 = vsel %vm343, %v245, 0
      %v363 = vsel %vm343, %v247, 0
      %v366 = vsel %vm343, %v249, 0
      %vm368 = vcmask 1040384
      %v369 = vsel 0, 4294967295, 65535
      %v370 = vsel %vm368, %v369, 0
      %v372 = vand.u32 %v325, %v370
      %v375 = vand.u32 %v326, %v370
      %377 = vmatpush.bf16.msra.mxu0 %v323
      %378 = vmatpush.bf16.msra.mxu0 %v321
      %379 = vmatpush.bf16.msra.mxu0 %v319
      %380 = vmatpush.bf16.msra.mxu0 %v317
      %381 = vmatpush.bf16.msra.mxu0 %v315
      %382 = vmatpush.bf16.msra.mxu0 %v313
      %383 = vmatpush.bf16.msra.mxu0 %v311
      %384 = vmatpush.bf16.msra.mxu0 %v309
      %385 = vmatmul.bf16.gmra.mxu0 %v234
      %v386 = vpop.f32.mrf.mxu0
      %v387 = vadd.f32 0.0, %v386
      %v388 = vpop.f32.mrf.mxu0
      %v389 = vadd.f32 0.0, %v388
      %390 = vmatmul.bf16.gmra.mxu0 %v236
      %v391 = vpop.f32.mrf.mxu0
      %v392 = vadd.f32 0.0, %v391
      %v393 = vpop.f32.mrf.mxu0
      %v394 = vadd.f32 0.0, %v393
      %395 = vmatmul.bf16.gmra.mxu0 %v238
      %v396 = vpop.f32.mrf.mxu0
      %v397 = vadd.f32 0.0, %v396
      %v398 = vpop.f32.mrf.mxu0
      %v399 = vadd.f32 0.0, %v398
      %400 = vmatmul.bf16.gmra.mxu0 %v240
      %v401 = vpop.f32.mrf.mxu0
      %v402 = vadd.f32 0.0, %v401
      %v403 = vpop.f32.mrf.mxu0
      %v404 = vadd.f32 0.0, %v403
      %405 = vmatmul.bf16.gmra.mxu0 %v242
      %v406 = vpop.f32.mrf.mxu0
      %v407 = vadd.f32 0.0, %v406
      %v408 = vpop.f32.mrf.mxu0
      %v409 = vadd.f32 0.0, %v408
      %410 = vmatmul.bf16.gmra.mxu0 %v244
      %v411 = vpop.f32.mrf.mxu0
      %v412 = vadd.f32 0.0, %v411
      %v413 = vpop.f32.mrf.mxu0
      %v414 = vadd.f32 0.0, %v413
      %415 = vmatmul.bf16.gmra.mxu0 %v246
      %v416 = vpop.f32.mrf.mxu0
      %v417 = vadd.f32 0.0, %v416
      %v418 = vpop.f32.mrf.mxu0
      %v419 = vadd.f32 0.0, %v418
      %420 = vmatmul.bf16.gmra.mxu0 %v248
      %v421 = vpop.f32.mrf.mxu0
      %v422 = vadd.f32 0.0, %v421
      %v423 = vpop.f32.mrf.mxu0
      %v424 = vadd.f32 0.0, %v423
      %425 = vdwg.mxu0
      %426 = vmatpush.bf16.msra.mxu0 0
      %427 = vmatpush.bf16.msra.mxu0 0
      %428 = vmatpush.bf16.msra.mxu0 0
      %429 = vmatpush.bf16.msra.mxu0 0
      %430 = vmatpush.bf16.msra.mxu0 0
      %431 = vmatpush.bf16.msra.mxu0 0
      %432 = vmatpush.bf16.msra.mxu0 0
      %433 = vmatpush.bf16.msra.mxu0 %v372
      %434 = vmatmul.bf16.gmra.mxu0 %v345
      %v435 = vpop.f32.mrf.mxu0
      %v436 = vadd.f32 %v387, %v435
      %v437 = vpop.f32.mrf.mxu0
      %v438 = vadd.f32 %v389, %v437
      %439 = vmatmul.bf16.gmra.mxu0 %v348
      %v440 = vpop.f32.mrf.mxu0
      %v441 = vadd.f32 %v392, %v440
      %v442 = vpop.f32.mrf.mxu0
      %v443 = vadd.f32 %v394, %v442
      %444 = vmatmul.bf16.gmra.mxu0 %v351
      %v445 = vpop.f32.mrf.mxu0
      %v446 = vadd.f32 %v397, %v445
      %v447 = vpop.f32.mrf.mxu0
      %v448 = vadd.f32 %v399, %v447
      %449 = vmatmul.bf16.gmra.mxu0 %v354
      %v450 = vpop.f32.mrf.mxu0
      %v451 = vadd.f32 %v402, %v450
      %v452 = vpop.f32.mrf.mxu0
      %v453 = vadd.f32 %v404, %v452
      %454 = vmatmul.bf16.gmra.mxu0 %v357
      %v455 = vpop.f32.mrf.mxu0
      %v456 = vadd.f32 %v407, %v455
      %v457 = vpop.f32.mrf.mxu0
      %v458 = vadd.f32 %v409, %v457
      %459 = vmatmul.bf16.gmra.mxu0 %v360
      %v460 = vpop.f32.mrf.mxu0
      %v461 = vadd.f32 %v412, %v460
      %v462 = vpop.f32.mrf.mxu0
      %v463 = vadd.f32 %v414, %v462
      %464 = vmatmul.bf16.gmra.mxu0 %v363
      %v465 = vpop.f32.mrf.mxu0
      %v466 = vadd.f32 %v417, %v465
      %v467 = vpop.f32.mrf.mxu0
      %v468 = vadd.f32 %v419, %v467
      %469 = vmatmul.bf16.gmra.mxu0 %v366
      %v470 = vpop.f32.mrf.mxu0
      %v471 = vadd.f32 %v422, %v470
      %v472 = vpop.f32.mrf.mxu0
      %v473 = vadd.f32 %v424, %v472
      %474 = vdwg.mxu0
      %475 = vmatpush.bf16.msra.mxu0 %v324
      %476 = vmatpush.bf16.msra.mxu0 %v322
      %477 = vmatpush.bf16.msra.mxu0 %v320
      %478 = vmatpush.bf16.msra.mxu0 %v318
      %479 = vmatpush.bf16.msra.mxu0 %v316
      %480 = vmatpush.bf16.msra.mxu0 %v314
      %481 = vmatpush.bf16.msra.mxu0 %v312
      %482 = vmatpush.bf16.msra.mxu0 %v310
      %483 = vmatmul.bf16.gmra.mxu0 %v234
      %v484 = vpop.f32.mrf.mxu0
      %v485 = vadd.f32 0.0, %v484
      %v486 = vpop.f32.mrf.mxu0
      %v487 = vadd.f32 0.0, %v486
      %488 = vmatmul.bf16.gmra.mxu0 %v236
      %v489 = vpop.f32.mrf.mxu0
      %v490 = vadd.f32 0.0, %v489
      %v491 = vpop.f32.mrf.mxu0
      %v492 = vadd.f32 0.0, %v491
      %493 = vmatmul.bf16.gmra.mxu0 %v238
      %v494 = vpop.f32.mrf.mxu0
      %v495 = vadd.f32 0.0, %v494
      %v496 = vpop.f32.mrf.mxu0
      %v497 = vadd.f32 0.0, %v496
      %498 = vmatmul.bf16.gmra.mxu0 %v240
      %v499 = vpop.f32.mrf.mxu0
      %v500 = vadd.f32 0.0, %v499
      %v501 = vpop.f32.mrf.mxu0
      %v502 = vadd.f32 0.0, %v501
      %503 = vmatmul.bf16.gmra.mxu0 %v242
      %v504 = vpop.f32.mrf.mxu0
      %v505 = vadd.f32 0.0, %v504
      %v506 = vpop.f32.mrf.mxu0
      %v507 = vadd.f32 0.0, %v506
      %508 = vmatmul.bf16.gmra.mxu0 %v244
      %v509 = vpop.f32.mrf.mxu0
      %v510 = vadd.f32 0.0, %v509
      %v511 = vpop.f32.mrf.mxu0
      %v512 = vadd.f32 0.0, %v511
      %513 = vmatmul.bf16.gmra.mxu0 %v246
      %v514 = vpop.f32.mrf.mxu0
      %v515 = vadd.f32 0.0, %v514
      %v516 = vpop.f32.mrf.mxu0
      %v517 = vadd.f32 0.0, %v516
      %518 = vmatmul.bf16.gmra.mxu0 %v248
      %v519 = vpop.f32.mrf.mxu0
      %v520 = vadd.f32 0.0, %v519
      %v521 = vpop.f32.mrf.mxu0
      %v522 = vadd.f32 0.0, %v521
      %523 = vdwg.mxu0
      %524 = vmatpush.bf16.msra.mxu0 0
      %525 = vmatpush.bf16.msra.mxu0 0
      %526 = vmatpush.bf16.msra.mxu0 0
      %527 = vmatpush.bf16.msra.mxu0 0
      %528 = vmatpush.bf16.msra.mxu0 0
      %529 = vmatpush.bf16.msra.mxu0 0
      %530 = vmatpush.bf16.msra.mxu0 0
      %531 = vmatpush.bf16.msra.mxu0 %v375
      %532 = vmatmul.bf16.gmra.mxu0 %v345
      %v533 = vpop.f32.mrf.mxu0
      %v534 = vadd.f32 %v485, %v533
      %v535 = vpop.f32.mrf.mxu0
      %v536 = vadd.f32 %v487, %v535
      %537 = vmatmul.bf16.gmra.mxu0 %v348
      %v538 = vpop.f32.mrf.mxu0
      %v539 = vadd.f32 %v490, %v538
      %v540 = vpop.f32.mrf.mxu0
      %v541 = vadd.f32 %v492, %v540
      %542 = vmatmul.bf16.gmra.mxu0 %v351
      %v543 = vpop.f32.mrf.mxu0
      %v544 = vadd.f32 %v495, %v543
      %v545 = vpop.f32.mrf.mxu0
      %v546 = vadd.f32 %v497, %v545
      %547 = vmatmul.bf16.gmra.mxu0 %v354
      %v548 = vpop.f32.mrf.mxu0
      %v549 = vadd.f32 %v500, %v548
      %v550 = vpop.f32.mrf.mxu0
      %v551 = vadd.f32 %v502, %v550
      %552 = vmatmul.bf16.gmra.mxu0 %v357
      %v553 = vpop.f32.mrf.mxu0
      %v554 = vadd.f32 %v505, %v553
      %v555 = vpop.f32.mrf.mxu0
      %v556 = vadd.f32 %v507, %v555
      %557 = vmatmul.bf16.gmra.mxu0 %v360
      %v558 = vpop.f32.mrf.mxu0
      %v559 = vadd.f32 %v510, %v558
      %v560 = vpop.f32.mrf.mxu0
      %v561 = vadd.f32 %v512, %v560
      %562 = vmatmul.bf16.gmra.mxu0 %v363
      %v563 = vpop.f32.mrf.mxu0
      %v564 = vadd.f32 %v515, %v563
      %v565 = vpop.f32.mrf.mxu0
      %v566 = vadd.f32 %v517, %v565
      %567 = vmatmul.bf16.gmra.mxu0 %v366
      %v568 = vpop.f32.mrf.mxu0
      %v569 = vadd.f32 %v520, %v568
      %v570 = vpop.f32.mrf.mxu0
      %v571 = vadd.f32 %v522, %v570
      %572 = vdwg.mxu0
      %v573 = vpack.c.bf16 %v534, %v436
      %v574 = vpack.c.bf16 %v536, %v438
      %v575 = vpack.c.bf16 %v539, %v441
      %v576 = vpack.c.bf16 %v541, %v443
      %v577 = vpack.c.bf16 %v544, %v446
      %v578 = vpack.c.bf16 %v546, %v448
      %v579 = vpack.c.bf16 %v549, %v451
      %v580 = vpack.c.bf16 %v551, %v453
      %v581 = vpack.c.bf16 %v554, %v456
      %v582 = vpack.c.bf16 %v556, %v458
      %v583 = vpack.c.bf16 %v559, %v461
      %v584 = vpack.c.bf16 %v561, %v463
      %v585 = vpack.c.bf16 %v564, %v466
      %v586 = vpack.c.bf16 %v566, %v468
      %v587 = vpack.c.bf16 %v569, %v471
      %v588 = vpack.c.bf16 %v571, %v473
      %589 = vst [vmem:[%s150] sm:$0xff] %v573
      %590 = vst [vmem:[%s150 + $0x8] sm:$0xff] %v574
      %591 = vst [vmem:[%s150 + $0x10] sm:$0xff] %v575
      %592 = vst [vmem:[%s150 + $0x18] sm:$0xff] %v576
      %593 = vst [vmem:[%s150 + $0x20] sm:$0xff] %v577
      %594 = vst [vmem:[%s150 + $0x28] sm:$0xff] %v578
      %595 = vst [vmem:[%s150 + $0x30] sm:$0xff] %v579
      %596 = vst [vmem:[%s150 + $0x38] sm:$0xff] %v580
      %597 = vst [vmem:[%s150 + $0x40] sm:$0xff] %v581
      %598 = vst [vmem:[%s150 + $0x48] sm:$0xff] %v582
      %599 = vst [vmem:[%s150 + $0x50] sm:$0xff] %v583
      %600 = vst [vmem:[%s150 + $0x58] sm:$0xff] %v584
      %601 = vst [vmem:[%s150 + $0x60] sm:$0xff] %v585
      %602 = vst [vmem:[%s150 + $0x68] sm:$0xff] %v586
      %603 = vst [vmem:[%s150 + $0x70] sm:$0xff] %v587
      %604 = vst [vmem:[%s150 + $0x78] sm:$0xff] %v588
      %s605 = smul.u32 16, %s13
      %p606 = scmp.lt.s32.totalorder %s605, 31
      %s607 = scalar_select %p606, %s605, 31
      %s608 = smul.addr %s607, 2
      %s609 = smul.addr %s608, 4
      %s610 = scalar_lea.vmem %s2, %s609
      // Predicated region
      $region29: #{gat_forward.8} parent=27 // pred_check
        %p611 = pneg %p78
      $region30: #{gat_forward.8} parent=27 // pred_check_branch
        %613 = sbr.rel (%p611) target = $region32
      $region31: #{gat_forward.8} parent=27 // pred_region
        %s614 = smul.u32 16, %s13
      $region32: #{gat_forward.8} parent=27 // pred_fallthru
        _
    $region28: #{gat_forward.8} parent=5 // pred_fallthru
      _
    %p615 = scmp.le.s32.totalorder 2, %s8
    // Predicated region
    $region33: #{gat_forward.8} parent=5 // pred_check
      %p616 = pneg %p615
    $region34: #{gat_forward.8} parent=5 // pred_check_branch
      %618 = sbr.rel (%p616) target = $region36
    $region35: #{gat_forward.8} parent=5 // pred_region
      %s619 = ssub.s32 %s8, 2
      // Predicated region
      $region37: #{gat_forward.8} parent=35 // pred_check
        %p620 = pneg %p84
      $region38: #{gat_forward.8} parent=35 // pred_check_branch
        %622 = sbr.rel (%p620) target = $region40
      $region39: #{gat_forward.8} parent=35 // pred_region
        %s623 = smul.u32 16, %s14
        %p624 = scmp.lt.s32.totalorder %s623, 31
        %s625 = scalar_select %p624, %s623, 31
        %s626 = smul.addr %s625, 2
        %s627 = smul.addr %s626, 4
        %s628 = scalar_lea.vmem %s2, %s627
      $region40: #{gat_forward.8} parent=35 // pred_fallthru
        _
    $region36: #{gat_forward.8} parent=5 // pred_fallthru
      _
  $region6: #{gat_forward.8} parent=0 // loop_footer
    %s12 = sadd.s32 1, %s8
  $region7: #{gat_forward.8} parent=0 // loop_footer_branch
    %7 = sbr.rel target = $region3
  $region8: #{gat_forward.8} parent=0 // loop_exit
    _

// kernel: gat_forward.10
$region0: #{gat_forward.10}
  #allocation0 [shape = 'u32[]', space=smem, size = 0x4, offset = 0x4, fixed_abs, tag = 'smem constant byte address 0x4 - core index']
  #allocation1 [shape = 'u32[72,128]{1,0:T(1,128)}', space=vmem, size = 0x9000, scoped, tag = 'internal scratch']
  %s0 = inlined_call_operand.vmem [shape: bf16[256,129], index: 0, kind: input, shape index: {}]
  %s1 = inlined_call_operand.vmem [shape: bf16[129,128], index: 1, kind: input, shape index: {}]
  %s2 = inlined_call_operand.vmem [shape: bf16[256,128], index: 2, kind: output, shape index: {}]
  %s3 = sld [smem:[#allocation0]]
  $region41: #{gat_forward.10} parent=0
    _
  %s5 = ssub.s32 1, %s3
  %s6 = scalar_select 0, %s5, %s3
  loop: start=0, step=1, limit=4
  $region2: #{gat_forward.10} parent=0 // loop_pre_header
    _
  $region3: #{gat_forward.10} parent=0 // loop_header
    %s8 = sphi 0, %s12
    %p9 = scmp.ge.s32.totalorder %s8, 4
    %s18 = sphi 0, %s20
    %s21 = sphi 0, %s18
    %s22 = sphi 0, %s21
    %s38 = sphi 0, %s22
    %s42 = sphi 0, %s42
    %s44 = sphi 0, %s42
    %s45 = sphi 0, %s44
    %s59 = sphi 0, %s45
    %s65 = sphi 0, %s67
    %s68 = sphi 0, %s65
    %s69 = sphi 0, %s68
    %s85 = sphi 0, %s69
  $region4: #{gat_forward.10} parent=0 // loop_header_branch
    %11 = sbr.rel (%p9) target = $region8
  $region5: #{gat_forward.10} parent=0 // loop_body
    %s13 = ssub.s32 %s8, 1
    %s14 = ssub.s32 %s8, 2
    %s15 = sadd.s32 %s8, 1
    %s16 = ssub.s32 %s8, %s15
    %p17 = scmp.eq.s32.totalorder %s16, 0
    %s19 = sadd.s32 %s18, 1
    %s20 = scalar_select %p17, %s18, %s19
    %p23 = pneg %p17
    %p24 = scmp.eq.s32.totalorder %s8, 1
    %p25 = por %p23, %p24
    %p26 = scmp.ne.s32.totalorder %s18, %s21
    %p27 = scmp.eq.s32.totalorder %s8, 0
    %p28 = por %p26, %p27
    %p29 = scmp.ne.s32.totalorder %s18, %s21
    %p30 = scmp.eq.s32.totalorder %s13, 1
    %p31 = por %p29, %p30
    %p32 = scmp.ne.s32.totalorder %s21, %s22
    %p33 = scmp.eq.s32.totalorder %s13, 0
    %p34 = por %p32, %p33
    %p35 = scmp.ne.s32.totalorder %s21, %s22
    %p36 = scmp.eq.s32.totalorder %s14, 1
    %p37 = por %p35, %p36
    %p39 = scmp.ne.s32.totalorder %s22, %s38
    %p40 = scmp.eq.s32.totalorder %s14, 0
    %p41 = por %p39, %p40
    %s43 = sadd.s32 %s42, 1
    %p46 = scmp.eq.s32.totalorder %s8, 1
    %p47 = scmp.ne.s32.totalorder %s42, %s44
    %p48 = scmp.eq.s32.totalorder %s8, 0
    %p49 = por %p47, %p48
    %p50 = scmp.ne.s32.totalorder %s42, %s44
    %p51 = scmp.eq.s32.totalorder %s13, 1
    %p52 = por %p50, %p51
    %p53 = scmp.ne.s32.totalorder %s44, %s45
    %p54 = scmp.eq.s32.totalorder %s13, 0
    %p55 = por %p53, %p54
    %p56 = scmp.ne.s32.totalorder %s44, %s45
    %p57 = scmp.eq.s32.totalorder %s14, 1
    %p58 = por %p56, %p57
    %p60 = scmp.ne.s32.totalorder %s45, %s59
    %p61 = scmp.eq.s32.totalorder %s14, 0
    %p62 = por %p60, %p61
    %s63 = ssub.s32 %s8, %s15
    %p64 = scmp.eq.s32.totalorder %s63, 0
    %s66 = sadd.s32 %s65, 1
    %s67 = scalar_select %p64, %s65, %s66
    %p70 = pneg %p64
    %p71 = scmp.eq.s32.totalorder %s8, 1
    %p72 = por %p70, %p71
    %p73 = scmp.ne.s32.totalorder %s65, %s68
    %p74 = scmp.eq.s32.totalorder %s8, 0
    %p75 = por %p73, %p74
    %p76 = scmp.ne.s32.totalorder %s65, %s68
    %p77 = scmp.eq.s32.totalorder %s13, 1
    %p78 = por %p76, %p77
    %p79 = scmp.ne.s32.totalorder %s68, %s69
    %p80 = scmp.eq.s32.totalorder %s13, 0
    %p81 = por %p79, %p80
    %p82 = scmp.ne.s32.totalorder %s68, %s69
    %p83 = scmp.eq.s32.totalorder %s14, 1
    %p84 = por %p82, %p83
    %p86 = scmp.ne.s32.totalorder %s69, %s85
    %p87 = scmp.eq.s32.totalorder %s14, 0
    %p88 = por %p86, %p87
    %p89 = scmp.le.s32.totalorder 1, %s8
    %p90 = scmp.lt.s32.totalorder %s8, 3
    %p91 = pnand %p89, %p90
    %p92 = pneg %p91
    // Predicated region
    $region9: #{gat_forward.10} parent=5 // pred_check
      _
    $region10: #{gat_forward.10} parent=5 // pred_check_branch
      %94 = sbr.rel (%p91) target = $region12
    $region11: #{gat_forward.10} parent=5 // pred_region
      %s95 = ssub.s32 %s8, 1
      // Predicated region
      $region13: #{gat_forward.10} parent=11 // pred_check
        %p96 = pneg %p55
      $region14: #{gat_forward.10} parent=11 // pred_check_branch
        %98 = sbr.rel (%p96) target = $region16
      $region15: #{gat_forward.10} parent=11 // pred_region
        _
      $region16: #{gat_forward.10} parent=11 // pred_fallthru
        _
    $region12: #{gat_forward.10} parent=5 // pred_fallthru
      _
    %p99 = scmp.lt.s32.totalorder %s8, 2
    // Predicated region
    $region17: #{gat_forward.10} parent=5 // pred_check
      %p100 = pneg %p99
    $region18: #{gat_forward.10} parent=5 // pred_check_branch
      %102 = sbr.rel (%p100) target = $region20
    $region19: #{gat_forward.10} parent=5 // pred_region
      // Predicated region
      $region21: #{gat_forward.10} parent=19 // pred_check
        %p103 = pneg %p28
      $region22: #{gat_forward.10} parent=19 // pred_check_branch
        %105 = sbr.rel (%p103) target = $region24
      $region23: #{gat_forward.10} parent=19 // pred_region
        %s106 = smul.u32 16, %s8
        %p107 = scmp.lt.s32.totalorder %s106, 31
        %s108 = scalar_select %p107, %s106, 31
        %s109 = smul.addr %s108, 2
        %s110 = smul.addr %s109, 4
        %s111 = scalar_lea.vmem %s0, %s110
        %s112 = smul.u32 16, %s8
      $region24: #{gat_forward.10} parent=19 // pred_fallthru
        _
    $region20: #{gat_forward.10} parent=5 // pred_fallthru
      _
    %p113 = scmp.le.s32.totalorder 1, %s8
    %p114 = scmp.lt.s32.totalorder %s8, 3
    %p115 = pnand %p113, %p114
    %p116 = pneg %p115
    // Predicated region
    $region25: #{gat_forward.10} parent=5 // pred_check
      _
    $region26: #{gat_forward.10} parent=5 // pred_check_branch
      %118 = sbr.rel (%p115) target = $region28
    $region27: #{gat_forward.10} parent=5 // pred_region
      %s119 = ssub.s32 %s8, 1
      %s120 = smul.u32 16, %s13
      %p121 = scmp.lt.s32.totalorder %s120, 31
      %s122 = scalar_select %p121, %s120, 31
      %s123 = smul.addr %s122, 2
      %s124 = smul.addr %s123, 4
      %s125 = scalar_lea.vmem %s0, %s124
      %p126 = pneg %p34
      %p127 = pneg %p31
      %p128 = pneg %p55
      %p129 = pneg %p52
      %p130 = pneg %p81
      %p131 = pneg %p78
      %s132 = smul.u32 16, %s13
      %p133 = scmp.lt.s32.totalorder %s132, 31
      %s134 = scalar_select %p133, %s132, 31
      %s135 = smul.addr %s134, 4
      %s136 = scalar_lea.vmem %s2, %s135
      %s137 = smul.u32 16, %s13
      %p138 = scmp.lt.s32.totalorder %s137, 31
      %s139 = scalar_select %p138, %s137, 31
      %s140 = smul.addr %s139, 2
      %s141 = smul.addr %s140, 4
      %s142 = scalar_lea.vmem %s0, %s141
      %s143 = smul.u32 16, %s13
      %s144 = smul.u32 16, %s13
      %p145 = scmp.lt.s32.totalorder %s144, 31
      %s146 = scalar_select %p145, %s144, 31
      %s147 = smul.addr %s146, 4
      %s148 = scalar_lea.vmem %s2, %s147
      %s149 = smul.u32 16, %s13
      %v151 = vld [vmem:[%s142] sm:$0xff]
      %v152 = vld [vmem:[%s142 + $0x8] sm:$0xff]
      %v153 = vld [vmem:[%s142 + $0x10] sm:$0xff]
      %v154 = vld [vmem:[%s142 + $0x18] sm:$0xff]
      %v155 = vld [vmem:[%s142 + $0x20] sm:$0xff]
      %v156 = vld [vmem:[%s142 + $0x28] sm:$0xff]
      %v157 = vld [vmem:[%s142 + $0x30] sm:$0xff]
      %v158 = vld [vmem:[%s142 + $0x38] sm:$0xff]
      %v159 = vld [vmem:[%s142 + $0x40] sm:$0xff]
      %v160 = vld [vmem:[%s142 + $0x48] sm:$0xff]
      %v161 = vld [vmem:[%s142 + $0x50] sm:$0xff]
      %v162 = vld [vmem:[%s142 + $0x58] sm:$0xff]
      %v163 = vld [vmem:[%s142 + $0x60] sm:$0xff]
      %v164 = vld [vmem:[%s142 + $0x68] sm:$0xff]
      %v165 = vld [vmem:[%s142 + $0x70] sm:$0xff]
      %v166 = vld [vmem:[%s142 + $0x78] sm:$0xff]
      %v167 = vld [vmem:[%s1] sm:$0xf]
      %v168 = vld [vmem:[%s1 + $0x4] sm:$0xf]
      %v169 = vld [vmem:[%s1 + $0x8] sm:$0xf]
      %v170 = vld [vmem:[%s1 + $0xc] sm:$0xf]
      %v171 = vld [vmem:[%s1 + $0x10] sm:$0xf]
      %v172 = vld [vmem:[%s1 + $0x14] sm:$0xf]
      %v173 = vld [vmem:[%s1 + $0x18] sm:$0xf]
      %v174 = vld [vmem:[%s1 + $0x1c] sm:$0xf]
      %v175 = vld [vmem:[%s1 + $0x20] sm:$0xf]
      %v176 = vld [vmem:[%s1 + $0x24] sm:$0xf]
      %v177 = vld [vmem:[%s1 + $0x28] sm:$0xf]
      %v178 = vld [vmem:[%s1 + $0x2c] sm:$0xf]
      %v179 = vld [vmem:[%s1 + $0x30] sm:$0xf]
      %v180 = vld [vmem:[%s1 + $0x34] sm:$0xf]
      %v181 = vld [vmem:[%s1 + $0x38] sm:$0xf]
      %v182 = vld [vmem:[%s1 + $0x3c] sm:$0xf]
      %v183 = vld [vmem:[%s1 + $0x40] sm:$0x1]
      %v200 = vunpack.c.l.b16 %v151
      %v201 = vunpack.c.h.b16 %v151
      %v202 = vunpack.c.l.b16 %v152
      %v203 = vunpack.c.h.b16 %v152
      %v204 = vunpack.c.l.b16 %v153
      %v205 = vunpack.c.h.b16 %v153
      %v206 = vunpack.c.l.b16 %v154
      %v207 = vunpack.c.h.b16 %v154
      %v208 = vunpack.c.l.b16 %v155
      %v209 = vunpack.c.h.b16 %v155
      %v210 = vunpack.c.l.b16 %v156
      %v211 = vunpack.c.h.b16 %v156
      %v212 = vunpack.c.l.b16 %v157
      %v213 = vunpack.c.h.b16 %v157
      %v214 = vunpack.c.l.b16 %v158
      %v215 = vunpack.c.h.b16 %v158
      %v216 = vunpack.c.l.b16 %v159
      %v217 = vunpack.c.h.b16 %v159
      %v218 = vunpack.c.l.b16 %v160
      %v219 = vunpack.c.h.b16 %v160
      %v220 = vunpack.c.l.b16 %v161
      %v221 = vunpack.c.h.b16 %v161
      %v222 = vunpack.c.l.b16 %v162
      %v223 = vunpack.c.h.b16 %v162
      %v224 = vunpack.c.l.b16 %v163
      %v225 = vunpack.c.h.b16 %v163
      %v226 = vunpack.c.l.b16 %v164
      %v227 = vunpack.c.h.b16 %v164
      %v228 = vunpack.c.l.b16 %v165
      %v229 = vunpack.c.h.b16 %v165
      %v230 = vunpack.c.l.b16 %v166
      %v231 = vunpack.c.h.b16 %v166
      %v232 = vpack.c.b16 %v202, %v200
      %v233 = vpack.c.b16 %v203, %v201
      %v234 = vpack.c.b16 %v206, %v204
      %v235 = vpack.c.b16 %v207, %v205
      %v236 = vpack.c.b16 %v210, %v208
      %v237 = vpack.c.b16 %v211, %v209
      %v238 = vpack.c.b16 %v214, %v212
      %v239 = vpack.c.b16 %v215, %v213
      %v240 = vpack.c.b16 %v218, %v216
      %v241 = vpack.c.b16 %v219, %v217
      %v242 = vpack.c.b16 %v222, %v220
      %v243 = vpack.c.b16 %v223, %v221
      %v244 = vpack.c.b16 %v226, %v224
      %v245 = vpack.c.b16 %v227, %v225
      %v246 = vpack.c.b16 %v230, %v228
      %v247 = vpack.c.b16 %v231, %v229
      %v273 = vunpack.c.l.b16 %v167
      %v274 = vunpack.c.l.b16 %v168
      %v275 = vunpack.c.l.b16 %v169
      %v276 = vunpack.c.l.b16 %v170
      %v277 = vunpack.c.l.b16 %v171
      %v278 = vunpack.c.l.b16 %v172
      %v279 = vunpack.c.l.b16 %v173
      %v280 = vunpack.c.l.b16 %v174
      %v281 = vunpack.c.l.b16 %v175
      %v282 = vunpack.c.l.b16 %v176
      %v283 = vunpack.c.l.b16 %v177
      %v284 = vunpack.c.l.b16 %v178
      %v285 = vunpack.c.l.b16 %v179
      %v286 = vunpack.c.l.b16 %v180
      %v287 = vunpack.c.l.b16 %v181
      %v288 = vunpack.c.l.b16 %v182
      %v289 = vunpack.c.l.b16 %v183
      %v290 = vpack.c.b16 %v274, %v273
      %v291 = vpack.c.b16 %v276, %v275
      %v292 = vpack.c.b16 %v278, %v277
      %v293 = vpack.c.b16 %v280, %v279
      %v294 = vpack.c.b16 %v282, %v281
      %v295 = vpack.c.b16 %v284, %v283
      %v296 = vpack.c.b16 %v286, %v285
      %v297 = vpack.c.b16 %v288, %v287
      %v298 = vpack.c.b16 %v289, %v289
      %vm307 = vcmask 7168
      %v309 = vsel %vm307, %v233, 0
      %v312 = vsel %vm307, %v235, 0
      %v315 = vsel %vm307, %v237, 0
      %v318 = vsel %vm307, %v239, 0
      %v321 = vsel %vm307, %v241, 0
      %v324 = vsel %vm307, %v243, 0
      %v327 = vsel %vm307, %v245, 0
      %v330 = vsel %vm307, %v247, 0
      %vm332 = vcmask 1040384
      %v333 = vsel 0, 4294967295, 65535
      %v334 = vsel %vm332, %v333, 0
      %v336 = vand.u32 %v298, %v334
      %338 = vmatpush.bf16.msra.mxu0 %v297
      %339 = vmatpush.bf16.msra.mxu0 %v296
      %340 = vmatpush.bf16.msra.mxu0 %v295
      %341 = vmatpush.bf16.msra.mxu0 %v294
      %342 = vmatpush.bf16.msra.mxu0 %v293
      %343 = vmatpush.bf16.msra.mxu0 %v292
      %344 = vmatpush.bf16.msra.mxu0 %v291
      %345 = vmatpush.bf16.msra.mxu0 %v290
      %346 = vmatmul.bf16.gmra.mxu0 %v232
      %v347 = vpop.f32.mrf.mxu0
      %v348 = vadd.f32 0.0, %v347
      %v349 = vpop.f32.mrf.mxu0
      %v350 = vadd.f32 0.0, %v349
      %351 = vmatmul.bf16.gmra.mxu0 %v234
      %v352 = vpop.f32.mrf.mxu0
      %v353 = vadd.f32 0.0, %v352
      %v354 = vpop.f32.mrf.mxu0
      %v355 = vadd.f32 0.0, %v354
      %356 = vmatmul.bf16.gmra.mxu0 %v236
      %v357 = vpop.f32.mrf.mxu0
      %v358 = vadd.f32 0.0, %v357
      %v359 = vpop.f32.mrf.mxu0
      %v360 = vadd.f32 0.0, %v359
      %361 = vmatmul.bf16.gmra.mxu0 %v238
      %v362 = vpop.f32.mrf.mxu0
      %v363 = vadd.f32 0.0, %v362
      %v364 = vpop.f32.mrf.mxu0
      %v365 = vadd.f32 0.0, %v364
      %366 = vmatmul.bf16.gmra.mxu0 %v240
      %v367 = vpop.f32.mrf.mxu0
      %v368 = vadd.f32 0.0, %v367
      %v369 = vpop.f32.mrf.mxu0
      %v370 = vadd.f32 0.0, %v369
      %371 = vmatmul.bf16.gmra.mxu0 %v242
      %v372 = vpop.f32.mrf.mxu0
      %v373 = vadd.f32 0.0, %v372
      %v374 = vpop.f32.mrf.mxu0
      %v375 = vadd.f32 0.0, %v374
      %376 = vmatmul.bf16.gmra.mxu0 %v244
      %v377 = vpop.f32.mrf.mxu0
      %v378 = vadd.f32 0.0, %v377
      %v379 = vpop.f32.mrf.mxu0
      %v380 = vadd.f32 0.0, %v379
      %381 = vmatmul.bf16.gmra.mxu0 %v246
      %v382 = vpop.f32.mrf.mxu0
      %v383 = vadd.f32 0.0, %v382
      %v384 = vpop.f32.mrf.mxu0
      %v385 = vadd.f32 0.0, %v384
      %386 = vdwg.mxu0
      %387 = vmatpush.bf16.msra.mxu0 0
      %388 = vmatpush.bf16.msra.mxu0 0
      %389 = vmatpush.bf16.msra.mxu0 0
      %390 = vmatpush.bf16.msra.mxu0 0
      %391 = vmatpush.bf16.msra.mxu0 0
      %392 = vmatpush.bf16.msra.mxu0 0
      %393 = vmatpush.bf16.msra.mxu0 0
      %394 = vmatpush.bf16.msra.mxu0 %v336
      %395 = vmatmul.bf16.gmra.mxu0 %v309
      %v396 = vpop.f32.mrf.mxu0
      %v397 = vadd.f32 %v348, %v396
      %v398 = vpop.f32.mrf.mxu0
      %v399 = vadd.f32 %v350, %v398
      %400 = vmatmul.bf16.gmra.mxu0 %v312
      %v401 = vpop.f32.mrf.mxu0
      %v402 = vadd.f32 %v353, %v401
      %v403 = vpop.f32.mrf.mxu0
      %v404 = vadd.f32 %v355, %v403
      %405 = vmatmul.bf16.gmra.mxu0 %v315
      %v406 = vpop.f32.mrf.mxu0
      %v407 = vadd.f32 %v358, %v406
      %v408 = vpop.f32.mrf.mxu0
      %v409 = vadd.f32 %v360, %v408
      %410 = vmatmul.bf16.gmra.mxu0 %v318
      %v411 = vpop.f32.mrf.mxu0
      %v412 = vadd.f32 %v363, %v411
      %v413 = vpop.f32.mrf.mxu0
      %v414 = vadd.f32 %v365, %v413
      %415 = vmatmul.bf16.gmra.mxu0 %v321
      %v416 = vpop.f32.mrf.mxu0
      %v417 = vadd.f32 %v368, %v416
      %v418 = vpop.f32.mrf.mxu0
      %v419 = vadd.f32 %v370, %v418
      %420 = vmatmul.bf16.gmra.mxu0 %v324
      %v421 = vpop.f32.mrf.mxu0
      %v422 = vadd.f32 %v373, %v421
      %v423 = vpop.f32.mrf.mxu0
      %v424 = vadd.f32 %v375, %v423
      %425 = vmatmul.bf16.gmra.mxu0 %v327
      %v426 = vpop.f32.mrf.mxu0
      %v427 = vadd.f32 %v378, %v426
      %v428 = vpop.f32.mrf.mxu0
      %v429 = vadd.f32 %v380, %v428
      %430 = vmatmul.bf16.gmra.mxu0 %v330
      %v431 = vpop.f32.mrf.mxu0
      %v432 = vadd.f32 %v383, %v431
      %v433 = vpop.f32.mrf.mxu0
      %v434 = vadd.f32 %v385, %v433
      %435 = vdwg.mxu0
      %v436 = vpack.c.bf16 %v397, %v397
      %v437 = vpack.c.bf16 %v399, %v399
      %v438 = vpack.c.bf16 %v402, %v402
      %v439 = vpack.c.bf16 %v404, %v404
      %v440 = vpack.c.bf16 %v407, %v407
      %v441 = vpack.c.bf16 %v409, %v409
      %v442 = vpack.c.bf16 %v412, %v412
      %v443 = vpack.c.bf16 %v414, %v414
      %v444 = vpack.c.bf16 %v417, %v417
      %v445 = vpack.c.bf16 %v419, %v419
      %v446 = vpack.c.bf16 %v422, %v422
      %v447 = vpack.c.bf16 %v424, %v424
      %v448 = vpack.c.bf16 %v427, %v427
      %v449 = vpack.c.bf16 %v429, %v429
      %v450 = vpack.c.bf16 %v432, %v432
      %v451 = vpack.c.bf16 %v434, %v434
      %452 = vst [vmem:[%s148] sm:$0xf] %v436
      %453 = vst [vmem:[%s148 + $0x4] sm:$0xf] %v437
      %454 = vst [vmem:[%s148 + $0x8] sm:$0xf] %v438
      %455 = vst [vmem:[%s148 + $0xc] sm:$0xf] %v439
      %456 = vst [vmem:[%s148 + $0x10] sm:$0xf] %v440
      %457 = vst [vmem:[%s148 + $0x14] sm:$0xf] %v441
      %458 = vst [vmem:[%s148 + $0x18] sm:$0xf] %v442
      %459 = vst [vmem:[%s148 + $0x1c] sm:$0xf] %v443
      %460 = vst [vmem:[%s148 + $0x20] sm:$0xf] %v444
      %461 = vst [vmem:[%s148 + $0x24] sm:$0xf] %v445
      %462 = vst [vmem:[%s148 + $0x28] sm:$0xf] %v446
      %463 = vst [vmem:[%s148 + $0x2c] sm:$0xf] %v447
      %464 = vst [vmem:[%s148 + $0x30] sm:$0xf] %v448
      %465 = vst [vmem:[%s148 + $0x34] sm:$0xf] %v449
      %466 = vst [vmem:[%s148 + $0x38] sm:$0xf] %v450
      %467 = vst [vmem:[%s148 + $0x3c] sm:$0xf] %v451
      %s468 = smul.u32 16, %s13
      %p469 = scmp.lt.s32.totalorder %s468, 31
      %s470 = scalar_select %p469, %s468, 31
      %s471 = smul.addr %s470, 4
      %s472 = scalar_lea.vmem %s2, %s471
      // Predicated region
      $region29: #{gat_forward.10} parent=27 // pred_check
        %p473 = pneg %p78
      $region30: #{gat_forward.10} parent=27 // pred_check_branch
        %475 = sbr.rel (%p473) target = $region32
      $region31: #{gat_forward.10} parent=27 // pred_region
        %s476 = smul.u32 16, %s13
      $region32: #{gat_forward.10} parent=27 // pred_fallthru
        _
    $region28: #{gat_forward.10} parent=5 // pred_fallthru
      _
    %p477 = scmp.le.s32.totalorder 2, %s8
    // Predicated region
    $region33: #{gat_forward.10} parent=5 // pred_check
      %p478 = pneg %p477
    $region34: #{gat_forward.10} parent=5 // pred_check_branch
      %480 = sbr.rel (%p478) target = $region36
    $region35: #{gat_forward.10} parent=5 // pred_region
      %s481 = ssub.s32 %s8, 2
      // Predicated region
      $region37: #{gat_forward.10} parent=35 // pred_check
        %p482 = pneg %p84
      $region38: #{gat_forward.10} parent=35 // pred_check_branch
        %484 = sbr.rel (%p482) target = $region40
      $region39: #{gat_forward.10} parent=35 // pred_region
        %s485 = smul.u32 16, %s14
        %p486 = scmp.lt.s32.totalorder %s485, 31
        %s487 = scalar_select %p486, %s485, 31
        %s488 = smul.addr %s487, 4
        %s489 = scalar_lea.vmem %s2, %s488
      $region40: #{gat_forward.10} parent=35 // pred_fallthru
        _
    $region36: #{gat_forward.10} parent=5 // pred_fallthru
      _
  $region6: #{gat_forward.10} parent=0 // loop_footer
    %s12 = sadd.s32 1, %s8
  $region7: #{gat_forward.10} parent=0 // loop_footer_branch
    %7 = sbr.rel target = $region3
  $region8: #{gat_forward.10} parent=0 // loop_exit
    _

// kernel: gat_forward.7
$region0: #{gat_forward.7}
  #allocation0 [shape = 'u32[]', space=smem, size = 0x4, offset = 0x4, fixed_abs, tag = 'smem constant byte address 0x4 - core index']
  #allocation1 [shape = 'u32[72,128]{1,0:T(1,128)}', space=vmem, size = 0x9000, scoped, tag = 'internal scratch']
  #allocation2 [shape = 'f32[128,4]{1,0:T(8,128)}', space=vmem, size = 0x10000, scoped, tag = 'scratch operand']
  #allocation3 [shape = 'f32[128,132]{1,0:T(8,128)}', space=vmem, size = 0x20000, scoped, tag = 'scratch operand']
  %s0 = inlined_call_operand.vmem [shape: bf16[256,256], index: 0, kind: input, shape index: {}]
  %s1 = inlined_call_operand.vmem [shape: f32[4,256], index: 1, kind: input, shape index: {}]
  %s2 = inlined_call_operand.vmem [shape: f32[256,4], index: 2, kind: input, shape index: {}]
  %s3 = inlined_call_operand.vmem [shape: f32[1,128], index: 3, kind: input, shape index: {}]
  %s4 = inlined_call_operand.vmem [shape: s8[256,256], index: 4, kind: input, shape index: {}]
  %s5 = inlined_call_operand.vmem [shape: bf16[256,128], index: 5, kind: output, shape index: {}]
  %s6 = sld [smem:[#allocation0]]
  $region99: #{gat_forward.7} parent=0
    _
  %s8 = ssub.s32 1, %s6
  %s9 = scalar_select 0, %s8, %s6
  $region1: #{gat_forward.7} parent=0
    #allocation4 [shape = 'u8[32768]{0}', space=vmem, size = 0x8000, scoped, tag = 'input window, operand 4']
    loop: start=0, step=1, limit=6
    $region2: #{gat_forward.7} parent=1 // loop_pre_header
      _
    $region3: #{gat_forward.7} parent=1 // loop_header
      %s11 = sphi 0, %s15
      %p12 = scmp.ge.s32.totalorder %s11, 6
      %s18 = sphi 0, %s30
      %s19 = sphi 0, %s26
      %s20 = sphi 0, %s18
      %s21 = sphi 0, %s19
      %s22 = sphi 0, %s20
      %s23 = sphi 0, %s21
      %s33 = sphi 0, %s35
      %s36 = sphi 0, %s33
      %s37 = sphi 0, %s36
      %s53 = sphi 0, %s37
      %s59 = sphi 0, %s61
      %s62 = sphi 0, %s59
      %s63 = sphi 0, %s62
      %s79 = sphi 0, %s63
      %s85 = sphi 0, %s87
      %s88 = sphi 0, %s85
      %s89 = sphi 0, %s88
      %s105 = sphi 0, %s89
      %s109 = sphi 0, %s109
      %s111 = sphi 0, %s109
      %s112 = sphi 0, %s111
      %s126 = sphi 0, %s112
      %s134 = sphi 0, %s136
      %s137 = sphi 0, %s134
      %s138 = sphi 0, %s137
      %s154 = sphi 0, %s138
      %s160 = sphi 0, %s162
      %s163 = sphi 0, %s160
      %s164 = sphi 0, %s163
      %s180 = sphi 0, %s164
    $region4: #{gat_forward.7} parent=1 // loop_header_branch
      %14 = sbr.rel (%p12) target = $region8
    $region5: #{gat_forward.7} parent=1 // loop_body
      %s16 = ssub.s32 %s11, 1
      %s17 = ssub.s32 %s11, 2
      %s24 = sadd.s32 1, %s19
      %p25 = scmp.ge.s32.totalorder %s24, 2
      %s26 = scalar_select %p25, 0, %s24
      %s27 = sadd.s32 1, %s18
      %s28 = scalar_select %p25, %s27, %s18
      %p29 = scmp.ge.s32.totalorder %s28, 2
      %s30 = scalar_select %p29, 0, %s28
      %s31 = ssub.s32 %s19, %s26
      %p32 = scmp.eq.s32.totalorder %s31, 0
      %s34 = sadd.s32 %s33, 1
      %s35 = scalar_select %p32, %s33, %s34
      %p38 = pneg %p32
      %p39 = scmp.eq.s32.totalorder %s11, 3
      %p40 = por %p38, %p39
      %p41 = scmp.ne.s32.totalorder %s33, %s36
      %p42 = scmp.eq.s32.totalorder %s11, 0
      %p43 = por %p41, %p42
      %p44 = scmp.ne.s32.totalorder %s33, %s36
      %p45 = scmp.eq.s32.totalorder %s16, 3
      %p46 = por %p44, %p45
      %p47 = scmp.ne.s32.totalorder %s36, %s37
      %p48 = scmp.eq.s32.totalorder %s16, 0
      %p49 = por %p47, %p48
      %p50 = scmp.ne.s32.totalorder %s36, %s37
      %p51 = scmp.eq.s32.totalorder %s17, 3
      %p52 = por %p50, %p51
      %p54 = scmp.ne.s32.totalorder %s37, %s53
      %p55 = scmp.eq.s32.totalorder %s17, 0
      %p56 = por %p54, %p55
      %s57 = ssub.s32 %s19, %s26
      %p58 = scmp.eq.s32.totalorder %s57, 0
      %s60 = sadd.s32 %s59, 1
      %s61 = scalar_select %p58, %s59, %s60
      %p64 = pneg %p58
      %p65 = scmp.eq.s32.totalorder %s11, 3
      %p66 = por %p64, %p65
      %p67 = scmp.ne.s32.totalorder %s59, %s62
      %p68 = scmp.eq.s32.totalorder %s11, 0
      %p69 = por %p67, %p68
      %p70 = scmp.ne.s32.totalorder %s59, %s62
      %p71 = scmp.eq.s32.totalorder %s16, 3
      %p72 = por %p70, %p71
      %p73 = scmp.ne.s32.totalorder %s62, %s63
      %p74 = scmp.eq.s32.totalorder %s16, 0
      %p75 = por %p73, %p74
      %p76 = scmp.ne.s32.totalorder %s62, %s63
      %p77 = scmp.eq.s32.totalorder %s17, 3
      %p78 = por %p76, %p77
      %p80 = scmp.ne.s32.totalorder %s63, %s79
      %p81 = scmp.eq.s32.totalorder %s17, 0
      %p82 = por %p80, %p81
      %s83 = ssub.s32 %s18, %s30
      %p84 = scmp.eq.s32.totalorder %s83, 0
      %s86 = sadd.s32 %s85, 1
      %s87 = scalar_select %p84, %s85, %s86
      %p90 = pneg %p84
      %p91 = scmp.eq.s32.totalorder %s11, 3
      %p92 = por %p90, %p91
      %p93 = scmp.ne.s32.totalorder %s85, %s88
      %p94 = scmp.eq.s32.totalorder %s11, 0
      %p95 = por %p93, %p94
      %p96 = scmp.ne.s32.totalorder %s85, %s88
      %p97 = scmp.eq.s32.totalorder %s16, 3
      %p98 = por %p96, %p97
      %p99 = scmp.ne.s32.totalorder %s88, %s89
      %p100 = scmp.eq.s32.totalorder %s16, 0
      %p101 = por %p99, %p100
      %p102 = scmp.ne.s32.totalorder %s88, %s89
      %p103 = scmp.eq.s32.totalorder %s17, 3
      %p104 = por %p102, %p103
      %p106 = scmp.ne.s32.totalorder %s89, %s105
      %p107 = scmp.eq.s32.totalorder %s17, 0
      %p108 = por %p106, %p107
      %s110 = sadd.s32 %s109, 1
      %p113 = scmp.eq.s32.totalorder %s11, 3
      %p114 = scmp.ne.s32.totalorder %s109, %s111
      %p115 = scmp.eq.s32.totalorder %s11, 0
      %p116 = por %p114, %p115
      %p117 = scmp.ne.s32.totalorder %s109, %s111
      %p118 = scmp.eq.s32.totalorder %s16, 3
      %p119 = por %p117, %p118
      %p120 = scmp.ne.s32.totalorder %s111, %s112
      %p121 = scmp.eq.s32.totalorder %s16, 0
      %p122 = por %p120, %p121
      %p123 = scmp.ne.s32.totalorder %s111, %s112
      %p124 = scmp.eq.s32.totalorder %s17, 3
      %p125 = por %p123, %p124
      %p127 = scmp.ne.s32.totalorder %s112, %s126
      %p128 = scmp.eq.s32.totalorder %s17, 0
      %p129 = por %p127, %p128
      %s130 = ssub.s32 %s18, %s30
      %s131 = ssub.s32 %s19, %s26
      %s132 = sor.u32 %s130, %s131
      %p133 = scmp.eq.s32.totalorder %s132, 0
      %s135 = sadd.s32 %s134, 1
      %s136 = scalar_select %p133, %s134, %s135
      %p139 = pneg %p133
      %p140 = scmp.eq.s32.totalorder %s11, 3
      %p141 = por %p139, %p140
      %p142 = scmp.ne.s32.totalorder %s134, %s137
      %p143 = scmp.eq.s32.totalorder %s11, 0
      %p144 = por %p142, %p143
      %p145 = scmp.ne.s32.totalorder %s134, %s137
      %p146 = scmp.eq.s32.totalorder %s16, 3
      %p147 = por %p145, %p146
      %p148 = scmp.ne.s32.totalorder %s137, %s138
      %p149 = scmp.eq.s32.totalorder %s16, 0
      %p150 = por %p148, %p149
      %p151 = scmp.ne.s32.totalorder %s137, %s138
      %p152 = scmp.eq.s32.totalorder %s17, 3
      %p153 = por %p151, %p152
      %p155 = scmp.ne.s32.totalorder %s138, %s154
      %p156 = scmp.eq.s32.totalorder %s17, 0
      %p157 = por %p155, %p156
      %s158 = ssub.s32 %s18, %s30
      %p159 = scmp.eq.s32.totalorder %s158, 0
      %s161 = sadd.s32 %s160, 1
      %s162 = scalar_select %p159, %s160, %s161
      %p165 = pneg %p159
      %p166 = scmp.eq.s32.totalorder %s11, 3
      %p167 = por %p165, %p166
      %p168 = scmp.ne.s32.totalorder %s160, %s163
      %p169 = scmp.eq.s32.totalorder %s11, 0
      %p170 = por %p168, %p169
      %p171 = scmp.ne.s32.totalorder %s160, %s163
      %p172 = scmp.eq.s32.totalorder %s16, 3
      %p173 = por %p171, %p172
      %p174 = scmp.ne.s32.totalorder %s163, %s164
      %p175 = scmp.eq.s32.totalorder %s16, 0
      %p176 = por %p174, %p175
      %p177 = scmp.ne.s32.totalorder %s163, %s164
      %p178 = scmp.eq.s32.totalorder %s17, 3
      %p179 = por %p177, %p178
      %p181 = scmp.ne.s32.totalorder %s164, %s180
      %p182 = scmp.eq.s32.totalorder %s17, 0
      %p183 = por %p181, %p182
      %p184 = scmp.le.s32.totalorder 1, %s11
      %p185 = scmp.lt.s32.totalorder %s11, 5
      %p186 = pnand %p184, %p185
      %p187 = pneg %p186
      // Predicated region
      $region9: #{gat_forward.7} parent=5 // pred_check
        _
      $region10: #{gat_forward.7} parent=5 // pred_check_branch
        %189 = sbr.rel (%p186) target = $region12
      $region11: #{gat_forward.7} parent=5 // pred_region
        %s190 = ssub.s32 %s11, 1
        // Predicated region
        $region13: #{gat_forward.7} parent=11 // pred_check
          %p191 = pneg %p122
        $region14: #{gat_forward.7} parent=11 // pred_check_branch
          %193 = sbr.rel (%p191) target = $region16
        $region15: #{gat_forward.7} parent=11 // pred_region
          _
        $region16: #{gat_forward.7} parent=11 // pred_fallthru
          _
      $region12: #{gat_forward.7} parent=5 // pred_fallthru
        _
      %p194 = scmp.lt.s32.totalorder %s11, 4
      // Predicated region
      $region17: #{gat_forward.7} parent=5 // pred_check
        %p195 = pneg %p194
      $region18: #{gat_forward.7} parent=5 // pred_check_branch
        %197 = sbr.rel (%p195) target = $region20
      $region19: #{gat_forward.7} parent=5 // pred_region
        // Predicated region
        $region21: #{gat_forward.7} parent=19 // pred_check
          %p198 = pneg %p43
        $region22: #{gat_forward.7} parent=19 // pred_check_branch
          %200 = sbr.rel (%p198) target = $region24
        $region23: #{gat_forward.7} parent=19 // pred_region
          %s201 = smul.u32 16, %s19
          %p202 = scmp.lt.s32.totalorder %s201, 31
          %s203 = scalar_select %p202, %s201, 31
          %s204 = smul.addr %s203, 2
          %s205 = smul.addr %s204, 4
          %s206 = scalar_lea.vmem %s0, %s205
          %s207 = smul.u32 16, %s19
        $region24: #{gat_forward.7} parent=19 // pred_fallthru
          _
        // Predicated region
        $region25: #{gat_forward.7} parent=19 // pred_check
          %p208 = pneg %p69
        $region26: #{gat_forward.7} parent=19 // pred_check_branch
          %210 = sbr.rel (%p208) target = $region28
        $region27: #{gat_forward.7} parent=19 // pred_region
          %p211 = scmp.lt.s32.totalorder %s19, 1
          %s212 = scalar_select %p211, %s19, 1
          %s213 = smul.addr %s212, 4
          %s214 = scalar_lea.vmem %s1, %s213
        $region28: #{gat_forward.7} parent=19 // pred_fallthru
          _
        // Predicated region
        $region29: #{gat_forward.7} parent=19 // pred_check
          %p215 = pneg %p95
        $region30: #{gat_forward.7} parent=19 // pred_check_branch
          %217 = sbr.rel (%p215) target = $region32
        $region31: #{gat_forward.7} parent=19 // pred_region
          %s218 = smul.u32 16, %s18
          %p219 = scmp.lt.s32.totalorder %s218, 31
          %s220 = scalar_select %p219, %s218, 31
          %s221 = smul.addr %s220, 8
          %s222 = scalar_lea.vmem %s2, %s221
          %s223 = smul.u32 16, %s18
        $region32: #{gat_forward.7} parent=19 // pred_fallthru
          _
        // Predicated region
        $region33: #{gat_forward.7} parent=19 // pred_check
          %p224 = pneg %p144
        $region34: #{gat_forward.7} parent=19 // pred_check_branch
          %226 = sbr.rel (%p224) target = $region36
        $region35: #{gat_forward.7} parent=19 // pred_region
          %s227 = sand.u32 %s134, 1
          %s228 = sand.u32 %s134, 1
          %s229 = smul.addr %s228, 32
          %s230 = scalar_lea.vmem [#allocation4], %s229
          %s231 = smul.u32 4, %s18
          %s232 = smul.addr %s231, 2
          %s233 = sadd.s32 %s19, %s232
          %s234 = smul.addr %s233, 8
          %s235 = scalar_lea.vmem %s4, %s234
          // Predicated region
          $region37: #{gat_forward.7} parent=35 // pred_check
            _
          $region38: #{gat_forward.7} parent=35 // pred_check_branch
            %237 = sbr.rel (0) target = $region40
          $region39: #{gat_forward.7} parent=35 // pred_region
            // Predicated region
            $region41: #{gat_forward.7} parent=39 // pred_check
              _
            $region42: #{gat_forward.7} parent=39 // pred_check_branch
              %239 = sbr.rel (0) target = $region44
            $region43: #{gat_forward.7} parent=39 // pred_region
              // Predicated region
              $region56: #{gat_forward.7} parent=43 // pred_check
                _
              $region57: #{gat_forward.7} parent=43 // pred_check_branch
                %261 = sbr.rel (0) target = $region59
              $region58: #{gat_forward.7} parent=43 // pred_region
                loop: start=0, step=1, limit=1
                $region60: #{gat_forward.7} parent=58 // loop_pre_header
                  _
                $region61: #{gat_forward.7} parent=58 // loop_header
                  %s263 = sphi 0, %s267
                  %p264 = scmp.ge.s32.totalorder %s263, 1
                  %s268 = sphi %s235, %s235
                  %s269 = sphi %s230, %s230
                $region62: #{gat_forward.7} parent=58 // loop_header_branch
                  %266 = sbr.rel (%p264) target = $region66
                $region63: #{gat_forward.7} parent=58 // loop_body
                  %v270 = vld [vmem:[%s268] sm:$0xff]
                  %271 = vst [vmem:[%s269] sm:$0xff] %v270
                  %v272 = vld [vmem:[%s268 + $0x10] sm:$0xff]
                  %273 = vst [vmem:[%s269 + $0x8] sm:$0xff] %v272
                  %v274 = vld [vmem:[%s268 + $0x20] sm:$0xff]
                  %275 = vst [vmem:[%s269 + $0x10] sm:$0xff] %v274
                  %v276 = vld [vmem:[%s268 + $0x30] sm:$0xff]
                  %277 = vst [vmem:[%s269 + $0x18] sm:$0xff] %v276
                $region64: #{gat_forward.7} parent=58 // loop_footer
                  %s267 = sadd.s32 1, %s263
                $region65: #{gat_forward.7} parent=58 // loop_footer_branch
                  %262 = sbr.rel target = $region61
                $region66: #{gat_forward.7} parent=58 // loop_exit
                  _
              $region59: #{gat_forward.7} parent=43 // pred_fallthru
                _
              // Predicated region
              $region67: #{gat_forward.7} parent=43 // pred_check
                _
              $region68: #{gat_forward.7} parent=43 // pred_check_branch
                %279 = sbr.rel target = $region70
              $region69: #{gat_forward.7} parent=43 // pred_region
                _
              $region70: #{gat_forward.7} parent=43 // pred_fallthru
                _
            $region44: #{gat_forward.7} parent=39 // pred_fallthru
              _
            // Predicated region
            $region45: #{gat_forward.7} parent=39 // pred_check
              _
            $region46: #{gat_forward.7} parent=39 // pred_check_branch
              %241 = sbr.rel target = $region48
            $region47: #{gat_forward.7} parent=39 // pred_region
              %s243 = ssub.s32 256, 1
              loop: start=0, step=1, limit=1
              $region49: #{gat_forward.7} parent=47 // loop_pre_header
                _
              $region50: #{gat_forward.7} parent=47 // loop_header
                %s245 = sphi 0, %s249
                %p246 = scmp.ge.s32.totalorder %s245, 1
                %s250 = sphi %s235, %s235
                %s251 = sphi %s230, %s230
              $region51: #{gat_forward.7} parent=47 // loop_header_branch
                %248 = sbr.rel (%p246) target = $region55
              $region52: #{gat_forward.7} parent=47 // loop_body
                %v252 = vld [vmem:[%s250] sm:%s243]
                %253 = vst [vmem:[%s251] sm:%s243] %v252
                %v254 = vld [vmem:[%s250 + $0x10] sm:%s243]
                %255 = vst [vmem:[%s251 + $0x8] sm:%s243] %v254
                %v256 = vld [vmem:[%s250 + $0x20] sm:%s243]
                %257 = vst [vmem:[%s251 + $0x10] sm:%s243] %v256
                %v258 = vld [vmem:[%s250 + $0x30] sm:%s243]
                %259 = vst [vmem:[%s251 + $0x18] sm:%s243] %v258
              $region53: #{gat_forward.7} parent=47 // loop_footer
                %s249 = sadd.s32 1, %s245
              $region54: #{gat_forward.7} parent=47 // loop_footer_branch
                %244 = sbr.rel target = $region50
              $region55: #{gat_forward.7} parent=47 // loop_exit
                _
            $region48: #{gat_forward.7} parent=39 // pred_fallthru
              _
          $region40: #{gat_forward.7} parent=35 // pred_fallthru
            _
          %280 = vnop
        $region36: #{gat_forward.7} parent=19 // pred_fallthru
          _
      $region20: #{gat_forward.7} parent=5 // pred_fallthru
        _
      %p281 = scmp.le.s32.totalorder 1, %s11
      %p282 = scmp.lt.s32.totalorder %s11, 5
      %p283 = pnand %p281, %p282
      %p284 = pneg %p283
      // Predicated region
      $region71: #{gat_forward.7} parent=5 // pred_check
        _
      $region72: #{gat_forward.7} parent=5 // pred_check_branch
        %286 = sbr.rel (%p283) target = $region74
      $region73: #{gat_forward.7} parent=5 // pred_region
        %s287 = ssub.s32 %s11, 1
        %s288 = sand.u32 %s137, 1
        %s289 = sand.u32 %s137, 1
        %s290 = smul.addr %s289, 32
        %s291 = scalar_lea.vmem [#allocation4], %s290
        // Predicated region
        $region75: #{gat_forward.7} parent=73 // pred_check
          %p292 = pneg %p150
        $region76: #{gat_forward.7} parent=73 // pred_check_branch
          %294 = sbr.rel (%p292) target = $region78
        $region77: #{gat_forward.7} parent=73 // pred_region
          _
        $region78: #{gat_forward.7} parent=73 // pred_fallthru
          _
        %s295 = smul.u32 16, %s21
        %p296 = scmp.lt.s32.totalorder %s295, 31
        %s297 = scalar_select %p296, %s295, 31
        %s298 = smul.addr %s297, 2
        %s299 = smul.addr %s298, 4
        %s300 = scalar_lea.vmem %s0, %s299
        %p301 = pneg %p49
        %p302 = pneg %p46
        %p303 = scmp.lt.s32.totalorder %s21, 1
        %s304 = scalar_select %p303, %s21, 1
        %s305 = smul.addr %s304, 4
        %s306 = scalar_lea.vmem %s1, %s305
        %p307 = pneg %p75
        %p308 = pneg %p72
        %s309 = smul.u32 16, %s20
        %p310 = scmp.lt.s32.totalorder %s309, 31
        %s311 = scalar_select %p310, %s309, 31
        %s312 = smul.addr %s311, 8
        %s313 = scalar_lea.vmem %s2, %s312
        %p314 = pneg %p101
        %p315 = pneg %p98
        %p316 = pneg %p122
        %p317 = pneg %p119
        %s318 = sand.u32 %s137, 1
        %s319 = sand.u32 %s137, 1
        %s320 = smul.addr %s319, 32
        %s321 = scalar_lea.vmem [#allocation4], %s320
        %p322 = pneg %p150
        %p323 = pneg %p147
        %p324 = pneg %p176
        %p325 = pneg %p173
        %s326 = smul.u32 16, %s20
        %p327 = scmp.lt.s32.totalorder %s326, 31
        %s328 = scalar_select %p327, %s326, 31
        %s329 = smul.addr %s328, 4
        %s330 = scalar_lea.vmem %s5, %s329
        %s331 = smul.u32 16, %s21
        %p332 = scmp.lt.s32.totalorder %s331, 31
        %s333 = scalar_select %p332, %s331, 31
        %s334 = smul.addr %s333, 2
        %s335 = smul.addr %s334, 4
        %s336 = scalar_lea.vmem %s0, %s335
        %s337 = smul.u32 16, %s21
        %p338 = scmp.lt.s32.totalorder %s21, 1
        %s339 = scalar_select %p338, %s21, 1
        %s340 = smul.addr %s339, 4
        %s341 = scalar_lea.vmem %s1, %s340
        %s342 = smul.u32 16, %s20
        %p343 = scmp.lt.s32.totalorder %s342, 31
        %s344 = scalar_select %p343, %s342, 31
        %s345 = smul.addr %s344, 8
        %s346 = scalar_lea.vmem %s2, %s345
        %s347 = smul.u32 16, %s20
        %s348 = smul.u32 4, %s20
        %s349 = smul.u32 16, %s20
        %p350 = scmp.lt.s32.totalorder %s349, 31
        %s351 = scalar_select %p350, %s349, 31
        %s352 = smul.addr %s351, 4
        %s353 = scalar_lea.vmem %s5, %s352
        %s354 = smul.u32 16, %s20
        %p355 = scmp.eq.s32.totalorder %s21, 0
        // Predicated region
        $region79: #{gat_forward.7} parent=73 // pred_check
          %p356 = pneg %p355
        $region80: #{gat_forward.7} parent=73 // pred_check_branch
          %358 = sbr.rel (%p356) target = $region82
        $region81: #{gat_forward.7} parent=73 // pred_region
          %vm359 = vcmask 31744
          %360 = vst.msk [vmem:[#allocation2] sm:$0xff] %vm359, -1e+30
          %361 = vst.msk [vmem:[#allocation2 + $0x8] sm:$0xff] %vm359, -1e+30
          %362 = vst.msk [vmem:[#allocation2 + $0x10] sm:$0xff] %vm359, -1e+30
          %363 = vst.msk [vmem:[#allocation2 + $0x18] sm:$0xff] %vm359, -1e+30
          %364 = vst.msk [vmem:[#allocation2 + $0x20] sm:$0xff] %vm359, -1e+30
          %365 = vst.msk [vmem:[#allocation2 + $0x28] sm:$0xff] %vm359, -1e+30
          %366 = vst.msk [vmem:[#allocation2 + $0x30] sm:$0xff] %vm359, -1e+30
          %367 = vst.msk [vmem:[#allocation2 + $0x38] sm:$0xff] %vm359, -1e+30
          %368 = vst.msk [vmem:[#allocation2 + $0x40] sm:$0xff] %vm359, -1e+30
          %369 = vst.msk [vmem:[#allocation2 + $0x48] sm:$0xff] %vm359, -1e+30
          %370 = vst.msk [vmem:[#allocation2 + $0x50] sm:$0xff] %vm359, -1e+30
          %371 = vst.msk [vmem:[#allocation2 + $0x58] sm:$0xff] %vm359, -1e+30
          %372 = vst.msk [vmem:[#allocation2 + $0x60] sm:$0xff] %vm359, -1e+30
          %373 = vst.msk [vmem:[#allocation2 + $0x68] sm:$0xff] %vm359, -1e+30
          %374 = vst.msk [vmem:[#allocation2 + $0x70] sm:$0xff] %vm359, -1e+30
          %375 = vst.msk [vmem:[#allocation2 + $0x78] sm:$0xff] %vm359, -1e+30
          %376 = vst [vmem:[#allocation3] sm:$0xff] 0.0
          %377 = vst.msk [vmem:[#allocation3 + $0x8] sm:$0xff] %vm359, 0.0
          %378 = vst [vmem:[#allocation3 + $0x10] sm:$0xff] 0.0
          %379 = vst.msk [vmem:[#allocation3 + $0x18] sm:$0xff] %vm359, 0.0
          %380 = vst [vmem:[#allocation3 + $0x20] sm:$0xff] 0.0
          %381 = vst.msk [vmem:[#allocation3 + $0x28] sm:$0xff] %vm359, 0.0
          %382 = vst [vmem:[#allocation3 + $0x30] sm:$0xff] 0.0
          %383 = vst.msk [vmem:[#allocation3 + $0x38] sm:$0xff] %vm359, 0.0
          %384 = vst [vmem:[#allocation3 + $0x40] sm:$0xff] 0.0
          %385 = vst.msk [vmem:[#allocation3 + $0x48] sm:$0xff] %vm359, 0.0
          %386 = vst [vmem:[#allocation3 + $0x50] sm:$0xff] 0.0
          %387 = vst.msk [vmem:[#allocation3 + $0x58] sm:$0xff] %vm359, 0.0
          %388 = vst [vmem:[#allocation3 + $0x60] sm:$0xff] 0.0
          %389 = vst.msk [vmem:[#allocation3 + $0x68] sm:$0xff] %vm359, 0.0
          %390 = vst [vmem:[#allocation3 + $0x70] sm:$0xff] 0.0
          %391 = vst.msk [vmem:[#allocation3 + $0x78] sm:$0xff] %vm359, 0.0
          %392 = vst [vmem:[#allocation3 + $0x80] sm:$0xff] 0.0
          %393 = vst.msk [vmem:[#allocation3 + $0x88] sm:$0xff] %vm359, 0.0
          %394 = vst [vmem:[#allocation3 + $0x90] sm:$0xff] 0.0
          %395 = vst.msk [vmem:[#allocation3 + $0x98] sm:$0xff] %vm359, 0.0
          %396 = vst [vmem:[#allocation3 + $0xa0] sm:$0xff] 0.0
          %397 = vst.msk [vmem:[#allocation3 + $0xa8] sm:$0xff] %vm359, 0.0
          %398 = vst [vmem:[#allocation3 + $0xb0] sm:$0xff] 0.0
          %399 = vst.msk [vmem:[#allocation3 + $0xb8] sm:$0xff] %vm359, 0.0
          %400 = vst [vmem:[#allocation3 + $0xc0] sm:$0xff] 0.0
          %401 = vst.msk [vmem:[#allocation3 + $0xc8] sm:$0xff] %vm359, 0.0
          %402 = vst [vmem:[#allocation3 + $0xd0] sm:$0xff] 0.0
          %403 = vst.msk [vmem:[#allocation3 + $0xd8] sm:$0xff] %vm359, 0.0
          %404 = vst [vmem:[#allocation3 + $0xe0] sm:$0xff] 0.0
          %405 = vst.msk [vmem:[#allocation3 + $0xe8] sm:$0xff] %vm359, 0.0
          %406 = vst [vmem:[#allocation3 + $0xf0] sm:$0xff] 0.0
          %407 = vst.msk [vmem:[#allocation3 + $0xf8] sm:$0xff] %vm359, 0.0
        $region82: #{gat_forward.7} parent=73 // pred_fallthru
          _
        %v408 = vld [vmem:[%s336] sm:$0xff]
        %v409 = vld [vmem:[%s336 + $0x8] sm:$0xff]
        %v410 = vld [vmem:[%s336 + $0x10] sm:$0xff]
        %v411 = vld [vmem:[%s336 + $0x18] sm:$0xff]
        %v412 = vld [vmem:[%s336 + $0x20] sm:$0xff]
        %v413 = vld [vmem:[%s336 + $0x28] sm:$0xff]
        %v414 = vld [vmem:[%s336 + $0x30] sm:$0xff]
        %v415 = vld [vmem:[%s336 + $0x38] sm:$0xff]
        %v416 = vld [vmem:[%s336 + $0x40] sm:$0xff]
        %v417 = vld [vmem:[%s336 + $0x48] sm:$0xff]
        %v418 = vld [vmem:[%s336 + $0x50] sm:$0xff]
        %v419 = vld [vmem:[%s336 + $0x58] sm:$0xff]
        %v420 = vld [vmem:[%s336 + $0x60] sm:$0xff]
        %v421 = vld [vmem:[%s336 + $0x68] sm:$0xff]
        %v422 = vld [vmem:[%s336 + $0x70] sm:$0xff]
        %v423 = vld [vmem:[%s336 + $0x78] sm:$0xff]
        %v424 = vld [vmem:[%s341] sm:$0xf]
        %v425 = vld [vmem:[%s346] sm:$0xff]
        %v426 = vld [vmem:[%s346 + $0x8] sm:$0xff]
        %v427 = vld [vmem:[%s346 + $0x10] sm:$0xff]
        %v428 = vld [vmem:[%s346 + $0x18] sm:$0xff]
        %v429 = vld [vmem:[%s346 + $0x20] sm:$0xff]
        %v430 = vld [vmem:[%s346 + $0x28] sm:$0xff]
        %v431 = vld [vmem:[%s346 + $0x30] sm:$0xff]
        %v432 = vld [vmem:[%s346 + $0x38] sm:$0xff]
        %v433 = vld [vmem:[%s346 + $0x40] sm:$0xff]
        %v434 = vld [vmem:[%s346 + $0x48] sm:$0xff]
        %v435 = vld [vmem:[%s346 + $0x50] sm:$0xff]
        %v436 = vld [vmem:[%s346 + $0x58] sm:$0xff]
        %v437 = vld [vmem:[%s346 + $0x60] sm:$0xff]
        %v438 = vld [vmem:[%s346 + $0x68] sm:$0xff]
        %v439 = vld [vmem:[%s346 + $0x70] sm:$0xff]
        %v440 = vld [vmem:[%s346 + $0x78] sm:$0xff]
        %v441 = vld [vmem:[%s291] sm:$0xff]
        %v442 = vld [vmem:[%s291 + $0x8] sm:$0xff]
        %v443 = vld [vmem:[%s291 + $0x10] sm:$0xff]
        %v444 = vld [vmem:[%s291 + $0x18] sm:$0xff]
        %v445 = vunpack.c.0.s8 %v441
        %v446 = vunpack.c.1.s8 %v441
        %v447 = vunpack.c.2.s8 %v441
        %v448 = vunpack.c.3.s8 %v441
        %v449 = vunpack.c.0.s8 %v442
        %v450 = vunpack.c.1.s8 %v442
        %v451 = vunpack.c.2.s8 %v442
        %v452 = vunpack.c.3.s8 %v442
        %v453 = vunpack.c.0.s8 %v443
        %v454 = vunpack.c.1.s8 %v443
        %v455 = vunpack.c.2.s8 %v443
        %v456 = vunpack.c.3.s8 %v443
        %v457 = vunpack.c.0.s8 %v444
        %v458 = vunpack.c.1.s8 %v444
        %v459 = vunpack.c.2.s8 %v444
        %v460 = vunpack.c.3.s8 %v444
        %v461 = vcvt.s32.f32 %v445
        %v462 = vcvt.s32.f32 %v446
        %v463 = vcvt.s32.f32 %v447
        %v464 = vcvt.s32.f32 %v448
        %v465 = vcvt.s32.f32 %v449
        %v466 = vcvt.s32.f32 %v450
        %v467 = vcvt.s32.f32 %v451
        %v468 = vcvt.s32.f32 %v452
        %v469 = vcvt.s32.f32 %v453
        %v470 = vcvt.s32.f32 %v454
        %v471 = vcvt.s32.f32 %v455
        %v472 = vcvt.s32.f32 %v456
        %v473 = vcvt.s32.f32 %v457
        %v474 = vcvt.s32.f32 %v458
        %v475 = vcvt.s32.f32 %v459
        %v476 = vcvt.s32.f32 %v460
        %v477 = vsub.f32 %v461, 1.0
        %v478 = vsub.f32 %v462, 1.0
        %v479 = vsub.f32 %v463, 1.0
        %v480 = vsub.f32 %v464, 1.0
        %v481 = vsub.f32 %v465, 1.0
        %v482 = vsub.f32 %v466, 1.0
        %v483 = vsub.f32 %v467, 1.0
        %v484 = vsub.f32 %v468, 1.0
        %v485 = vsub.f32 %v469, 1.0
        %v486 = vsub.f32 %v470, 1.0
        %v487 = vsub.f32 %v471, 1.0
        %v488 = vsub.f32 %v472, 1.0
        %v489 = vsub.f32 %v473, 1.0
        %v490 = vsub.f32 %v474, 1.0
        %v491 = vsub.f32 %v475, 1.0
        %v492 = vsub.f32 %v476, 1.0
        %v493 = vmul.f32 %v477, 1e+30
        %v494 = vmul.f32 %v478, 1e+30
        %v495 = vmul.f32 %v479, 1e+30
        %v496 = vmul.f32 %v480, 1e+30
        %v497 = vmul.f32 %v481, 1e+30
        %v498 = vmul.f32 %v482, 1e+30
        %v499 = vmul.f32 %v483, 1e+30
        %v500 = vmul.f32 %v484, 1e+30
        %v501 = vmul.f32 %v485, 1e+30
        %v502 = vmul.f32 %v486, 1e+30
        %v503 = vmul.f32 %v487, 1e+30
        %v504 = vmul.f32 %v488, 1e+30
        %v505 = vmul.f32 %v489, 1e+30
        %v506 = vmul.f32 %v490, 1e+30
        %v507 = vmul.f32 %v491, 1e+30
        %v508 = vmul.f32 %v492, 1e+30
        %v509 = vld [vmem:[#allocation2] sm:$0xff]
        %v510 = vld [vmem:[#allocation2 + $0x8] sm:$0xff]
        %v511 = vld [vmem:[#allocation2 + $0x10] sm:$0xff]
        %v512 = vld [vmem:[#allocation2 + $0x18] sm:$0xff]
        %v513 = vld [vmem:[#allocation2 + $0x20] sm:$0xff]
        %v514 = vld [vmem:[#allocation2 + $0x28] sm:$0xff]
        %v515 = vld [vmem:[#allocation2 + $0x30] sm:$0xff]
        %v516 = vld [vmem:[#allocation2 + $0x38] sm:$0xff]
        %v517 = vld [vmem:[#allocation2 + $0x40] sm:$0xff]
        %v518 = vld [vmem:[#allocation2 + $0x48] sm:$0xff]
        %v519 = vld [vmem:[#allocation2 + $0x50] sm:$0xff]
        %v520 = vld [vmem:[#allocation2 + $0x58] sm:$0xff]
        %v521 = vld [vmem:[#allocation2 + $0x60] sm:$0xff]
        %v522 = vld [vmem:[#allocation2 + $0x68] sm:$0xff]
        %v523 = vld [vmem:[#allocation2 + $0x70] sm:$0xff]
        %v524 = vld [vmem:[#allocation2 + $0x78] sm:$0xff]
        %v525 = vld [vmem:[#allocation3] sm:$0xff]
        %v526 = vld [vmem:[#allocation3 + $0x8] sm:$0xff]
        %v527 = vld [vmem:[#allocation3 + $0x10] sm:$0xff]
        %v528 = vld [vmem:[#allocation3 + $0x18] sm:$0xff]
        %v529 = vld [vmem:[#allocation3 + $0x20] sm:$0xff]
        %v530 = vld [vmem:[#allocation3 + $0x28] sm:$0xff]
        %v531 = vld [vmem:[#allocation3 + $0x30] sm:$0xff]
        %v532 = vld [vmem:[#allocation3 + $0x38] sm:$0xff]
        %v533 = vld [vmem:[#allocation3 + $0x40] sm:$0xff]
        %v534 = vld [vmem:[#allocation3 + $0x48] sm:$0xff]
        %v535 = vld [vmem:[#allocation3 + $0x50] sm:$0xff]
        %v536 = vld [vmem:[#allocation3 + $0x58] sm:$0xff]
        %v537 = vld [vmem:[#allocation3 + $0x60] sm:$0xff]
        %v538 = vld [vmem:[#allocation3 + $0x68] sm:$0xff]
        %v539 = vld [vmem:[#allocation3 + $0x70] sm:$0xff]
        %v540 = vld [vmem:[#allocation3 + $0x78] sm:$0xff]
        %v541 = vld [vmem:[#allocation3 + $0x80] sm:$0xff]
        %v542 = vld [vmem:[#allocation3 + $0x88] sm:$0xff]
        %v543 = vld [vmem:[#allocation3 + $0x90] sm:$0xff]
        %v544 = vld [vmem:[#allocation3 + $0x98] sm:$0xff]
        %v545 = vld [vmem:[#allocation3 + $0xa0] sm:$0xff]
        %v546 = vld [vmem:[#allocation3 + $0xa8] sm:$0xff]
        %v547 = vld [vmem:[#allocation3 + $0xb0] sm:$0xff]
        %v548 = vld [vmem:[#allocation3 + $0xb8] sm:$0xff]
        %v549 = vld [vmem:[#allocation3 + $0xc0] sm:$0xff]
        %v550 = vld [vmem:[#allocation3 + $0xc8] sm:$0xff]
        %v551 = vld [vmem:[#allocation3 + $0xd0] sm:$0xff]
        %v552 = vld [vmem:[#allocation3 + $0xd8] sm:$0xff]
        %v553 = vld [vmem:[#allocation3 + $0xe0] sm:$0xff]
        %v554 = vld [vmem:[#allocation3 + $0xe8] sm:$0xff]
        %v555 = vld [vmem:[#allocation3 + $0xf0] sm:$0xff]
        %v556 = vld [vmem:[#allocation3 + $0xf8] sm:$0xff]
        %558 = vset.pattern.permute.xlu0 0
        %559 = vperm.xlu0 %558, %v425
        %v560 = vpop.permute.xlu0 %559
        %563 = vset.pattern.permute.xlu0 0
        %564 = vperm.xlu0 %563, %v426
        %v565 = vpop.permute.xlu0 %564
        %568 = vset.pattern.permute.xlu0 0
        %569 = vperm.xlu0 %568, %v427
        %v570 = vpop.permute.xlu0 %569
        %573 = vset.pattern.permute.xlu0 0
        %574 = vperm.xlu0 %573, %v428
        %v575 = vpop.permute.xlu0 %574
        %578 = vset.pattern.permute.xlu0 0
        %579 = vperm.xlu0 %578, %v429
        %v580 = vpop.permute.xlu0 %579
        %583 = vset.pattern.permute.xlu0 0
        %584 = vperm.xlu0 %583, %v430
        %v585 = vpop.permute.xlu0 %584
        %588 = vset.pattern.permute.xlu0 0
        %589 = vperm.xlu0 %588, %v431
        %v590 = vpop.permute.xlu0 %589
        %593 = vset.pattern.permute.xlu0 0
        %594 = vperm.xlu0 %593, %v432
        %v595 = vpop.permute.xlu0 %594
        %598 = vset.pattern.permute.xlu0 0
        %599 = vperm.xlu0 %598, %v433
        %v600 = vpop.permute.xlu0 %599
        %603 = vset.pattern.permute.xlu0 0
        %604 = vperm.xlu0 %603, %v434
        %v605 = vpop.permute.xlu0 %604
        %608 = vset.pattern.permute.xlu0 0
        %609 = vperm.xlu0 %608, %v435
        %v610 = vpop.permute.xlu0 %609
        %613 = vset.pattern.permute.xlu0 0
        %614 = vperm.xlu0 %613, %v436
        %v615 = vpop.permute.xlu0 %614
        %618 = vset.pattern.permute.xlu0 0
        %619 = vperm.xlu0 %618, %v437
        %v620 = vpop.permute.xlu0 %619
        %623 = vset.pattern.permute.xlu0 0
        %624 = vperm.xlu0 %623, %v438
        %v625 = vpop.permute.xlu0 %624
        %628 = vset.pattern.permute.xlu0 0
        %629 = vperm.xlu0 %628, %v439
        %v630 = vpop.permute.xlu0 %629
        %633 = vset.pattern.permute.xlu0 0
        %634 = vperm.xlu0 %633, %v440
        %v635 = vpop.permute.xlu0 %634
        %v637 = vperm.slane %v424, 0
        %v638 = vadd.f32 %v560, %v637
        %v639 = vadd.f32 %v565, %v637
        %v640 = vadd.f32 %v570, %v637
        %v641 = vadd.f32 %v575, %v637
        %v642 = vadd.f32 %v580, %v637
        %v643 = vadd.f32 %v585, %v637
        %v644 = vadd.f32 %v590, %v637
        %v645 = vadd.f32 %v595, %v637
        %v646 = vadd.f32 %v600, %v637
        %v647 = vadd.f32 %v605, %v637
        %v648 = vadd.f32 %v610, %v637
        %v649 = vadd.f32 %v615, %v637
        %v650 = vadd.f32 %v620, %v637
        %v651 = vadd.f32 %v625, %v637
        %v652 = vadd.f32 %v630, %v637
        %v653 = vadd.f32 %v635, %v637
        %vm654 = vcmp.gt.f32.partialorder %v638, 0.0
        %vm655 = vcmp.gt.f32.partialorder %v639, 0.0
        %vm656 = vcmp.gt.f32.partialorder %v640, 0.0
        %vm657 = vcmp.gt.f32.partialorder %v641, 0.0
        %vm658 = vcmp.gt.f32.partialorder %v642, 0.0
        %vm659 = vcmp.gt.f32.partialorder %v643, 0.0
        %vm660 = vcmp.gt.f32.partialorder %v644, 0.0
        %vm661 = vcmp.gt.f32.partialorder %v645, 0.0
        %vm662 = vcmp.gt.f32.partialorder %v646, 0.0
        %vm663 = vcmp.gt.f32.partialorder %v647, 0.0
        %vm664 = vcmp.gt.f32.partialorder %v648, 0.0
        %vm665 = vcmp.gt.f32.partialorder %v649, 0.0
        %vm666 = vcmp.gt.f32.partialorder %v650, 0.0
        %vm667 = vcmp.gt.f32.partialorder %v651, 0.0
        %vm668 = vcmp.gt.f32.partialorder %v652, 0.0
        %vm669 = vcmp.gt.f32.partialorder %v653, 0.0
        %v670 = vmul.f32 %v638, 0.2
        %v671 = vmul.f32 %v639, 0.2
        %v672 = vmul.f32 %v640, 0.2
        %v673 = vmul.f32 %v641, 0.2
        %v674 = vmul.f32 %v642, 0.2
        %v675 = vmul.f32 %v643, 0.2
        %v676 = vmul.f32 %v644, 0.2
        %v677 = vmul.f32 %v645, 0.2
        %v678 = vmul.f32 %v646, 0.2
        %v679 = vmul.f32 %v647, 0.2
        %v680 = vmul.f32 %v648, 0.2
        %v681 = vmul.f32 %v649, 0.2
        %v682 = vmul.f32 %v650, 0.2
        %v683 = vmul.f32 %v651, 0.2
        %v684 = vmul.f32 %v652, 0.2
        %v685 = vmul.f32 %v653, 0.2
        %v686 = vsel %vm654, %v638, %v670
        %v687 = vsel %vm655, %v639, %v671
        %v688 = vsel %vm656, %v640, %v672
        %v689 = vsel %vm657, %v641, %v673
        %v690 = vsel %vm658, %v642, %v674
        %v691 = vsel %vm659, %v643, %v675
        %v692 = vsel %vm660, %v644, %v676
        %v693 = vsel %vm661, %v645, %v677
        %v694 = vsel %vm662, %v646, %v678
        %v695 = vsel %vm663, %v647, %v679
        %v696 = vsel %vm664, %v648, %v680
        %v697 = vsel %vm665, %v649, %v681
        %v698 = vsel %vm666, %v650, %v682
        %v699 = vsel %vm667, %v651, %v683
        %v700 = vsel %vm668, %v652, %v684
        %v701 = vsel %vm669, %v653, %v685
        %v702 = vadd.f32 %v686, %v493
        %v703 = vadd.f32 %v687, %v494
        %v704 = vadd.f32 %v688, %v495
        %v705 = vadd.f32 %v689, %v496
        %v706 = vadd.f32 %v690, %v497
        %v707 = vadd.f32 %v691, %v498
        %v708 = vadd.f32 %v692, %v499
        %v709 = vadd.f32 %v693, %v500
        %v710 = vadd.f32 %v694, %v501
        %v711 = vadd.f32 %v695, %v502
        %v712 = vadd.f32 %v696, %v503
        %v713 = vadd.f32 %v697, %v504
        %v714 = vadd.f32 %v698, %v505
        %v715 = vadd.f32 %v699, %v506
        %v716 = vadd.f32 %v700, %v507
        %v717 = vadd.f32 %v701, %v508
        %718 = vmax.xlane.f32.xlu0 %v702
        %v719 = vpop.xlane.xlu0 %718
        %720 = vmax.xlane.f32.xlu0 %v703
        %v721 = vpop.xlane.xlu0 %720
        %722 = vmax.xlane.f32.xlu0 %v704
        %v723 = vpop.xlane.xlu0 %722
        %724 = vmax.xlane.f32.xlu0 %v705
        %v725 = vpop.xlane.xlu0 %724
        %726 = vmax.xlane.f32.xlu0 %v706
        %v727 = vpop.xlane.xlu0 %726
        %728 = vmax.xlane.f32.xlu0 %v707
        %v729 = vpop.xlane.xlu0 %728
        %730 = vmax.xlane.f32.xlu0 %v708
        %v731 = vpop.xlane.xlu0 %730
        %732 = vmax.xlane.f32.xlu0 %v709
        %v733 = vpop.xlane.xlu0 %732
        %734 = vmax.xlane.f32.xlu0 %v710
        %v735 = vpop.xlane.xlu0 %734
        %736 = vmax.xlane.f32.xlu0 %v711
        %v737 = vpop.xlane.xlu0 %736
        %738 = vmax.xlane.f32.xlu0 %v712
        %v739 = vpop.xlane.xlu0 %738
        %740 = vmax.xlane.f32.xlu0 %v713
        %v741 = vpop.xlane.xlu0 %740
        %742 = vmax.xlane.f32.xlu0 %v714
        %v743 = vpop.xlane.xlu0 %742
        %744 = vmax.xlane.f32.xlu0 %v715
        %v745 = vpop.xlane.xlu0 %744
        %746 = vmax.xlane.f32.xlu0 %v716
        %v747 = vpop.xlane.xlu0 %746
        %748 = vmax.xlane.f32.xlu0 %v717
        %v749 = vpop.xlane.xlu0 %748
        %v750 = vmax.f32 %v509, %v719
        %v751 = vmax.f32 %v510, %v721
        %v752 = vmax.f32 %v511, %v723
        %v753 = vmax.f32 %v512, %v725
        %v754 = vmax.f32 %v513, %v727
        %v755 = vmax.f32 %v514, %v729
        %v756 = vmax.f32 %v515, %v731
        %v757 = vmax.f32 %v516, %v733
        %v758 = vmax.f32 %v517, %v735
        %v759 = vmax.f32 %v518, %v737
        %v760 = vmax.f32 %v519, %v739
        %v761 = vmax.f32 %v520, %v741
        %v762 = vmax.f32 %v521, %v743
        %v763 = vmax.f32 %v522, %v745
        %v764 = vmax.f32 %v523, %v747
        %v765 = vmax.f32 %v524, %v749
        %767 = vset.pattern.permute.xlu0 0
        %768 = vperm.xlu0 %767, %v750
        %v769 = vpop.permute.xlu0 %768
        %772 = vset.pattern.permute.xlu0 0
        %773 = vperm.xlu0 %772, %v751
        %v774 = vpop.permute.xlu0 %773
        %777 = vset.pattern.permute.xlu0 0
        %778 = vperm.xlu0 %777, %v752
        %v779 = vpop.permute.xlu0 %778
        %782 = vset.pattern.permute.xlu0 0
        %783 = vperm.xlu0 %782, %v753
        %v784 = vpop.permute.xlu0 %783
        %787 = vset.pattern.permute.xlu0 0
        %788 = vperm.xlu0 %787, %v754
        %v789 = vpop.permute.xlu0 %788
        %792 = vset.pattern.permute.xlu0 0
        %793 = vperm.xlu0 %792, %v755
        %v794 = vpop.permute.xlu0 %793
        %797 = vset.pattern.permute.xlu0 0
        %798 = vperm.xlu0 %797, %v756
        %v799 = vpop.permute.xlu0 %798
        %802 = vset.pattern.permute.xlu0 0
        %803 = vperm.xlu0 %802, %v757
        %v804 = vpop.permute.xlu0 %803
        %807 = vset.pattern.permute.xlu0 0
        %808 = vperm.xlu0 %807, %v758
        %v809 = vpop.permute.xlu0 %808
        %812 = vset.pattern.permute.xlu0 0
        %813 = vperm.xlu0 %812, %v759
        %v814 = vpop.permute.xlu0 %813
        %817 = vset.pattern.permute.xlu0 0
        %818 = vperm.xlu0 %817, %v760
        %v819 = vpop.permute.xlu0 %818
        %822 = vset.pattern.permute.xlu0 0
        %823 = vperm.xlu0 %822, %v761
        %v824 = vpop.permute.xlu0 %823
        %827 = vset.pattern.permute.xlu0 0
        %828 = vperm.xlu0 %827, %v762
        %v829 = vpop.permute.xlu0 %828
        %832 = vset.pattern.permute.xlu0 0
        %833 = vperm.xlu0 %832, %v763
        %v834 = vpop.permute.xlu0 %833
        %837 = vset.pattern.permute.xlu0 0
        %838 = vperm.xlu0 %837, %v764
        %v839 = vpop.permute.xlu0 %838
        %842 = vset.pattern.permute.xlu0 0
        %843 = vperm.xlu0 %842, %v765
        %v844 = vpop.permute.xlu0 %843
        %v846 = vsub.f32 %v702, %v769
        %v847 = vsub.f32 %v703, %v774
        %v848 = vsub.f32 %v704, %v779
        %v849 = vsub.f32 %v705, %v784
        %v850 = vsub.f32 %v706, %v789
        %v851 = vsub.f32 %v707, %v794
        %v852 = vsub.f32 %v708, %v799
        %v853 = vsub.f32 %v709, %v804
        %v854 = vsub.f32 %v710, %v809
        %v855 = vsub.f32 %v711, %v814
        %v856 = vsub.f32 %v712, %v819
        %v857 = vsub.f32 %v713, %v824
        %v858 = vsub.f32 %v714, %v829
        %v859 = vsub.f32 %v715, %v834
        %v860 = vsub.f32 %v716, %v839
        %v861 = vsub.f32 %v717, %v844
        %v862 = vmul.f32 %v846, 1.442695
        %v863 = vpow.pop %v862
        %v864 = vmul.f32 %v847, 1.442695
        %v865 = vpow.pop %v864
        %v866 = vmul.f32 %v848, 1.442695
        %v867 = vpow.pop %v866
        %v868 = vmul.f32 %v849, 1.442695
        %v869 = vpow.pop %v868
        %v870 = vmul.f32 %v850, 1.442695
        %v871 = vpow.pop %v870
        %v872 = vmul.f32 %v851, 1.442695
        %v873 = vpow.pop %v872
        %v874 = vmul.f32 %v852, 1.442695
        %v875 = vpow.pop %v874
        %v876 = vmul.f32 %v853, 1.442695
        %v877 = vpow.pop %v876
        %v878 = vmul.f32 %v854, 1.442695
        %v879 = vpow.pop %v878
        %v880 = vmul.f32 %v855, 1.442695
        %v881 = vpow.pop %v880
        %v882 = vmul.f32 %v856, 1.442695
        %v883 = vpow.pop %v882
        %v884 = vmul.f32 %v857, 1.442695
        %v885 = vpow.pop %v884
        %v886 = vmul.f32 %v858, 1.442695
        %v887 = vpow.pop %v886
        %v888 = vmul.f32 %v859, 1.442695
        %v889 = vpow.pop %v888
        %v890 = vmul.f32 %v860, 1.442695
        %v891 = vpow.pop %v890
        %v892 = vmul.f32 %v861, 1.442695
        %v893 = vpow.pop %v892
        %v894 = vmul.f32 %v863, %v461
        %v895 = vmul.f32 %v865, %v462
        %v896 = vmul.f32 %v867, %v463
        %v897 = vmul.f32 %v869, %v464
        %v898 = vmul.f32 %v871, %v465
        %v899 = vmul.f32 %v873, %v466
        %v900 = vmul.f32 %v875, %v467
        %v901 = vmul.f32 %v877, %v468
        %v902 = vmul.f32 %v879, %v469
        %v903 = vmul.f32 %v881, %v470
        %v904 = vmul.f32 %v883, %v471
        %v905 = vmul.f32 %v885, %v472
        %v906 = vmul.f32 %v887, %v473
        %v907 = vmul.f32 %v889, %v474
        %v908 = vmul.f32 %v891, %v475
        %v909 = vmul.f32 %v893, %v476
        %v910 = vsub.f32 %v509, %v750
        %v911 = vsub.f32 %v510, %v751
        %v912 = vsub.f32 %v511, %v752
        %v913 = vsub.f32 %v512, %v753
        %v914 = vsub.f32 %v513, %v754
        %v915 = vsub.f32 %v514, %v755
        %v916 = vsub.f32 %v515, %v756
        %v917 = vsub.f32 %v516, %v757
        %v918 = vsub.f32 %v517, %v758
        %v919 = vsub.f32 %v518, %v759
        %v920 = vsub.f32 %v519, %v760
        %v921 = vsub.f32 %v520, %v761
        %v922 = vsub.f32 %v521, %v762
        %v923 = vsub.f32 %v522, %v763
        %v924 = vsub.f32 %v523, %v764
        %v925 = vsub.f32 %v524, %v765
        %v926 = vmul.f32 %v910, 1.442695
        %v927 = vpow.pop %v926
        %v928 = vmul.f32 %v911, 1.442695
        %v929 = vpow.pop %v928
        %v930 = vmul.f32 %v912, 1.442695
        %v931 = vpow.pop %v930
        %v932 = vmul.f32 %v913, 1.442695
        %v933 = vpow.pop %v932
        %v934 = vmul.f32 %v914, 1.442695
        %v935 = vpow.pop %v934
        %v936 = vmul.f32 %v915, 1.442695
        %v937 = vpow.pop %v936
        %v938 = vmul.f32 %v916, 1.442695
        %v939 = vpow.pop %v938
        %v940 = vmul.f32 %v917, 1.442695
        %v941 = vpow.pop %v940
        %v942 = vmul.f32 %v918, 1.442695
        %v943 = vpow.pop %v942
        %v944 = vmul.f32 %v919, 1.442695
        %v945 = vpow.pop %v944
        %v946 = vmul.f32 %v920, 1.442695
        %v947 = vpow.pop %v946
        %v948 = vmul.f32 %v921, 1.442695
        %v949 = vpow.pop %v948
        %v950 = vmul.f32 %v922, 1.442695
        %v951 = vpow.pop %v950
        %v952 = vmul.f32 %v923, 1.442695
        %v953 = vpow.pop %v952
        %v954 = vmul.f32 %v924, 1.442695
        %v955 = vpow.pop %v954
        %v956 = vmul.f32 %v925, 1.442695
        %v957 = vpow.pop %v956
        %v958 = vpack.c.bf16 %v895, %v894
        %v959 = vpack.c.bf16 %v897, %v896
        %v960 = vpack.c.bf16 %v899, %v898
        %v961 = vpack.c.bf16 %v901, %v900
        %v962 = vpack.c.bf16 %v903, %v902
        %v963 = vpack.c.bf16 %v905, %v904
        %v964 = vpack.c.bf16 %v907, %v906
        %v965 = vpack.c.bf16 %v909, %v908
        %v982 = vunpack.c.l.b16 %v408
        %v983 = vunpack.c.l.b16 %v409
        %v984 = vunpack.c.l.b16 %v410
        %v985 = vunpack.c.l.b16 %v411
        %v986 = vunpack.c.l.b16 %v412
        %v987 = vunpack.c.l.b16 %v413
        %v988 = vunpack.c.l.b16 %v414
        %v989 = vunpack.c.l.b16 %v415
        %v990 = vunpack.c.l.b16 %v416
        %v991 = vunpack.c.l.b16 %v417
        %v992 = vunpack.c.l.b16 %v418
        %v993 = vunpack.c.l.b16 %v419
        %v994 = vunpack.c.l.b16 %v420
        %v995 = vunpack.c.l.b16 %v421
        %v996 = vunpack.c.l.b16 %v422
        %v997 = vunpack.c.l.b16 %v423
        %v998 = vpack.c.b16 %v983, %v982
        %v999 = vpack.c.b16 %v985, %v984
        %v1000 = vpack.c.b16 %v987, %v986
        %v1001 = vpack.c.b16 %v989, %v988
        %v1002 = vpack.c.b16 %v991, %v990
        %v1003 = vpack.c.b16 %v993, %v992
        %v1004 = vpack.c.b16 %v995, %v994
        %v1005 = vpack.c.b16 %v997, %v996
        %1014 = vmatpush.bf16.msra.mxu0 %v1005
        %1015 = vmatpush.bf16.msra.mxu0 %v1004
        %1016 = vmatpush.bf16.msra.mxu0 %v1003
        %1017 = vmatpush.bf16.msra.mxu0 %v1002
        %1018 = vmatpush.bf16.msra.mxu0 %v1001
        %1019 = vmatpush.bf16.msra.mxu0 %v1000
        %1020 = vmatpush.bf16.msra.mxu0 %v999
        %1021 = vmatpush.bf16.msra.mxu0 %v998
        %1022 = vmatmul.bf16.gmra.mxu0 %v958
        %v1023 = vpop.f32.mrf.mxu0
        %v1024 = vadd.f32 0.0, %v1023
        %v1025 = vpop.f32.mrf.mxu0
        %v1026 = vadd.f32 0.0, %v1025
        %1027 = vmatmul.bf16.gmra.mxu0 %v959
        %v1028 = vpop.f32.mrf.mxu0
        %v1029 = vadd.f32 0.0, %v1028
        %v1030 = vpop.f32.mrf.mxu0
        %v1031 = vadd.f32 0.0, %v1030
        %1032 = vmatmul.bf16.gmra.mxu0 %v960
        %v1033 = vpop.f32.mrf.mxu0
        %v1034 = vadd.f32 0.0, %v1033
        %v1035 = vpop.f32.mrf.mxu0
        %v1036 = vadd.f32 0.0, %v1035
        %1037 = vmatmul.bf16.gmra.mxu0 %v961
        %v1038 = vpop.f32.mrf.mxu0
        %v1039 = vadd.f32 0.0, %v1038
        %v1040 = vpop.f32.mrf.mxu0
        %v1041 = vadd.f32 0.0, %v1040
        %1042 = vmatmul.bf16.gmra.mxu0 %v962
        %v1043 = vpop.f32.mrf.mxu0
        %v1044 = vadd.f32 0.0, %v1043
        %v1045 = vpop.f32.mrf.mxu0
        %v1046 = vadd.f32 0.0, %v1045
        %1047 = vmatmul.bf16.gmra.mxu0 %v963
        %v1048 = vpop.f32.mrf.mxu0
        %v1049 = vadd.f32 0.0, %v1048
        %v1050 = vpop.f32.mrf.mxu0
        %v1051 = vadd.f32 0.0, %v1050
        %1052 = vmatmul.bf16.gmra.mxu0 %v964
        %v1053 = vpop.f32.mrf.mxu0
        %v1054 = vadd.f32 0.0, %v1053
        %v1055 = vpop.f32.mrf.mxu0
        %v1056 = vadd.f32 0.0, %v1055
        %1057 = vmatmul.bf16.gmra.mxu0 %v965
        %v1058 = vpop.f32.mrf.mxu0
        %v1059 = vadd.f32 0.0, %v1058
        %v1060 = vpop.f32.mrf.mxu0
        %v1061 = vadd.f32 0.0, %v1060
        %1062 = vdwg.mxu0
        %1064 = vset.pattern.permute.xlu0 0
        %1065 = vperm.xlu0 %1064, %v927
        %v1066 = vpop.permute.xlu0 %1065
        %1069 = vset.pattern.permute.xlu0 0
        %1070 = vperm.xlu0 %1069, %v929
        %v1071 = vpop.permute.xlu0 %1070
        %1074 = vset.pattern.permute.xlu0 0
        %1075 = vperm.xlu0 %1074, %v931
        %v1076 = vpop.permute.xlu0 %1075
        %1079 = vset.pattern.permute.xlu0 0
        %1080 = vperm.xlu0 %1079, %v933
        %v1081 = vpop.permute.xlu0 %1080
        %1084 = vset.pattern.permute.xlu0 0
        %1085 = vperm.xlu0 %1084, %v935
        %v1086 = vpop.permute.xlu0 %1085
        %1089 = vset.pattern.permute.xlu0 0
        %1090 = vperm.xlu0 %1089, %v937
        %v1091 = vpop.permute.xlu0 %1090
        %1094 = vset.pattern.permute.xlu0 0
        %1095 = vperm.xlu0 %1094, %v939
        %v1096 = vpop.permute.xlu0 %1095
        %1099 = vset.pattern.permute.xlu0 0
        %1100 = vperm.xlu0 %1099, %v941
        %v1101 = vpop.permute.xlu0 %1100
        %1104 = vset.pattern.permute.xlu0 0
        %1105 = vperm.xlu0 %1104, %v943
        %v1106 = vpop.permute.xlu0 %1105
        %1109 = vset.pattern.permute.xlu0 0
        %1110 = vperm.xlu0 %1109, %v945
        %v1111 = vpop.permute.xlu0 %1110
        %1114 = vset.pattern.permute.xlu0 0
        %1115 = vperm.xlu0 %1114, %v947
        %v1116 = vpop.permute.xlu0 %1115
        %1119 = vset.pattern.permute.xlu0 0
        %1120 = vperm.xlu0 %1119, %v949
        %v1121 = vpop.permute.xlu0 %1120
        %1124 = vset.pattern.permute.xlu0 0
        %1125 = vperm.xlu0 %1124, %v951
        %v1126 = vpop.permute.xlu0 %1125
        %1129 = vset.pattern.permute.xlu0 0
        %1130 = vperm.xlu0 %1129, %v953
        %v1131 = vpop.permute.xlu0 %1130
        %1134 = vset.pattern.permute.xlu0 0
        %1135 = vperm.xlu0 %1134, %v955
        %v1136 = vpop.permute.xlu0 %1135
        %1139 = vset.pattern.permute.xlu0 0
        %1140 = vperm.xlu0 %1139, %v957
        %v1141 = vpop.permute.xlu0 %1140
        %v1143 = vmul.f32 %v1066, %v525
        %v1144 = vmul.f32 %v1071, %v527
        %v1145 = vmul.f32 %v1076, %v529
        %v1146 = vmul.f32 %v1081, %v531
        %v1147 = vmul.f32 %v1086, %v533
        %v1148 = vmul.f32 %v1091, %v535
        %v1149 = vmul.f32 %v1096, %v537
        %v1150 = vmul.f32 %v1101, %v539
        %v1151 = vmul.f32 %v1106, %v541
        %v1152 = vmul.f32 %v1111, %v543
        %v1153 = vmul.f32 %v1116, %v545
        %v1154 = vmul.f32 %v1121, %v547
        %v1155 = vmul.f32 %v1126, %v549
        %v1156 = vmul.f32 %v1131, %v551
        %v1157 = vmul.f32 %v1136, %v553
        %v1158 = vmul.f32 %v1141, %v555
        %v1159 = vadd.f32 %v1143, %v1024
        %v1160 = vadd.f32 %v1144, %v1026
        %v1161 = vadd.f32 %v1145, %v1029
        %v1162 = vadd.f32 %v1146, %v1031
        %v1163 = vadd.f32 %v1147, %v1034
        %v1164 = vadd.f32 %v1148, %v1036
        %v1165 = vadd.f32 %v1149, %v1039
        %v1166 = vadd.f32 %v1150, %v1041
        %v1167 = vadd.f32 %v1151, %v1044
        %v1168 = vadd.f32 %v1152, %v1046
        %v1169 = vadd.f32 %v1153, %v1049
        %v1170 = vadd.f32 %v1154, %v1051
        %v1171 = vadd.f32 %v1155, %v1054
        %v1172 = vadd.f32 %v1156, %v1056
        %v1173 = vadd.f32 %v1157, %v1059
        %v1174 = vadd.f32 %v1158, %v1061
        %1175 = vset.pattern.permute.xlu0 1
        %1176 = vperm.xlu0 %1175, %v425
        %v1177 = vpop.permute.xlu0 %1176
        %1179 = vset.pattern.permute.xlu0 1
        %1180 = vperm.xlu0 %1179, %v426
        %v1181 = vpop.permute.xlu0 %1180
        %1183 = vset.pattern.permute.xlu0 1
        %1184 = vperm.xlu0 %1183, %v427
        %v1185 = vpop.permute.xlu0 %1184
        %1187 = vset.pattern.permute.xlu0 1
        %1188 = vperm.xlu0 %1187, %v428
        %v1189 = vpop.permute.xlu0 %1188
        %1191 = vset.pattern.permute.xlu0 1
        %1192 = vperm.xlu0 %1191, %v429
        %v1193 = vpop.permute.xlu0 %1192
        %1195 = vset.pattern.permute.xlu0 1
        %1196 = vperm.xlu0 %1195, %v430
        %v1197 = vpop.permute.xlu0 %1196
        %1199 = vset.pattern.permute.xlu0 1
        %1200 = vperm.xlu0 %1199, %v431
        %v1201 = vpop.permute.xlu0 %1200
        %1203 = vset.pattern.permute.xlu0 1
        %1204 = vperm.xlu0 %1203, %v432
        %v1205 = vpop.permute.xlu0 %1204
        %1207 = vset.pattern.permute.xlu0 1
        %1208 = vperm.xlu0 %1207, %v433
        %v1209 = vpop.permute.xlu0 %1208
        %1211 = vset.pattern.permute.xlu0 1
        %1212 = vperm.xlu0 %1211, %v434
        %v1213 = vpop.permute.xlu0 %1212
        %1215 = vset.pattern.permute.xlu0 1
        %1216 = vperm.xlu0 %1215, %v435
        %v1217 = vpop.permute.xlu0 %1216
        %1219 = vset.pattern.permute.xlu0 1
        %1220 = vperm.xlu0 %1219, %v436
        %v1221 = vpop.permute.xlu0 %1220
        %1223 = vset.pattern.permute.xlu0 1
        %1224 = vperm.xlu0 %1223, %v437
        %v1225 = vpop.permute.xlu0 %1224
        %1227 = vset.pattern.permute.xlu0 1
        %1228 = vperm.xlu0 %1227, %v438
        %v1229 = vpop.permute.xlu0 %1228
        %1231 = vset.pattern.permute.xlu0 1
        %1232 = vperm.xlu0 %1231, %v439
        %v1233 = vpop.permute.xlu0 %1232
        %1235 = vset.pattern.permute.xlu0 1
        %1236 = vperm.xlu0 %1235, %v440
        %v1237 = vpop.permute.xlu0 %1236
        %v1239 = vperm.slane %v424, 1
        %v1240 = vadd.f32 %v1177, %v1239
        %v1241 = vadd.f32 %v1181, %v1239
        %v1242 = vadd.f32 %v1185, %v1239
        %v1243 = vadd.f32 %v1189, %v1239
        %v1244 = vadd.f32 %v1193, %v1239
        %v1245 = vadd.f32 %v1197, %v1239
        %v1246 = vadd.f32 %v1201, %v1239
        %v1247 = vadd.f32 %v1205, %v1239
        %v1248 = vadd.f32 %v1209, %v1239
        %v1249 = vadd.f32 %v1213, %v1239
        %v1250 = vadd.f32 %v1217, %v1239
        %v1251 = vadd.f32 %v1221, %v1239
        %v1252 = vadd.f32 %v1225, %v1239
        %v1253 = vadd.f32 %v1229, %v1239
        %v1254 = vadd.f32 %v1233, %v1239
        %v1255 = vadd.f32 %v1237, %v1239
        %vm1256 = vcmp.gt.f32.partialorder %v1240, 0.0
        %vm1257 = vcmp.gt.f32.partialorder %v1241, 0.0
        %vm1258 = vcmp.gt.f32.partialorder %v1242, 0.0
        %vm1259 = vcmp.gt.f32.partialorder %v1243, 0.0
        %vm1260 = vcmp.gt.f32.partialorder %v1244, 0.0
        %vm1261 = vcmp.gt.f32.partialorder %v1245, 0.0
        %vm1262 = vcmp.gt.f32.partialorder %v1246, 0.0
        %vm1263 = vcmp.gt.f32.partialorder %v1247, 0.0
        %vm1264 = vcmp.gt.f32.partialorder %v1248, 0.0
        %vm1265 = vcmp.gt.f32.partialorder %v1249, 0.0
        %vm1266 = vcmp.gt.f32.partialorder %v1250, 0.0
        %vm1267 = vcmp.gt.f32.partialorder %v1251, 0.0
        %vm1268 = vcmp.gt.f32.partialorder %v1252, 0.0
        %vm1269 = vcmp.gt.f32.partialorder %v1253, 0.0
        %vm1270 = vcmp.gt.f32.partialorder %v1254, 0.0
        %vm1271 = vcmp.gt.f32.partialorder %v1255, 0.0
        %v1272 = vmul.f32 %v1240, 0.2
        %v1273 = vmul.f32 %v1241, 0.2
        %v1274 = vmul.f32 %v1242, 0.2
        %v1275 = vmul.f32 %v1243, 0.2
        %v1276 = vmul.f32 %v1244, 0.2
        %v1277 = vmul.f32 %v1245, 0.2
        %v1278 = vmul.f32 %v1246, 0.2
        %v1279 = vmul.f32 %v1247, 0.2
        %v1280 = vmul.f32 %v1248, 0.2
        %v1281 = vmul.f32 %v1249, 0.2
        %v1282 = vmul.f32 %v1250, 0.2
        %v1283 = vmul.f32 %v1251, 0.2
        %v1284 = vmul.f32 %v1252, 0.2
        %v1285 = vmul.f32 %v1253, 0.2
        %v1286 = vmul.f32 %v1254, 0.2
        %v1287 = vmul.f32 %v1255, 0.2
        %v1288 = vsel %vm1256, %v1240, %v1272
        %v1289 = vsel %vm1257, %v1241, %v1273
        %v1290 = vsel %vm1258, %v1242, %v1274
        %v1291 = vsel %vm1259, %v1243, %v1275
        %v1292 = vsel %vm1260, %v1244, %v1276
        %v1293 = vsel %vm1261, %v1245, %v1277
        %v1294 = vsel %vm1262, %v1246, %v1278
        %v1295 = vsel %vm1263, %v1247, %v1279
        %v1296 = vsel %vm1264, %v1248, %v1280
        %v1297 = vsel %vm1265, %v1249, %v1281
        %v1298 = vsel %vm1266, %v1250, %v1282
        %v1299 = vsel %vm1267, %v1251, %v1283
        %v1300 = vsel %vm1268, %v1252, %v1284
        %v1301 = vsel %vm1269, %v1253, %v1285
        %v1302 = vsel %vm1270, %v1254, %v1286
        %v1303 = vsel %vm1271, %v1255, %v1287
        %v1304 = vadd.f32 %v1288, %v493
        %v1305 = vadd.f32 %v1289, %v494
        %v1306 = vadd.f32 %v1290, %v495
        %v1307 = vadd.f32 %v1291, %v496
        %v1308 = vadd.f32 %v1292, %v497
        %v1309 = vadd.f32 %v1293, %v498
        %v1310 = vadd.f32 %v1294, %v499
        %v1311 = vadd.f32 %v1295, %v500
        %v1312 = vadd.f32 %v1296, %v501
        %v1313 = vadd.f32 %v1297, %v502
        %v1314 = vadd.f32 %v1298, %v503
        %v1315 = vadd.f32 %v1299, %v504
        %v1316 = vadd.f32 %v1300, %v505
        %v1317 = vadd.f32 %v1301, %v506
        %v1318 = vadd.f32 %v1302, %v507
        %v1319 = vadd.f32 %v1303, %v508
        %1320 = vmax.xlane.f32.xlu0 %v1304
        %v1321 = vpop.xlane.xlu0 %1320
        %1322 = vmax.xlane.f32.xlu0 %v1305
        %v1323 = vpop.xlane.xlu0 %1322
        %1324 = vmax.xlane.f32.xlu0 %v1306
        %v1325 = vpop.xlane.xlu0 %1324
        %1326 = vmax.xlane.f32.xlu0 %v1307
        %v1327 = vpop.xlane.xlu0 %1326
        %1328 = vmax.xlane.f32.xlu0 %v1308
        %v1329 = vpop.xlane.xlu0 %1328
        %1330 = vmax.xlane.f32.xlu0 %v1309
        %v1331 = vpop.xlane.xlu0 %1330
        %1332 = vmax.xlane.f32.xlu0 %v1310
        %v1333 = vpop.xlane.xlu0 %1332
        %1334 = vmax.xlane.f32.xlu0 %v1311
        %v1335 = vpop.xlane.xlu0 %1334
        %1336 = vmax.xlane.f32.xlu0 %v1312
        %v1337 = vpop.xlane.xlu0 %1336
        %1338 = vmax.xlane.f32.xlu0 %v1313
        %v1339 = vpop.xlane.xlu0 %1338
        %1340 = vmax.xlane.f32.xlu0 %v1314
        %v1341 = vpop.xlane.xlu0 %1340
        %1342 = vmax.xlane.f32.xlu0 %v1315
        %v1343 = vpop.xlane.xlu0 %1342
        %1344 = vmax.xlane.f32.xlu0 %v1316
        %v1345 = vpop.xlane.xlu0 %1344
        %1346 = vmax.xlane.f32.xlu0 %v1317
        %v1347 = vpop.xlane.xlu0 %1346
        %1348 = vmax.xlane.f32.xlu0 %v1318
        %v1349 = vpop.xlane.xlu0 %1348
        %1350 = vmax.xlane.f32.xlu0 %v1319
        %v1351 = vpop.xlane.xlu0 %1350
        %v1352 = vmax.f32 %v509, %v1321
        %v1353 = vmax.f32 %v510, %v1323
        %v1354 = vmax.f32 %v511, %v1325
        %v1355 = vmax.f32 %v512, %v1327
        %v1356 = vmax.f32 %v513, %v1329
        %v1357 = vmax.f32 %v514, %v1331
        %v1358 = vmax.f32 %v515, %v1333
        %v1359 = vmax.f32 %v516, %v1335
        %v1360 = vmax.f32 %v517, %v1337
        %v1361 = vmax.f32 %v518, %v1339
        %v1362 = vmax.f32 %v519, %v1341
        %v1363 = vmax.f32 %v520, %v1343
        %v1364 = vmax.f32 %v521, %v1345
        %v1365 = vmax.f32 %v522, %v1347
        %v1366 = vmax.f32 %v523, %v1349
        %v1367 = vmax.f32 %v524, %v1351
        %1369 = vset.pattern.permute.xlu0 1
        %1370 = vperm.xlu0 %1369, %v1352
        %v1371 = vpop.permute.xlu0 %1370
        %1374 = vset.pattern.permute.xlu0 1
        %1375 = vperm.xlu0 %1374, %v1353
        %v1376 = vpop.permute.xlu0 %1375
        %1379 = vset.pattern.permute.xlu0 1
        %1380 = vperm.xlu0 %1379, %v1354
        %v1381 = vpop.permute.xlu0 %1380
        %1384 = vset.pattern.permute.xlu0 1
        %1385 = vperm.xlu0 %1384, %v1355
        %v1386 = vpop.permute.xlu0 %1385
        %1389 = vset.pattern.permute.xlu0 1
        %1390 = vperm.xlu0 %1389, %v1356
        %v1391 = vpop.permute.xlu0 %1390
        %1394 = vset.pattern.permute.xlu0 1
        %1395 = vperm.xlu0 %1394, %v1357
        %v1396 = vpop.permute.xlu0 %1395
        %1399 = vset.pattern.permute.xlu0 1
        %1400 = vperm.xlu0 %1399, %v1358
        %v1401 = vpop.permute.xlu0 %1400
        %1404 = vset.pattern.permute.xlu0 1
        %1405 = vperm.xlu0 %1404, %v1359
        %v1406 = vpop.permute.xlu0 %1405
        %1409 = vset.pattern.permute.xlu0 1
        %1410 = vperm.xlu0 %1409, %v1360
        %v1411 = vpop.permute.xlu0 %1410
        %1414 = vset.pattern.permute.xlu0 1
        %1415 = vperm.xlu0 %1414, %v1361
        %v1416 = vpop.permute.xlu0 %1415
        %1419 = vset.pattern.permute.xlu0 1
        %1420 = vperm.xlu0 %1419, %v1362
        %v1421 = vpop.permute.xlu0 %1420
        %1424 = vset.pattern.permute.xlu0 1
        %1425 = vperm.xlu0 %1424, %v1363
        %v1426 = vpop.permute.xlu0 %1425
        %1429 = vset.pattern.permute.xlu0 1
        %1430 = vperm.xlu0 %1429, %v1364
        %v1431 = vpop.permute.xlu0 %1430
        %1434 = vset.pattern.permute.xlu0 1
        %1435 = vperm.xlu0 %1434, %v1365
        %v1436 = vpop.permute.xlu0 %1435
        %1439 = vset.pattern.permute.xlu0 1
        %1440 = vperm.xlu0 %1439, %v1366
        %v1441 = vpop.permute.xlu0 %1440
        %1444 = vset.pattern.permute.xlu0 1
        %1445 = vperm.xlu0 %1444, %v1367
        %v1446 = vpop.permute.xlu0 %1445
        %v1448 = vsub.f32 %v1304, %v1371
        %v1449 = vsub.f32 %v1305, %v1376
        %v1450 = vsub.f32 %v1306, %v1381
        %v1451 = vsub.f32 %v1307, %v1386
        %v1452 = vsub.f32 %v1308, %v1391
        %v1453 = vsub.f32 %v1309, %v1396
        %v1454 = vsub.f32 %v1310, %v1401
        %v1455 = vsub.f32 %v1311, %v1406
        %v1456 = vsub.f32 %v1312, %v1411
        %v1457 = vsub.f32 %v1313, %v1416
        %v1458 = vsub.f32 %v1314, %v1421
        %v1459 = vsub.f32 %v1315, %v1426
        %v1460 = vsub.f32 %v1316, %v1431
        %v1461 = vsub.f32 %v1317, %v1436
        %v1462 = vsub.f32 %v1318, %v1441
        %v1463 = vsub.f32 %v1319, %v1446
        %v1464 = vmul.f32 %v1448, 1.442695
        %v1465 = vpow.pop %v1464
        %v1466 = vmul.f32 %v1449, 1.442695
        %v1467 = vpow.pop %v1466
        %v1468 = vmul.f32 %v1450, 1.442695
        %v1469 = vpow.pop %v1468
        %v1470 = vmul.f32 %v1451, 1.442695
        %v1471 = vpow.pop %v1470
        %v1472 = vmul.f32 %v1452, 1.442695
        %v1473 = vpow.pop %v1472
        %v1474 = vmul.f32 %v1453, 1.442695
        %v1475 = vpow.pop %v1474
        %v1476 = vmul.f32 %v1454, 1.442695
        %v1477 = vpow.pop %v1476
        %v1478 = vmul.f32 %v1455, 1.442695
        %v1479 = vpow.pop %v1478
        %v1480 = vmul.f32 %v1456, 1.442695
        %v1481 = vpow.pop %v1480
        %v1482 = vmul.f32 %v1457, 1.442695
        %v1483 = vpow.pop %v1482
        %v1484 = vmul.f32 %v1458, 1.442695
        %v1485 = vpow.pop %v1484
        %v1486 = vmul.f32 %v1459, 1.442695
        %v1487 = vpow.pop %v1486
        %v1488 = vmul.f32 %v1460, 1.442695
        %v1489 = vpow.pop %v1488
        %v1490 = vmul.f32 %v1461, 1.442695
        %v1491 = vpow.pop %v1490
        %v1492 = vmul.f32 %v1462, 1.442695
        %v1493 = vpow.pop %v1492
        %v1494 = vmul.f32 %v1463, 1.442695
        %v1495 = vpow.pop %v1494
        %v1496 = vmul.f32 %v1465, %v461
        %v1497 = vmul.f32 %v1467, %v462
        %v1498 = vmul.f32 %v1469, %v463
        %v1499 = vmul.f32 %v1471, %v464
        %v1500 = vmul.f32 %v1473, %v465
        %v1501 = vmul.f32 %v1475, %v466
        %v1502 = vmul.f32 %v1477, %v467
        %v1503 = vmul.f32 %v1479, %v468
        %v1504 = vmul.f32 %v1481, %v469
        %v1505 = vmul.f32 %v1483, %v470
        %v1506 = vmul.f32 %v1485, %v471
        %v1507 = vmul.f32 %v1487, %v472
        %v1508 = vmul.f32 %v1489, %v473
        %v1509 = vmul.f32 %v1491, %v474
        %v1510 = vmul.f32 %v1493, %v475
        %v1511 = vmul.f32 %v1495, %v476
        %v1512 = vsub.f32 %v509, %v1352
        %v1513 = vsub.f32 %v510, %v1353
        %v1514 = vsub.f32 %v511, %v1354
        %v1515 = vsub.f32 %v512, %v1355
        %v1516 = vsub.f32 %v513, %v1356
        %v1517 = vsub.f32 %v514, %v1357
        %v1518 = vsub.f32 %v515, %v1358
        %v1519 = vsub.f32 %v516, %v1359
        %v1520 = vsub.f32 %v517, %v1360
        %v1521 = vsub.f32 %v518, %v1361
        %v1522 = vsub.f32 %v519, %v1362
        %v1523 = vsub.f32 %v520, %v1363
        %v1524 = vsub.f32 %v521, %v1364
        %v1525 = vsub.f32 %v522, %v1365
        %v1526 = vsub.f32 %v523, %v1366
        %v1527 = vsub.f32 %v524, %v1367
        %v1528 = vmul.f32 %v1512, 1.442695
        %v1529 = vpow.pop %v1528
        %v1530 = vmul.f32 %v1513, 1.442695
        %v1531 = vpow.pop %v1530
        %v1532 = vmul.f32 %v1514, 1.442695
        %v1533 = vpow.pop %v1532
        %v1534 = vmul.f32 %v1515, 1.442695
        %v1535 = vpow.pop %v1534
        %v1536 = vmul.f32 %v1516, 1.442695
        %v1537 = vpow.pop %v1536
        %v1538 = vmul.f32 %v1517, 1.442695
        %v1539 = vpow.pop %v1538
        %v1540 = vmul.f32 %v1518, 1.442695
        %v1541 = vpow.pop %v1540
        %v1542 = vmul.f32 %v1519, 1.442695
        %v1543 = vpow.pop %v1542
        %v1544 = vmul.f32 %v1520, 1.442695
        %v1545 = vpow.pop %v1544
        %v1546 = vmul.f32 %v1521, 1.442695
        %v1547 = vpow.pop %v1546
        %v1548 = vmul.f32 %v1522, 1.442695
        %v1549 = vpow.pop %v1548
        %v1550 = vmul.f32 %v1523, 1.442695
        %v1551 = vpow.pop %v1550
        %v1552 = vmul.f32 %v1524, 1.442695
        %v1553 = vpow.pop %v1552
        %v1554 = vmul.f32 %v1525, 1.442695
        %v1555 = vpow.pop %v1554
        %v1556 = vmul.f32 %v1526, 1.442695
        %v1557 = vpow.pop %v1556
        %v1558 = vmul.f32 %v1527, 1.442695
        %v1559 = vpow.pop %v1558
        %v1560 = vpack.c.bf16 %v1497, %v1496
        %v1561 = vpack.c.bf16 %v1499, %v1498
        %v1562 = vpack.c.bf16 %v1501, %v1500
        %v1563 = vpack.c.bf16 %v1503, %v1502
        %v1564 = vpack.c.bf16 %v1505, %v1504
        %v1565 = vpack.c.bf16 %v1507, %v1506
        %v1566 = vpack.c.bf16 %v1509, %v1508
        %v1567 = vpack.c.bf16 %v1511, %v1510
        %1568 = vrot.lane.b32.xlu0 %v998, 95
        %v1569 = vpop.permute.xlu0 %1568
        %1570 = vrot.lane.b32.xlu0 %v999, 95
        %v1571 = vpop.permute.xlu0 %1570
        %1572 = vrot.lane.b32.xlu0 %v1000, 95
        %v1573 = vpop.permute.xlu0 %1572
        %1574 = vrot.lane.b32.xlu0 %v1001, 95
        %v1575 = vpop.permute.xlu0 %1574
        %1576 = vrot.lane.b32.xlu0 %v1002, 95
        %v1577 = vpop.permute.xlu0 %1576
        %1578 = vrot.lane.b32.xlu0 %v1003, 95
        %v1579 = vpop.permute.xlu0 %1578
        %1580 = vrot.lane.b32.xlu0 %v1004, 95
        %v1581 = vpop.permute.xlu0 %1580
        %1582 = vrot.lane.b32.xlu0 %v1005, 95
        %v1583 = vpop.permute.xlu0 %1582
        %1592 = vmatpush.bf16.msra.mxu0 %v1583
        %1593 = vmatpush.bf16.msra.mxu0 %v1581
        %1594 = vmatpush.bf16.msra.mxu0 %v1579
        %1595 = vmatpush.bf16.msra.mxu0 %v1577
        %1596 = vmatpush.bf16.msra.mxu0 %v1575
        %1597 = vmatpush.bf16.msra.mxu0 %v1573
        %1598 = vmatpush.bf16.msra.mxu0 %v1571
        %1599 = vmatpush.bf16.msra.mxu0 %v1569
        %1600 = vmatmul.bf16.gmra.mxu0 %v1560
        %v1601 = vpop.f32.mrf.mxu0
        %v1602 = vadd.f32 0.0, %v1601
        %v1603 = vpop.f32.mrf.mxu0
        %v1604 = vadd.f32 0.0, %v1603
        %1605 = vmatmul.bf16.gmra.mxu0 %v1561
        %v1606 = vpop.f32.mrf.mxu0
        %v1607 = vadd.f32 0.0, %v1606
        %v1608 = vpop.f32.mrf.mxu0
        %v1609 = vadd.f32 0.0, %v1608
        %1610 = vmatmul.bf16.gmra.mxu0 %v1562
        %v1611 = vpop.f32.mrf.mxu0
        %v1612 = vadd.f32 0.0, %v1611
        %v1613 = vpop.f32.mrf.mxu0
        %v1614 = vadd.f32 0.0, %v1613
        %1615 = vmatmul.bf16.gmra.mxu0 %v1563
        %v1616 = vpop.f32.mrf.mxu0
        %v1617 = vadd.f32 0.0, %v1616
        %v1618 = vpop.f32.mrf.mxu0
        %v1619 = vadd.f32 0.0, %v1618
        %1620 = vmatmul.bf16.gmra.mxu0 %v1564
        %v1621 = vpop.f32.mrf.mxu0
        %v1622 = vadd.f32 0.0, %v1621
        %v1623 = vpop.f32.mrf.mxu0
        %v1624 = vadd.f32 0.0, %v1623
        %1625 = vmatmul.bf16.gmra.mxu0 %v1565
        %v1626 = vpop.f32.mrf.mxu0
        %v1627 = vadd.f32 0.0, %v1626
        %v1628 = vpop.f32.mrf.mxu0
        %v1629 = vadd.f32 0.0, %v1628
        %1630 = vmatmul.bf16.gmra.mxu0 %v1566
        %v1631 = vpop.f32.mrf.mxu0
        %v1632 = vadd.f32 0.0, %v1631
        %v1633 = vpop.f32.mrf.mxu0
        %v1634 = vadd.f32 0.0, %v1633
        %1635 = vmatmul.bf16.gmra.mxu0 %v1567
        %v1636 = vpop.f32.mrf.mxu0
        %v1637 = vadd.f32 0.0, %v1636
        %v1638 = vpop.f32.mrf.mxu0
        %v1639 = vadd.f32 0.0, %v1638
        %1640 = vdwg.mxu0
        %1642 = vset.pattern.permute.xlu0 1
        %1643 = vperm.xlu0 %1642, %v1529
        %v1644 = vpop.permute.xlu0 %1643
        %1647 = vset.pattern.permute.xlu0 1
        %1648 = vperm.xlu0 %1647, %v1531
        %v1649 = vpop.permute.xlu0 %1648
        %1652 = vset.pattern.permute.xlu0 1
        %1653 = vperm.xlu0 %1652, %v1533
        %v1654 = vpop.permute.xlu0 %1653
        %1657 = vset.pattern.permute.xlu0 1
        %1658 = vperm.xlu0 %1657, %v1535
        %v1659 = vpop.permute.xlu0 %1658
        %1662 = vset.pattern.permute.xlu0 1
        %1663 = vperm.xlu0 %1662, %v1537
        %v1664 = vpop.permute.xlu0 %1663
        %1667 = vset.pattern.permute.xlu0 1
        %1668 = vperm.xlu0 %1667, %v1539
        %v1669 = vpop.permute.xlu0 %1668
        %1672 = vset.pattern.permute.xlu0 1
        %1673 = vperm.xlu0 %1672, %v1541
        %v1674 = vpop.permute.xlu0 %1673
        %1677 = vset.pattern.permute.xlu0 1
        %1678 = vperm.xlu0 %1677, %v1543
        %v1679 = vpop.permute.xlu0 %1678
        %1682 = vset.pattern.permute.xlu0 1
        %1683 = vperm.xlu0 %1682, %v1545
        %v1684 = vpop.permute.xlu0 %1683
        %1687 = vset.pattern.permute.xlu0 1
        %1688 = vperm.xlu0 %1687, %v1547
        %v1689 = vpop.permute.xlu0 %1688
        %1692 = vset.pattern.permute.xlu0 1
        %1693 = vperm.xlu0 %1692, %v1549
        %v1694 = vpop.permute.xlu0 %1693
        %1697 = vset.pattern.permute.xlu0 1
        %1698 = vperm.xlu0 %1697, %v1551
        %v1699 = vpop.permute.xlu0 %1698
        %1702 = vset.pattern.permute.xlu0 1
        %1703 = vperm.xlu0 %1702, %v1553
        %v1704 = vpop.permute.xlu0 %1703
        %1707 = vset.pattern.permute.xlu0 1
        %1708 = vperm.xlu0 %1707, %v1555
        %v1709 = vpop.permute.xlu0 %1708
        %1712 = vset.pattern.permute.xlu0 1
        %1713 = vperm.xlu0 %1712, %v1557
        %v1714 = vpop.permute.xlu0 %1713
        %1717 = vset.pattern.permute.xlu0 1
        %1718 = vperm.xlu0 %1717, %v1559
        %v1719 = vpop.permute.xlu0 %1718
        %v1721 = vmul.f32 %v1644, %v525
        %v1722 = vmul.f32 %v1649, %v527
        %v1723 = vmul.f32 %v1654, %v529
        %v1724 = vmul.f32 %v1659, %v531
        %v1725 = vmul.f32 %v1664, %v533
        %v1726 = vmul.f32 %v1669, %v535
        %v1727 = vmul.f32 %v1674, %v537
        %v1728 = vmul.f32 %v1679, %v539
        %v1729 = vmul.f32 %v1684, %v541
        %v1730 = vmul.f32 %v1689, %v543
        %v1731 = vmul.f32 %v1694, %v545
        %v1732 = vmul.f32 %v1699, %v547
        %v1733 = vmul.f32 %v1704, %v549
        %v1734 = vmul.f32 %v1709, %v551
        %v1735 = vmul.f32 %v1714, %v553
        %v1736 = vmul.f32 %v1719, %v555
        %1753 = vrot.lane.b32.xlu0 %v1602, 33
        %v1754 = vpop.permute.xlu0 %1753
        %1755 = vrot.lane.b32.xlu0 %v1604, 33
        %v1756 = vpop.permute.xlu0 %1755
        %1757 = vrot.lane.b32.xlu0 %v1607, 33
        %v1758 = vpop.permute.xlu0 %1757
        %1759 = vrot.lane.b32.xlu0 %v1609, 33
        %v1760 = vpop.permute.xlu0 %1759
        %1761 = vrot.lane.b32.xlu0 %v1612, 33
        %v1762 = vpop.permute.xlu0 %1761
        %1763 = vrot.lane.b32.xlu0 %v1614, 33
        %v1764 = vpop.permute.xlu0 %1763
        %1765 = vrot.lane.b32.xlu0 %v1617, 33
        %v1766 = vpop.permute.xlu0 %1765
        %1767 = vrot.lane.b32.xlu0 %v1619, 33
        %v1768 = vpop.permute.xlu0 %1767
        %1769 = vrot.lane.b32.xlu0 %v1622, 33
        %v1770 = vpop.permute.xlu0 %1769
        %1771 = vrot.lane.b32.xlu0 %v1624, 33
        %v1772 = vpop.permute.xlu0 %1771
        %1773 = vrot.lane.b32.xlu0 %v1627, 33
        %v1774 = vpop.permute.xlu0 %1773
        %1775 = vrot.lane.b32.xlu0 %v1629, 33
        %v1776 = vpop.permute.xlu0 %1775
        %1777 = vrot.lane.b32.xlu0 %v1632, 33
        %v1778 = vpop.permute.xlu0 %1777
        %1779 = vrot.lane.b32.xlu0 %v1634, 33
        %v1780 = vpop.permute.xlu0 %1779
        %1781 = vrot.lane.b32.xlu0 %v1637, 33
        %v1782 = vpop.permute.xlu0 %1781
        %1783 = vrot.lane.b32.xlu0 %v1639, 33
        %v1784 = vpop.permute.xlu0 %1783
        %v1801 = vadd.f32 %v1721, %v1754
        %v1802 = vadd.f32 %v1722, %v1756
        %v1803 = vadd.f32 %v1723, %v1758
        %v1804 = vadd.f32 %v1724, %v1760
        %v1805 = vadd.f32 %v1725, %v1762
        %v1806 = vadd.f32 %v1726, %v1764
        %v1807 = vadd.f32 %v1727, %v1766
        %v1808 = vadd.f32 %v1728, %v1768
        %v1809 = vadd.f32 %v1729, %v1770
        %v1810 = vadd.f32 %v1730, %v1772
        %v1811 = vadd.f32 %v1731, %v1774
        %v1812 = vadd.f32 %v1732, %v1776
        %v1813 = vadd.f32 %v1733, %v1778
        %v1814 = vadd.f32 %v1734, %v1780
        %v1815 = vadd.f32 %v1735, %v1782
        %v1816 = vadd.f32 %v1736, %v1784
        %1817 = vset.pattern.permute.xlu0 2
        %1818 = vperm.xlu0 %1817, %v425
        %v1819 = vpop.permute.xlu0 %1818
        %1821 = vset.pattern.permute.xlu0 2
        %1822 = vperm.xlu0 %1821, %v426
        %v1823 = vpop.permute.xlu0 %1822
        %1825 = vset.pattern.permute.xlu0 2
        %1826 = vperm.xlu0 %1825, %v427
        %v1827 = vpop.permute.xlu0 %1826
        %1829 = vset.pattern.permute.xlu0 2
        %1830 = vperm.xlu0 %1829, %v428
        %v1831 = vpop.permute.xlu0 %1830
        %1833 = vset.pattern.permute.xlu0 2
        %1834 = vperm.xlu0 %1833, %v429
        %v1835 = vpop.permute.xlu0 %1834
        %1837 = vset.pattern.permute.xlu0 2
        %1838 = vperm.xlu0 %1837, %v430
        %v1839 = vpop.permute.xlu0 %1838
        %1841 = vset.pattern.permute.xlu0 2
        %1842 = vperm.xlu0 %1841, %v431
        %v1843 = vpop.permute.xlu0 %1842
        %1845 = vset.pattern.permute.xlu0 2
        %1846 = vperm.xlu0 %1845, %v432
        %v1847 = vpop.permute.xlu0 %1846
        %1849 = vset.pattern.permute.xlu0 2
        %1850 = vperm.xlu0 %1849, %v433
        %v1851 = vpop.permute.xlu0 %1850
        %1853 = vset.pattern.permute.xlu0 2
        %1854 = vperm.xlu0 %1853, %v434
        %v1855 = vpop.permute.xlu0 %1854
        %1857 = vset.pattern.permute.xlu0 2
        %1858 = vperm.xlu0 %1857, %v435
        %v1859 = vpop.permute.xlu0 %1858
        %1861 = vset.pattern.permute.xlu0 2
        %1862 = vperm.xlu0 %1861, %v436
        %v1863 = vpop.permute.xlu0 %1862
        %1865 = vset.pattern.permute.xlu0 2
        %1866 = vperm.xlu0 %1865, %v437
        %v1867 = vpop.permute.xlu0 %1866
        %1869 = vset.pattern.permute.xlu0 2
        %1870 = vperm.xlu0 %1869, %v438
        %v1871 = vpop.permute.xlu0 %1870
        %1873 = vset.pattern.permute.xlu0 2
        %1874 = vperm.xlu0 %1873, %v439
        %v1875 = vpop.permute.xlu0 %1874
        %1877 = vset.pattern.permute.xlu0 2
        %1878 = vperm.xlu0 %1877, %v440
        %v1879 = vpop.permute.xlu0 %1878
        %v1881 = vperm.slane %v424, 2
        %v1882 = vadd.f32 %v1819, %v1881
        %v1883 = vadd.f32 %v1823, %v1881
        %v1884 = vadd.f32 %v1827, %v1881
        %v1885 = vadd.f32 %v1831, %v1881
        %v1886 = vadd.f32 %v1835, %v1881
        %v1887 = vadd.f32 %v1839, %v1881
        %v1888 = vadd.f32 %v1843, %v1881
        %v1889 = vadd.f32 %v1847, %v1881
        %v1890 = vadd.f32 %v1851, %v1881
        %v1891 = vadd.f32 %v1855, %v1881
        %v1892 = vadd.f32 %v1859, %v1881
        %v1893 = vadd.f32 %v1863, %v1881
        %v1894 = vadd.f32 %v1867, %v1881
        %v1895 = vadd.f32 %v1871, %v1881
        %v1896 = vadd.f32 %v1875, %v1881
        %v1897 = vadd.f32 %v1879, %v1881
        %vm1898 = vcmp.gt.f32.partialorder %v1882, 0.0
        %vm1899 = vcmp.gt.f32.partialorder %v1883, 0.0
        %vm1900 = vcmp.gt.f32.partialorder %v1884, 0.0
        %vm1901 = vcmp.gt.f32.partialorder %v1885, 0.0
        %vm1902 = vcmp.gt.f32.partialorder %v1886, 0.0
        %vm1903 = vcmp.gt.f32.partialorder %v1887, 0.0
        %vm1904 = vcmp.gt.f32.partialorder %v1888, 0.0
        %vm1905 = vcmp.gt.f32.partialorder %v1889, 0.0
        %vm1906 = vcmp.gt.f32.partialorder %v1890, 0.0
        %vm1907 = vcmp.gt.f32.partialorder %v1891, 0.0
        %vm1908 = vcmp.gt.f32.partialorder %v1892, 0.0
        %vm1909 = vcmp.gt.f32.partialorder %v1893, 0.0
        %vm1910 = vcmp.gt.f32.partialorder %v1894, 0.0
        %vm1911 = vcmp.gt.f32.partialorder %v1895, 0.0
        %vm1912 = vcmp.gt.f32.partialorder %v1896, 0.0
        %vm1913 = vcmp.gt.f32.partialorder %v1897, 0.0
        %v1914 = vmul.f32 %v1882, 0.2
        %v1915 = vmul.f32 %v1883, 0.2
        %v1916 = vmul.f32 %v1884, 0.2
        %v1917 = vmul.f32 %v1885, 0.2
        %v1918 = vmul.f32 %v1886, 0.2
        %v1919 = vmul.f32 %v1887, 0.2
        %v1920 = vmul.f32 %v1888, 0.2
        %v1921 = vmul.f32 %v1889, 0.2
        %v1922 = vmul.f32 %v1890, 0.2
        %v1923 = vmul.f32 %v1891, 0.2
        %v1924 = vmul.f32 %v1892, 0.2
        %v1925 = vmul.f32 %v1893, 0.2
        %v1926 = vmul.f32 %v1894, 0.2
        %v1927 = vmul.f32 %v1895, 0.2
        %v1928 = vmul.f32 %v1896, 0.2
        %v1929 = vmul.f32 %v1897, 0.2
        %v1930 = vsel %vm1898, %v1882, %v1914
        %v1931 = vsel %vm1899, %v1883, %v1915
        %v1932 = vsel %vm1900, %v1884, %v1916
        %v1933 = vsel %vm1901, %v1885, %v1917
        %v1934 = vsel %vm1902, %v1886, %v1918
        %v1935 = vsel %vm1903, %v1887, %v1919
        %v1936 = vsel %vm1904, %v1888, %v1920
        %v1937 = vsel %vm1905, %v1889, %v1921
        %v1938 = vsel %vm1906, %v1890, %v1922
        %v1939 = vsel %vm1907, %v1891, %v1923
        %v1940 = vsel %vm1908, %v1892, %v1924
        %v1941 = vsel %vm1909, %v1893, %v1925
        %v1942 = vsel %vm1910, %v1894, %v1926
        %v1943 = vsel %vm1911, %v1895, %v1927
        %v1944 = vsel %vm1912, %v1896, %v1928
        %v1945 = vsel %vm1913, %v1897, %v1929
        %v1946 = vadd.f32 %v1930, %v493
        %v1947 = vadd.f32 %v1931, %v494
        %v1948 = vadd.f32 %v1932, %v495
        %v1949 = vadd.f32 %v1933, %v496
        %v1950 = vadd.f32 %v1934, %v497
        %v1951 = vadd.f32 %v1935, %v498
        %v1952 = vadd.f32 %v1936, %v499
        %v1953 = vadd.f32 %v1937, %v500
        %v1954 = vadd.f32 %v1938, %v501
        %v1955 = vadd.f32 %v1939, %v502
        %v1956 = vadd.f32 %v1940, %v503
        %v1957 = vadd.f32 %v1941, %v504
        %v1958 = vadd.f32 %v1942, %v505
        %v1959 = vadd.f32 %v1943, %v506
        %v1960 = vadd.f32 %v1944, %v507
        %v1961 = vadd.f32 %v1945, %v508
        %1962 = vmax.xlane.f32.xlu0 %v1946
        %v1963 = vpop.xlane.xlu0 %1962
        %1964 = vmax.xlane.f32.xlu0 %v1947
        %v1965 = vpop.xlane.xlu0 %1964
        %1966 = vmax.xlane.f32.xlu0 %v1948
        %v1967 = vpop.xlane.xlu0 %1966
        %1968 = vmax.xlane.f32.xlu0 %v1949
        %v1969 = vpop.xlane.xlu0 %1968
        %1970 = vmax.xlane.f32.xlu0 %v1950
        %v1971 = vpop.xlane.xlu0 %1970
        %1972 = vmax.xlane.f32.xlu0 %v1951
        %v1973 = vpop.xlane.xlu0 %1972
        %1974 = vmax.xlane.f32.xlu0 %v1952
        %v1975 = vpop.xlane.xlu0 %1974
        %1976 = vmax.xlane.f32.xlu0 %v1953
        %v1977 = vpop.xlane.xlu0 %1976
        %1978 = vmax.xlane.f32.xlu0 %v1954
        %v1979 = vpop.xlane.xlu0 %1978
        %1980 = vmax.xlane.f32.xlu0 %v1955
        %v1981 = vpop.xlane.xlu0 %1980
        %1982 = vmax.xlane.f32.xlu0 %v1956
        %v1983 = vpop.xlane.xlu0 %1982
        %1984 = vmax.xlane.f32.xlu0 %v1957
        %v1985 = vpop.xlane.xlu0 %1984
        %1986 = vmax.xlane.f32.xlu0 %v1958
        %v1987 = vpop.xlane.xlu0 %1986
        %1988 = vmax.xlane.f32.xlu0 %v1959
        %v1989 = vpop.xlane.xlu0 %1988
        %1990 = vmax.xlane.f32.xlu0 %v1960
        %v1991 = vpop.xlane.xlu0 %1990
        %1992 = vmax.xlane.f32.xlu0 %v1961
        %v1993 = vpop.xlane.xlu0 %1992
        %v1994 = vmax.f32 %v509, %v1963
        %v1995 = vmax.f32 %v510, %v1965
        %v1996 = vmax.f32 %v511, %v1967
        %v1997 = vmax.f32 %v512, %v1969
        %v1998 = vmax.f32 %v513, %v1971
        %v1999 = vmax.f32 %v514, %v1973
        %v2000 = vmax.f32 %v515, %v1975
        %v2001 = vmax.f32 %v516, %v1977
        %v2002 = vmax.f32 %v517, %v1979
        %v2003 = vmax.f32 %v518, %v1981
        %v2004 = vmax.f32 %v519, %v1983
        %v2005 = vmax.f32 %v520, %v1985
        %v2006 = vmax.f32 %v521, %v1987
        %v2007 = vmax.f32 %v522, %v1989
        %v2008 = vmax.f32 %v523, %v1991
        %v2009 = vmax.f32 %v524, %v1993
        %2011 = vset.pattern.permute.xlu0 2
        %2012 = vperm.xlu0 %2011, %v1994
        %v2013 = vpop.permute.xlu0 %2012
        %2016 = vset.pattern.permute.xlu0 2
        %2017 = vperm.xlu0 %2016, %v1995
        %v2018 = vpop.permute.xlu0 %2017
        %2021 = vset.pattern.permute.xlu0 2
        %2022 = vperm.xlu0 %2021, %v1996
        %v2023 = vpop.permute.xlu0 %2022
        %2026 = vset.pattern.permute.xlu0 2
        %2027 = vperm.xlu0 %2026, %v1997
        %v2028 = vpop.permute.xlu0 %2027
        %2031 = vset.pattern.permute.xlu0 2
        %2032 = vperm.xlu0 %2031, %v1998
        %v2033 = vpop.permute.xlu0 %2032
        %2036 = vset.pattern.permute.xlu0 2
        %2037 = vperm.xlu0 %2036, %v1999
        %v2038 = vpop.permute.xlu0 %2037
        %2041 = vset.pattern.permute.xlu0 2
        %2042 = vperm.xlu0 %2041, %v2000
        %v2043 = vpop.permute.xlu0 %2042
        %2046 = vset.pattern.permute.xlu0 2
        %2047 = vperm.xlu0 %2046, %v2001
        %v2048 = vpop.permute.xlu0 %2047
        %2051 = vset.pattern.permute.xlu0 2
        %2052 = vperm.xlu0 %2051, %v2002
        %v2053 = vpop.permute.xlu0 %2052
        %2056 = vset.pattern.permute.xlu0 2
        %2057 = vperm.xlu0 %2056, %v2003
        %v2058 = vpop.permute.xlu0 %2057
        %2061 = vset.pattern.permute.xlu0 2
        %2062 = vperm.xlu0 %2061, %v2004
        %v2063 = vpop.permute.xlu0 %2062
        %2066 = vset.pattern.permute.xlu0 2
        %2067 = vperm.xlu0 %2066, %v2005
        %v2068 = vpop.permute.xlu0 %2067
        %2071 = vset.pattern.permute.xlu0 2
        %2072 = vperm.xlu0 %2071, %v2006
        %v2073 = vpop.permute.xlu0 %2072
        %2076 = vset.pattern.permute.xlu0 2
        %2077 = vperm.xlu0 %2076, %v2007
        %v2078 = vpop.permute.xlu0 %2077
        %2081 = vset.pattern.permute.xlu0 2
        %2082 = vperm.xlu0 %2081, %v2008
        %v2083 = vpop.permute.xlu0 %2082
        %2086 = vset.pattern.permute.xlu0 2
        %2087 = vperm.xlu0 %2086, %v2009
        %v2088 = vpop.permute.xlu0 %2087
        %v2090 = vsub.f32 %v1946, %v2013
        %v2091 = vsub.f32 %v1947, %v2018
        %v2092 = vsub.f32 %v1948, %v2023
        %v2093 = vsub.f32 %v1949, %v2028
        %v2094 = vsub.f32 %v1950, %v2033
        %v2095 = vsub.f32 %v1951, %v2038
        %v2096 = vsub.f32 %v1952, %v2043
        %v2097 = vsub.f32 %v1953, %v2048
        %v2098 = vsub.f32 %v1954, %v2053
        %v2099 = vsub.f32 %v1955, %v2058
        %v2100 = vsub.f32 %v1956, %v2063
        %v2101 = vsub.f32 %v1957, %v2068
        %v2102 = vsub.f32 %v1958, %v2073
        %v2103 = vsub.f32 %v1959, %v2078
        %v2104 = vsub.f32 %v1960, %v2083
        %v2105 = vsub.f32 %v1961, %v2088
        %v2106 = vmul.f32 %v2090, 1.442695
        %v2107 = vpow.pop %v2106
        %v2108 = vmul.f32 %v2091, 1.442695
        %v2109 = vpow.pop %v2108
        %v2110 = vmul.f32 %v2092, 1.442695
        %v2111 = vpow.pop %v2110
        %v2112 = vmul.f32 %v2093, 1.442695
        %v2113 = vpow.pop %v2112
        %v2114 = vmul.f32 %v2094, 1.442695
        %v2115 = vpow.pop %v2114
        %v2116 = vmul.f32 %v2095, 1.442695
        %v2117 = vpow.pop %v2116
        %v2118 = vmul.f32 %v2096, 1.442695
        %v2119 = vpow.pop %v2118
        %v2120 = vmul.f32 %v2097, 1.442695
        %v2121 = vpow.pop %v2120
        %v2122 = vmul.f32 %v2098, 1.442695
        %v2123 = vpow.pop %v2122
        %v2124 = vmul.f32 %v2099, 1.442695
        %v2125 = vpow.pop %v2124
        %v2126 = vmul.f32 %v2100, 1.442695
        %v2127 = vpow.pop %v2126
        %v2128 = vmul.f32 %v2101, 1.442695
        %v2129 = vpow.pop %v2128
        %v2130 = vmul.f32 %v2102, 1.442695
        %v2131 = vpow.pop %v2130
        %v2132 = vmul.f32 %v2103, 1.442695
        %v2133 = vpow.pop %v2132
        %v2134 = vmul.f32 %v2104, 1.442695
        %v2135 = vpow.pop %v2134
        %v2136 = vmul.f32 %v2105, 1.442695
        %v2137 = vpow.pop %v2136
        %v2138 = vmul.f32 %v2107, %v461
        %v2139 = vmul.f32 %v2109, %v462
        %v2140 = vmul.f32 %v2111, %v463
        %v2141 = vmul.f32 %v2113, %v464
        %v2142 = vmul.f32 %v2115, %v465
        %v2143 = vmul.f32 %v2117, %v466
        %v2144 = vmul.f32 %v2119, %v467
        %v2145 = vmul.f32 %v2121, %v468
        %v2146 = vmul.f32 %v2123, %v469
        %v2147 = vmul.f32 %v2125, %v470
        %v2148 = vmul.f32 %v2127, %v471
        %v2149 = vmul.f32 %v2129, %v472
        %v2150 = vmul.f32 %v2131, %v473
        %v2151 = vmul.f32 %v2133, %v474
        %v2152 = vmul.f32 %v2135, %v475
        %v2153 = vmul.f32 %v2137, %v476
        %v2154 = vsub.f32 %v509, %v1994
        %v2155 = vsub.f32 %v510, %v1995
        %v2156 = vsub.f32 %v511, %v1996
        %v2157 = vsub.f32 %v512, %v1997
        %v2158 = vsub.f32 %v513, %v1998
        %v2159 = vsub.f32 %v514, %v1999
        %v2160 = vsub.f32 %v515, %v2000
        %v2161 = vsub.f32 %v516, %v2001
        %v2162 = vsub.f32 %v517, %v2002
        %v2163 = vsub.f32 %v518, %v2003
        %v2164 = vsub.f32 %v519, %v2004
        %v2165 = vsub.f32 %v520, %v2005
        %v2166 = vsub.f32 %v521, %v2006
        %v2167 = vsub.f32 %v522, %v2007
        %v2168 = vsub.f32 %v523, %v2008
        %v2169 = vsub.f32 %v524, %v2009
        %v2170 = vmul.f32 %v2154, 1.442695
        %v2171 = vpow.pop %v2170
        %v2172 = vmul.f32 %v2155, 1.442695
        %v2173 = vpow.pop %v2172
        %v2174 = vmul.f32 %v2156, 1.442695
        %v2175 = vpow.pop %v2174
        %v2176 = vmul.f32 %v2157, 1.442695
        %v2177 = vpow.pop %v2176
        %v2178 = vmul.f32 %v2158, 1.442695
        %v2179 = vpow.pop %v2178
        %v2180 = vmul.f32 %v2159, 1.442695
        %v2181 = vpow.pop %v2180
        %v2182 = vmul.f32 %v2160, 1.442695
        %v2183 = vpow.pop %v2182
        %v2184 = vmul.f32 %v2161, 1.442695
        %v2185 = vpow.pop %v2184
        %v2186 = vmul.f32 %v2162, 1.442695
        %v2187 = vpow.pop %v2186
        %v2188 = vmul.f32 %v2163, 1.442695
        %v2189 = vpow.pop %v2188
        %v2190 = vmul.f32 %v2164, 1.442695
        %v2191 = vpow.pop %v2190
        %v2192 = vmul.f32 %v2165, 1.442695
        %v2193 = vpow.pop %v2192
        %v2194 = vmul.f32 %v2166, 1.442695
        %v2195 = vpow.pop %v2194
        %v2196 = vmul.f32 %v2167, 1.442695
        %v2197 = vpow.pop %v2196
        %v2198 = vmul.f32 %v2168, 1.442695
        %v2199 = vpow.pop %v2198
        %v2200 = vmul.f32 %v2169, 1.442695
        %v2201 = vpow.pop %v2200
        %v2202 = vpack.c.bf16 %v2139, %v2138
        %v2203 = vpack.c.bf16 %v2141, %v2140
        %v2204 = vpack.c.bf16 %v2143, %v2142
        %v2205 = vpack.c.bf16 %v2145, %v2144
        %v2206 = vpack.c.bf16 %v2147, %v2146
        %v2207 = vpack.c.bf16 %v2149, %v2148
        %v2208 = vpack.c.bf16 %v2151, %v2150
        %v2209 = vpack.c.bf16 %v2153, %v2152
        %2210 = vrot.lane.b32.xlu0 %v998, 62
        %v2211 = vpop.permute.xlu0 %2210
        %2212 = vrot.lane.b32.xlu0 %v999, 62
        %v2213 = vpop.permute.xlu0 %2212
        %2214 = vrot.lane.b32.xlu0 %v1000, 62
        %v2215 = vpop.permute.xlu0 %2214
        %2216 = vrot.lane.b32.xlu0 %v1001, 62
        %v2217 = vpop.permute.xlu0 %2216
        %2218 = vrot.lane.b32.xlu0 %v1002, 62
        %v2219 = vpop.permute.xlu0 %2218
        %2220 = vrot.lane.b32.xlu0 %v1003, 62
        %v2221 = vpop.permute.xlu0 %2220
        %2222 = vrot.lane.b32.xlu0 %v1004, 62
        %v2223 = vpop.permute.xlu0 %2222
        %2224 = vrot.lane.b32.xlu0 %v1005, 62
        %v2225 = vpop.permute.xlu0 %2224
        %2234 = vmatpush.bf16.msra.mxu0 %v2225
        %2235 = vmatpush.bf16.msra.mxu0 %v2223
        %2236 = vmatpush.bf16.msra.mxu0 %v2221
        %2237 = vmatpush.bf16.msra.mxu0 %v2219
        %2238 = vmatpush.bf16.msra.mxu0 %v2217
        %2239 = vmatpush.bf16.msra.mxu0 %v2215
        %2240 = vmatpush.bf16.msra.mxu0 %v2213
        %2241 = vmatpush.bf16.msra.mxu0 %v2211
        %2242 = vmatmul.bf16.gmra.mxu0 %v2202
        %v2243 = vpop.f32.mrf.mxu0
        %v2244 = vadd.f32 0.0, %v2243
        %v2245 = vpop.f32.mrf.mxu0
        %v2246 = vadd.f32 0.0, %v2245
        %2247 = vmatmul.bf16.gmra.mxu0 %v2203
        %v2248 = vpop.f32.mrf.mxu0
        %v2249 = vadd.f32 0.0, %v2248
        %v2250 = vpop.f32.mrf.mxu0
        %v2251 = vadd.f32 0.0, %v2250
        %2252 = vmatmul.bf16.gmra.mxu0 %v2204
        %v2253 = vpop.f32.mrf.mxu0
        %v2254 = vadd.f32 0.0, %v2253
        %v2255 = vpop.f32.mrf.mxu0
        %v2256 = vadd.f32 0.0, %v2255
        %2257 = vmatmul.bf16.gmra.mxu0 %v2205
        %v2258 = vpop.f32.mrf.mxu0
        %v2259 = vadd.f32 0.0, %v2258
        %v2260 = vpop.f32.mrf.mxu0
        %v2261 = vadd.f32 0.0, %v2260
        %2262 = vmatmul.bf16.gmra.mxu0 %v2206
        %v2263 = vpop.f32.mrf.mxu0
        %v2264 = vadd.f32 0.0, %v2263
        %v2265 = vpop.f32.mrf.mxu0
        %v2266 = vadd.f32 0.0, %v2265
        %2267 = vmatmul.bf16.gmra.mxu0 %v2207
        %v2268 = vpop.f32.mrf.mxu0
        %v2269 = vadd.f32 0.0, %v2268
        %v2270 = vpop.f32.mrf.mxu0
        %v2271 = vadd.f32 0.0, %v2270
        %2272 = vmatmul.bf16.gmra.mxu0 %v2208
        %v2273 = vpop.f32.mrf.mxu0
        %v2274 = vadd.f32 0.0, %v2273
        %v2275 = vpop.f32.mrf.mxu0
        %v2276 = vadd.f32 0.0, %v2275
        %2277 = vmatmul.bf16.gmra.mxu0 %v2209
        %v2278 = vpop.f32.mrf.mxu0
        %v2279 = vadd.f32 0.0, %v2278
        %v2280 = vpop.f32.mrf.mxu0
        %v2281 = vadd.f32 0.0, %v2280
        %2282 = vdwg.mxu0
        %2284 = vset.pattern.permute.xlu0 2
        %2285 = vperm.xlu0 %2284, %v2171
        %v2286 = vpop.permute.xlu0 %2285
        %2289 = vset.pattern.permute.xlu0 2
        %2290 = vperm.xlu0 %2289, %v2173
        %v2291 = vpop.permute.xlu0 %2290
        %2294 = vset.pattern.permute.xlu0 2
        %2295 = vperm.xlu0 %2294, %v2175
        %v2296 = vpop.permute.xlu0 %2295
        %2299 = vset.pattern.permute.xlu0 2
        %2300 = vperm.xlu0 %2299, %v2177
        %v2301 = vpop.permute.xlu0 %2300
        %2304 = vset.pattern.permute.xlu0 2
        %2305 = vperm.xlu0 %2304, %v2179
        %v2306 = vpop.permute.xlu0 %2305
        %2309 = vset.pattern.permute.xlu0 2
        %2310 = vperm.xlu0 %2309, %v2181
        %v2311 = vpop.permute.xlu0 %2310
        %2314 = vset.pattern.permute.xlu0 2
        %2315 = vperm.xlu0 %2314, %v2183
        %v2316 = vpop.permute.xlu0 %2315
        %2319 = vset.pattern.permute.xlu0 2
        %2320 = vperm.xlu0 %2319, %v2185
        %v2321 = vpop.permute.xlu0 %2320
        %2324 = vset.pattern.permute.xlu0 2
        %2325 = vperm.xlu0 %2324, %v2187
        %v2326 = vpop.permute.xlu0 %2325
        %2329 = vset.pattern.permute.xlu0 2
        %2330 = vperm.xlu0 %2329, %v2189
        %v2331 = vpop.permute.xlu0 %2330
        %2334 = vset.pattern.permute.xlu0 2
        %2335 = vperm.xlu0 %2334, %v2191
        %v2336 = vpop.permute.xlu0 %2335
        %2339 = vset.pattern.permute.xlu0 2
        %2340 = vperm.xlu0 %2339, %v2193
        %v2341 = vpop.permute.xlu0 %2340
        %2344 = vset.pattern.permute.xlu0 2
        %2345 = vperm.xlu0 %2344, %v2195
        %v2346 = vpop.permute.xlu0 %2345
        %2349 = vset.pattern.permute.xlu0 2
        %2350 = vperm.xlu0 %2349, %v2197
        %v2351 = vpop.permute.xlu0 %2350
        %2354 = vset.pattern.permute.xlu0 2
        %2355 = vperm.xlu0 %2354, %v2199
        %v2356 = vpop.permute.xlu0 %2355
        %2359 = vset.pattern.permute.xlu0 2
        %2360 = vperm.xlu0 %2359, %v2201
        %v2361 = vpop.permute.xlu0 %2360
        %v2363 = vmul.f32 %v2286, %v525
        %v2364 = vmul.f32 %v2291, %v527
        %v2365 = vmul.f32 %v2296, %v529
        %v2366 = vmul.f32 %v2301, %v531
        %v2367 = vmul.f32 %v2306, %v533
        %v2368 = vmul.f32 %v2311, %v535
        %v2369 = vmul.f32 %v2316, %v537
        %v2370 = vmul.f32 %v2321, %v539
        %v2371 = vmul.f32 %v2326, %v541
        %v2372 = vmul.f32 %v2331, %v543
        %v2373 = vmul.f32 %v2336, %v545
        %v2374 = vmul.f32 %v2341, %v547
        %v2375 = vmul.f32 %v2346, %v549
        %v2376 = vmul.f32 %v2351, %v551
        %v2377 = vmul.f32 %v2356, %v553
        %v2378 = vmul.f32 %v2361, %v555
        %2395 = vrot.lane.b32.xlu0 %v2244, 66
        %v2396 = vpop.permute.xlu0 %2395
        %2397 = vrot.lane.b32.xlu0 %v2246, 66
        %v2398 = vpop.permute.xlu0 %2397
        %2399 = vrot.lane.b32.xlu0 %v2249, 66
        %v2400 = vpop.permute.xlu0 %2399
        %2401 = vrot.lane.b32.xlu0 %v2251, 66
        %v2402 = vpop.permute.xlu0 %2401
        %2403 = vrot.lane.b32.xlu0 %v2254, 66
        %v2404 = vpop.permute.xlu0 %2403
        %2405 = vrot.lane.b32.xlu0 %v2256, 66
        %v2406 = vpop.permute.xlu0 %2405
        %2407 = vrot.lane.b32.xlu0 %v2259, 66
        %v2408 = vpop.permute.xlu0 %2407
        %2409 = vrot.lane.b32.xlu0 %v2261, 66
        %v2410 = vpop.permute.xlu0 %2409
        %2411 = vrot.lane.b32.xlu0 %v2264, 66
        %v2412 = vpop.permute.xlu0 %2411
        %2413 = vrot.lane.b32.xlu0 %v2266, 66
        %v2414 = vpop.permute.xlu0 %2413
        %2415 = vrot.lane.b32.xlu0 %v2269, 66
        %v2416 = vpop.permute.xlu0 %2415
        %2417 = vrot.lane.b32.xlu0 %v2271, 66
        %v2418 = vpop.permute.xlu0 %2417
        %2419 = vrot.lane.b32.xlu0 %v2274, 66
        %v2420 = vpop.permute.xlu0 %2419
        %2421 = vrot.lane.b32.xlu0 %v2276, 66
        %v2422 = vpop.permute.xlu0 %2421
        %2423 = vrot.lane.b32.xlu0 %v2279, 66
        %v2424 = vpop.permute.xlu0 %2423
        %2425 = vrot.lane.b32.xlu0 %v2281, 66
        %v2426 = vpop.permute.xlu0 %2425
        %v2443 = vadd.f32 %v2363, %v2396
        %v2444 = vadd.f32 %v2364, %v2398
        %v2445 = vadd.f32 %v2365, %v2400
        %v2446 = vadd.f32 %v2366, %v2402
        %v2447 = vadd.f32 %v2367, %v2404
        %v2448 = vadd.f32 %v2368, %v2406
        %v2449 = vadd.f32 %v2369, %v2408
        %v2450 = vadd.f32 %v2370, %v2410
        %v2451 = vadd.f32 %v2371, %v2412
        %v2452 = vadd.f32 %v2372, %v2414
        %v2453 = vadd.f32 %v2373, %v2416
        %v2454 = vadd.f32 %v2374, %v2418
        %v2455 = vadd.f32 %v2375, %v2420
        %v2456 = vadd.f32 %v2376, %v2422
        %v2457 = vadd.f32 %v2377, %v2424
        %v2458 = vadd.f32 %v2378, %v2426
        %2459 = vset.pattern.permute.xlu0 3
        %2460 = vperm.xlu0 %2459, %v425
        %v2461 = vpop.permute.xlu0 %2460
        %2463 = vset.pattern.permute.xlu0 3
        %2464 = vperm.xlu0 %2463, %v426
        %v2465 = vpop.permute.xlu0 %2464
        %2467 = vset.pattern.permute.xlu0 3
        %2468 = vperm.xlu0 %2467, %v427
        %v2469 = vpop.permute.xlu0 %2468
        %2471 = vset.pattern.permute.xlu0 3
        %2472 = vperm.xlu0 %2471, %v428
        %v2473 = vpop.permute.xlu0 %2472
        %2475 = vset.pattern.permute.xlu0 3
        %2476 = vperm.xlu0 %2475, %v429
        %v2477 = vpop.permute.xlu0 %2476
        %2479 = vset.pattern.permute.xlu0 3
        %2480 = vperm.xlu0 %2479, %v430
        %v2481 = vpop.permute.xlu0 %2480
        %2483 = vset.pattern.permute.xlu0 3
        %2484 = vperm.xlu0 %2483, %v431
        %v2485 = vpop.permute.xlu0 %2484
        %2487 = vset.pattern.permute.xlu0 3
        %2488 = vperm.xlu0 %2487, %v432
        %v2489 = vpop.permute.xlu0 %2488
        %2491 = vset.pattern.permute.xlu0 3
        %2492 = vperm.xlu0 %2491, %v433
        %v2493 = vpop.permute.xlu0 %2492
        %2495 = vset.pattern.permute.xlu0 3
        %2496 = vperm.xlu0 %2495, %v434
        %v2497 = vpop.permute.xlu0 %2496
        %2499 = vset.pattern.permute.xlu0 3
        %2500 = vperm.xlu0 %2499, %v435
        %v2501 = vpop.permute.xlu0 %2500
        %2503 = vset.pattern.permute.xlu0 3
        %2504 = vperm.xlu0 %2503, %v436
        %v2505 = vpop.permute.xlu0 %2504
        %2507 = vset.pattern.permute.xlu0 3
        %2508 = vperm.xlu0 %2507, %v437
        %v2509 = vpop.permute.xlu0 %2508
        %2511 = vset.pattern.permute.xlu0 3
        %2512 = vperm.xlu0 %2511, %v438
        %v2513 = vpop.permute.xlu0 %2512
        %2515 = vset.pattern.permute.xlu0 3
        %2516 = vperm.xlu0 %2515, %v439
        %v2517 = vpop.permute.xlu0 %2516
        %2519 = vset.pattern.permute.xlu0 3
        %2520 = vperm.xlu0 %2519, %v440
        %v2521 = vpop.permute.xlu0 %2520
        %v2523 = vperm.slane %v424, 3
        %v2524 = vadd.f32 %v2461, %v2523
        %v2525 = vadd.f32 %v2465, %v2523
        %v2526 = vadd.f32 %v2469, %v2523
        %v2527 = vadd.f32 %v2473, %v2523
        %v2528 = vadd.f32 %v2477, %v2523
        %v2529 = vadd.f32 %v2481, %v2523
        %v2530 = vadd.f32 %v2485, %v2523
        %v2531 = vadd.f32 %v2489, %v2523
        %v2532 = vadd.f32 %v2493, %v2523
        %v2533 = vadd.f32 %v2497, %v2523
        %v2534 = vadd.f32 %v2501, %v2523
        %v2535 = vadd.f32 %v2505, %v2523
        %v2536 = vadd.f32 %v2509, %v2523
        %v2537 = vadd.f32 %v2513, %v2523
        %v2538 = vadd.f32 %v2517, %v2523
        %v2539 = vadd.f32 %v2521, %v2523
        %vm2540 = vcmp.gt.f32.partialorder %v2524, 0.0
        %vm2541 = vcmp.gt.f32.partialorder %v2525, 0.0
        %vm2542 = vcmp.gt.f32.partialorder %v2526, 0.0
        %vm2543 = vcmp.gt.f32.partialorder %v2527, 0.0
        %vm2544 = vcmp.gt.f32.partialorder %v2528, 0.0
        %vm2545 = vcmp.gt.f32.partialorder %v2529, 0.0
        %vm2546 = vcmp.gt.f32.partialorder %v2530, 0.0
        %vm2547 = vcmp.gt.f32.partialorder %v2531, 0.0
        %vm2548 = vcmp.gt.f32.partialorder %v2532, 0.0
        %vm2549 = vcmp.gt.f32.partialorder %v2533, 0.0
        %vm2550 = vcmp.gt.f32.partialorder %v2534, 0.0
        %vm2551 = vcmp.gt.f32.partialorder %v2535, 0.0
        %vm2552 = vcmp.gt.f32.partialorder %v2536, 0.0
        %vm2553 = vcmp.gt.f32.partialorder %v2537, 0.0
        %vm2554 = vcmp.gt.f32.partialorder %v2538, 0.0
        %vm2555 = vcmp.gt.f32.partialorder %v2539, 0.0
        %v2556 = vmul.f32 %v2524, 0.2
        %v2557 = vmul.f32 %v2525, 0.2
        %v2558 = vmul.f32 %v2526, 0.2
        %v2559 = vmul.f32 %v2527, 0.2
        %v2560 = vmul.f32 %v2528, 0.2
        %v2561 = vmul.f32 %v2529, 0.2
        %v2562 = vmul.f32 %v2530, 0.2
        %v2563 = vmul.f32 %v2531, 0.2
        %v2564 = vmul.f32 %v2532, 0.2
        %v2565 = vmul.f32 %v2533, 0.2
        %v2566 = vmul.f32 %v2534, 0.2
        %v2567 = vmul.f32 %v2535, 0.2
        %v2568 = vmul.f32 %v2536, 0.2
        %v2569 = vmul.f32 %v2537, 0.2
        %v2570 = vmul.f32 %v2538, 0.2
        %v2571 = vmul.f32 %v2539, 0.2
        %v2572 = vsel %vm2540, %v2524, %v2556
        %v2573 = vsel %vm2541, %v2525, %v2557
        %v2574 = vsel %vm2542, %v2526, %v2558
        %v2575 = vsel %vm2543, %v2527, %v2559
        %v2576 = vsel %vm2544, %v2528, %v2560
        %v2577 = vsel %vm2545, %v2529, %v2561
        %v2578 = vsel %vm2546, %v2530, %v2562
        %v2579 = vsel %vm2547, %v2531, %v2563
        %v2580 = vsel %vm2548, %v2532, %v2564
        %v2581 = vsel %vm2549, %v2533, %v2565
        %v2582 = vsel %vm2550, %v2534, %v2566
        %v2583 = vsel %vm2551, %v2535, %v2567
        %v2584 = vsel %vm2552, %v2536, %v2568
        %v2585 = vsel %vm2553, %v2537, %v2569
        %v2586 = vsel %vm2554, %v2538, %v2570
        %v2587 = vsel %vm2555, %v2539, %v2571
        %v2588 = vadd.f32 %v2572, %v493
        %v2589 = vadd.f32 %v2573, %v494
        %v2590 = vadd.f32 %v2574, %v495
        %v2591 = vadd.f32 %v2575, %v496
        %v2592 = vadd.f32 %v2576, %v497
        %v2593 = vadd.f32 %v2577, %v498
        %v2594 = vadd.f32 %v2578, %v499
        %v2595 = vadd.f32 %v2579, %v500
        %v2596 = vadd.f32 %v2580, %v501
        %v2597 = vadd.f32 %v2581, %v502
        %v2598 = vadd.f32 %v2582, %v503
        %v2599 = vadd.f32 %v2583, %v504
        %v2600 = vadd.f32 %v2584, %v505
        %v2601 = vadd.f32 %v2585, %v506
        %v2602 = vadd.f32 %v2586, %v507
        %v2603 = vadd.f32 %v2587, %v508
        %2604 = vmax.xlane.f32.xlu0 %v2588
        %v2605 = vpop.xlane.xlu0 %2604
        %2606 = vmax.xlane.f32.xlu0 %v2589
        %v2607 = vpop.xlane.xlu0 %2606
        %2608 = vmax.xlane.f32.xlu0 %v2590
        %v2609 = vpop.xlane.xlu0 %2608
        %2610 = vmax.xlane.f32.xlu0 %v2591
        %v2611 = vpop.xlane.xlu0 %2610
        %2612 = vmax.xlane.f32.xlu0 %v2592
        %v2613 = vpop.xlane.xlu0 %2612
        %2614 = vmax.xlane.f32.xlu0 %v2593
        %v2615 = vpop.xlane.xlu0 %2614
        %2616 = vmax.xlane.f32.xlu0 %v2594
        %v2617 = vpop.xlane.xlu0 %2616
        %2618 = vmax.xlane.f32.xlu0 %v2595
        %v2619 = vpop.xlane.xlu0 %2618
        %2620 = vmax.xlane.f32.xlu0 %v2596
        %v2621 = vpop.xlane.xlu0 %2620
        %2622 = vmax.xlane.f32.xlu0 %v2597
        %v2623 = vpop.xlane.xlu0 %2622
        %2624 = vmax.xlane.f32.xlu0 %v2598
        %v2625 = vpop.xlane.xlu0 %2624
        %2626 = vmax.xlane.f32.xlu0 %v2599
        %v2627 = vpop.xlane.xlu0 %2626
        %2628 = vmax.xlane.f32.xlu0 %v2600
        %v2629 = vpop.xlane.xlu0 %2628
        %2630 = vmax.xlane.f32.xlu0 %v2601
        %v2631 = vpop.xlane.xlu0 %2630
        %2632 = vmax.xlane.f32.xlu0 %v2602
        %v2633 = vpop.xlane.xlu0 %2632
        %2634 = vmax.xlane.f32.xlu0 %v2603
        %v2635 = vpop.xlane.xlu0 %2634
        %v2636 = vmax.f32 %v509, %v2605
        %v2637 = vmax.f32 %v510, %v2607
        %v2638 = vmax.f32 %v511, %v2609
        %v2639 = vmax.f32 %v512, %v2611
        %v2640 = vmax.f32 %v513, %v2613
        %v2641 = vmax.f32 %v514, %v2615
        %v2642 = vmax.f32 %v515, %v2617
        %v2643 = vmax.f32 %v516, %v2619
        %v2644 = vmax.f32 %v517, %v2621
        %v2645 = vmax.f32 %v518, %v2623
        %v2646 = vmax.f32 %v519, %v2625
        %v2647 = vmax.f32 %v520, %v2627
        %v2648 = vmax.f32 %v521, %v2629
        %v2649 = vmax.f32 %v522, %v2631
        %v2650 = vmax.f32 %v523, %v2633
        %v2651 = vmax.f32 %v524, %v2635
        %2653 = vset.pattern.permute.xlu0 3
        %2654 = vperm.xlu0 %2653, %v2636
        %v2655 = vpop.permute.xlu0 %2654
        %2658 = vset.pattern.permute.xlu0 3
        %2659 = vperm.xlu0 %2658, %v2637
        %v2660 = vpop.permute.xlu0 %2659
        %2663 = vset.pattern.permute.xlu0 3
        %2664 = vperm.xlu0 %2663, %v2638
        %v2665 = vpop.permute.xlu0 %2664
        %2668 = vset.pattern.permute.xlu0 3
        %2669 = vperm.xlu0 %2668, %v2639
        %v2670 = vpop.permute.xlu0 %2669
        %2673 = vset.pattern.permute.xlu0 3
        %2674 = vperm.xlu0 %2673, %v2640
        %v2675 = vpop.permute.xlu0 %2674
        %2678 = vset.pattern.permute.xlu0 3
        %2679 = vperm.xlu0 %2678, %v2641
        %v2680 = vpop.permute.xlu0 %2679
        %2683 = vset.pattern.permute.xlu0 3
        %2684 = vperm.xlu0 %2683, %v2642
        %v2685 = vpop.permute.xlu0 %2684
        %2688 = vset.pattern.permute.xlu0 3
        %2689 = vperm.xlu0 %2688, %v2643
        %v2690 = vpop.permute.xlu0 %2689
        %2693 = vset.pattern.permute.xlu0 3
        %2694 = vperm.xlu0 %2693, %v2644
        %v2695 = vpop.permute.xlu0 %2694
        %2698 = vset.pattern.permute.xlu0 3
        %2699 = vperm.xlu0 %2698, %v2645
        %v2700 = vpop.permute.xlu0 %2699
        %2703 = vset.pattern.permute.xlu0 3
        %2704 = vperm.xlu0 %2703, %v2646
        %v2705 = vpop.permute.xlu0 %2704
        %2708 = vset.pattern.permute.xlu0 3
        %2709 = vperm.xlu0 %2708, %v2647
        %v2710 = vpop.permute.xlu0 %2709
        %2713 = vset.pattern.permute.xlu0 3
        %2714 = vperm.xlu0 %2713, %v2648
        %v2715 = vpop.permute.xlu0 %2714
        %2718 = vset.pattern.permute.xlu0 3
        %2719 = vperm.xlu0 %2718, %v2649
        %v2720 = vpop.permute.xlu0 %2719
        %2723 = vset.pattern.permute.xlu0 3
        %2724 = vperm.xlu0 %2723, %v2650
        %v2725 = vpop.permute.xlu0 %2724
        %2728 = vset.pattern.permute.xlu0 3
        %2729 = vperm.xlu0 %2728, %v2651
        %v2730 = vpop.permute.xlu0 %2729
        %v2732 = vsub.f32 %v2588, %v2655
        %v2733 = vsub.f32 %v2589, %v2660
        %v2734 = vsub.f32 %v2590, %v2665
        %v2735 = vsub.f32 %v2591, %v2670
        %v2736 = vsub.f32 %v2592, %v2675
        %v2737 = vsub.f32 %v2593, %v2680
        %v2738 = vsub.f32 %v2594, %v2685
        %v2739 = vsub.f32 %v2595, %v2690
        %v2740 = vsub.f32 %v2596, %v2695
        %v2741 = vsub.f32 %v2597, %v2700
        %v2742 = vsub.f32 %v2598, %v2705
        %v2743 = vsub.f32 %v2599, %v2710
        %v2744 = vsub.f32 %v2600, %v2715
        %v2745 = vsub.f32 %v2601, %v2720
        %v2746 = vsub.f32 %v2602, %v2725
        %v2747 = vsub.f32 %v2603, %v2730
        %v2748 = vmul.f32 %v2732, 1.442695
        %v2749 = vpow.pop %v2748
        %v2750 = vmul.f32 %v2733, 1.442695
        %v2751 = vpow.pop %v2750
        %v2752 = vmul.f32 %v2734, 1.442695
        %v2753 = vpow.pop %v2752
        %v2754 = vmul.f32 %v2735, 1.442695
        %v2755 = vpow.pop %v2754
        %v2756 = vmul.f32 %v2736, 1.442695
        %v2757 = vpow.pop %v2756
        %v2758 = vmul.f32 %v2737, 1.442695
        %v2759 = vpow.pop %v2758
        %v2760 = vmul.f32 %v2738, 1.442695
        %v2761 = vpow.pop %v2760
        %v2762 = vmul.f32 %v2739, 1.442695
        %v2763 = vpow.pop %v2762
        %v2764 = vmul.f32 %v2740, 1.442695
        %v2765 = vpow.pop %v2764
        %v2766 = vmul.f32 %v2741, 1.442695
        %v2767 = vpow.pop %v2766
        %v2768 = vmul.f32 %v2742, 1.442695
        %v2769 = vpow.pop %v2768
        %v2770 = vmul.f32 %v2743, 1.442695
        %v2771 = vpow.pop %v2770
        %v2772 = vmul.f32 %v2744, 1.442695
        %v2773 = vpow.pop %v2772
        %v2774 = vmul.f32 %v2745, 1.442695
        %v2775 = vpow.pop %v2774
        %v2776 = vmul.f32 %v2746, 1.442695
        %v2777 = vpow.pop %v2776
        %v2778 = vmul.f32 %v2747, 1.442695
        %v2779 = vpow.pop %v2778
        %v2780 = vmul.f32 %v2749, %v461
        %v2781 = vmul.f32 %v2751, %v462
        %v2782 = vmul.f32 %v2753, %v463
        %v2783 = vmul.f32 %v2755, %v464
        %v2784 = vmul.f32 %v2757, %v465
        %v2785 = vmul.f32 %v2759, %v466
        %v2786 = vmul.f32 %v2761, %v467
        %v2787 = vmul.f32 %v2763, %v468
        %v2788 = vmul.f32 %v2765, %v469
        %v2789 = vmul.f32 %v2767, %v470
        %v2790 = vmul.f32 %v2769, %v471
        %v2791 = vmul.f32 %v2771, %v472
        %v2792 = vmul.f32 %v2773, %v473
        %v2793 = vmul.f32 %v2775, %v474
        %v2794 = vmul.f32 %v2777, %v475
        %v2795 = vmul.f32 %v2779, %v476
        %v2796 = vsub.f32 %v509, %v2636
        %v2797 = vsub.f32 %v510, %v2637
        %v2798 = vsub.f32 %v511, %v2638
        %v2799 = vsub.f32 %v512, %v2639
        %v2800 = vsub.f32 %v513, %v2640
        %v2801 = vsub.f32 %v514, %v2641
        %v2802 = vsub.f32 %v515, %v2642
        %v2803 = vsub.f32 %v516, %v2643
        %v2804 = vsub.f32 %v517, %v2644
        %v2805 = vsub.f32 %v518, %v2645
        %v2806 = vsub.f32 %v519, %v2646
        %v2807 = vsub.f32 %v520, %v2647
        %v2808 = vsub.f32 %v521, %v2648
        %v2809 = vsub.f32 %v522, %v2649
        %v2810 = vsub.f32 %v523, %v2650
        %v2811 = vsub.f32 %v524, %v2651
        %v2812 = vmul.f32 %v2796, 1.442695
        %v2813 = vpow.pop %v2812
        %v2814 = vmul.f32 %v2797, 1.442695
        %v2815 = vpow.pop %v2814
        %v2816 = vmul.f32 %v2798, 1.442695
        %v2817 = vpow.pop %v2816
        %v2818 = vmul.f32 %v2799, 1.442695
        %v2819 = vpow.pop %v2818
        %v2820 = vmul.f32 %v2800, 1.442695
        %v2821 = vpow.pop %v2820
        %v2822 = vmul.f32 %v2801, 1.442695
        %v2823 = vpow.pop %v2822
        %v2824 = vmul.f32 %v2802, 1.442695
        %v2825 = vpow.pop %v2824
        %v2826 = vmul.f32 %v2803, 1.442695
        %v2827 = vpow.pop %v2826
        %v2828 = vmul.f32 %v2804, 1.442695
        %v2829 = vpow.pop %v2828
        %v2830 = vmul.f32 %v2805, 1.442695
        %v2831 = vpow.pop %v2830
        %v2832 = vmul.f32 %v2806, 1.442695
        %v2833 = vpow.pop %v2832
        %v2834 = vmul.f32 %v2807, 1.442695
        %v2835 = vpow.pop %v2834
        %v2836 = vmul.f32 %v2808, 1.442695
        %v2837 = vpow.pop %v2836
        %v2838 = vmul.f32 %v2809, 1.442695
        %v2839 = vpow.pop %v2838
        %v2840 = vmul.f32 %v2810, 1.442695
        %v2841 = vpow.pop %v2840
        %v2842 = vmul.f32 %v2811, 1.442695
        %v2843 = vpow.pop %v2842
        %v2844 = vpack.c.bf16 %v2781, %v2780
        %v2845 = vpack.c.bf16 %v2783, %v2782
        %v2846 = vpack.c.bf16 %v2785, %v2784
        %v2847 = vpack.c.bf16 %v2787, %v2786
        %v2848 = vpack.c.bf16 %v2789, %v2788
        %v2849 = vpack.c.bf16 %v2791, %v2790
        %v2850 = vpack.c.bf16 %v2793, %v2792
        %v2851 = vpack.c.bf16 %v2795, %v2794
        %v2852 = vunpack.c.h.b16 %v408
        %v2853 = vunpack.c.h.b16 %v409
        %v2854 = vunpack.c.h.b16 %v410
        %v2855 = vunpack.c.h.b16 %v411
        %v2856 = vunpack.c.h.b16 %v412
        %v2857 = vunpack.c.h.b16 %v413
        %v2858 = vunpack.c.h.b16 %v414
        %v2859 = vunpack.c.h.b16 %v415
        %v2860 = vunpack.c.h.b16 %v416
        %v2861 = vunpack.c.h.b16 %v417
        %v2862 = vunpack.c.h.b16 %v418
        %v2863 = vunpack.c.h.b16 %v419
        %v2864 = vunpack.c.h.b16 %v420
        %v2865 = vunpack.c.h.b16 %v421
        %v2866 = vunpack.c.h.b16 %v422
        %v2867 = vunpack.c.h.b16 %v423
        %v2868 = vpack.c.b16 %v2853, %v2852
        %v2869 = vpack.c.b16 %v2855, %v2854
        %v2870 = vpack.c.b16 %v2857, %v2856
        %v2871 = vpack.c.b16 %v2859, %v2858
        %v2872 = vpack.c.b16 %v2861, %v2860
        %v2873 = vpack.c.b16 %v2863, %v2862
        %v2874 = vpack.c.b16 %v2865, %v2864
        %v2875 = vpack.c.b16 %v2867, %v2866
        %2876 = vrot.lane.b32.xlu0 %v998, 29
        %v2877 = vpop.permute.xlu0 %2876
        %2878 = vrot.lane.b32.xlu0 %v2868, 29
        %v2879 = vpop.permute.xlu0 %2878
        %2880 = vrot.lane.b32.xlu0 %v999, 29
        %v2881 = vpop.permute.xlu0 %2880
        %2882 = vrot.lane.b32.xlu0 %v2869, 29
        %v2883 = vpop.permute.xlu0 %2882
        %2884 = vrot.lane.b32.xlu0 %v1000, 29
        %v2885 = vpop.permute.xlu0 %2884
        %2886 = vrot.lane.b32.xlu0 %v2870, 29
        %v2887 = vpop.permute.xlu0 %2886
        %2888 = vrot.lane.b32.xlu0 %v1001, 29
        %v2889 = vpop.permute.xlu0 %2888
        %2890 = vrot.lane.b32.xlu0 %v2871, 29
        %v2891 = vpop.permute.xlu0 %2890
        %2892 = vrot.lane.b32.xlu0 %v1002, 29
        %v2893 = vpop.permute.xlu0 %2892
        %2894 = vrot.lane.b32.xlu0 %v2872, 29
        %v2895 = vpop.permute.xlu0 %2894
        %2896 = vrot.lane.b32.xlu0 %v1003, 29
        %v2897 = vpop.permute.xlu0 %2896
        %2898 = vrot.lane.b32.xlu0 %v2873, 29
        %v2899 = vpop.permute.xlu0 %2898
        %2900 = vrot.lane.b32.xlu0 %v1004, 29
        %v2901 = vpop.permute.xlu0 %2900
        %2902 = vrot.lane.b32.xlu0 %v2874, 29
        %v2903 = vpop.permute.xlu0 %2902
        %2904 = vrot.lane.b32.xlu0 %v1005, 29
        %v2905 = vpop.permute.xlu0 %2904
        %2906 = vrot.lane.b32.xlu0 %v2875, 29
        %v2907 = vpop.permute.xlu0 %2906
        %vm2908 = vcmask 236544
        %v2909 = vsel %vm2908, %v2877, %v2879
        %v2910 = vsel %vm2908, %v2881, %v2883
        %v2911 = vsel %vm2908, %v2885, %v2887
        %v2912 = vsel %vm2908, %v2889, %v2891
        %v2913 = vsel %vm2908, %v2893, %v2895
        %v2914 = vsel %vm2908, %v2897, %v2899
        %v2915 = vsel %vm2908, %v2901, %v2903
        %v2916 = vsel %vm2908, %v2905, %v2907
        %2925 = vmatpush.bf16.msra.mxu0 %v2916
        %2926 = vmatpush.bf16.msra.mxu0 %v2915
        %2927 = vmatpush.bf16.msra.mxu0 %v2914
        %2928 = vmatpush.bf16.msra.mxu0 %v2913
        %2929 = vmatpush.bf16.msra.mxu0 %v2912
        %2930 = vmatpush.bf16.msra.mxu0 %v2911
        %2931 = vmatpush.bf16.msra.mxu0 %v2910
        %2932 = vmatpush.bf16.msra.mxu0 %v2909
        %2933 = vmatmul.bf16.gmra.mxu0 %v2844
        %v2934 = vpop.f32.mrf.mxu0
        %v2935 = vadd.f32 0.0, %v2934
        %v2936 = vpop.f32.mrf.mxu0
        %v2937 = vadd.f32 0.0, %v2936
        %2938 = vmatmul.bf16.gmra.mxu0 %v2845
        %v2939 = vpop.f32.mrf.mxu0
        %v2940 = vadd.f32 0.0, %v2939
        %v2941 = vpop.f32.mrf.mxu0
        %v2942 = vadd.f32 0.0, %v2941
        %2943 = vmatmul.bf16.gmra.mxu0 %v2846
        %v2944 = vpop.f32.mrf.mxu0
        %v2945 = vadd.f32 0.0, %v2944
        %v2946 = vpop.f32.mrf.mxu0
        %v2947 = vadd.f32 0.0, %v2946
        %2948 = vmatmul.bf16.gmra.mxu0 %v2847
        %v2949 = vpop.f32.mrf.mxu0
        %v2950 = vadd.f32 0.0, %v2949
        %v2951 = vpop.f32.mrf.mxu0
        %v2952 = vadd.f32 0.0, %v2951
        %2953 = vmatmul.bf16.gmra.mxu0 %v2848
        %v2954 = vpop.f32.mrf.mxu0
        %v2955 = vadd.f32 0.0, %v2954
        %v2956 = vpop.f32.mrf.mxu0
        %v2957 = vadd.f32 0.0, %v2956
        %2958 = vmatmul.bf16.gmra.mxu0 %v2849
        %v2959 = vpop.f32.mrf.mxu0
        %v2960 = vadd.f32 0.0, %v2959
        %v2961 = vpop.f32.mrf.mxu0
        %v2962 = vadd.f32 0.0, %v2961
        %2963 = vmatmul.bf16.gmra.mxu0 %v2850
        %v2964 = vpop.f32.mrf.mxu0
        %v2965 = vadd.f32 0.0, %v2964
        %v2966 = vpop.f32.mrf.mxu0
        %v2967 = vadd.f32 0.0, %v2966
        %2968 = vmatmul.bf16.gmra.mxu0 %v2851
        %v2969 = vpop.f32.mrf.mxu0
        %v2970 = vadd.f32 0.0, %v2969
        %v2971 = vpop.f32.mrf.mxu0
        %v2972 = vadd.f32 0.0, %v2971
        %2973 = vdwg.mxu0
        %2975 = vset.pattern.permute.xlu0 3
        %2976 = vperm.xlu0 %2975, %v2813
        %v2977 = vpop.permute.xlu0 %2976
        %2980 = vset.pattern.permute.xlu0 3
        %2981 = vperm.xlu0 %2980, %v2815
        %v2982 = vpop.permute.xlu0 %2981
        %2985 = vset.pattern.permute.xlu0 3
        %2986 = vperm.xlu0 %2985, %v2817
        %v2987 = vpop.permute.xlu0 %2986
        %2990 = vset.pattern.permute.xlu0 3
        %2991 = vperm.xlu0 %2990, %v2819
        %v2992 = vpop.permute.xlu0 %2991
        %2995 = vset.pattern.permute.xlu0 3
        %2996 = vperm.xlu0 %2995, %v2821
        %v2997 = vpop.permute.xlu0 %2996
        %3000 = vset.pattern.permute.xlu0 3
        %3001 = vperm.xlu0 %3000, %v2823
        %v3002 = vpop.permute.xlu0 %3001
        %3005 = vset.pattern.permute.xlu0 3
        %3006 = vperm.xlu0 %3005, %v2825
        %v3007 = vpop.permute.xlu0 %3006
        %3010 = vset.pattern.permute.xlu0 3
        %3011 = vperm.xlu0 %3010, %v2827
        %v3012 = vpop.permute.xlu0 %3011
        %3015 = vset.pattern.permute.xlu0 3
        %3016 = vperm.xlu0 %3015, %v2829
        %v3017 = vpop.permute.xlu0 %3016
        %3020 = vset.pattern.permute.xlu0 3
        %3021 = vperm.xlu0 %3020, %v2831
        %v3022 = vpop.permute.xlu0 %3021
        %3025 = vset.pattern.permute.xlu0 3
        %3026 = vperm.xlu0 %3025, %v2833
        %v3027 = vpop.permute.xlu0 %3026
        %3030 = vset.pattern.permute.xlu0 3
        %3031 = vperm.xlu0 %3030, %v2835
        %v3032 = vpop.permute.xlu0 %3031
        %3035 = vset.pattern.permute.xlu0 3
        %3036 = vperm.xlu0 %3035, %v2837
        %v3037 = vpop.permute.xlu0 %3036
        %3040 = vset.pattern.permute.xlu0 3
        %3041 = vperm.xlu0 %3040, %v2839
        %v3042 = vpop.permute.xlu0 %3041
        %3045 = vset.pattern.permute.xlu0 3
        %3046 = vperm.xlu0 %3045, %v2841
        %v3047 = vpop.permute.xlu0 %3046
        %3050 = vset.pattern.permute.xlu0 3
        %3051 = vperm.xlu0 %3050, %v2843
        %v3052 = vpop.permute.xlu0 %3051
        %v3054 = vmul.f32 %v2977, %v525
        %v3055 = vmul.f32 %v2977, %v526
        %v3056 = vmul.f32 %v2982, %v527
        %v3057 = vmul.f32 %v2982, %v528
        %v3058 = vmul.f32 %v2987, %v529
        %v3059 = vmul.f32 %v2987, %v530
        %v3060 = vmul.f32 %v2992, %v531
        %v3061 = vmul.f32 %v2992, %v532
        %v3062 = vmul.f32 %v2997, %v533
        %v3063 = vmul.f32 %v2997, %v534
        %v3064 = vmul.f32 %v3002, %v535
        %v3065 = vmul.f32 %v3002, %v536
        %v3066 = vmul.f32 %v3007, %v537
        %v3067 = vmul.f32 %v3007, %v538
        %v3068 = vmul.f32 %v3012, %v539
        %v3069 = vmul.f32 %v3012, %v540
        %v3070 = vmul.f32 %v3017, %v541
        %v3071 = vmul.f32 %v3017, %v542
        %v3072 = vmul.f32 %v3022, %v543
        %v3073 = vmul.f32 %v3022, %v544
        %v3074 = vmul.f32 %v3027, %v545
        %v3075 = vmul.f32 %v3027, %v546
        %v3076 = vmul.f32 %v3032, %v547
        %v3077 = vmul.f32 %v3032, %v548
        %v3078 = vmul.f32 %v3037, %v549
        %v3079 = vmul.f32 %v3037, %v550
        %v3080 = vmul.f32 %v3042, %v551
        %v3081 = vmul.f32 %v3042, %v552
        %v3082 = vmul.f32 %v3047, %v553
        %v3083 = vmul.f32 %v3047, %v554
        %v3084 = vmul.f32 %v3052, %v555
        %v3085 = vmul.f32 %v3052, %v556
        %3102 = vrot.lane.b32.xlu0 %v2935, 99
        %v3103 = vpop.permute.xlu0 %3102
        %3104 = vrot.lane.b32.xlu0 %v2937, 99
        %v3105 = vpop.permute.xlu0 %3104
        %3106 = vrot.lane.b32.xlu0 %v2940, 99
        %v3107 = vpop.permute.xlu0 %3106
        %3108 = vrot.lane.b32.xlu0 %v2942, 99
        %v3109 = vpop.permute.xlu0 %3108
        %3110 = vrot.lane.b32.xlu0 %v2945, 99
        %v3111 = vpop.permute.xlu0 %3110
        %3112 = vrot.lane.b32.xlu0 %v2947, 99
        %v3113 = vpop.permute.xlu0 %3112
        %3114 = vrot.lane.b32.xlu0 %v2950, 99
        %v3115 = vpop.permute.xlu0 %3114
        %3116 = vrot.lane.b32.xlu0 %v2952, 99
        %v3117 = vpop.permute.xlu0 %3116
        %3118 = vrot.lane.b32.xlu0 %v2955, 99
        %v3119 = vpop.permute.xlu0 %3118
        %3120 = vrot.lane.b32.xlu0 %v2957, 99
        %v3121 = vpop.permute.xlu0 %3120
        %3122 = vrot.lane.b32.xlu0 %v2960, 99
        %v3123 = vpop.permute.xlu0 %3122
        %3124 = vrot.lane.b32.xlu0 %v2962, 99
        %v3125 = vpop.permute.xlu0 %3124
        %3126 = vrot.lane.b32.xlu0 %v2965, 99
        %v3127 = vpop.permute.xlu0 %3126
        %3128 = vrot.lane.b32.xlu0 %v2967, 99
        %v3129 = vpop.permute.xlu0 %3128
        %3130 = vrot.lane.b32.xlu0 %v2970, 99
        %v3131 = vpop.permute.xlu0 %3130
        %3132 = vrot.lane.b32.xlu0 %v2972, 99
        %v3133 = vpop.permute.xlu0 %3132
        %v3150 = vadd.f32 %v3054, %v3103
        %v3151 = vadd.f32 %v3055, %v3103
        %v3152 = vadd.f32 %v3056, %v3105
        %v3153 = vadd.f32 %v3057, %v3105
        %v3154 = vadd.f32 %v3058, %v3107
        %v3155 = vadd.f32 %v3059, %v3107
        %v3156 = vadd.f32 %v3060, %v3109
        %v3157 = vadd.f32 %v3061, %v3109
        %v3158 = vadd.f32 %v3062, %v3111
        %v3159 = vadd.f32 %v3063, %v3111
        %v3160 = vadd.f32 %v3064, %v3113
        %v3161 = vadd.f32 %v3065, %v3113
        %v3162 = vadd.f32 %v3066, %v3115
        %v3163 = vadd.f32 %v3067, %v3115
        %v3164 = vadd.f32 %v3068, %v3117
        %v3165 = vadd.f32 %v3069, %v3117
        %v3166 = vadd.f32 %v3070, %v3119
        %v3167 = vadd.f32 %v3071, %v3119
        %v3168 = vadd.f32 %v3072, %v3121
        %v3169 = vadd.f32 %v3073, %v3121
        %v3170 = vadd.f32 %v3074, %v3123
        %v3171 = vadd.f32 %v3075, %v3123
        %v3172 = vadd.f32 %v3076, %v3125
        %v3173 = vadd.f32 %v3077, %v3125
        %v3174 = vadd.f32 %v3078, %v3127
        %v3175 = vadd.f32 %v3079, %v3127
        %v3176 = vadd.f32 %v3080, %v3129
        %v3177 = vadd.f32 %v3081, %v3129
        %v3178 = vadd.f32 %v3082, %v3131
        %v3179 = vadd.f32 %v3083, %v3131
        %v3180 = vadd.f32 %v3084, %v3133
        %v3181 = vadd.f32 %v3085, %v3133
        %vm3182 = vcmask 7168
        %v3183 = vsel %vm3182, %v750, %v1352
        %v3184 = vsel %vm3182, %v751, %v1353
        %v3185 = vsel %vm3182, %v752, %v1354
        %v3186 = vsel %vm3182, %v753, %v1355
        %v3187 = vsel %vm3182, %v754, %v1356
        %v3188 = vsel %vm3182, %v755, %v1357
        %v3189 = vsel %vm3182, %v756, %v1358
        %v3190 = vsel %vm3182, %v757, %v1359
        %v3191 = vsel %vm3182, %v758, %v1360
        %v3192 = vsel %vm3182, %v759, %v1361
        %v3193 = vsel %vm3182, %v760, %v1362
        %v3194 = vsel %vm3182, %v761, %v1363
        %v3195 = vsel %vm3182, %v762, %v1364
        %v3196 = vsel %vm3182, %v763, %v1365
        %v3197 = vsel %vm3182, %v764, %v1366
        %v3198 = vsel %vm3182, %v765, %v1367
        %vm3199 = vcmask 15360
        %v3200 = vsel %vm3199, %v3183, %v1994
        %v3201 = vsel %vm3199, %v3184, %v1995
        %v3202 = vsel %vm3199, %v3185, %v1996
        %v3203 = vsel %vm3199, %v3186, %v1997
        %v3204 = vsel %vm3199, %v3187, %v1998
        %v3205 = vsel %vm3199, %v3188, %v1999
        %v3206 = vsel %vm3199, %v3189, %v2000
        %v3207 = vsel %vm3199, %v3190, %v2001
        %v3208 = vsel %vm3199, %v3191, %v2002
        %v3209 = vsel %vm3199, %v3192, %v2003
        %v3210 = vsel %vm3199, %v3193, %v2004
        %v3211 = vsel %vm3199, %v3194, %v2005
        %v3212 = vsel %vm3199, %v3195, %v2006
        %v3213 = vsel %vm3199, %v3196, %v2007
        %v3214 = vsel %vm3199, %v3197, %v2008
        %v3215 = vsel %vm3199, %v3198, %v2009
        %vm3216 = vcmask 23552
        %v3217 = vsel %vm3216, %v3200, %v2636
        %v3218 = vsel %vm3216, %v3201, %v2637
        %v3219 = vsel %vm3216, %v3202, %v2638
        %v3220 = vsel %vm3216, %v3203, %v2639
        %v3221 = vsel %vm3216, %v3204, %v2640
        %v3222 = vsel %vm3216, %v3205, %v2641
        %v3223 = vsel %vm3216, %v3206, %v2642
        %v3224 = vsel %vm3216, %v3207, %v2643
        %v3225 = vsel %vm3216, %v3208, %v2644
        %v3226 = vsel %vm3216, %v3209, %v2645
        %v3227 = vsel %vm3216, %v3210, %v2646
        %v3228 = vsel %vm3216, %v3211, %v2647
        %v3229 = vsel %vm3216, %v3212, %v2648
        %v3230 = vsel %vm3216, %v3213, %v2649
        %v3231 = vsel %vm3216, %v3214, %v2650
        %v3232 = vsel %vm3216, %v3215, %v2651
        %vm3233 = vcmask 31744
        %3234 = vst.msk [vmem:[#allocation2] sm:$0xff] %vm3233, %v3217
        %3235 = vst.msk [vmem:[#allocation2 + $0x8] sm:$0xff] %vm3233, %v3218
        %3236 = vst.msk [vmem:[#allocation2 + $0x10] sm:$0xff] %vm3233, %v3219
        %3237 = vst.msk [vmem:[#allocation2 + $0x18] sm:$0xff] %vm3233, %v3220
        %3238 = vst.msk [vmem:[#allocation2 + $0x20] sm:$0xff] %vm3233, %v3221
        %3239 = vst.msk [vmem:[#allocation2 + $0x28] sm:$0xff] %vm3233, %v3222
        %3240 = vst.msk [vmem:[#allocation2 + $0x30] sm:$0xff] %vm3233, %v3223
        %3241 = vst.msk [vmem:[#allocation2 + $0x38] sm:$0xff] %vm3233, %v3224
        %3242 = vst.msk [vmem:[#allocation2 + $0x40] sm:$0xff] %vm3233, %v3225
        %3243 = vst.msk [vmem:[#allocation2 + $0x48] sm:$0xff] %vm3233, %v3226
        %3244 = vst.msk [vmem:[#allocation2 + $0x50] sm:$0xff] %vm3233, %v3227
        %3245 = vst.msk [vmem:[#allocation2 + $0x58] sm:$0xff] %vm3233, %v3228
        %3246 = vst.msk [vmem:[#allocation2 + $0x60] sm:$0xff] %vm3233, %v3229
        %3247 = vst.msk [vmem:[#allocation2 + $0x68] sm:$0xff] %vm3233, %v3230
        %3248 = vst.msk [vmem:[#allocation2 + $0x70] sm:$0xff] %vm3233, %v3231
        %3249 = vst.msk [vmem:[#allocation2 + $0x78] sm:$0xff] %vm3233, %v3232
        %vm3250 = vcmask 269312
        %v3251 = vsel %vm3250, %v1159, %v1801
        %v3252 = vsel %vm3250, %v1160, %v1802
        %v3253 = vsel %vm3250, %v1161, %v1803
        %v3254 = vsel %vm3250, %v1162, %v1804
        %v3255 = vsel %vm3250, %v1163, %v1805
        %v3256 = vsel %vm3250, %v1164, %v1806
        %v3257 = vsel %vm3250, %v1165, %v1807
        %v3258 = vsel %vm3250, %v1166, %v1808
        %v3259 = vsel %vm3250, %v1167, %v1809
        %v3260 = vsel %vm3250, %v1168, %v1810
        %v3261 = vsel %vm3250, %v1169, %v1811
        %v3262 = vsel %vm3250, %v1170, %v1812
        %v3263 = vsel %vm3250, %v1171, %v1813
        %v3264 = vsel %vm3250, %v1172, %v1814
        %v3265 = vsel %vm3250, %v1173, %v1815
        %v3266 = vsel %vm3250, %v1174, %v1816
        %vm3267 = vcmask 539648
        %v3268 = vsel %vm3267, %v3251, %v2443
        %v3269 = vsel %vm3267, %v3252, %v2444
        %v3270 = vsel %vm3267, %v3253, %v2445
        %v3271 = vsel %vm3267, %v3254, %v2446
        %v3272 = vsel %vm3267, %v3255, %v2447
        %v3273 = vsel %vm3267, %v3256, %v2448
        %v3274 = vsel %vm3267, %v3257, %v2449
        %v3275 = vsel %vm3267, %v3258, %v2450
        %v3276 = vsel %vm3267, %v3259, %v2451
        %v3277 = vsel %vm3267, %v3260, %v2452
        %v3278 = vsel %vm3267, %v3261, %v2453
        %v3279 = vsel %vm3267, %v3262, %v2454
        %v3280 = vsel %vm3267, %v3263, %v2455
        %v3281 = vsel %vm3267, %v3264, %v2456
        %v3282 = vsel %vm3267, %v3265, %v2457
        %v3283 = vsel %vm3267, %v3266, %v2458
        %vm3284 = vcmask 809984
        %v3285 = vsel %vm3284, %v3268, %v3150
        %v3286 = vsel %vm3284, %v3269, %v3152
        %v3287 = vsel %vm3284, %v3270, %v3154
        %v3288 = vsel %vm3284, %v3271, %v3156
        %v3289 = vsel %vm3284, %v3272, %v3158
        %v3290 = vsel %vm3284, %v3273, %v3160
        %v3291 = vsel %vm3284, %v3274, %v3162
        %v3292 = vsel %vm3284, %v3275, %v3164
        %v3293 = vsel %vm3284, %v3276, %v3166
        %v3294 = vsel %vm3284, %v3277, %v3168
        %v3295 = vsel %vm3284, %v3278, %v3170
        %v3296 = vsel %vm3284, %v3279, %v3172
        %v3297 = vsel %vm3284, %v3280, %v3174
        %v3298 = vsel %vm3284, %v3281, %v3176
        %v3299 = vsel %vm3284, %v3282, %v3178
        %v3300 = vsel %vm3284, %v3283, %v3180
        %3301 = vst [vmem:[#allocation3] sm:$0xff] %v3285
        %3302 = vst.msk [vmem:[#allocation3 + $0x8] sm:$0xff] %vm3233, %v3151
        %3303 = vst [vmem:[#allocation3 + $0x10] sm:$0xff] %v3286
        %3304 = vst.msk [vmem:[#allocation3 + $0x18] sm:$0xff] %vm3233, %v3153
        %3305 = vst [vmem:[#allocation3 + $0x20] sm:$0xff] %v3287
        %3306 = vst.msk [vmem:[#allocation3 + $0x28] sm:$0xff] %vm3233, %v3155
        %3307 = vst [vmem:[#allocation3 + $0x30] sm:$0xff] %v3288
        %3308 = vst.msk [vmem:[#allocation3 + $0x38] sm:$0xff] %vm3233, %v3157
        %3309 = vst [vmem:[#allocation3 + $0x40] sm:$0xff] %v3289
        %3310 = vst.msk [vmem:[#allocation3 + $0x48] sm:$0xff] %vm3233, %v3159
        %3311 = vst [vmem:[#allocation3 + $0x50] sm:$0xff] %v3290
        %3312 = vst.msk [vmem:[#allocation3 + $0x58] sm:$0xff] %vm3233, %v3161
        %3313 = vst [vmem:[#allocation3 + $0x60] sm:$0xff] %v3291
        %3314 = vst.msk [vmem:[#allocation3 + $0x68] sm:$0xff] %vm3233, %v3163
        %3315 = vst [vmem:[#allocation3 + $0x70] sm:$0xff] %v3292
        %3316 = vst.msk [vmem:[#allocation3 + $0x78] sm:$0xff] %vm3233, %v3165
        %3317 = vst [vmem:[#allocation3 + $0x80] sm:$0xff] %v3293
        %3318 = vst.msk [vmem:[#allocation3 + $0x88] sm:$0xff] %vm3233, %v3167
        %3319 = vst [vmem:[#allocation3 + $0x90] sm:$0xff] %v3294
        %3320 = vst.msk [vmem:[#allocation3 + $0x98] sm:$0xff] %vm3233, %v3169
        %3321 = vst [vmem:[#allocation3 + $0xa0] sm:$0xff] %v3295
        %3322 = vst.msk [vmem:[#allocation3 + $0xa8] sm:$0xff] %vm3233, %v3171
        %3323 = vst [vmem:[#allocation3 + $0xb0] sm:$0xff] %v3296
        %3324 = vst.msk [vmem:[#allocation3 + $0xb8] sm:$0xff] %vm3233, %v3173
        %3325 = vst [vmem:[#allocation3 + $0xc0] sm:$0xff] %v3297
        %3326 = vst.msk [vmem:[#allocation3 + $0xc8] sm:$0xff] %vm3233, %v3175
        %3327 = vst [vmem:[#allocation3 + $0xd0] sm:$0xff] %v3298
        %3328 = vst.msk [vmem:[#allocation3 + $0xd8] sm:$0xff] %vm3233, %v3177
        %3329 = vst [vmem:[#allocation3 + $0xe0] sm:$0xff] %v3299
        %3330 = vst.msk [vmem:[#allocation3 + $0xe8] sm:$0xff] %vm3233, %v3179
        %3331 = vst [vmem:[#allocation3 + $0xf0] sm:$0xff] %v3300
        %3332 = vst.msk [vmem:[#allocation3 + $0xf8] sm:$0xff] %vm3233, %v3181
        %p3333 = scmp.eq.s32.totalorder %s21, 1
        // Predicated region
        $region83: #{gat_forward.7} parent=73 // pred_check
          %p3334 = pneg %p3333
        $region84: #{gat_forward.7} parent=73 // pred_check_branch
          %3336 = sbr.rel (%p3334) target = $region86
        $region85: #{gat_forward.7} parent=73 // pred_region
          %v3337 = vld [vmem:[#allocation3] sm:$0xff]
          %v3338 = vld [vmem:[#allocation3 + $0x8] sm:$0xff]
          %v3339 = vld [vmem:[#allocation3 + $0x10] sm:$0xff]
          %v3340 = vld [vmem:[#allocation3 + $0x18] sm:$0xff]
          %v3341 = vld [vmem:[#allocation3 + $0x20] sm:$0xff]
          %v3342 = vld [vmem:[#allocation3 + $0x28] sm:$0xff]
          %v3343 = vld [vmem:[#allocation3 + $0x30] sm:$0xff]
          %v3344 = vld [vmem:[#allocation3 + $0x38] sm:$0xff]
          %v3345 = vld [vmem:[#allocation3 + $0x40] sm:$0xff]
          %v3346 = vld [vmem:[#allocation3 + $0x48] sm:$0xff]
          %v3347 = vld [vmem:[#allocation3 + $0x50] sm:$0xff]
          %v3348 = vld [vmem:[#allocation3 + $0x58] sm:$0xff]
          %v3349 = vld [vmem:[#allocation3 + $0x60] sm:$0xff]
          %v3350 = vld [vmem:[#allocation3 + $0x68] sm:$0xff]
          %v3351 = vld [vmem:[#allocation3 + $0x70] sm:$0xff]
          %v3352 = vld [vmem:[#allocation3 + $0x78] sm:$0xff]
          %v3353 = vld [vmem:[#allocation3 + $0x80] sm:$0xff]
          %v3354 = vld [vmem:[#allocation3 + $0x88] sm:$0xff]
          %v3355 = vld [vmem:[#allocation3 + $0x90] sm:$0xff]
          %v3356 = vld [vmem:[#allocation3 + $0x98] sm:$0xff]
          %v3357 = vld [vmem:[#allocation3 + $0xa0] sm:$0xff]
          %v3358 = vld [vmem:[#allocation3 + $0xa8] sm:$0xff]
          %v3359 = vld [vmem:[#allocation3 + $0xb0] sm:$0xff]
          %v3360 = vld [vmem:[#allocation3 + $0xb8] sm:$0xff]
          %v3361 = vld [vmem:[#allocation3 + $0xc0] sm:$0xff]
          %v3362 = vld [vmem:[#allocation3 + $0xc8] sm:$0xff]
          %v3363 = vld [vmem:[#allocation3 + $0xd0] sm:$0xff]
          %v3364 = vld [vmem:[#allocation3 + $0xd8] sm:$0xff]
          %v3365 = vld [vmem:[#allocation3 + $0xe0] sm:$0xff]
          %v3366 = vld [vmem:[#allocation3 + $0xe8] sm:$0xff]
          %v3367 = vld [vmem:[#allocation3 + $0xf0] sm:$0xff]
          %v3368 = vld [vmem:[#allocation3 + $0xf8] sm:$0xff]
          %v3369 = vrcp.pop %v3337
          %v3370 = vrcp.pop %v3339
          %v3371 = vrcp.pop %v3341
          %v3372 = vrcp.pop %v3343
          %v3373 = vrcp.pop %v3345
          %v3374 = vrcp.pop %v3347
          %v3375 = vrcp.pop %v3349
          %v3376 = vrcp.pop %v3351
          %v3377 = vrcp.pop %v3353
          %v3378 = vrcp.pop %v3355
          %v3379 = vrcp.pop %v3357
          %v3380 = vrcp.pop %v3359
          %v3381 = vrcp.pop %v3361
          %v3382 = vrcp.pop %v3363
          %v3383 = vrcp.pop %v3365
          %v3384 = vrcp.pop %v3367
          %3386 = vset.pattern.permute.xlu0 32
          %3387 = vperm.xlu0 %3386, %v3369
          %v3388 = vpop.permute.xlu0 %3387
          %3391 = vset.pattern.permute.xlu0 32
          %3392 = vperm.xlu0 %3391, %v3370
          %v3393 = vpop.permute.xlu0 %3392
          %3396 = vset.pattern.permute.xlu0 32
          %3397 = vperm.xlu0 %3396, %v3371
          %v3398 = vpop.permute.xlu0 %3397
          %3401 = vset.pattern.permute.xlu0 32
          %3402 = vperm.xlu0 %3401, %v3372
          %v3403 = vpop.permute.xlu0 %3402
          %3406 = vset.pattern.permute.xlu0 32
          %3407 = vperm.xlu0 %3406, %v3373
          %v3408 = vpop.permute.xlu0 %3407
          %3411 = vset.pattern.permute.xlu0 32
          %3412 = vperm.xlu0 %3411, %v3374
          %v3413 = vpop.permute.xlu0 %3412
          %3416 = vset.pattern.permute.xlu0 32
          %3417 = vperm.xlu0 %3416, %v3375
          %v3418 = vpop.permute.xlu0 %3417
          %3421 = vset.pattern.permute.xlu0 32
          %3422 = vperm.xlu0 %3421, %v3376
          %v3423 = vpop.permute.xlu0 %3422
          %3426 = vset.pattern.permute.xlu0 32
          %3427 = vperm.xlu0 %3426, %v3377
          %v3428 = vpop.permute.xlu0 %3427
          %3431 = vset.pattern.permute.xlu0 32
          %3432 = vperm.xlu0 %3431, %v3378
          %v3433 = vpop.permute.xlu0 %3432
          %3436 = vset.pattern.permute.xlu0 32
          %3437 = vperm.xlu0 %3436, %v3379
          %v3438 = vpop.permute.xlu0 %3437
          %3441 = vset.pattern.permute.xlu0 32
          %3442 = vperm.xlu0 %3441, %v3380
          %v3443 = vpop.permute.xlu0 %3442
          %3446 = vset.pattern.permute.xlu0 32
          %3447 = vperm.xlu0 %3446, %v3381
          %v3448 = vpop.permute.xlu0 %3447
          %3451 = vset.pattern.permute.xlu0 32
          %3452 = vperm.xlu0 %3451, %v3382
          %v3453 = vpop.permute.xlu0 %3452
          %3456 = vset.pattern.permute.xlu0 32
          %3457 = vperm.xlu0 %3456, %v3383
          %v3458 = vpop.permute.xlu0 %3457
          %3461 = vset.pattern.permute.xlu0 32
          %3462 = vperm.xlu0 %3461, %v3384
          %v3463 = vpop.permute.xlu0 %3462
          %v3465 = vmul.f32 %v3337, %v3388
          %v3466 = vmul.f32 %v3339, %v3393
          %v3467 = vmul.f32 %v3341, %v3398
          %v3468 = vmul.f32 %v3343, %v3403
          %v3469 = vmul.f32 %v3345, %v3408
          %v3470 = vmul.f32 %v3347, %v3413
          %v3471 = vmul.f32 %v3349, %v3418
          %v3472 = vmul.f32 %v3351, %v3423
          %v3473 = vmul.f32 %v3353, %v3428
          %v3474 = vmul.f32 %v3355, %v3433
          %v3475 = vmul.f32 %v3357, %v3438
          %v3476 = vmul.f32 %v3359, %v3443
          %v3477 = vmul.f32 %v3361, %v3448
          %v3478 = vmul.f32 %v3363, %v3453
          %v3479 = vmul.f32 %v3365, %v3458
          %v3480 = vmul.f32 %v3367, %v3463
          %3481 = vset.pattern.permute.xlu0 65
          %3482 = vperm.xlu0 %3481, %v3369
          %v3483 = vpop.permute.xlu0 %3482
          %3485 = vset.pattern.permute.xlu0 65
          %3486 = vperm.xlu0 %3485, %v3370
          %v3487 = vpop.permute.xlu0 %3486
          %3489 = vset.pattern.permute.xlu0 65
          %3490 = vperm.xlu0 %3489, %v3371
          %v3491 = vpop.permute.xlu0 %3490
          %3493 = vset.pattern.permute.xlu0 65
          %3494 = vperm.xlu0 %3493, %v3372
          %v3495 = vpop.permute.xlu0 %3494
          %3497 = vset.pattern.permute.xlu0 65
          %3498 = vperm.xlu0 %3497, %v3373
          %v3499 = vpop.permute.xlu0 %3498
          %3501 = vset.pattern.permute.xlu0 65
          %3502 = vperm.xlu0 %3501, %v3374
          %v3503 = vpop.permute.xlu0 %3502
          %3505 = vset.pattern.permute.xlu0 65
          %3506 = vperm.xlu0 %3505, %v3375
          %v3507 = vpop.permute.xlu0 %3506
          %3509 = vset.pattern.permute.xlu0 65
          %3510 = vperm.xlu0 %3509, %v3376
          %v3511 = vpop.permute.xlu0 %3510
          %3513 = vset.pattern.permute.xlu0 65
          %3514 = vperm.xlu0 %3513, %v3377
          %v3515 = vpop.permute.xlu0 %3514
          %3517 = vset.pattern.permute.xlu0 65
          %3518 = vperm.xlu0 %3517, %v3378
          %v3519 = vpop.permute.xlu0 %3518
          %3521 = vset.pattern.permute.xlu0 65
          %3522 = vperm.xlu0 %3521, %v3379
          %v3523 = vpop.permute.xlu0 %3522
          %3525 = vset.pattern.permute.xlu0 65
          %3526 = vperm.xlu0 %3525, %v3380
          %v3527 = vpop.permute.xlu0 %3526
          %3529 = vset.pattern.permute.xlu0 65
          %3530 = vperm.xlu0 %3529, %v3381
          %v3531 = vpop.permute.xlu0 %3530
          %3533 = vset.pattern.permute.xlu0 65
          %3534 = vperm.xlu0 %3533, %v3382
          %v3535 = vpop.permute.xlu0 %3534
          %3537 = vset.pattern.permute.xlu0 65
          %3538 = vperm.xlu0 %3537, %v3383
          %v3539 = vpop.permute.xlu0 %3538
          %3541 = vset.pattern.permute.xlu0 65
          %3542 = vperm.xlu0 %3541, %v3384
          %v3543 = vpop.permute.xlu0 %3542
          %v3545 = vmul.f32 %v3337, %v3483
          %v3546 = vmul.f32 %v3339, %v3487
          %v3547 = vmul.f32 %v3341, %v3491
          %v3548 = vmul.f32 %v3343, %v3495
          %v3549 = vmul.f32 %v3345, %v3499
          %v3550 = vmul.f32 %v3347, %v3503
          %v3551 = vmul.f32 %v3349, %v3507
          %v3552 = vmul.f32 %v3351, %v3511
          %v3553 = vmul.f32 %v3353, %v3515
          %v3554 = vmul.f32 %v3355, %v3519
          %v3555 = vmul.f32 %v3357, %v3523
          %v3556 = vmul.f32 %v3359, %v3527
          %v3557 = vmul.f32 %v3361, %v3531
          %v3558 = vmul.f32 %v3363, %v3535
          %v3559 = vmul.f32 %v3365, %v3539
          %v3560 = vmul.f32 %v3367, %v3543
          %3561 = vset.pattern.permute.xlu0 98
          %3562 = vperm.xlu0 %3561, %v3369
          %v3563 = vpop.permute.xlu0 %3562
          %3565 = vset.pattern.permute.xlu0 98
          %3566 = vperm.xlu0 %3565, %v3370
          %v3567 = vpop.permute.xlu0 %3566
          %3569 = vset.pattern.permute.xlu0 98
          %3570 = vperm.xlu0 %3569, %v3371
          %v3571 = vpop.permute.xlu0 %3570
          %3573 = vset.pattern.permute.xlu0 98
          %3574 = vperm.xlu0 %3573, %v3372
          %v3575 = vpop.permute.xlu0 %3574
          %3577 = vset.pattern.permute.xlu0 98
          %3578 = vperm.xlu0 %3577, %v3373
          %v3579 = vpop.permute.xlu0 %3578
          %3581 = vset.pattern.permute.xlu0 98
          %3582 = vperm.xlu0 %3581, %v3374
          %v3583 = vpop.permute.xlu0 %3582
          %3585 = vset.pattern.permute.xlu0 98
          %3586 = vperm.xlu0 %3585, %v3375
          %v3587 = vpop.permute.xlu0 %3586
          %3589 = vset.pattern.permute.xlu0 98
          %3590 = vperm.xlu0 %3589, %v3376
          %v3591 = vpop.permute.xlu0 %3590
          %3593 = vset.pattern.permute.xlu0 98
          %3594 = vperm.xlu0 %3593, %v3377
          %v3595 = vpop.permute.xlu0 %3594
          %3597 = vset.pattern.permute.xlu0 98
          %3598 = vperm.xlu0 %3597, %v3378
          %v3599 = vpop.permute.xlu0 %3598
          %3601 = vset.pattern.permute.xlu0 98
          %3602 = vperm.xlu0 %3601, %v3379
          %v3603 = vpop.permute.xlu0 %3602
          %3605 = vset.pattern.permute.xlu0 98
          %3606 = vperm.xlu0 %3605, %v3380
          %v3607 = vpop.permute.xlu0 %3606
          %3609 = vset.pattern.permute.xlu0 98
          %3610 = vperm.xlu0 %3609, %v3381
          %v3611 = vpop.permute.xlu0 %3610
          %3613 = vset.pattern.permute.xlu0 98
          %3614 = vperm.xlu0 %3613, %v3382
          %v3615 = vpop.permute.xlu0 %3614
          %3617 = vset.pattern.permute.xlu0 98
          %3618 = vperm.xlu0 %3617, %v3383
          %v3619 = vpop.permute.xlu0 %3618
          %3621 = vset.pattern.permute.xlu0 98
          %3622 = vperm.xlu0 %3621, %v3384
          %v3623 = vpop.permute.xlu0 %3622
          %v3625 = vmul.f32 %v3337, %v3563
          %v3626 = vmul.f32 %v3339, %v3567
          %v3627 = vmul.f32 %v3341, %v3571
          %v3628 = vmul.f32 %v3343, %v3575
          %v3629 = vmul.f32 %v3345, %v3579
          %v3630 = vmul.f32 %v3347, %v3583
          %v3631 = vmul.f32 %v3349, %v3587
          %v3632 = vmul.f32 %v3351, %v3591
          %v3633 = vmul.f32 %v3353, %v3595
          %v3634 = vmul.f32 %v3355, %v3599
          %v3635 = vmul.f32 %v3357, %v3603
          %v3636 = vmul.f32 %v3359, %v3607
          %v3637 = vmul.f32 %v3361, %v3611
          %v3638 = vmul.f32 %v3363, %v3615
          %v3639 = vmul.f32 %v3365, %v3619
          %v3640 = vmul.f32 %v3367, %v3623
          %v3641 = vrcp.pop %v3338
          %v3642 = vrcp.pop %v3340
          %v3643 = vrcp.pop %v3342
          %v3644 = vrcp.pop %v3344
          %v3645 = vrcp.pop %v3346
          %v3646 = vrcp.pop %v3348
          %v3647 = vrcp.pop %v3350
          %v3648 = vrcp.pop %v3352
          %v3649 = vrcp.pop %v3354
          %v3650 = vrcp.pop %v3356
          %v3651 = vrcp.pop %v3358
          %v3652 = vrcp.pop %v3360
          %v3653 = vrcp.pop %v3362
          %v3654 = vrcp.pop %v3364
          %v3655 = vrcp.pop %v3366
          %v3656 = vrcp.pop %v3368
          %3658 = vset.pattern.permute.xlu0 3
          %3659 = vperm.xlu0 %3658, %v3641
          %v3660 = vpop.permute.xlu0 %3659
          %3663 = vset.pattern.permute.xlu0 3
          %3664 = vperm.xlu0 %3663, %v3642
          %v3665 = vpop.permute.xlu0 %3664
          %3668 = vset.pattern.permute.xlu0 3
          %3669 = vperm.xlu0 %3668, %v3643
          %v3670 = vpop.permute.xlu0 %3669
          %3673 = vset.pattern.permute.xlu0 3
          %3674 = vperm.xlu0 %3673, %v3644
          %v3675 = vpop.permute.xlu0 %3674
          %3678 = vset.pattern.permute.xlu0 3
          %3679 = vperm.xlu0 %3678, %v3645
          %v3680 = vpop.permute.xlu0 %3679
          %3683 = vset.pattern.permute.xlu0 3
          %3684 = vperm.xlu0 %3683, %v3646
          %v3685 = vpop.permute.xlu0 %3684
          %3688 = vset.pattern.permute.xlu0 3
          %3689 = vperm.xlu0 %3688, %v3647
          %v3690 = vpop.permute.xlu0 %3689
          %3693 = vset.pattern.permute.xlu0 3
          %3694 = vperm.xlu0 %3693, %v3648
          %v3695 = vpop.permute.xlu0 %3694
          %3698 = vset.pattern.permute.xlu0 3
          %3699 = vperm.xlu0 %3698, %v3649
          %v3700 = vpop.permute.xlu0 %3699
          %3703 = vset.pattern.permute.xlu0 3
          %3704 = vperm.xlu0 %3703, %v3650
          %v3705 = vpop.permute.xlu0 %3704
          %3708 = vset.pattern.permute.xlu0 3
          %3709 = vperm.xlu0 %3708, %v3651
          %v3710 = vpop.permute.xlu0 %3709
          %3713 = vset.pattern.permute.xlu0 3
          %3714 = vperm.xlu0 %3713, %v3652
          %v3715 = vpop.permute.xlu0 %3714
          %3718 = vset.pattern.permute.xlu0 3
          %3719 = vperm.xlu0 %3718, %v3653
          %v3720 = vpop.permute.xlu0 %3719
          %3723 = vset.pattern.permute.xlu0 3
          %3724 = vperm.xlu0 %3723, %v3654
          %v3725 = vpop.permute.xlu0 %3724
          %3728 = vset.pattern.permute.xlu0 3
          %3729 = vperm.xlu0 %3728, %v3655
          %v3730 = vpop.permute.xlu0 %3729
          %3733 = vset.pattern.permute.xlu0 3
          %3734 = vperm.xlu0 %3733, %v3656
          %v3735 = vpop.permute.xlu0 %3734
          %v3737 = vmul.f32 %v3337, %v3660
          %v3738 = vmul.f32 %v3338, %v3660
          %v3739 = vmul.f32 %v3339, %v3665
          %v3740 = vmul.f32 %v3340, %v3665
          %v3741 = vmul.f32 %v3341, %v3670
          %v3742 = vmul.f32 %v3342, %v3670
          %v3743 = vmul.f32 %v3343, %v3675
          %v3744 = vmul.f32 %v3344, %v3675
          %v3745 = vmul.f32 %v3345, %v3680
          %v3746 = vmul.f32 %v3346, %v3680
          %v3747 = vmul.f32 %v3347, %v3685
          %v3748 = vmul.f32 %v3348, %v3685
          %v3749 = vmul.f32 %v3349, %v3690
          %v3750 = vmul.f32 %v3350, %v3690
          %v3751 = vmul.f32 %v3351, %v3695
          %v3752 = vmul.f32 %v3352, %v3695
          %v3753 = vmul.f32 %v3353, %v3700
          %v3754 = vmul.f32 %v3354, %v3700
          %v3755 = vmul.f32 %v3355, %v3705
          %v3756 = vmul.f32 %v3356, %v3705
          %v3757 = vmul.f32 %v3357, %v3710
          %v3758 = vmul.f32 %v3358, %v3710
          %v3759 = vmul.f32 %v3359, %v3715
          %v3760 = vmul.f32 %v3360, %v3715
          %v3761 = vmul.f32 %v3361, %v3720
          %v3762 = vmul.f32 %v3362, %v3720
          %v3763 = vmul.f32 %v3363, %v3725
          %v3764 = vmul.f32 %v3364, %v3725
          %v3765 = vmul.f32 %v3365, %v3730
          %v3766 = vmul.f32 %v3366, %v3730
          %v3767 = vmul.f32 %v3367, %v3735
          %v3768 = vmul.f32 %v3368, %v3735
          %3785 = vrot.lane.b32.xlu0 %v3545, 127
          %v3786 = vpop.permute.xlu0 %3785
          %3787 = vrot.lane.b32.xlu0 %v3546, 127
          %v3788 = vpop.permute.xlu0 %3787
          %3789 = vrot.lane.b32.xlu0 %v3547, 127
          %v3790 = vpop.permute.xlu0 %3789
          %3791 = vrot.lane.b32.xlu0 %v3548, 127
          %v3792 = vpop.permute.xlu0 %3791
          %3793 = vrot.lane.b32.xlu0 %v3549, 127
          %v3794 = vpop.permute.xlu0 %3793
          %3795 = vrot.lane.b32.xlu0 %v3550, 127
          %v3796 = vpop.permute.xlu0 %3795
          %3797 = vrot.lane.b32.xlu0 %v3551, 127
          %v3798 = vpop.permute.xlu0 %3797
          %3799 = vrot.lane.b32.xlu0 %v3552, 127
          %v3800 = vpop.permute.xlu0 %3799
          %3801 = vrot.lane.b32.xlu0 %v3553, 127
          %v3802 = vpop.permute.xlu0 %3801
          %3803 = vrot.lane.b32.xlu0 %v3554, 127
          %v3804 = vpop.permute.xlu0 %3803
          %3805 = vrot.lane.b32.xlu0 %v3555, 127
          %v3806 = vpop.permute.xlu0 %3805
          %3807 = vrot.lane.b32.xlu0 %v3556, 127
          %v3808 = vpop.permute.xlu0 %3807
          %3809 = vrot.lane.b32.xlu0 %v3557, 127
          %v3810 = vpop.permute.xlu0 %3809
          %3811 = vrot.lane.b32.xlu0 %v3558, 127
          %v3812 = vpop.permute.xlu0 %3811
          %3813 = vrot.lane.b32.xlu0 %v3559, 127
          %v3814 = vpop.permute.xlu0 %3813
          %3815 = vrot.lane.b32.xlu0 %v3560, 127
          %v3816 = vpop.permute.xlu0 %3815
          %3849 = vrot.lane.b32.xlu0 %v3625, 126
          %v3850 = vpop.permute.xlu0 %3849
          %3851 = vrot.lane.b32.xlu0 %v3626, 126
          %v3852 = vpop.permute.xlu0 %3851
          %3853 = vrot.lane.b32.xlu0 %v3627, 126
          %v3854 = vpop.permute.xlu0 %3853
          %3855 = vrot.lane.b32.xlu0 %v3628, 126
          %v3856 = vpop.permute.xlu0 %3855
          %3857 = vrot.lane.b32.xlu0 %v3629, 126
          %v3858 = vpop.permute.xlu0 %3857
          %3859 = vrot.lane.b32.xlu0 %v3630, 126
          %v3860 = vpop.permute.xlu0 %3859
          %3861 = vrot.lane.b32.xlu0 %v3631, 126
          %v3862 = vpop.permute.xlu0 %3861
          %3863 = vrot.lane.b32.xlu0 %v3632, 126
          %v3864 = vpop.permute.xlu0 %3863
          %3865 = vrot.lane.b32.xlu0 %v3633, 126
          %v3866 = vpop.permute.xlu0 %3865
          %3867 = vrot.lane.b32.xlu0 %v3634, 126
          %v3868 = vpop.permute.xlu0 %3867
          %3869 = vrot.lane.b32.xlu0 %v3635, 126
          %v3870 = vpop.permute.xlu0 %3869
          %3871 = vrot.lane.b32.xlu0 %v3636, 126
          %v3872 = vpop.permute.xlu0 %3871
          %3873 = vrot.lane.b32.xlu0 %v3637, 126
          %v3874 = vpop.permute.xlu0 %3873
          %3875 = vrot.lane.b32.xlu0 %v3638, 126
          %v3876 = vpop.permute.xlu0 %3875
          %3877 = vrot.lane.b32.xlu0 %v3639, 126
          %v3878 = vpop.permute.xlu0 %3877
          %3879 = vrot.lane.b32.xlu0 %v3640, 126
          %v3880 = vpop.permute.xlu0 %3879
          %3929 = vrot.lane.b32.xlu0 %v3737, 125
          %v3930 = vpop.permute.xlu0 %3929
          %3931 = vrot.lane.b32.xlu0 %v3738, 125
          %v3932 = vpop.permute.xlu0 %3931
          %3933 = vrot.lane.b32.xlu0 %v3739, 125
          %v3934 = vpop.permute.xlu0 %3933
          %3935 = vrot.lane.b32.xlu0 %v3740, 125
          %v3936 = vpop.permute.xlu0 %3935
          %3937 = vrot.lane.b32.xlu0 %v3741, 125
          %v3938 = vpop.permute.xlu0 %3937
          %3939 = vrot.lane.b32.xlu0 %v3742, 125
          %v3940 = vpop.permute.xlu0 %3939
          %3941 = vrot.lane.b32.xlu0 %v3743, 125
          %v3942 = vpop.permute.xlu0 %3941
          %3943 = vrot.lane.b32.xlu0 %v3744, 125
          %v3944 = vpop.permute.xlu0 %3943
          %3945 = vrot.lane.b32.xlu0 %v3745, 125
          %v3946 = vpop.permute.xlu0 %3945
          %3947 = vrot.lane.b32.xlu0 %v3746, 125
          %v3948 = vpop.permute.xlu0 %3947
          %3949 = vrot.lane.b32.xlu0 %v3747, 125
          %v3950 = vpop.permute.xlu0 %3949
          %3951 = vrot.lane.b32.xlu0 %v3748, 125
          %v3952 = vpop.permute.xlu0 %3951
          %3953 = vrot.lane.b32.xlu0 %v3749, 125
          %v3954 = vpop.permute.xlu0 %3953
          %3955 = vrot.lane.b32.xlu0 %v3750, 125
          %v3956 = vpop.permute.xlu0 %3955
          %3957 = vrot.lane.b32.xlu0 %v3751, 125
          %v3958 = vpop.permute.xlu0 %3957
          %3959 = vrot.lane.b32.xlu0 %v3752, 125
          %v3960 = vpop.permute.xlu0 %3959
          %3961 = vrot.lane.b32.xlu0 %v3753, 125
          %v3962 = vpop.permute.xlu0 %3961
          %3963 = vrot.lane.b32.xlu0 %v3754, 125
          %v3964 = vpop.permute.xlu0 %3963
          %3965 = vrot.lane.b32.xlu0 %v3755, 125
          %v3966 = vpop.permute.xlu0 %3965
          %3967 = vrot.lane.b32.xlu0 %v3756, 125
          %v3968 = vpop.permute.xlu0 %3967
          %3969 = vrot.lane.b32.xlu0 %v3757, 125
          %v3970 = vpop.permute.xlu0 %3969
          %3971 = vrot.lane.b32.xlu0 %v3758, 125
          %v3972 = vpop.permute.xlu0 %3971
          %3973 = vrot.lane.b32.xlu0 %v3759, 125
          %v3974 = vpop.permute.xlu0 %3973
          %3975 = vrot.lane.b32.xlu0 %v3760, 125
          %v3976 = vpop.permute.xlu0 %3975
          %3977 = vrot.lane.b32.xlu0 %v3761, 125
          %v3978 = vpop.permute.xlu0 %3977
          %3979 = vrot.lane.b32.xlu0 %v3762, 125
          %v3980 = vpop.permute.xlu0 %3979
          %3981 = vrot.lane.b32.xlu0 %v3763, 125
          %v3982 = vpop.permute.xlu0 %3981
          %3983 = vrot.lane.b32.xlu0 %v3764, 125
          %v3984 = vpop.permute.xlu0 %3983
          %3985 = vrot.lane.b32.xlu0 %v3765, 125
          %v3986 = vpop.permute.xlu0 %3985
          %3987 = vrot.lane.b32.xlu0 %v3766, 125
          %v3988 = vpop.permute.xlu0 %3987
          %3989 = vrot.lane.b32.xlu0 %v3767, 125
          %v3990 = vpop.permute.xlu0 %3989
          %3991 = vrot.lane.b32.xlu0 %v3768, 125
          %v3992 = vpop.permute.xlu0 %3991
          %vm3993 = vcmask 1022976
          %v3994 = vsel %vm3993, %v3930, %v3932
          %v3995 = vsel %vm3993, %v3934, %v3936
          %v3996 = vsel %vm3993, %v3938, %v3940
          %v3997 = vsel %vm3993, %v3942, %v3944
          %v3998 = vsel %vm3993, %v3946, %v3948
          %v3999 = vsel %vm3993, %v3950, %v3952
          %v4000 = vsel %vm3993, %v3954, %v3956
          %v4001 = vsel %vm3993, %v3958, %v3960
          %v4002 = vsel %vm3993, %v3962, %v3964
          %v4003 = vsel %vm3993, %v3966, %v3968
          %v4004 = vsel %vm3993, %v3970, %v3972
          %v4005 = vsel %vm3993, %v3974, %v3976
          %v4006 = vsel %vm3993, %v3978, %v3980
          %v4007 = vsel %vm3993, %v3982, %v3984
          %v4008 = vsel %vm3993, %v3986, %v3988
          %v4009 = vsel %vm3993, %v3990, %v3992
          %vm4026 = vcmask 261120
          %v4027 = vsel %vm4026, %v3465, %v3786
          %v4028 = vsel %vm4026, %v3466, %v3788
          %v4029 = vsel %vm4026, %v3467, %v3790
          %v4030 = vsel %vm4026, %v3468, %v3792
          %v4031 = vsel %vm4026, %v3469, %v3794
          %v4032 = vsel %vm4026, %v3470, %v3796
          %v4033 = vsel %vm4026, %v3471, %v3798
          %v4034 = vsel %vm4026, %v3472, %v3800
          %v4035 = vsel %vm4026, %v3473, %v3802
          %v4036 = vsel %vm4026, %v3474, %v3804
          %v4037 = vsel %vm4026, %v3475, %v3806
          %v4038 = vsel %vm4026, %v3476, %v3808
          %v4039 = vsel %vm4026, %v3477, %v3810
          %v4040 = vsel %vm4026, %v3478, %v3812
          %v4041 = vsel %vm4026, %v3479, %v3814
          %v4042 = vsel %vm4026, %v3480, %v3816
          %vm4043 = vcmask 523264
          %v4044 = vsel %vm4043, %v4027, %v3850
          %v4045 = vsel %vm4043, %v4028, %v3852
          %v4046 = vsel %vm4043, %v4029, %v3854
          %v4047 = vsel %vm4043, %v4030, %v3856
          %v4048 = vsel %vm4043, %v4031, %v3858
          %v4049 = vsel %vm4043, %v4032, %v3860
          %v4050 = vsel %vm4043, %v4033, %v3862
          %v4051 = vsel %vm4043, %v4034, %v3864
          %v4052 = vsel %vm4043, %v4035, %v3866
          %v4053 = vsel %vm4043, %v4036, %v3868
          %v4054 = vsel %vm4043, %v4037, %v3870
          %v4055 = vsel %vm4043, %v4038, %v3872
          %v4056 = vsel %vm4043, %v4039, %v3874
          %v4057 = vsel %vm4043, %v4040, %v3876
          %v4058 = vsel %vm4043, %v4041, %v3878
          %v4059 = vsel %vm4043, %v4042, %v3880
          %vm4060 = vcmask 785408
          %v4061 = vsel %vm4060, %v4044, %v3994
          %v4062 = vsel %vm4060, %v4045, %v3995
          %v4063 = vsel %vm4060, %v4046, %v3996
          %v4064 = vsel %vm4060, %v4047, %v3997
          %v4065 = vsel %vm4060, %v4048, %v3998
          %v4066 = vsel %vm4060, %v4049, %v3999
          %v4067 = vsel %vm4060, %v4050, %v4000
          %v4068 = vsel %vm4060, %v4051, %v4001
          %v4069 = vsel %vm4060, %v4052, %v4002
          %v4070 = vsel %vm4060, %v4053, %v4003
          %v4071 = vsel %vm4060, %v4054, %v4004
          %v4072 = vsel %vm4060, %v4055, %v4005
          %v4073 = vsel %vm4060, %v4056, %v4006
          %v4074 = vsel %vm4060, %v4057, %v4007
          %v4075 = vsel %vm4060, %v4058, %v4008
          %v4076 = vsel %vm4060, %v4059, %v4009
          %v4077 = vld [vmem:[%s3] sm:$0x1]
          %v4079 = vperm.slane %v4077, 0
          %v4081 = vadd.f32 %v4061, %v4079
          %v4082 = vadd.f32 %v4062, %v4079
          %v4083 = vadd.f32 %v4063, %v4079
          %v4084 = vadd.f32 %v4064, %v4079
          %v4085 = vadd.f32 %v4065, %v4079
          %v4086 = vadd.f32 %v4066, %v4079
          %v4087 = vadd.f32 %v4067, %v4079
          %v4088 = vadd.f32 %v4068, %v4079
          %v4089 = vadd.f32 %v4069, %v4079
          %v4090 = vadd.f32 %v4070, %v4079
          %v4091 = vadd.f32 %v4071, %v4079
          %v4092 = vadd.f32 %v4072, %v4079
          %v4093 = vadd.f32 %v4073, %v4079
          %v4094 = vadd.f32 %v4074, %v4079
          %v4095 = vadd.f32 %v4075, %v4079
          %v4096 = vadd.f32 %v4076, %v4079
          %vm4097 = vcmp.gt.f32.partialorder %v4081, 0.0
          %vm4098 = vcmp.gt.f32.partialorder %v4082, 0.0
          %vm4099 = vcmp.gt.f32.partialorder %v4083, 0.0
          %vm4100 = vcmp.gt.f32.partialorder %v4084, 0.0
          %vm4101 = vcmp.gt.f32.partialorder %v4085, 0.0
          %vm4102 = vcmp.gt.f32.partialorder %v4086, 0.0
          %vm4103 = vcmp.gt.f32.partialorder %v4087, 0.0
          %vm4104 = vcmp.gt.f32.partialorder %v4088, 0.0
          %vm4105 = vcmp.gt.f32.partialorder %v4089, 0.0
          %vm4106 = vcmp.gt.f32.partialorder %v4090, 0.0
          %vm4107 = vcmp.gt.f32.partialorder %v4091, 0.0
          %vm4108 = vcmp.gt.f32.partialorder %v4092, 0.0
          %vm4109 = vcmp.gt.f32.partialorder %v4093, 0.0
          %vm4110 = vcmp.gt.f32.partialorder %v4094, 0.0
          %vm4111 = vcmp.gt.f32.partialorder %v4095, 0.0
          %vm4112 = vcmp.gt.f32.partialorder %v4096, 0.0
          %v4113 = vmin.f32 %v4081, 0.0
          %v4114 = vmin.f32 %v4082, 0.0
          %v4115 = vmin.f32 %v4083, 0.0
          %v4116 = vmin.f32 %v4084, 0.0
          %v4117 = vmin.f32 %v4085, 0.0
          %v4118 = vmin.f32 %v4086, 0.0
          %v4119 = vmin.f32 %v4087, 0.0
          %v4120 = vmin.f32 %v4088, 0.0
          %v4121 = vmin.f32 %v4089, 0.0
          %v4122 = vmin.f32 %v4090, 0.0
          %v4123 = vmin.f32 %v4091, 0.0
          %v4124 = vmin.f32 %v4092, 0.0
          %v4125 = vmin.f32 %v4093, 0.0
          %v4126 = vmin.f32 %v4094, 0.0
          %v4127 = vmin.f32 %v4095, 0.0
          %v4128 = vmin.f32 %v4096, 0.0
          %v4129 = vmul.f32 %v4113, 1.442695
          %v4130 = vpow.pop %v4129
          %v4131 = vmul.f32 %v4114, 1.442695
          %v4132 = vpow.pop %v4131
          %v4133 = vmul.f32 %v4115, 1.442695
          %v4134 = vpow.pop %v4133
          %v4135 = vmul.f32 %v4116, 1.442695
          %v4136 = vpow.pop %v4135
          %v4137 = vmul.f32 %v4117, 1.442695
          %v4138 = vpow.pop %v4137
          %v4139 = vmul.f32 %v4118, 1.442695
          %v4140 = vpow.pop %v4139
          %v4141 = vmul.f32 %v4119, 1.442695
          %v4142 = vpow.pop %v4141
          %v4143 = vmul.f32 %v4120, 1.442695
          %v4144 = vpow.pop %v4143
          %v4145 = vmul.f32 %v4121, 1.442695
          %v4146 = vpow.pop %v4145
          %v4147 = vmul.f32 %v4122, 1.442695
          %v4148 = vpow.pop %v4147
          %v4149 = vmul.f32 %v4123, 1.442695
          %v4150 = vpow.pop %v4149
          %v4151 = vmul.f32 %v4124, 1.442695
          %v4152 = vpow.pop %v4151
          %v4153 = vmul.f32 %v4125, 1.442695
          %v4154 = vpow.pop %v4153
          %v4155 = vmul.f32 %v4126, 1.442695
          %v4156 = vpow.pop %v4155
          %v4157 = vmul.f32 %v4127, 1.442695
          %v4158 = vpow.pop %v4157
          %v4159 = vmul.f32 %v4128, 1.442695
          %v4160 = vpow.pop %v4159
          %v4161 = vsub.f32 %v4130, 1.0
          %v4162 = vsub.f32 %v4132, 1.0
          %v4163 = vsub.f32 %v4134, 1.0
          %v4164 = vsub.f32 %v4136, 1.0
          %v4165 = vsub.f32 %v4138, 1.0
          %v4166 = vsub.f32 %v4140, 1.0
          %v4167 = vsub.f32 %v4142, 1.0
          %v4168 = vsub.f32 %v4144, 1.0
          %v4169 = vsub.f32 %v4146, 1.0
          %v4170 = vsub.f32 %v4148, 1.0
          %v4171 = vsub.f32 %v4150, 1.0
          %v4172 = vsub.f32 %v4152, 1.0
          %v4173 = vsub.f32 %v4154, 1.0
          %v4174 = vsub.f32 %v4156, 1.0
          %v4175 = vsub.f32 %v4158, 1.0
          %v4176 = vsub.f32 %v4160, 1.0
          %v4177 = vsel %vm4097, %v4081, %v4161
          %v4178 = vsel %vm4098, %v4082, %v4162
          %v4179 = vsel %vm4099, %v4083, %v4163
          %v4180 = vsel %vm4100, %v4084, %v4164
          %v4181 = vsel %vm4101, %v4085, %v4165
          %v4182 = vsel %vm4102, %v4086, %v4166
          %v4183 = vsel %vm4103, %v4087, %v4167
          %v4184 = vsel %vm4104, %v4088, %v4168
          %v4185 = vsel %vm4105, %v4089, %v4169
          %v4186 = vsel %vm4106, %v4090, %v4170
          %v4187 = vsel %vm4107, %v4091, %v4171
          %v4188 = vsel %vm4108, %v4092, %v4172
          %v4189 = vsel %vm4109, %v4093, %v4173
          %v4190 = vsel %vm4110, %v4094, %v4174
          %v4191 = vsel %vm4111, %v4095, %v4175
          %v4192 = vsel %vm4112, %v4096, %v4176
          %v4193 = vpack.c.bf16 %v4177, %v4177
          %v4194 = vpack.c.bf16 %v4178, %v4178
          %v4195 = vpack.c.bf16 %v4179, %v4179
          %v4196 = vpack.c.bf16 %v4180, %v4180
          %v4197 = vpack.c.bf16 %v4181, %v4181
          %v4198 = vpack.c.bf16 %v4182, %v4182
          %v4199 = vpack.c.bf16 %v4183, %v4183
          %v4200 = vpack.c.bf16 %v4184, %v4184
          %v4201 = vpack.c.bf16 %v4185, %v4185
          %v4202 = vpack.c.bf16 %v4186, %v4186
          %v4203 = vpack.c.bf16 %v4187, %v4187
          %v4204 = vpack.c.bf16 %v4188, %v4188
          %v4205 = vpack.c.bf16 %v4189, %v4189
          %v4206 = vpack.c.bf16 %v4190, %v4190
          %v4207 = vpack.c.bf16 %v4191, %v4191
          %v4208 = vpack.c.bf16 %v4192, %v4192
          %4209 = vst [vmem:[%s353] sm:$0xf] %v4193
          %4210 = vst [vmem:[%s353 + $0x4] sm:$0xf] %v4194
          %4211 = vst [vmem:[%s353 + $0x8] sm:$0xf] %v4195
          %4212 = vst [vmem:[%s353 + $0xc] sm:$0xf] %v4196
          %4213 = vst [vmem:[%s353 + $0x10] sm:$0xf] %v4197
          %4214 = vst [vmem:[%s353 + $0x14] sm:$0xf] %v4198
          %4215 = vst [vmem:[%s353 + $0x18] sm:$0xf] %v4199
          %4216 = vst [vmem:[%s353 + $0x1c] sm:$0xf] %v4200
          %4217 = vst [vmem:[%s353 + $0x20] sm:$0xf] %v4201
          %4218 = vst [vmem:[%s353 + $0x24] sm:$0xf] %v4202
          %4219 = vst [vmem:[%s353 + $0x28] sm:$0xf] %v4203
          %4220 = vst [vmem:[%s353 + $0x2c] sm:$0xf] %v4204
          %4221 = vst [vmem:[%s353 + $0x30] sm:$0xf] %v4205
          %4222 = vst [vmem:[%s353 + $0x34] sm:$0xf] %v4206
          %4223 = vst [vmem:[%s353 + $0x38] sm:$0xf] %v4207
          %4224 = vst [vmem:[%s353 + $0x3c] sm:$0xf] %v4208
        $region86: #{gat_forward.7} parent=73 // pred_fallthru
          _
        %s4225 = smul.u32 16, %s20
        %p4226 = scmp.lt.s32.totalorder %s4225, 31
        %s4227 = scalar_select %p4226, %s4225, 31
        %s4228 = smul.addr %s4227, 4
        %s4229 = scalar_lea.vmem %s5, %s4228
        // Predicated region
        $region87: #{gat_forward.7} parent=73 // pred_check
          %p4230 = pneg %p173
        $region88: #{gat_forward.7} parent=73 // pred_check_branch
          %4232 = sbr.rel (%p4230) target = $region90
        $region89: #{gat_forward.7} parent=73 // pred_region
          %s4233 = smul.u32 16, %s20
        $region90: #{gat_forward.7} parent=73 // pred_fallthru
          _
      $region74: #{gat_forward.7} parent=5 // pred_fallthru
        _
      %p4234 = scmp.le.s32.totalorder 2, %s11
      // Predicated region
      $region91: #{gat_forward.7} parent=5 // pred_check
        %p4235 = pneg %p4234
      $region92: #{gat_forward.7} parent=5 // pred_check_branch
        %4237 = sbr.rel (%p4235) target = $region94
      $region93: #{gat_forward.7} parent=5 // pred_region
        %s4238 = ssub.s32 %s11, 2
        // Predicated region
        $region95: #{gat_forward.7} parent=93 // pred_check
          %p4239 = pneg %p179
        $region96: #{gat_forward.7} parent=93 // pred_check_branch
          %4241 = sbr.rel (%p4239) target = $region98
        $region97: #{gat_forward.7} parent=93 // pred_region
          %s4242 = smul.u32 16, %s22
          %p4243 = scmp.lt.s32.totalorder %s4242, 31
          %s4244 = scalar_select %p4243, %s4242, 31
          %s4245 = smul.addr %s4244, 4
          %s4246 = scalar_lea.vmem %s5, %s4245
        $region98: #{gat_forward.7} parent=93 // pred_fallthru
          _
      $region94: #{gat_forward.7} parent=5 // pred_fallthru
        _
    $region6: #{gat_forward.7} parent=1 // loop_footer
      %s15 = sadd.s32 1, %s11
    $region7: #{gat_forward.7} parent=1 // loop_footer_branch
      %10 = sbr.rel target = $region3
    $region8: #{gat_forward.7} parent=1 // loop_exit
      _

// kernel: gat_forward.11
$region0: #{gat_forward.11}
  #allocation0 [shape = 'u32[]', space=smem, size = 0x4, offset = 0x4, fixed_abs, tag = 'smem constant byte address 0x4 - core index']
  #allocation1 [shape = 'u32[72,128]{1,0:T(1,128)}', space=vmem, size = 0x9000, scoped, tag = 'internal scratch']
  #allocation2 [shape = 'f32[128,1]{1,0:T(8,128)}', space=vmem, size = 0x10000, scoped, tag = 'scratch operand']
  #allocation3 [shape = 'f32[128,9]{1,0:T(8,128)}', space=vmem, size = 0x10000, scoped, tag = 'scratch operand']
  %s0 = inlined_call_operand.vmem [shape: bf16[256,128], index: 0, kind: input, shape index: {}]
  %s1 = inlined_call_operand.vmem [shape: f32[1,256], index: 1, kind: input, shape index: {}]
  %s2 = inlined_call_operand.vmem [shape: f32[256,1], index: 2, kind: input, shape index: {}]
  %s3 = inlined_call_operand.vmem [shape: f32[1,128], index: 3, kind: input, shape index: {}]
  %s4 = inlined_call_operand.vmem [shape: s8[256,256], index: 4, kind: input, shape index: {}]
  %s5 = inlined_call_operand.vmem [shape: f32[256,128], index: 5, kind: output, shape index: {}]
  %s6 = sld [smem:[#allocation0]]
  $region99: #{gat_forward.11} parent=0
    _
  %s8 = ssub.s32 1, %s6
  %s9 = scalar_select 0, %s8, %s6
  $region1: #{gat_forward.11} parent=0
    #allocation4 [shape = 'u8[32768]{0}', space=vmem, size = 0x8000, scoped, tag = 'input window, operand 4']
    loop: start=0, step=1, limit=6
    $region2: #{gat_forward.11} parent=1 // loop_pre_header
      _
    $region3: #{gat_forward.11} parent=1 // loop_header
      %s11 = sphi 0, %s15
      %p12 = scmp.ge.s32.totalorder %s11, 6
      %s18 = sphi 0, %s30
      %s19 = sphi 0, %s26
      %s20 = sphi 0, %s18
      %s21 = sphi 0, %s19
      %s22 = sphi 0, %s20
      %s23 = sphi 0, %s21
      %s33 = sphi 0, %s35
      %s36 = sphi 0, %s33
      %s37 = sphi 0, %s36
      %s53 = sphi 0, %s37
      %s59 = sphi 0, %s61
      %s62 = sphi 0, %s59
      %s63 = sphi 0, %s62
      %s79 = sphi 0, %s63
      %s85 = sphi 0, %s87
      %s88 = sphi 0, %s85
      %s89 = sphi 0, %s88
      %s105 = sphi 0, %s89
      %s109 = sphi 0, %s109
      %s111 = sphi 0, %s109
      %s112 = sphi 0, %s111
      %s126 = sphi 0, %s112
      %s134 = sphi 0, %s136
      %s137 = sphi 0, %s134
      %s138 = sphi 0, %s137
      %s154 = sphi 0, %s138
      %s160 = sphi 0, %s162
      %s163 = sphi 0, %s160
      %s164 = sphi 0, %s163
      %s180 = sphi 0, %s164
    $region4: #{gat_forward.11} parent=1 // loop_header_branch
      %14 = sbr.rel (%p12) target = $region8
    $region5: #{gat_forward.11} parent=1 // loop_body
      %s16 = ssub.s32 %s11, 1
      %s17 = ssub.s32 %s11, 2
      %s24 = sadd.s32 1, %s19
      %p25 = scmp.ge.s32.totalorder %s24, 2
      %s26 = scalar_select %p25, 0, %s24
      %s27 = sadd.s32 1, %s18
      %s28 = scalar_select %p25, %s27, %s18
      %p29 = scmp.ge.s32.totalorder %s28, 2
      %s30 = scalar_select %p29, 0, %s28
      %s31 = ssub.s32 %s19, %s26
      %p32 = scmp.eq.s32.totalorder %s31, 0
      %s34 = sadd.s32 %s33, 1
      %s35 = scalar_select %p32, %s33, %s34
      %p38 = pneg %p32
      %p39 = scmp.eq.s32.totalorder %s11, 3
      %p40 = por %p38, %p39
      %p41 = scmp.ne.s32.totalorder %s33, %s36
      %p42 = scmp.eq.s32.totalorder %s11, 0
      %p43 = por %p41, %p42
      %p44 = scmp.ne.s32.totalorder %s33, %s36
      %p45 = scmp.eq.s32.totalorder %s16, 3
      %p46 = por %p44, %p45
      %p47 = scmp.ne.s32.totalorder %s36, %s37
      %p48 = scmp.eq.s32.totalorder %s16, 0
      %p49 = por %p47, %p48
      %p50 = scmp.ne.s32.totalorder %s36, %s37
      %p51 = scmp.eq.s32.totalorder %s17, 3
      %p52 = por %p50, %p51
      %p54 = scmp.ne.s32.totalorder %s37, %s53
      %p55 = scmp.eq.s32.totalorder %s17, 0
      %p56 = por %p54, %p55
      %s57 = ssub.s32 %s19, %s26
      %p58 = scmp.eq.s32.totalorder %s57, 0
      %s60 = sadd.s32 %s59, 1
      %s61 = scalar_select %p58, %s59, %s60
      %p64 = pneg %p58
      %p65 = scmp.eq.s32.totalorder %s11, 3
      %p66 = por %p64, %p65
      %p67 = scmp.ne.s32.totalorder %s59, %s62
      %p68 = scmp.eq.s32.totalorder %s11, 0
      %p69 = por %p67, %p68
      %p70 = scmp.ne.s32.totalorder %s59, %s62
      %p71 = scmp.eq.s32.totalorder %s16, 3
      %p72 = por %p70, %p71
      %p73 = scmp.ne.s32.totalorder %s62, %s63
      %p74 = scmp.eq.s32.totalorder %s16, 0
      %p75 = por %p73, %p74
      %p76 = scmp.ne.s32.totalorder %s62, %s63
      %p77 = scmp.eq.s32.totalorder %s17, 3
      %p78 = por %p76, %p77
      %p80 = scmp.ne.s32.totalorder %s63, %s79
      %p81 = scmp.eq.s32.totalorder %s17, 0
      %p82 = por %p80, %p81
      %s83 = ssub.s32 %s18, %s30
      %p84 = scmp.eq.s32.totalorder %s83, 0
      %s86 = sadd.s32 %s85, 1
      %s87 = scalar_select %p84, %s85, %s86
      %p90 = pneg %p84
      %p91 = scmp.eq.s32.totalorder %s11, 3
      %p92 = por %p90, %p91
      %p93 = scmp.ne.s32.totalorder %s85, %s88
      %p94 = scmp.eq.s32.totalorder %s11, 0
      %p95 = por %p93, %p94
      %p96 = scmp.ne.s32.totalorder %s85, %s88
      %p97 = scmp.eq.s32.totalorder %s16, 3
      %p98 = por %p96, %p97
      %p99 = scmp.ne.s32.totalorder %s88, %s89
      %p100 = scmp.eq.s32.totalorder %s16, 0
      %p101 = por %p99, %p100
      %p102 = scmp.ne.s32.totalorder %s88, %s89
      %p103 = scmp.eq.s32.totalorder %s17, 3
      %p104 = por %p102, %p103
      %p106 = scmp.ne.s32.totalorder %s89, %s105
      %p107 = scmp.eq.s32.totalorder %s17, 0
      %p108 = por %p106, %p107
      %s110 = sadd.s32 %s109, 1
      %p113 = scmp.eq.s32.totalorder %s11, 3
      %p114 = scmp.ne.s32.totalorder %s109, %s111
      %p115 = scmp.eq.s32.totalorder %s11, 0
      %p116 = por %p114, %p115
      %p117 = scmp.ne.s32.totalorder %s109, %s111
      %p118 = scmp.eq.s32.totalorder %s16, 3
      %p119 = por %p117, %p118
      %p120 = scmp.ne.s32.totalorder %s111, %s112
      %p121 = scmp.eq.s32.totalorder %s16, 0
      %p122 = por %p120, %p121
      %p123 = scmp.ne.s32.totalorder %s111, %s112
      %p124 = scmp.eq.s32.totalorder %s17, 3
      %p125 = por %p123, %p124
      %p127 = scmp.ne.s32.totalorder %s112, %s126
      %p128 = scmp.eq.s32.totalorder %s17, 0
      %p129 = por %p127, %p128
      %s130 = ssub.s32 %s18, %s30
      %s131 = ssub.s32 %s19, %s26
      %s132 = sor.u32 %s130, %s131
      %p133 = scmp.eq.s32.totalorder %s132, 0
      %s135 = sadd.s32 %s134, 1
      %s136 = scalar_select %p133, %s134, %s135
      %p139 = pneg %p133
      %p140 = scmp.eq.s32.totalorder %s11, 3
      %p141 = por %p139, %p140
      %p142 = scmp.ne.s32.totalorder %s134, %s137
      %p143 = scmp.eq.s32.totalorder %s11, 0
      %p144 = por %p142, %p143
      %p145 = scmp.ne.s32.totalorder %s134, %s137
      %p146 = scmp.eq.s32.totalorder %s16, 3
      %p147 = por %p145, %p146
      %p148 = scmp.ne.s32.totalorder %s137, %s138
      %p149 = scmp.eq.s32.totalorder %s16, 0
      %p150 = por %p148, %p149
      %p151 = scmp.ne.s32.totalorder %s137, %s138
      %p152 = scmp.eq.s32.totalorder %s17, 3
      %p153 = por %p151, %p152
      %p155 = scmp.ne.s32.totalorder %s138, %s154
      %p156 = scmp.eq.s32.totalorder %s17, 0
      %p157 = por %p155, %p156
      %s158 = ssub.s32 %s18, %s30
      %p159 = scmp.eq.s32.totalorder %s158, 0
      %s161 = sadd.s32 %s160, 1
      %s162 = scalar_select %p159, %s160, %s161
      %p165 = pneg %p159
      %p166 = scmp.eq.s32.totalorder %s11, 3
      %p167 = por %p165, %p166
      %p168 = scmp.ne.s32.totalorder %s160, %s163
      %p169 = scmp.eq.s32.totalorder %s11, 0
      %p170 = por %p168, %p169
      %p171 = scmp.ne.s32.totalorder %s160, %s163
      %p172 = scmp.eq.s32.totalorder %s16, 3
      %p173 = por %p171, %p172
      %p174 = scmp.ne.s32.totalorder %s163, %s164
      %p175 = scmp.eq.s32.totalorder %s16, 0
      %p176 = por %p174, %p175
      %p177 = scmp.ne.s32.totalorder %s163, %s164
      %p178 = scmp.eq.s32.totalorder %s17, 3
      %p179 = por %p177, %p178
      %p181 = scmp.ne.s32.totalorder %s164, %s180
      %p182 = scmp.eq.s32.totalorder %s17, 0
      %p183 = por %p181, %p182
      %p184 = scmp.le.s32.totalorder 1, %s11
      %p185 = scmp.lt.s32.totalorder %s11, 5
      %p186 = pnand %p184, %p185
      %p187 = pneg %p186
      // Predicated region
      $region9: #{gat_forward.11} parent=5 // pred_check
        _
      $region10: #{gat_forward.11} parent=5 // pred_check_branch
        %189 = sbr.rel (%p186) target = $region12
      $region11: #{gat_forward.11} parent=5 // pred_region
        %s190 = ssub.s32 %s11, 1
        // Predicated region
        $region13: #{gat_forward.11} parent=11 // pred_check
          %p191 = pneg %p122
        $region14: #{gat_forward.11} parent=11 // pred_check_branch
          %193 = sbr.rel (%p191) target = $region16
        $region15: #{gat_forward.11} parent=11 // pred_region
          _
        $region16: #{gat_forward.11} parent=11 // pred_fallthru
          _
      $region12: #{gat_forward.11} parent=5 // pred_fallthru
        _
      %p194 = scmp.lt.s32.totalorder %s11, 4
      // Predicated region
      $region17: #{gat_forward.11} parent=5 // pred_check
        %p195 = pneg %p194
      $region18: #{gat_forward.11} parent=5 // pred_check_branch
        %197 = sbr.rel (%p195) target = $region20
      $region19: #{gat_forward.11} parent=5 // pred_region
        // Predicated region
        $region21: #{gat_forward.11} parent=19 // pred_check
          %p198 = pneg %p43
        $region22: #{gat_forward.11} parent=19 // pred_check_branch
          %200 = sbr.rel (%p198) target = $region24
        $region23: #{gat_forward.11} parent=19 // pred_region
          %s201 = smul.u32 16, %s19
          %p202 = scmp.lt.s32.totalorder %s201, 31
          %s203 = scalar_select %p202, %s201, 31
          %s204 = smul.addr %s203, 4
          %s205 = scalar_lea.vmem %s0, %s204
          %s206 = smul.u32 16, %s19
        $region24: #{gat_forward.11} parent=19 // pred_fallthru
          _
        // Predicated region
        $region25: #{gat_forward.11} parent=19 // pred_check
          %p207 = pneg %p69
        $region26: #{gat_forward.11} parent=19 // pred_check_branch
          %209 = sbr.rel (%p207) target = $region28
        $region27: #{gat_forward.11} parent=19 // pred_region
          %p210 = scmp.lt.s32.totalorder %s19, 1
          %s211 = scalar_select %p210, %s19, 1
          %s212 = scalar_lea.vmem %s1, %s211
        $region28: #{gat_forward.11} parent=19 // pred_fallthru
          _
        // Predicated region
        $region29: #{gat_forward.11} parent=19 // pred_check
          %p213 = pneg %p95
        $region30: #{gat_forward.11} parent=19 // pred_check_branch
          %215 = sbr.rel (%p213) target = $region32
        $region31: #{gat_forward.11} parent=19 // pred_region
          %s216 = smul.u32 16, %s18
          %p217 = scmp.lt.s32.totalorder %s216, 31
          %s218 = scalar_select %p217, %s216, 31
          %s219 = smul.addr %s218, 8
          %s220 = scalar_lea.vmem %s2, %s219
          %s221 = smul.u32 16, %s18
        $region32: #{gat_forward.11} parent=19 // pred_fallthru
          _
        // Predicated region
        $region33: #{gat_forward.11} parent=19 // pred_check
          %p222 = pneg %p144
        $region34: #{gat_forward.11} parent=19 // pred_check_branch
          %224 = sbr.rel (%p222) target = $region36
        $region35: #{gat_forward.11} parent=19 // pred_region
          %s225 = sand.u32 %s134, 1
          %s226 = sand.u32 %s134, 1
          %s227 = smul.addr %s226, 32
          %s228 = scalar_lea.vmem [#allocation4], %s227
          %s229 = smul.u32 4, %s18
          %s230 = smul.addr %s229, 2
          %s231 = sadd.s32 %s19, %s230
          %s232 = smul.addr %s231, 8
          %s233 = scalar_lea.vmem %s4, %s232
          // Predicated region
          $region37: #{gat_forward.11} parent=35 // pred_check
            _
          $region38: #{gat_forward.11} parent=35 // pred_check_branch
            %235 = sbr.rel (0) target = $region40
          $region39: #{gat_forward.11} parent=35 // pred_region
            // Predicated region
            $region41: #{gat_forward.11} parent=39 // pred_check
              _
            $region42: #{gat_forward.11} parent=39 // pred_check_branch
              %237 = sbr.rel (0) target = $region44
            $region43: #{gat_forward.11} parent=39 // pred_region
              // Predicated region
              $region56: #{gat_forward.11} parent=43 // pred_check
                _
              $region57: #{gat_forward.11} parent=43 // pred_check_branch
                %259 = sbr.rel (0) target = $region59
              $region58: #{gat_forward.11} parent=43 // pred_region
                loop: start=0, step=1, limit=1
                $region60: #{gat_forward.11} parent=58 // loop_pre_header
                  _
                $region61: #{gat_forward.11} parent=58 // loop_header
                  %s261 = sphi 0, %s265
                  %p262 = scmp.ge.s32.totalorder %s261, 1
                  %s266 = sphi %s233, %s233
                  %s267 = sphi %s228, %s228
                $region62: #{gat_forward.11} parent=58 // loop_header_branch
                  %264 = sbr.rel (%p262) target = $region66
                $region63: #{gat_forward.11} parent=58 // loop_body
                  %v268 = vld [vmem:[%s266] sm:$0xff]
                  %269 = vst [vmem:[%s267] sm:$0xff] %v268
                  %v270 = vld [vmem:[%s266 + $0x10] sm:$0xff]
                  %271 = vst [vmem:[%s267 + $0x8] sm:$0xff] %v270
                  %v272 = vld [vmem:[%s266 + $0x20] sm:$0xff]
                  %273 = vst [vmem:[%s267 + $0x10] sm:$0xff] %v272
                  %v274 = vld [vmem:[%s266 + $0x30] sm:$0xff]
                  %275 = vst [vmem:[%s267 + $0x18] sm:$0xff] %v274
                $region64: #{gat_forward.11} parent=58 // loop_footer
                  %s265 = sadd.s32 1, %s261
                $region65: #{gat_forward.11} parent=58 // loop_footer_branch
                  %260 = sbr.rel target = $region61
                $region66: #{gat_forward.11} parent=58 // loop_exit
                  _
              $region59: #{gat_forward.11} parent=43 // pred_fallthru
                _
              // Predicated region
              $region67: #{gat_forward.11} parent=43 // pred_check
                _
              $region68: #{gat_forward.11} parent=43 // pred_check_branch
                %277 = sbr.rel target = $region70
              $region69: #{gat_forward.11} parent=43 // pred_region
                _
              $region70: #{gat_forward.11} parent=43 // pred_fallthru
                _
            $region44: #{gat_forward.11} parent=39 // pred_fallthru
              _
            // Predicated region
            $region45: #{gat_forward.11} parent=39 // pred_check
              _
            $region46: #{gat_forward.11} parent=39 // pred_check_branch
              %239 = sbr.rel target = $region48
            $region47: #{gat_forward.11} parent=39 // pred_region
              %s241 = ssub.s32 256, 1
              loop: start=0, step=1, limit=1
              $region49: #{gat_forward.11} parent=47 // loop_pre_header
                _
              $region50: #{gat_forward.11} parent=47 // loop_header
                %s243 = sphi 0, %s247
                %p244 = scmp.ge.s32.totalorder %s243, 1
                %s248 = sphi %s233, %s233
                %s249 = sphi %s228, %s228
              $region51: #{gat_forward.11} parent=47 // loop_header_branch
                %246 = sbr.rel (%p244) target = $region55
              $region52: #{gat_forward.11} parent=47 // loop_body
                %v250 = vld [vmem:[%s248] sm:%s241]
                %251 = vst [vmem:[%s249] sm:%s241] %v250
                %v252 = vld [vmem:[%s248 + $0x10] sm:%s241]
                %253 = vst [vmem:[%s249 + $0x8] sm:%s241] %v252
                %v254 = vld [vmem:[%s248 + $0x20] sm:%s241]
                %255 = vst [vmem:[%s249 + $0x10] sm:%s241] %v254
                %v256 = vld [vmem:[%s248 + $0x30] sm:%s241]
                %257 = vst [vmem:[%s249 + $0x18] sm:%s241] %v256
              $region53: #{gat_forward.11} parent=47 // loop_footer
                %s247 = sadd.s32 1, %s243
              $region54: #{gat_forward.11} parent=47 // loop_footer_branch
                %242 = sbr.rel target = $region50
              $region55: #{gat_forward.11} parent=47 // loop_exit
                _
            $region48: #{gat_forward.11} parent=39 // pred_fallthru
              _
          $region40: #{gat_forward.11} parent=35 // pred_fallthru
            _
          %278 = vnop
        $region36: #{gat_forward.11} parent=19 // pred_fallthru
          _
      $region20: #{gat_forward.11} parent=5 // pred_fallthru
        _
      %p279 = scmp.le.s32.totalorder 1, %s11
      %p280 = scmp.lt.s32.totalorder %s11, 5
      %p281 = pnand %p279, %p280
      %p282 = pneg %p281
      // Predicated region
      $region71: #{gat_forward.11} parent=5 // pred_check
        _
      $region72: #{gat_forward.11} parent=5 // pred_check_branch
        %284 = sbr.rel (%p281) target = $region74
      $region73: #{gat_forward.11} parent=5 // pred_region
        %s285 = ssub.s32 %s11, 1
        %s286 = sand.u32 %s137, 1
        %s287 = sand.u32 %s137, 1
        %s288 = smul.addr %s287, 32
        %s289 = scalar_lea.vmem [#allocation4], %s288
        // Predicated region
        $region75: #{gat_forward.11} parent=73 // pred_check
          %p290 = pneg %p150
        $region76: #{gat_forward.11} parent=73 // pred_check_branch
          %292 = sbr.rel (%p290) target = $region78
        $region77: #{gat_forward.11} parent=73 // pred_region
          _
        $region78: #{gat_forward.11} parent=73 // pred_fallthru
          _
        %s293 = smul.u32 16, %s21
        %p294 = scmp.lt.s32.totalorder %s293, 31
        %s295 = scalar_select %p294, %s293, 31
        %s296 = smul.addr %s295, 4
        %s297 = scalar_lea.vmem %s0, %s296
        %p298 = pneg %p49
        %p299 = pneg %p46
        %p300 = scmp.lt.s32.totalorder %s21, 1
        %s301 = scalar_select %p300, %s21, 1
        %s302 = scalar_lea.vmem %s1, %s301
        %p303 = pneg %p75
        %p304 = pneg %p72
        %s305 = smul.u32 16, %s20
        %p306 = scmp.lt.s32.totalorder %s305, 31
        %s307 = scalar_select %p306, %s305, 31
        %s308 = smul.addr %s307, 8
        %s309 = scalar_lea.vmem %s2, %s308
        %p310 = pneg %p101
        %p311 = pneg %p98
        %p312 = pneg %p122
        %p313 = pneg %p119
        %s314 = sand.u32 %s137, 1
        %s315 = sand.u32 %s137, 1
        %s316 = smul.addr %s315, 32
        %s317 = scalar_lea.vmem [#allocation4], %s316
        %p318 = pneg %p150
        %p319 = pneg %p147
        %p320 = pneg %p176
        %p321 = pneg %p173
        %s322 = smul.u32 16, %s20
        %p323 = scmp.lt.s32.totalorder %s322, 31
        %s324 = scalar_select %p323, %s322, 31
        %s325 = smul.addr %s324, 8
        %s326 = scalar_lea.vmem %s5, %s325
        %s327 = smul.u32 16, %s21
        %p328 = scmp.lt.s32.totalorder %s327, 31
        %s329 = scalar_select %p328, %s327, 31
        %s330 = smul.addr %s329, 4
        %s331 = scalar_lea.vmem %s0, %s330
        %s332 = smul.u32 16, %s21
        %p333 = scmp.lt.s32.totalorder %s21, 1
        %s334 = scalar_select %p333, %s21, 1
        %s335 = scalar_lea.vmem %s1, %s334
        %s336 = smul.u32 16, %s20
        %p337 = scmp.lt.s32.totalorder %s336, 31
        %s338 = scalar_select %p337, %s336, 31
        %s339 = smul.addr %s338, 8
        %s340 = scalar_lea.vmem %s2, %s339
        %s341 = smul.u32 16, %s20
        %s342 = smul.u32 4, %s20
        %s343 = smul.u32 16, %s20
        %p344 = scmp.lt.s32.totalorder %s343, 31
        %s345 = scalar_select %p344, %s343, 31
        %s346 = smul.addr %s345, 8
        %s347 = scalar_lea.vmem %s5, %s346
        %s348 = smul.u32 16, %s20
        %p349 = scmp.eq.s32.totalorder %s21, 0
        // Predicated region
        $region79: #{gat_forward.11} parent=73 // pred_check
          %p350 = pneg %p349
        $region80: #{gat_forward.11} parent=73 // pred_check_branch
          %352 = sbr.rel (%p350) target = $region82
        $region81: #{gat_forward.11} parent=73 // pred_region
          %vm353 = vcmask 7168
          %354 = vst.msk [vmem:[#allocation2] sm:$0xff] %vm353, -1e+30
          %355 = vst.msk [vmem:[#allocation2 + $0x8] sm:$0xff] %vm353, -1e+30
          %356 = vst.msk [vmem:[#allocation2 + $0x10] sm:$0xff] %vm353, -1e+30
          %357 = vst.msk [vmem:[#allocation2 + $0x18] sm:$0xff] %vm353, -1e+30
          %358 = vst.msk [vmem:[#allocation2 + $0x20] sm:$0xff] %vm353, -1e+30
          %359 = vst.msk [vmem:[#allocation2 + $0x28] sm:$0xff] %vm353, -1e+30
          %360 = vst.msk [vmem:[#allocation2 + $0x30] sm:$0xff] %vm353, -1e+30
          %361 = vst.msk [vmem:[#allocation2 + $0x38] sm:$0xff] %vm353, -1e+30
          %362 = vst.msk [vmem:[#allocation2 + $0x40] sm:$0xff] %vm353, -1e+30
          %363 = vst.msk [vmem:[#allocation2 + $0x48] sm:$0xff] %vm353, -1e+30
          %364 = vst.msk [vmem:[#allocation2 + $0x50] sm:$0xff] %vm353, -1e+30
          %365 = vst.msk [vmem:[#allocation2 + $0x58] sm:$0xff] %vm353, -1e+30
          %366 = vst.msk [vmem:[#allocation2 + $0x60] sm:$0xff] %vm353, -1e+30
          %367 = vst.msk [vmem:[#allocation2 + $0x68] sm:$0xff] %vm353, -1e+30
          %368 = vst.msk [vmem:[#allocation2 + $0x70] sm:$0xff] %vm353, -1e+30
          %369 = vst.msk [vmem:[#allocation2 + $0x78] sm:$0xff] %vm353, -1e+30
          %vm370 = vcmask 72704
          %371 = vst.msk [vmem:[#allocation3] sm:$0xff] %vm370, 0.0
          %372 = vst.msk [vmem:[#allocation3 + $0x8] sm:$0xff] %vm370, 0.0
          %373 = vst.msk [vmem:[#allocation3 + $0x10] sm:$0xff] %vm370, 0.0
          %374 = vst.msk [vmem:[#allocation3 + $0x18] sm:$0xff] %vm370, 0.0
          %375 = vst.msk [vmem:[#allocation3 + $0x20] sm:$0xff] %vm370, 0.0
          %376 = vst.msk [vmem:[#allocation3 + $0x28] sm:$0xff] %vm370, 0.0
          %377 = vst.msk [vmem:[#allocation3 + $0x30] sm:$0xff] %vm370, 0.0
          %378 = vst.msk [vmem:[#allocation3 + $0x38] sm:$0xff] %vm370, 0.0
          %379 = vst.msk [vmem:[#allocation3 + $0x40] sm:$0xff] %vm370, 0.0
          %380 = vst.msk [vmem:[#allocation3 + $0x48] sm:$0xff] %vm370, 0.0
          %381 = vst.msk [vmem:[#allocation3 + $0x50] sm:$0xff] %vm370, 0.0
          %382 = vst.msk [vmem:[#allocation3 + $0x58] sm:$0xff] %vm370, 0.0
          %383 = vst.msk [vmem:[#allocation3 + $0x60] sm:$0xff] %vm370, 0.0
          %384 = vst.msk [vmem:[#allocation3 + $0x68] sm:$0xff] %vm370, 0.0
          %385 = vst.msk [vmem:[#allocation3 + $0x70] sm:$0xff] %vm370, 0.0
          %386 = vst.msk [vmem:[#allocation3 + $0x78] sm:$0xff] %vm370, 0.0
        $region82: #{gat_forward.11} parent=73 // pred_fallthru
          _
        %v387 = vld [vmem:[%s331] sm:$0xf]
        %v388 = vld [vmem:[%s331 + $0x4] sm:$0xf]
        %v389 = vld [vmem:[%s331 + $0x8] sm:$0xf]
        %v390 = vld [vmem:[%s331 + $0xc] sm:$0xf]
        %v391 = vld [vmem:[%s331 + $0x10] sm:$0xf]
        %v392 = vld [vmem:[%s331 + $0x14] sm:$0xf]
        %v393 = vld [vmem:[%s331 + $0x18] sm:$0xf]
        %v394 = vld [vmem:[%s331 + $0x1c] sm:$0xf]
        %v395 = vld [vmem:[%s331 + $0x20] sm:$0xf]
        %v396 = vld [vmem:[%s331 + $0x24] sm:$0xf]
        %v397 = vld [vmem:[%s331 + $0x28] sm:$0xf]
        %v398 = vld [vmem:[%s331 + $0x2c] sm:$0xf]
        %v399 = vld [vmem:[%s331 + $0x30] sm:$0xf]
        %v400 = vld [vmem:[%s331 + $0x34] sm:$0xf]
        %v401 = vld [vmem:[%s331 + $0x38] sm:$0xf]
        %v402 = vld [vmem:[%s331 + $0x3c] sm:$0xf]
        %v403 = vld [vmem:[%s335] sm:$0x1]
        %v404 = vld [vmem:[%s340] sm:$0xff]
        %v405 = vld [vmem:[%s340 + $0x8] sm:$0xff]
        %v406 = vld [vmem:[%s340 + $0x10] sm:$0xff]
        %v407 = vld [vmem:[%s340 + $0x18] sm:$0xff]
        %v408 = vld [vmem:[%s340 + $0x20] sm:$0xff]
        %v409 = vld [vmem:[%s340 + $0x28] sm:$0xff]
        %v410 = vld [vmem:[%s340 + $0x30] sm:$0xff]
        %v411 = vld [vmem:[%s340 + $0x38] sm:$0xff]
        %v412 = vld [vmem:[%s340 + $0x40] sm:$0xff]
        %v413 = vld [vmem:[%s340 + $0x48] sm:$0xff]
        %v414 = vld [vmem:[%s340 + $0x50] sm:$0xff]
        %v415 = vld [vmem:[%s340 + $0x58] sm:$0xff]
        %v416 = vld [vmem:[%s340 + $0x60] sm:$0xff]
        %v417 = vld [vmem:[%s340 + $0x68] sm:$0xff]
        %v418 = vld [vmem:[%s340 + $0x70] sm:$0xff]
        %v419 = vld [vmem:[%s340 + $0x78] sm:$0xff]
        %v420 = vld [vmem:[%s289] sm:$0xff]
        %v421 = vld [vmem:[%s289 + $0x8] sm:$0xff]
        %v422 = vld [vmem:[%s289 + $0x10] sm:$0xff]
        %v423 = vld [vmem:[%s289 + $0x18] sm:$0xff]
        %v424 = vunpack.c.0.s8 %v420
        %v425 = vunpack.c.1.s8 %v420
        %v426 = vunpack.c.2.s8 %v420
        %v427 = vunpack.c.3.s8 %v420
        %v428 = vunpack.c.0.s8 %v421
        %v429 = vunpack.c.1.s8 %v421
        %v430 = vunpack.c.2.s8 %v421
        %v431 = vunpack.c.3.s8 %v421
        %v432 = vunpack.c.0.s8 %v422
        %v433 = vunpack.c.1.s8 %v422
        %v434 = vunpack.c.2.s8 %v422
        %v435 = vunpack.c.3.s8 %v422
        %v436 = vunpack.c.0.s8 %v423
        %v437 = vunpack.c.1.s8 %v423
        %v438 = vunpack.c.2.s8 %v423
        %v439 = vunpack.c.3.s8 %v423
        %v440 = vcvt.s32.f32 %v424
        %v441 = vcvt.s32.f32 %v425
        %v442 = vcvt.s32.f32 %v426
        %v443 = vcvt.s32.f32 %v427
        %v444 = vcvt.s32.f32 %v428
        %v445 = vcvt.s32.f32 %v429
        %v446 = vcvt.s32.f32 %v430
        %v447 = vcvt.s32.f32 %v431
        %v448 = vcvt.s32.f32 %v432
        %v449 = vcvt.s32.f32 %v433
        %v450 = vcvt.s32.f32 %v434
        %v451 = vcvt.s32.f32 %v435
        %v452 = vcvt.s32.f32 %v436
        %v453 = vcvt.s32.f32 %v437
        %v454 = vcvt.s32.f32 %v438
        %v455 = vcvt.s32.f32 %v439
        %v456 = vsub.f32 %v440, 1.0
        %v457 = vsub.f32 %v441, 1.0
        %v458 = vsub.f32 %v442, 1.0
        %v459 = vsub.f32 %v443, 1.0
        %v460 = vsub.f32 %v444, 1.0
        %v461 = vsub.f32 %v445, 1.0
        %v462 = vsub.f32 %v446, 1.0
        %v463 = vsub.f32 %v447, 1.0
        %v464 = vsub.f32 %v448, 1.0
        %v465 = vsub.f32 %v449, 1.0
        %v466 = vsub.f32 %v450, 1.0
        %v467 = vsub.f32 %v451, 1.0
        %v468 = vsub.f32 %v452, 1.0
        %v469 = vsub.f32 %v453, 1.0
        %v470 = vsub.f32 %v454, 1.0
        %v471 = vsub.f32 %v455, 1.0
        %v472 = vmul.f32 %v456, 1e+30
        %v473 = vmul.f32 %v457, 1e+30
        %v474 = vmul.f32 %v458, 1e+30
        %v475 = vmul.f32 %v459, 1e+30
        %v476 = vmul.f32 %v460, 1e+30
        %v477 = vmul.f32 %v461, 1e+30
        %v478 = vmul.f32 %v462, 1e+30
        %v479 = vmul.f32 %v463, 1e+30
        %v480 = vmul.f32 %v464, 1e+30
        %v481 = vmul.f32 %v465, 1e+30
        %v482 = vmul.f32 %v466, 1e+30
        %v483 = vmul.f32 %v467, 1e+30
        %v484 = vmul.f32 %v468, 1e+30
        %v485 = vmul.f32 %v469, 1e+30
        %v486 = vmul.f32 %v470, 1e+30
        %v487 = vmul.f32 %v471, 1e+30
        %v488 = vld [vmem:[#allocation2] sm:$0xff]
        %v489 = vld [vmem:[#allocation2 + $0x8] sm:$0xff]
        %v490 = vld [vmem:[#allocation2 + $0x10] sm:$0xff]
        %v491 = vld [vmem:[#allocation2 + $0x18] sm:$0xff]
        %v492 = vld [vmem:[#allocation2 + $0x20] sm:$0xff]
        %v493 = vld [vmem:[#allocation2 + $0x28] sm:$0xff]
        %v494 = vld [vmem:[#allocation2 + $0x30] sm:$0xff]
        %v495 = vld [vmem:[#allocation2 + $0x38] sm:$0xff]
        %v496 = vld [vmem:[#allocation2 + $0x40] sm:$0xff]
        %v497 = vld [vmem:[#allocation2 + $0x48] sm:$0xff]
        %v498 = vld [vmem:[#allocation2 + $0x50] sm:$0xff]
        %v499 = vld [vmem:[#allocation2 + $0x58] sm:$0xff]
        %v500 = vld [vmem:[#allocation2 + $0x60] sm:$0xff]
        %v501 = vld [vmem:[#allocation2 + $0x68] sm:$0xff]
        %v502 = vld [vmem:[#allocation2 + $0x70] sm:$0xff]
        %v503 = vld [vmem:[#allocation2 + $0x78] sm:$0xff]
        %v504 = vld [vmem:[#allocation3] sm:$0xff]
        %v505 = vld [vmem:[#allocation3 + $0x8] sm:$0xff]
        %v506 = vld [vmem:[#allocation3 + $0x10] sm:$0xff]
        %v507 = vld [vmem:[#allocation3 + $0x18] sm:$0xff]
        %v508 = vld [vmem:[#allocation3 + $0x20] sm:$0xff]
        %v509 = vld [vmem:[#allocation3 + $0x28] sm:$0xff]
        %v510 = vld [vmem:[#allocation3 + $0x30] sm:$0xff]
        %v511 = vld [vmem:[#allocation3 + $0x38] sm:$0xff]
        %v512 = vld [vmem:[#allocation3 + $0x40] sm:$0xff]
        %v513 = vld [vmem:[#allocation3 + $0x48] sm:$0xff]
        %v514 = vld [vmem:[#allocation3 + $0x50] sm:$0xff]
        %v515 = vld [vmem:[#allocation3 + $0x58] sm:$0xff]
        %v516 = vld [vmem:[#allocation3 + $0x60] sm:$0xff]
        %v517 = vld [vmem:[#allocation3 + $0x68] sm:$0xff]
        %v518 = vld [vmem:[#allocation3 + $0x70] sm:$0xff]
        %v519 = vld [vmem:[#allocation3 + $0x78] sm:$0xff]
        %521 = vset.pattern.permute.xlu0 0
        %522 = vperm.xlu0 %521, %v404
        %v523 = vpop.permute.xlu0 %522
        %526 = vset.pattern.permute.xlu0 0
        %527 = vperm.xlu0 %526, %v405
        %v528 = vpop.permute.xlu0 %527
        %531 = vset.pattern.permute.xlu0 0
        %532 = vperm.xlu0 %531, %v406
        %v533 = vpop.permute.xlu0 %532
        %536 = vset.pattern.permute.xlu0 0
        %537 = vperm.xlu0 %536, %v407
        %v538 = vpop.permute.xlu0 %537
        %541 = vset.pattern.permute.xlu0 0
        %542 = vperm.xlu0 %541, %v408
        %v543 = vpop.permute.xlu0 %542
        %546 = vset.pattern.permute.xlu0 0
        %547 = vperm.xlu0 %546, %v409
        %v548 = vpop.permute.xlu0 %547
        %551 = vset.pattern.permute.xlu0 0
        %552 = vperm.xlu0 %551, %v410
        %v553 = vpop.permute.xlu0 %552
        %556 = vset.pattern.permute.xlu0 0
        %557 = vperm.xlu0 %556, %v411
        %v558 = vpop.permute.xlu0 %557
        %561 = vset.pattern.permute.xlu0 0
        %562 = vperm.xlu0 %561, %v412
        %v563 = vpop.permute.xlu0 %562
        %566 = vset.pattern.permute.xlu0 0
        %567 = vperm.xlu0 %566, %v413
        %v568 = vpop.permute.xlu0 %567
        %571 = vset.pattern.permute.xlu0 0
        %572 = vperm.xlu0 %571, %v414
        %v573 = vpop.permute.xlu0 %572
        %576 = vset.pattern.permute.xlu0 0
        %577 = vperm.xlu0 %576, %v415
        %v578 = vpop.permute.xlu0 %577
        %581 = vset.pattern.permute.xlu0 0
        %582 = vperm.xlu0 %581, %v416
        %v583 = vpop.permute.xlu0 %582
        %586 = vset.pattern.permute.xlu0 0
        %587 = vperm.xlu0 %586, %v417
        %v588 = vpop.permute.xlu0 %587
        %591 = vset.pattern.permute.xlu0 0
        %592 = vperm.xlu0 %591, %v418
        %v593 = vpop.permute.xlu0 %592
        %596 = vset.pattern.permute.xlu0 0
        %597 = vperm.xlu0 %596, %v419
        %v598 = vpop.permute.xlu0 %597
        %v601 = vperm.slane %v403, 0
        %v603 = vadd.f32 %v523, %v601
        %v604 = vadd.f32 %v528, %v601
        %v605 = vadd.f32 %v533, %v601
        %v606 = vadd.f32 %v538, %v601
        %v607 = vadd.f32 %v543, %v601
        %v608 = vadd.f32 %v548, %v601
        %v609 = vadd.f32 %v553, %v601
        %v610 = vadd.f32 %v558, %v601
        %v611 = vadd.f32 %v563, %v601
        %v612 = vadd.f32 %v568, %v601
        %v613 = vadd.f32 %v573, %v601
        %v614 = vadd.f32 %v578, %v601
        %v615 = vadd.f32 %v583, %v601
        %v616 = vadd.f32 %v588, %v601
        %v617 = vadd.f32 %v593, %v601
        %v618 = vadd.f32 %v598, %v601
        %vm619 = vcmp.gt.f32.partialorder %v603, 0.0
        %vm620 = vcmp.gt.f32.partialorder %v604, 0.0
        %vm621 = vcmp.gt.f32.partialorder %v605, 0.0
        %vm622 = vcmp.gt.f32.partialorder %v606, 0.0
        %vm623 = vcmp.gt.f32.partialorder %v607, 0.0
        %vm624 = vcmp.gt.f32.partialorder %v608, 0.0
        %vm625 = vcmp.gt.f32.partialorder %v609, 0.0
        %vm626 = vcmp.gt.f32.partialorder %v610, 0.0
        %vm627 = vcmp.gt.f32.partialorder %v611, 0.0
        %vm628 = vcmp.gt.f32.partialorder %v612, 0.0
        %vm629 = vcmp.gt.f32.partialorder %v613, 0.0
        %vm630 = vcmp.gt.f32.partialorder %v614, 0.0
        %vm631 = vcmp.gt.f32.partialorder %v615, 0.0
        %vm632 = vcmp.gt.f32.partialorder %v616, 0.0
        %vm633 = vcmp.gt.f32.partialorder %v617, 0.0
        %vm634 = vcmp.gt.f32.partialorder %v618, 0.0
        %v635 = vmul.f32 %v603, 0.2
        %v636 = vmul.f32 %v604, 0.2
        %v637 = vmul.f32 %v605, 0.2
        %v638 = vmul.f32 %v606, 0.2
        %v639 = vmul.f32 %v607, 0.2
        %v640 = vmul.f32 %v608, 0.2
        %v641 = vmul.f32 %v609, 0.2
        %v642 = vmul.f32 %v610, 0.2
        %v643 = vmul.f32 %v611, 0.2
        %v644 = vmul.f32 %v612, 0.2
        %v645 = vmul.f32 %v613, 0.2
        %v646 = vmul.f32 %v614, 0.2
        %v647 = vmul.f32 %v615, 0.2
        %v648 = vmul.f32 %v616, 0.2
        %v649 = vmul.f32 %v617, 0.2
        %v650 = vmul.f32 %v618, 0.2
        %v651 = vsel %vm619, %v603, %v635
        %v652 = vsel %vm620, %v604, %v636
        %v653 = vsel %vm621, %v605, %v637
        %v654 = vsel %vm622, %v606, %v638
        %v655 = vsel %vm623, %v607, %v639
        %v656 = vsel %vm624, %v608, %v640
        %v657 = vsel %vm625, %v609, %v641
        %v658 = vsel %vm626, %v610, %v642
        %v659 = vsel %vm627, %v611, %v643
        %v660 = vsel %vm628, %v612, %v644
        %v661 = vsel %vm629, %v613, %v645
        %v662 = vsel %vm630, %v614, %v646
        %v663 = vsel %vm631, %v615, %v647
        %v664 = vsel %vm632, %v616, %v648
        %v665 = vsel %vm633, %v617, %v649
        %v666 = vsel %vm634, %v618, %v650
        %v667 = vadd.f32 %v651, %v472
        %v668 = vadd.f32 %v652, %v473
        %v669 = vadd.f32 %v653, %v474
        %v670 = vadd.f32 %v654, %v475
        %v671 = vadd.f32 %v655, %v476
        %v672 = vadd.f32 %v656, %v477
        %v673 = vadd.f32 %v657, %v478
        %v674 = vadd.f32 %v658, %v479
        %v675 = vadd.f32 %v659, %v480
        %v676 = vadd.f32 %v660, %v481
        %v677 = vadd.f32 %v661, %v482
        %v678 = vadd.f32 %v662, %v483
        %v679 = vadd.f32 %v663, %v484
        %v680 = vadd.f32 %v664, %v485
        %v681 = vadd.f32 %v665, %v486
        %v682 = vadd.f32 %v666, %v487
        %683 = vmax.xlane.f32.xlu0 %v667
        %v684 = vpop.xlane.xlu0 %683
        %685 = vmax.xlane.f32.xlu0 %v668
        %v686 = vpop.xlane.xlu0 %685
        %687 = vmax.xlane.f32.xlu0 %v669
        %v688 = vpop.xlane.xlu0 %687
        %689 = vmax.xlane.f32.xlu0 %v670
        %v690 = vpop.xlane.xlu0 %689
        %691 = vmax.xlane.f32.xlu0 %v671
        %v692 = vpop.xlane.xlu0 %691
        %693 = vmax.xlane.f32.xlu0 %v672
        %v694 = vpop.xlane.xlu0 %693
        %695 = vmax.xlane.f32.xlu0 %v673
        %v696 = vpop.xlane.xlu0 %695
        %697 = vmax.xlane.f32.xlu0 %v674
        %v698 = vpop.xlane.xlu0 %697
        %699 = vmax.xlane.f32.xlu0 %v675
        %v700 = vpop.xlane.xlu0 %699
        %701 = vmax.xlane.f32.xlu0 %v676
        %v702 = vpop.xlane.xlu0 %701
        %703 = vmax.xlane.f32.xlu0 %v677
        %v704 = vpop.xlane.xlu0 %703
        %705 = vmax.xlane.f32.xlu0 %v678
        %v706 = vpop.xlane.xlu0 %705
        %707 = vmax.xlane.f32.xlu0 %v679
        %v708 = vpop.xlane.xlu0 %707
        %709 = vmax.xlane.f32.xlu0 %v680
        %v710 = vpop.xlane.xlu0 %709
        %711 = vmax.xlane.f32.xlu0 %v681
        %v712 = vpop.xlane.xlu0 %711
        %713 = vmax.xlane.f32.xlu0 %v682
        %v714 = vpop.xlane.xlu0 %713
        %v715 = vmax.f32 %v488, %v684
        %v716 = vmax.f32 %v489, %v686
        %v717 = vmax.f32 %v490, %v688
        %v718 = vmax.f32 %v491, %v690
        %v719 = vmax.f32 %v492, %v692
        %v720 = vmax.f32 %v493, %v694
        %v721 = vmax.f32 %v494, %v696
        %v722 = vmax.f32 %v495, %v698
        %v723 = vmax.f32 %v496, %v700
        %v724 = vmax.f32 %v497, %v702
        %v725 = vmax.f32 %v498, %v704
        %v726 = vmax.f32 %v499, %v706
        %v727 = vmax.f32 %v500, %v708
        %v728 = vmax.f32 %v501, %v710
        %v729 = vmax.f32 %v502, %v712
        %v730 = vmax.f32 %v503, %v714
        %732 = vset.pattern.permute.xlu0 0
        %733 = vperm.xlu0 %732, %v715
        %v734 = vpop.permute.xlu0 %733
        %737 = vset.pattern.permute.xlu0 0
        %738 = vperm.xlu0 %737, %v716
        %v739 = vpop.permute.xlu0 %738
        %742 = vset.pattern.permute.xlu0 0
        %743 = vperm.xlu0 %742, %v717
        %v744 = vpop.permute.xlu0 %743
        %747 = vset.pattern.permute.xlu0 0
        %748 = vperm.xlu0 %747, %v718
        %v749 = vpop.permute.xlu0 %748
        %752 = vset.pattern.permute.xlu0 0
        %753 = vperm.xlu0 %752, %v719
        %v754 = vpop.permute.xlu0 %753
        %757 = vset.pattern.permute.xlu0 0
        %758 = vperm.xlu0 %757, %v720
        %v759 = vpop.permute.xlu0 %758
        %762 = vset.pattern.permute.xlu0 0
        %763 = vperm.xlu0 %762, %v721
        %v764 = vpop.permute.xlu0 %763
        %767 = vset.pattern.permute.xlu0 0
        %768 = vperm.xlu0 %767, %v722
        %v769 = vpop.permute.xlu0 %768
        %772 = vset.pattern.permute.xlu0 0
        %773 = vperm.xlu0 %772, %v723
        %v774 = vpop.permute.xlu0 %773
        %777 = vset.pattern.permute.xlu0 0
        %778 = vperm.xlu0 %777, %v724
        %v779 = vpop.permute.xlu0 %778
        %782 = vset.pattern.permute.xlu0 0
        %783 = vperm.xlu0 %782, %v725
        %v784 = vpop.permute.xlu0 %783
        %787 = vset.pattern.permute.xlu0 0
        %788 = vperm.xlu0 %787, %v726
        %v789 = vpop.permute.xlu0 %788
        %792 = vset.pattern.permute.xlu0 0
        %793 = vperm.xlu0 %792, %v727
        %v794 = vpop.permute.xlu0 %793
        %797 = vset.pattern.permute.xlu0 0
        %798 = vperm.xlu0 %797, %v728
        %v799 = vpop.permute.xlu0 %798
        %802 = vset.pattern.permute.xlu0 0
        %803 = vperm.xlu0 %802, %v729
        %v804 = vpop.permute.xlu0 %803
        %807 = vset.pattern.permute.xlu0 0
        %808 = vperm.xlu0 %807, %v730
        %v809 = vpop.permute.xlu0 %808
        %v811 = vsub.f32 %v667, %v734
        %v812 = vsub.f32 %v668, %v739
        %v813 = vsub.f32 %v669, %v744
        %v814 = vsub.f32 %v670, %v749
        %v815 = vsub.f32 %v671, %v754
        %v816 = vsub.f32 %v672, %v759
        %v817 = vsub.f32 %v673, %v764
        %v818 = vsub.f32 %v674, %v769
        %v819 = vsub.f32 %v675, %v774
        %v820 = vsub.f32 %v676, %v779
        %v821 = vsub.f32 %v677, %v784
        %v822 = vsub.f32 %v678, %v789
        %v823 = vsub.f32 %v679, %v794
        %v824 = vsub.f32 %v680, %v799
        %v825 = vsub.f32 %v681, %v804
        %v826 = vsub.f32 %v682, %v809
        %v827 = vmul.f32 %v811, 1.442695
        %v828 = vpow.pop %v827
        %v829 = vmul.f32 %v812, 1.442695
        %v830 = vpow.pop %v829
        %v831 = vmul.f32 %v813, 1.442695
        %v832 = vpow.pop %v831
        %v833 = vmul.f32 %v814, 1.442695
        %v834 = vpow.pop %v833
        %v835 = vmul.f32 %v815, 1.442695
        %v836 = vpow.pop %v835
        %v837 = vmul.f32 %v816, 1.442695
        %v838 = vpow.pop %v837
        %v839 = vmul.f32 %v817, 1.442695
        %v840 = vpow.pop %v839
        %v841 = vmul.f32 %v818, 1.442695
        %v842 = vpow.pop %v841
        %v843 = vmul.f32 %v819, 1.442695
        %v844 = vpow.pop %v843
        %v845 = vmul.f32 %v820, 1.442695
        %v846 = vpow.pop %v845
        %v847 = vmul.f32 %v821, 1.442695
        %v848 = vpow.pop %v847
        %v849 = vmul.f32 %v822, 1.442695
        %v850 = vpow.pop %v849
        %v851 = vmul.f32 %v823, 1.442695
        %v852 = vpow.pop %v851
        %v853 = vmul.f32 %v824, 1.442695
        %v854 = vpow.pop %v853
        %v855 = vmul.f32 %v825, 1.442695
        %v856 = vpow.pop %v855
        %v857 = vmul.f32 %v826, 1.442695
        %v858 = vpow.pop %v857
        %v859 = vmul.f32 %v828, %v440
        %v860 = vmul.f32 %v830, %v441
        %v861 = vmul.f32 %v832, %v442
        %v862 = vmul.f32 %v834, %v443
        %v863 = vmul.f32 %v836, %v444
        %v864 = vmul.f32 %v838, %v445
        %v865 = vmul.f32 %v840, %v446
        %v866 = vmul.f32 %v842, %v447
        %v867 = vmul.f32 %v844, %v448
        %v868 = vmul.f32 %v846, %v449
        %v869 = vmul.f32 %v848, %v450
        %v870 = vmul.f32 %v850, %v451
        %v871 = vmul.f32 %v852, %v452
        %v872 = vmul.f32 %v854, %v453
        %v873 = vmul.f32 %v856, %v454
        %v874 = vmul.f32 %v858, %v455
        %v875 = vsub.f32 %v488, %v715
        %v876 = vsub.f32 %v489, %v716
        %v877 = vsub.f32 %v490, %v717
        %v878 = vsub.f32 %v491, %v718
        %v879 = vsub.f32 %v492, %v719
        %v880 = vsub.f32 %v493, %v720
        %v881 = vsub.f32 %v494, %v721
        %v882 = vsub.f32 %v495, %v722
        %v883 = vsub.f32 %v496, %v723
        %v884 = vsub.f32 %v497, %v724
        %v885 = vsub.f32 %v498, %v725
        %v886 = vsub.f32 %v499, %v726
        %v887 = vsub.f32 %v500, %v727
        %v888 = vsub.f32 %v501, %v728
        %v889 = vsub.f32 %v502, %v729
        %v890 = vsub.f32 %v503, %v730
        %v891 = vmul.f32 %v875, 1.442695
        %v892 = vpow.pop %v891
        %v893 = vmul.f32 %v876, 1.442695
        %v894 = vpow.pop %v893
        %v895 = vmul.f32 %v877, 1.442695
        %v896 = vpow.pop %v895
        %v897 = vmul.f32 %v878, 1.442695
        %v898 = vpow.pop %v897
        %v899 = vmul.f32 %v879, 1.442695
        %v900 = vpow.pop %v899
        %v901 = vmul.f32 %v880, 1.442695
        %v902 = vpow.pop %v901
        %v903 = vmul.f32 %v881, 1.442695
        %v904 = vpow.pop %v903
        %v905 = vmul.f32 %v882, 1.442695
        %v906 = vpow.pop %v905
        %v907 = vmul.f32 %v883, 1.442695
        %v908 = vpow.pop %v907
        %v909 = vmul.f32 %v884, 1.442695
        %v910 = vpow.pop %v909
        %v911 = vmul.f32 %v885, 1.442695
        %v912 = vpow.pop %v911
        %v913 = vmul.f32 %v886, 1.442695
        %v914 = vpow.pop %v913
        %v915 = vmul.f32 %v887, 1.442695
        %v916 = vpow.pop %v915
        %v917 = vmul.f32 %v888, 1.442695
        %v918 = vpow.pop %v917
        %v919 = vmul.f32 %v889, 1.442695
        %v920 = vpow.pop %v919
        %v921 = vmul.f32 %v890, 1.442695
        %v922 = vpow.pop %v921
        %v923 = vpack.c.bf16 %v860, %v859
        %v924 = vpack.c.bf16 %v862, %v861
        %v925 = vpack.c.bf16 %v864, %v863
        %v926 = vpack.c.bf16 %v866, %v865
        %v927 = vpack.c.bf16 %v868, %v867
        %v928 = vpack.c.bf16 %v870, %v869
        %v929 = vpack.c.bf16 %v872, %v871
        %v930 = vpack.c.bf16 %v874, %v873
        %v947 = vunpack.c.l.b16 %v387
        %v948 = vunpack.c.l.b16 %v388
        %v949 = vunpack.c.l.b16 %v389
        %v950 = vunpack.c.l.b16 %v390
        %v951 = vunpack.c.l.b16 %v391
        %v952 = vunpack.c.l.b16 %v392
        %v953 = vunpack.c.l.b16 %v393
        %v954 = vunpack.c.l.b16 %v394
        %v955 = vunpack.c.l.b16 %v395
        %v956 = vunpack.c.l.b16 %v396
        %v957 = vunpack.c.l.b16 %v397
        %v958 = vunpack.c.l.b16 %v398
        %v959 = vunpack.c.l.b16 %v399
        %v960 = vunpack.c.l.b16 %v400
        %v961 = vunpack.c.l.b16 %v401
        %v962 = vunpack.c.l.b16 %v402
        %v963 = vpack.c.b16 %v948, %v947
        %v964 = vpack.c.b16 %v950, %v949
        %v965 = vpack.c.b16 %v952, %v951
        %v966 = vpack.c.b16 %v954, %v953
        %v967 = vpack.c.b16 %v956, %v955
        %v968 = vpack.c.b16 %v958, %v957
        %v969 = vpack.c.b16 %v960, %v959
        %v970 = vpack.c.b16 %v962, %v961
        %979 = vmatpush.bf16.msra.mxu0 %v970
        %980 = vmatpush.bf16.msra.mxu0 %v969
        %981 = vmatpush.bf16.msra.mxu0 %v968
        %982 = vmatpush.bf16.msra.mxu0 %v967
        %983 = vmatpush.bf16.msra.mxu0 %v966
        %984 = vmatpush.bf16.msra.mxu0 %v965
        %985 = vmatpush.bf16.msra.mxu0 %v964
        %986 = vmatpush.bf16.msra.mxu0 %v963
        %987 = vmatmul.bf16.gmra.mxu0 %v923
        %v988 = vpop.f32.mrf.mxu0
        %v989 = vadd.f32 0.0, %v988
        %v990 = vpop.f32.mrf.mxu0
        %v991 = vadd.f32 0.0, %v990
        %992 = vmatmul.bf16.gmra.mxu0 %v924
        %v993 = vpop.f32.mrf.mxu0
        %v994 = vadd.f32 0.0, %v993
        %v995 = vpop.f32.mrf.mxu0
        %v996 = vadd.f32 0.0, %v995
        %997 = vmatmul.bf16.gmra.mxu0 %v925
        %v998 = vpop.f32.mrf.mxu0
        %v999 = vadd.f32 0.0, %v998
        %v1000 = vpop.f32.mrf.mxu0
        %v1001 = vadd.f32 0.0, %v1000
        %1002 = vmatmul.bf16.gmra.mxu0 %v926
        %v1003 = vpop.f32.mrf.mxu0
        %v1004 = vadd.f32 0.0, %v1003
        %v1005 = vpop.f32.mrf.mxu0
        %v1006 = vadd.f32 0.0, %v1005
        %1007 = vmatmul.bf16.gmra.mxu0 %v927
        %v1008 = vpop.f32.mrf.mxu0
        %v1009 = vadd.f32 0.0, %v1008
        %v1010 = vpop.f32.mrf.mxu0
        %v1011 = vadd.f32 0.0, %v1010
        %1012 = vmatmul.bf16.gmra.mxu0 %v928
        %v1013 = vpop.f32.mrf.mxu0
        %v1014 = vadd.f32 0.0, %v1013
        %v1015 = vpop.f32.mrf.mxu0
        %v1016 = vadd.f32 0.0, %v1015
        %1017 = vmatmul.bf16.gmra.mxu0 %v929
        %v1018 = vpop.f32.mrf.mxu0
        %v1019 = vadd.f32 0.0, %v1018
        %v1020 = vpop.f32.mrf.mxu0
        %v1021 = vadd.f32 0.0, %v1020
        %1022 = vmatmul.bf16.gmra.mxu0 %v930
        %v1023 = vpop.f32.mrf.mxu0
        %v1024 = vadd.f32 0.0, %v1023
        %v1025 = vpop.f32.mrf.mxu0
        %v1026 = vadd.f32 0.0, %v1025
        %1027 = vdwg.mxu0
        %1029 = vset.pattern.permute.xlu0 0
        %1030 = vperm.xlu0 %1029, %v892
        %v1031 = vpop.permute.xlu0 %1030
        %1034 = vset.pattern.permute.xlu0 0
        %1035 = vperm.xlu0 %1034, %v894
        %v1036 = vpop.permute.xlu0 %1035
        %1039 = vset.pattern.permute.xlu0 0
        %1040 = vperm.xlu0 %1039, %v896
        %v1041 = vpop.permute.xlu0 %1040
        %1044 = vset.pattern.permute.xlu0 0
        %1045 = vperm.xlu0 %1044, %v898
        %v1046 = vpop.permute.xlu0 %1045
        %1049 = vset.pattern.permute.xlu0 0
        %1050 = vperm.xlu0 %1049, %v900
        %v1051 = vpop.permute.xlu0 %1050
        %1054 = vset.pattern.permute.xlu0 0
        %1055 = vperm.xlu0 %1054, %v902
        %v1056 = vpop.permute.xlu0 %1055
        %1059 = vset.pattern.permute.xlu0 0
        %1060 = vperm.xlu0 %1059, %v904
        %v1061 = vpop.permute.xlu0 %1060
        %1064 = vset.pattern.permute.xlu0 0
        %1065 = vperm.xlu0 %1064, %v906
        %v1066 = vpop.permute.xlu0 %1065
        %1069 = vset.pattern.permute.xlu0 0
        %1070 = vperm.xlu0 %1069, %v908
        %v1071 = vpop.permute.xlu0 %1070
        %1074 = vset.pattern.permute.xlu0 0
        %1075 = vperm.xlu0 %1074, %v910
        %v1076 = vpop.permute.xlu0 %1075
        %1079 = vset.pattern.permute.xlu0 0
        %1080 = vperm.xlu0 %1079, %v912
        %v1081 = vpop.permute.xlu0 %1080
        %1084 = vset.pattern.permute.xlu0 0
        %1085 = vperm.xlu0 %1084, %v914
        %v1086 = vpop.permute.xlu0 %1085
        %1089 = vset.pattern.permute.xlu0 0
        %1090 = vperm.xlu0 %1089, %v916
        %v1091 = vpop.permute.xlu0 %1090
        %1094 = vset.pattern.permute.xlu0 0
        %1095 = vperm.xlu0 %1094, %v918
        %v1096 = vpop.permute.xlu0 %1095
        %1099 = vset.pattern.permute.xlu0 0
        %1100 = vperm.xlu0 %1099, %v920
        %v1101 = vpop.permute.xlu0 %1100
        %1104 = vset.pattern.permute.xlu0 0
        %1105 = vperm.xlu0 %1104, %v922
        %v1106 = vpop.permute.xlu0 %1105
        %v1108 = vmul.f32 %v1031, %v504
        %v1109 = vmul.f32 %v1036, %v505
        %v1110 = vmul.f32 %v1041, %v506
        %v1111 = vmul.f32 %v1046, %v507
        %v1112 = vmul.f32 %v1051, %v508
        %v1113 = vmul.f32 %v1056, %v509
        %v1114 = vmul.f32 %v1061, %v510
        %v1115 = vmul.f32 %v1066, %v511
        %v1116 = vmul.f32 %v1071, %v512
        %v1117 = vmul.f32 %v1076, %v513
        %v1118 = vmul.f32 %v1081, %v514
        %v1119 = vmul.f32 %v1086, %v515
        %v1120 = vmul.f32 %v1091, %v516
        %v1121 = vmul.f32 %v1096, %v517
        %v1122 = vmul.f32 %v1101, %v518
        %v1123 = vmul.f32 %v1106, %v519
        %v1124 = vadd.f32 %v1108, %v989
        %v1125 = vadd.f32 %v1109, %v991
        %v1126 = vadd.f32 %v1110, %v994
        %v1127 = vadd.f32 %v1111, %v996
        %v1128 = vadd.f32 %v1112, %v999
        %v1129 = vadd.f32 %v1113, %v1001
        %v1130 = vadd.f32 %v1114, %v1004
        %v1131 = vadd.f32 %v1115, %v1006
        %v1132 = vadd.f32 %v1116, %v1009
        %v1133 = vadd.f32 %v1117, %v1011
        %v1134 = vadd.f32 %v1118, %v1014
        %v1135 = vadd.f32 %v1119, %v1016
        %v1136 = vadd.f32 %v1120, %v1019
        %v1137 = vadd.f32 %v1121, %v1021
        %v1138 = vadd.f32 %v1122, %v1024
        %v1139 = vadd.f32 %v1123, %v1026
        %vm1140 = vcmask 7168
        %1141 = vst.msk [vmem:[#allocation2] sm:$0xff] %vm1140, %v715
        %1142 = vst.msk [vmem:[#allocation2 + $0x8] sm:$0xff] %vm1140, %v716
        %1143 = vst.msk [vmem:[#allocation2 + $0x10] sm:$0xff] %vm1140, %v717
        %1144 = vst.msk [vmem:[#allocation2 + $0x18] sm:$0xff] %vm1140, %v718
        %1145 = vst.msk [vmem:[#allocation2 + $0x20] sm:$0xff] %vm1140, %v719
        %1146 = vst.msk [vmem:[#allocation2 + $0x28] sm:$0xff] %vm1140, %v720
        %1147 = vst.msk [vmem:[#allocation2 + $0x30] sm:$0xff] %vm1140, %v721
        %1148 = vst.msk [vmem:[#allocation2 + $0x38] sm:$0xff] %vm1140, %v722
        %1149 = vst.msk [vmem:[#allocation2 + $0x40] sm:$0xff] %vm1140, %v723
        %1150 = vst.msk [vmem:[#allocation2 + $0x48] sm:$0xff] %vm1140, %v724
        %1151 = vst.msk [vmem:[#allocation2 + $0x50] sm:$0xff] %vm1140, %v725
        %1152 = vst.msk [vmem:[#allocation2 + $0x58] sm:$0xff] %vm1140, %v726
        %1153 = vst.msk [vmem:[#allocation2 + $0x60] sm:$0xff] %vm1140, %v727
        %1154 = vst.msk [vmem:[#allocation2 + $0x68] sm:$0xff] %vm1140, %v728
        %1155 = vst.msk [vmem:[#allocation2 + $0x70] sm:$0xff] %vm1140, %v729
        %1156 = vst.msk [vmem:[#allocation2 + $0x78] sm:$0xff] %vm1140, %v730
        %vm1157 = vcmask 72704
        %1158 = vst.msk [vmem:[#allocation3] sm:$0xff] %vm1157, %v1124
        %1159 = vst.msk [vmem:[#allocation3 + $0x8] sm:$0xff] %vm1157, %v1125
        %1160 = vst.msk [vmem:[#allocation3 + $0x10] sm:$0xff] %vm1157, %v1126
        %1161 = vst.msk [vmem:[#allocation3 + $0x18] sm:$0xff] %vm1157, %v1127
        %1162 = vst.msk [vmem:[#allocation3 + $0x20] sm:$0xff] %vm1157, %v1128
        %1163 = vst.msk [vmem:[#allocation3 + $0x28] sm:$0xff] %vm1157, %v1129
        %1164 = vst.msk [vmem:[#allocation3 + $0x30] sm:$0xff] %vm1157, %v1130
        %1165 = vst.msk [vmem:[#allocation3 + $0x38] sm:$0xff] %vm1157, %v1131
        %1166 = vst.msk [vmem:[#allocation3 + $0x40] sm:$0xff] %vm1157, %v1132
        %1167 = vst.msk [vmem:[#allocation3 + $0x48] sm:$0xff] %vm1157, %v1133
        %1168 = vst.msk [vmem:[#allocation3 + $0x50] sm:$0xff] %vm1157, %v1134
        %1169 = vst.msk [vmem:[#allocation3 + $0x58] sm:$0xff] %vm1157, %v1135
        %1170 = vst.msk [vmem:[#allocation3 + $0x60] sm:$0xff] %vm1157, %v1136
        %1171 = vst.msk [vmem:[#allocation3 + $0x68] sm:$0xff] %vm1157, %v1137
        %1172 = vst.msk [vmem:[#allocation3 + $0x70] sm:$0xff] %vm1157, %v1138
        %1173 = vst.msk [vmem:[#allocation3 + $0x78] sm:$0xff] %vm1157, %v1139
        %p1174 = scmp.eq.s32.totalorder %s21, 1
        // Predicated region
        $region83: #{gat_forward.11} parent=73 // pred_check
          %p1175 = pneg %p1174
        $region84: #{gat_forward.11} parent=73 // pred_check_branch
          %1177 = sbr.rel (%p1175) target = $region86
        $region85: #{gat_forward.11} parent=73 // pred_region
          %v1178 = vld [vmem:[#allocation3] sm:$0xff]
          %v1179 = vld [vmem:[#allocation3 + $0x8] sm:$0xff]
          %v1180 = vld [vmem:[#allocation3 + $0x10] sm:$0xff]
          %v1181 = vld [vmem:[#allocation3 + $0x18] sm:$0xff]
          %v1182 = vld [vmem:[#allocation3 + $0x20] sm:$0xff]
          %v1183 = vld [vmem:[#allocation3 + $0x28] sm:$0xff]
          %v1184 = vld [vmem:[#allocation3 + $0x30] sm:$0xff]
          %v1185 = vld [vmem:[#allocation3 + $0x38] sm:$0xff]
          %v1186 = vld [vmem:[#allocation3 + $0x40] sm:$0xff]
          %v1187 = vld [vmem:[#allocation3 + $0x48] sm:$0xff]
          %v1188 = vld [vmem:[#allocation3 + $0x50] sm:$0xff]
          %v1189 = vld [vmem:[#allocation3 + $0x58] sm:$0xff]
          %v1190 = vld [vmem:[#allocation3 + $0x60] sm:$0xff]
          %v1191 = vld [vmem:[#allocation3 + $0x68] sm:$0xff]
          %v1192 = vld [vmem:[#allocation3 + $0x70] sm:$0xff]
          %v1193 = vld [vmem:[#allocation3 + $0x78] sm:$0xff]
          %v1194 = vrcp.pop %v1178
          %v1195 = vrcp.pop %v1179
          %v1196 = vrcp.pop %v1180
          %v1197 = vrcp.pop %v1181
          %v1198 = vrcp.pop %v1182
          %v1199 = vrcp.pop %v1183
          %v1200 = vrcp.pop %v1184
          %v1201 = vrcp.pop %v1185
          %v1202 = vrcp.pop %v1186
          %v1203 = vrcp.pop %v1187
          %v1204 = vrcp.pop %v1188
          %v1205 = vrcp.pop %v1189
          %v1206 = vrcp.pop %v1190
          %v1207 = vrcp.pop %v1191
          %v1208 = vrcp.pop %v1192
          %v1209 = vrcp.pop %v1193
          %1211 = vset.pattern.permute.xlu0 8
          %1212 = vperm.xlu0 %1211, %v1194
          %v1213 = vpop.permute.xlu0 %1212
          %1216 = vset.pattern.permute.xlu0 8
          %1217 = vperm.xlu0 %1216, %v1195
          %v1218 = vpop.permute.xlu0 %1217
          %1221 = vset.pattern.permute.xlu0 8
          %1222 = vperm.xlu0 %1221, %v1196
          %v1223 = vpop.permute.xlu0 %1222
          %1226 = vset.pattern.permute.xlu0 8
          %1227 = vperm.xlu0 %1226, %v1197
          %v1228 = vpop.permute.xlu0 %1227
          %1231 = vset.pattern.permute.xlu0 8
          %1232 = vperm.xlu0 %1231, %v1198
          %v1233 = vpop.permute.xlu0 %1232
          %1236 = vset.pattern.permute.xlu0 8
          %1237 = vperm.xlu0 %1236, %v1199
          %v1238 = vpop.permute.xlu0 %1237
          %1241 = vset.pattern.permute.xlu0 8
          %1242 = vperm.xlu0 %1241, %v1200
          %v1243 = vpop.permute.xlu0 %1242
          %1246 = vset.pattern.permute.xlu0 8
          %1247 = vperm.xlu0 %1246, %v1201
          %v1248 = vpop.permute.xlu0 %1247
          %1251 = vset.pattern.permute.xlu0 8
          %1252 = vperm.xlu0 %1251, %v1202
          %v1253 = vpop.permute.xlu0 %1252
          %1256 = vset.pattern.permute.xlu0 8
          %1257 = vperm.xlu0 %1256, %v1203
          %v1258 = vpop.permute.xlu0 %1257
          %1261 = vset.pattern.permute.xlu0 8
          %1262 = vperm.xlu0 %1261, %v1204
          %v1263 = vpop.permute.xlu0 %1262
          %1266 = vset.pattern.permute.xlu0 8
          %1267 = vperm.xlu0 %1266, %v1205
          %v1268 = vpop.permute.xlu0 %1267
          %1271 = vset.pattern.permute.xlu0 8
          %1272 = vperm.xlu0 %1271, %v1206
          %v1273 = vpop.permute.xlu0 %1272
          %1276 = vset.pattern.permute.xlu0 8
          %1277 = vperm.xlu0 %1276, %v1207
          %v1278 = vpop.permute.xlu0 %1277
          %1281 = vset.pattern.permute.xlu0 8
          %1282 = vperm.xlu0 %1281, %v1208
          %v1283 = vpop.permute.xlu0 %1282
          %1286 = vset.pattern.permute.xlu0 8
          %1287 = vperm.xlu0 %1286, %v1209
          %v1288 = vpop.permute.xlu0 %1287
          %v1290 = vmul.f32 %v1178, %v1213
          %v1291 = vmul.f32 %v1179, %v1218
          %v1292 = vmul.f32 %v1180, %v1223
          %v1293 = vmul.f32 %v1181, %v1228
          %v1294 = vmul.f32 %v1182, %v1233
          %v1295 = vmul.f32 %v1183, %v1238
          %v1296 = vmul.f32 %v1184, %v1243
          %v1297 = vmul.f32 %v1185, %v1248
          %v1298 = vmul.f32 %v1186, %v1253
          %v1299 = vmul.f32 %v1187, %v1258
          %v1300 = vmul.f32 %v1188, %v1263
          %v1301 = vmul.f32 %v1189, %v1268
          %v1302 = vmul.f32 %v1190, %v1273
          %v1303 = vmul.f32 %v1191, %v1278
          %v1304 = vmul.f32 %v1192, %v1283
          %v1305 = vmul.f32 %v1193, %v1288
          %vm1306 = vcmask 64512
          %v1307 = vsel %vm1306, %v1290, 0.0
          %v1308 = vsel %vm1306, %v1291, 0.0
          %v1309 = vsel %vm1306, %v1292, 0.0
          %v1310 = vsel %vm1306, %v1293, 0.0
          %v1311 = vsel %vm1306, %v1294, 0.0
          %v1312 = vsel %vm1306, %v1295, 0.0
          %v1313 = vsel %vm1306, %v1296, 0.0
          %v1314 = vsel %vm1306, %v1297, 0.0
          %v1315 = vsel %vm1306, %v1298, 0.0
          %v1316 = vsel %vm1306, %v1299, 0.0
          %v1317 = vsel %vm1306, %v1300, 0.0
          %v1318 = vsel %vm1306, %v1301, 0.0
          %v1319 = vsel %vm1306, %v1302, 0.0
          %v1320 = vsel %vm1306, %v1303, 0.0
          %v1321 = vsel %vm1306, %v1304, 0.0
          %v1322 = vsel %vm1306, %v1305, 0.0
          %v1323 = vld [vmem:[%s3] sm:$0x1]
          %v1325 = vperm.slane %v1323, 0
          %v1327 = vadd.f32 %v1307, %v1325
          %v1328 = vadd.f32 %v1308, %v1325
          %v1329 = vadd.f32 %v1309, %v1325
          %v1330 = vadd.f32 %v1310, %v1325
          %v1331 = vadd.f32 %v1311, %v1325
          %v1332 = vadd.f32 %v1312, %v1325
          %v1333 = vadd.f32 %v1313, %v1325
          %v1334 = vadd.f32 %v1314, %v1325
          %v1335 = vadd.f32 %v1315, %v1325
          %v1336 = vadd.f32 %v1316, %v1325
          %v1337 = vadd.f32 %v1317, %v1325
          %v1338 = vadd.f32 %v1318, %v1325
          %v1339 = vadd.f32 %v1319, %v1325
          %v1340 = vadd.f32 %v1320, %v1325
          %v1341 = vadd.f32 %v1321, %v1325
          %v1342 = vadd.f32 %v1322, %v1325
          %1343 = vst [vmem:[%s347] sm:$0xff] %v1327
          %1344 = vst [vmem:[%s347 + $0x8] sm:$0xff] %v1328
          %1345 = vst [vmem:[%s347 + $0x10] sm:$0xff] %v1329
          %1346 = vst [vmem:[%s347 + $0x18] sm:$0xff] %v1330
          %1347 = vst [vmem:[%s347 + $0x20] sm:$0xff] %v1331
          %1348 = vst [vmem:[%s347 + $0x28] sm:$0xff] %v1332
          %1349 = vst [vmem:[%s347 + $0x30] sm:$0xff] %v1333
          %1350 = vst [vmem:[%s347 + $0x38] sm:$0xff] %v1334
          %1351 = vst [vmem:[%s347 + $0x40] sm:$0xff] %v1335
          %1352 = vst [vmem:[%s347 + $0x48] sm:$0xff] %v1336
          %1353 = vst [vmem:[%s347 + $0x50] sm:$0xff] %v1337
          %1354 = vst [vmem:[%s347 + $0x58] sm:$0xff] %v1338
          %1355 = vst [vmem:[%s347 + $0x60] sm:$0xff] %v1339
          %1356 = vst [vmem:[%s347 + $0x68] sm:$0xff] %v1340
          %1357 = vst [vmem:[%s347 + $0x70] sm:$0xff] %v1341
          %1358 = vst [vmem:[%s347 + $0x78] sm:$0xff] %v1342
        $region86: #{gat_forward.11} parent=73 // pred_fallthru
          _
        %s1359 = smul.u32 16, %s20
        %p1360 = scmp.lt.s32.totalorder %s1359, 31
        %s1361 = scalar_select %p1360, %s1359, 31
        %s1362 = smul.addr %s1361, 8
        %s1363 = scalar_lea.vmem %s5, %s1362
        // Predicated region
        $region87: #{gat_forward.11} parent=73 // pred_check
          %p1364 = pneg %p173
        $region88: #{gat_forward.11} parent=73 // pred_check_branch
          %1366 = sbr.rel (%p1364) target = $region90
        $region89: #{gat_forward.11} parent=73 // pred_region
          %s1367 = smul.u32 16, %s20
        $region90: #{gat_forward.11} parent=73 // pred_fallthru
          _
      $region74: #{gat_forward.11} parent=5 // pred_fallthru
        _
      %p1368 = scmp.le.s32.totalorder 2, %s11
      // Predicated region
      $region91: #{gat_forward.11} parent=5 // pred_check
        %p1369 = pneg %p1368
      $region92: #{gat_forward.11} parent=5 // pred_check_branch
        %1371 = sbr.rel (%p1369) target = $region94
      $region93: #{gat_forward.11} parent=5 // pred_region
        %s1372 = ssub.s32 %s11, 2
        // Predicated region
        $region95: #{gat_forward.11} parent=93 // pred_check
          %p1373 = pneg %p179
        $region96: #{gat_forward.11} parent=93 // pred_check_branch
          %1375 = sbr.rel (%p1373) target = $region98
        $region97: #{gat_forward.11} parent=93 // pred_region
          %s1376 = smul.u32 16, %s22
          %p1377 = scmp.lt.s32.totalorder %s1376, 31
          %s1378 = scalar_select %p1377, %s1376, 31
          %s1379 = smul.addr %s1378, 8
          %s1380 = scalar_lea.vmem %s5, %s1379
        $region98: #{gat_forward.11} parent=93 // pred_fallthru
          _
      $region94: #{gat_forward.11} parent=5 // pred_fallthru
        _
    $region6: #{gat_forward.11} parent=1 // loop_footer
      %s15 = sadd.s32 1, %s11
    $region7: #{gat_forward.11} parent=1 // loop_footer_branch
      %10 = sbr.rel target = $region3
    $region8: #{gat_forward.11} parent=1 // loop_exit
      _

</llo_original>
